<compile_context>
chip_gen: v5e
topology: v5e:2x2
jax: 0.10.0
libtpu: 0.0.40
codegen_flags: <defaults>
</compile_context>

<pallas_src>
import functools
from math import prod

import jax
import jax.numpy as jnp
from jax import lax
from jax.experimental import pallas as pl
from jax.experimental.pallas import tpu as pltpu


ACT_DTYPE = jnp.bfloat16      # inter-layer activation dtype (f32 math in-kernel)


# ---------------------------------------------------------------------------
# Pallas kernel 1: tiled matmul (MXU, bf16 operands, f32 accumulator) with the
# bias add fused into the K-reduction epilogue.  Used for the fc layer.
# ---------------------------------------------------------------------------
def _matmul_bias_kernel(a_ref, b_ref, bias_ref, o_ref, acc_ref):
    @pl.when(pl.program_id(2) == 0)
    def _():
        acc_ref[...] = jnp.zeros_like(acc_ref)

    acc_ref[...] += jnp.dot(a_ref[...], b_ref[...],
                            preferred_element_type=jnp.float32)

    @pl.when(pl.program_id(2) == pl.num_programs(2) - 1)
    def _():
        o_ref[...] = (acc_ref[...] + bias_ref[...]).astype(o_ref.dtype)


def _pick_block(dim, candidates):
    """Largest candidate that evenly divides `dim`; otherwise the full extent
    (a full-extent block is always a legal Pallas block shape -> no padding)."""
    for c in candidates:
        if dim >= c and dim % c == 0:
            return c
    return dim


def pallas_matmul(a, b, bias=None, bias_axis=None, out_dtype=jnp.float32):
    """(M, K) @ (K, N) [+ bias] on the MXU, bf16 operands / f32 accumulation."""
    M, K = a.shape
    K2, N = b.shape
    assert K == K2
    a = a.astype(jnp.bfloat16)
    b = b.astype(jnp.bfloat16)

    bm = _pick_block(M, (256, 128, 64, 32, 16, 8))
    bn = _pick_block(N, (512, 256, 128))
    bk = _pick_block(K, (512, 256, 128))
    grid = (M // bm, N // bn, K // bk)

    if bias is None:
        bias_arr = jnp.zeros((1, 1), jnp.float32)
        bias_spec = pl.BlockSpec((1, 1), lambda i, j, k: (0, 0))
    elif bias_axis == "row":
        bias_arr = bias.astype(jnp.float32).reshape(M, 1)
        bias_spec = pl.BlockSpec((bm, 1), lambda i, j, k: (i, 0))
    elif bias_axis == "col":
        bias_arr = bias.astype(jnp.float32).reshape(1, N)
        bias_spec = pl.BlockSpec((1, bn), lambda i, j, k: (0, j))
    else:
        raise ValueError("bias_axis must be 'row' or 'col' when bias is given")

    return pl.pallas_call(
        _matmul_bias_kernel,
        out_shape=jax.ShapeDtypeStruct((M, N), out_dtype),
        grid_spec=pltpu.PrefetchScalarGridSpec(
            num_scalar_prefetch=0,
            grid=grid,
            in_specs=[
                pl.BlockSpec((bm, bk), lambda i, j, k: (i, k)),
                pl.BlockSpec((bk, bn), lambda i, j, k: (k, j)),
                bias_spec,
            ],
            out_specs=pl.BlockSpec((bm, bn), lambda i, j, k: (i, j)),
            scratch_shapes=[pltpu.VMEM((bm, bn), jnp.float32)],
        ),
        compiler_params=pltpu.CompilerParams(
            dimension_semantics=("parallel", "parallel", "arbitrary")),
    )(a, b, bias_arr)


# ---------------------------------------------------------------------------
# Pallas kernel 2: direct convolution.  One grid step = one batch image.
# The input block is the padded image flattened to (Cin, Hp*Wp); each kernel
# tap is a static lane-offset slice fed to a (Cout,Cin)@(Cin,L) matmul, so no
# patch tensor ever touches HBM.  Bias is fused; output is written row-wise
# into a clean (Cout, Ho, Wo) block (the padded-width junk columns never leave
# the accumulator).
# ---------------------------------------------------------------------------
def _conv_taps_kernel(x_ref, w_ref, b_ref, o_ref, *, taps, wp, has_bias):
    # x_ref: (Cin, Hp*Wp) bf16 | w_ref: (T, Cout, Cin) bf16
    # b_ref: (Cout, 1) f32     | o_ref: (Cout, Ho, Wo)
    cout, ho, wo = o_ref.shape
    L = (ho - 1) * wp + wo                       # last valid flat index + 1
    acc = jnp.zeros((cout, L), jnp.float32)
    for t, off in enumerate(taps):               # static unrolled tap loop
        acc = acc + jnp.dot(w_ref[t], x_ref[:, off:off + L],
                            preferred_element_type=jnp.float32)
    if has_bias:
        acc = acc + b_ref[...]
    acc = acc.astype(o_ref.dtype)
    for h in range(ho):                          # drop the inter-row junk cols
        o_ref[:, h, :] = acc[:, h * wp:h * wp + wo]


def conv_taps(x, wtaps, *, kh, kw, pad, bias=None, out_dtype=ACT_DTYPE):
    """NCHW conv with per-tap weights wtaps: (kh*kw, Cout, Cin), stride 1."""
    B, Cin, H, W = x.shape
    T, Cout, Cin2 = wtaps.shape
    assert Cin2 == Cin and T == kh * kw
    (ph0, ph1), (pw0, pw1) = pad
    Hp, Wp = H + ph0 + ph1, W + pw0 + pw1
    Ho, Wo = Hp - kh + 1, Wp - kw + 1

    xflat = jnp.pad(x.astype(ACT_DTYPE),
                    ((0, 0), (0, 0), (ph0, ph1), (pw0, pw1))
                    ).reshape(B, Cin, Hp * Wp)
    taps = tuple(dy * Wp + dx for dy in range(kh) for dx in range(kw))

    if bias is None:
        bias_arr = jnp.zeros((Cout, 1), jnp.float32)
    else:
        bias_arr = bias.astype(jnp.float32).reshape(Cout, 1)

    kernel = functools.partial(_conv_taps_kernel, taps=taps, wp=Wp,
                               has_bias=bias is not None)
    return pl.pallas_call(
        kernel,
        out_shape=jax.ShapeDtypeStruct((B, Cout, Ho, Wo), out_dtype),
        grid_spec=pltpu.PrefetchScalarGridSpec(
            num_scalar_prefetch=0,
            grid=(B,),
            in_specs=[
                pl.BlockSpec((None, Cin, Hp * Wp), lambda b: (b, 0, 0)),
                pl.BlockSpec((T, Cout, Cin), lambda b: (0, 0, 0)),
                pl.BlockSpec((Cout, 1), lambda b: (0, 0)),
            ],
            out_specs=pl.BlockSpec((None, Cout, Ho, Wo), lambda b: (b, 0, 0, 0)),
        ),
        compiler_params=pltpu.CompilerParams(
            dimension_semantics=("parallel",)),
    )(xflat, wtaps.astype(jnp.bfloat16), bias_arr)


# ---------------------------------------------------------------------------
# Pallas kernel 3: fused GroupNorm + ELU (+ optional residual add).
# One grid step = one (batch, group) block (Cg, H*W); two-pass statistics.
# ---------------------------------------------------------------------------
def _gn_elu_body(x, res, g, b, eps):
    # x: (Cg, HW) f32, g/b: (Cg, 1) f32
    n = float(x.shape[0] * x.shape[1])
    mean = jnp.sum(jnp.sum(x, axis=1, keepdims=True), axis=0, keepdims=True) / n
    xc = x - mean
    var = jnp.sum(jnp.sum(xc * xc, axis=1, keepdims=True),
                  axis=0, keepdims=True) / n
    y = xc * lax.rsqrt(var + eps) * g + b
    # ELU(alpha=1).  where() evaluates both branches -> clamp the exp argument.
    # TODO(synk): expm1 would be marginally tighter near 0 (negligible at bf16).
    y = jnp.where(y > 0.0, y, jnp.exp(jnp.minimum(y, 0.0)) - 1.0)
    if res is not None:
        y = y + res
    return y


def _gn_elu_kernel(x_ref, g_ref, b_ref, o_ref, *, eps):
    o_ref[...] = _gn_elu_body(x_ref[...].astype(jnp.float32), None,
                              g_ref[...], b_ref[...], eps).astype(o_ref.dtype)


def _gn_elu_res_kernel(x_ref, r_ref, g_ref, b_ref, o_ref, *, eps):
    o_ref[...] = _gn_elu_body(x_ref[...].astype(jnp.float32),
                              r_ref[...].astype(jnp.float32),
                              g_ref[...], b_ref[...], eps).astype(o_ref.dtype)


def groupnorm_elu(x, gamma, beta, residual=None, eps=1e-5):
    """nn.GroupNorm(min(32, max(1, C//4)), C) + nn.ELU, optionally fused with a
    residual add (out = elu(gn(x)) + residual).  x: (B, C, H, W)."""
    B, C, H, W = x.shape
    G = min(32, max(1, C // 4))
    Cg = C // G
    HW = H * W

    xr = x.reshape(B, G, Cg, HW)
    g = gamma.astype(jnp.float32).reshape(G, Cg, 1)
    bt = beta.astype(jnp.float32).reshape(G, Cg, 1)

    x_spec = pl.BlockSpec((None, None, Cg, HW), lambda b, gi: (b, gi, 0, 0))
    p_spec = pl.BlockSpec((None, Cg, 1), lambda b, gi: (gi, 0, 0))

    if residual is None:
        kernel = functools.partial(_gn_elu_kernel, eps=eps)
        in_specs = [x_spec, p_spec, p_spec]
        args = (xr, g, bt)
    else:
        kernel = functools.partial(_gn_elu_res_kernel, eps=eps)
        in_specs = [x_spec, x_spec, p_spec, p_spec]
        args = (xr, residual.astype(ACT_DTYPE).reshape(B, G, Cg, HW), g, bt)

    out = pl.pallas_call(
        kernel,
        out_shape=jax.ShapeDtypeStruct((B, G, Cg, HW), ACT_DTYPE),
        grid_spec=pltpu.PrefetchScalarGridSpec(
            num_scalar_prefetch=0,
            grid=(B, G),
            in_specs=in_specs,
            out_specs=x_spec,
        ),
        compiler_params=pltpu.CompilerParams(
            dimension_semantics=("parallel", "parallel")),
    )(*args)
    return out.reshape(B, C, H, W)


# ---------------------------------------------------------------------------
# Weight folding (done ONCE at init time)
# ---------------------------------------------------------------------------
def _conv_w_to_taps(w):
    """PyTorch Conv2d weight (Cout, Cin, kh, kw) -> per-tap (kh*kw, Cout, Cin)."""
    cout, cin, kh, kw = w.shape
    return jnp.transpose(w, (2, 3, 0, 1)).reshape(kh * kw, cout, cin) \
              .astype(jnp.bfloat16)


def _convtranspose_s2_to_taps(w):
    """ConvTranspose2d(k=3, s=2, p=1) weight (Cin, Cout, 3, 3) -> sub-pixel form:
    a 2x2 stride-1 conv producing 4*Cout parity channels, taps (4, 4*Cout, Cin).
    Output pixel (2m+r) reads x[m+t] with kernel index k = 1 + r - 2t (t <= r)."""
    cin, cout = w.shape[0], w.shape[1]
    wc = jnp.zeros((4, 4 * cout, cin), jnp.float32)
    for ry in (0, 1):
        for rx in (0, 1):
            p0 = (ry * 2 + rx) * cout
            for ty in range(ry + 1):
                for tx in range(rx + 1):
                    ky, kx = 1 + ry - 2 * ty, 1 + rx - 2 * tx
                    wc = wc.at[ty * 2 + tx, p0:p0 + cout, :].set(w[:, :, ky, kx].T)
    return wc.astype(jnp.bfloat16)


# ---------------------------------------------------------------------------
# Convolution glue
# ---------------------------------------------------------------------------
def conv_transpose2d_s2(x, wtaps4, output_padding):
    """ConvTranspose2d(kernel=3, stride=2, padding=1, output_padding, bias=False)
    as a 2x2 stride-1 conv to 4*Cout parity channels + depth-to-space.
    No zero-dilated input is materialized and no MACs touch inserted zeros."""
    B, Cin, H, W = x.shape
    cout = wtaps4.shape[1] // 4
    oph, opw = output_padding
    y4 = conv_taps(x, wtaps4, kh=2, kw=2, pad=((0, 1), (0, 1)))   # (B,4Cout,H,W)
    y = (y4.reshape(B, 2, 2, cout, H, W)
           .transpose(0, 3, 4, 1, 5, 2)
           .reshape(B, cout, 2 * H, 2 * W))
    return y[:, :, :2 * H - 1 + oph, :2 * W - 1 + opw]


def upsample2x_bilinear(x):
    """nn.Upsample(scale_factor=2, mode='bilinear', align_corners=False), exact
    (including edge clamping).  Plain-JAX glue; lerp in f32, result in bf16.
    TODO(synk): fold into the following conv as a sub-pixel conv (needs border
    corrections for the clamped samples)."""
    def up1d(a, axis):
        n = a.shape[axis]
        lo = jnp.concatenate([lax.slice_in_dim(a, 0, 1, axis=axis),
                              lax.slice_in_dim(a, 0, n - 1, axis=axis)], axis=axis)
        hi = jnp.concatenate([lax.slice_in_dim(a, 1, n, axis=axis),
                              lax.slice_in_dim(a, n - 1, n, axis=axis)], axis=axis)
        a32 = a.astype(jnp.float32)
        even = 0.25 * lo.astype(jnp.float32) + 0.75 * a32    # out[2k]
        odd = 0.75 * a32 + 0.25 * hi.astype(jnp.float32)     # out[2k+1]
        out = jnp.stack([even, odd], axis=axis + 1)
        shape = list(a.shape)
        shape[axis] = 2 * n
        return out.reshape(shape)

    return up1d(up1d(x, 2), 3).astype(ACT_DTYPE)


# ---------------------------------------------------------------------------
# Decoder parameters + forward
# ---------------------------------------------------------------------------
def init_decoder_params(key, out_channels, latent_dim, origin_shape, hidden_layers):
    ks = iter(jax.random.split(key, 64))
    p = {}
    flat = prod(origin_shape)
    p["fc_w"] = 0.05 * jax.random.normal(next(ks), (latent_dim, flat), jnp.float32)
    p["fc_b"] = 0.01 * jax.random.normal(next(ks), (flat,), jnp.float32)

    blocks = []
    nxt_list = hidden_layers[1:] + (hidden_layers[-1],)
    for i, (curr, nxt) in enumerate(zip(hidden_layers, nxt_list)):
        blk = {}
        # ConvBlock: Conv2d(curr, curr, 3, 1, 1, bias=False) + GN + ELU
        blk["conv_w"] = _conv_w_to_taps(
            0.1 * jax.random.normal(next(ks), (curr, curr, 3, 3), jnp.float32))
        blk["conv_gamma"] = jnp.ones((curr,), jnp.float32)
        blk["conv_beta"] = jnp.zeros((curr,), jnp.float32)
        # ConvTpBlock
        if i == 0:
            blk["convt_w"] = _convtranspose_s2_to_taps(
                0.1 * jax.random.normal(next(ks), (curr, nxt, 3, 3), jnp.float32))
        else:
            blk["convt_w"] = _conv_w_to_taps(
                0.1 * jax.random.normal(next(ks), (nxt, curr, 3, 3), jnp.float32))
        blk["convt_gamma"] = jnp.ones((nxt,), jnp.float32)
        blk["convt_beta"] = jnp.zeros((nxt,), jnp.float32)
        blocks.append(blk)
    p["blocks"] = blocks

    p["head_w"] = _conv_w_to_taps(
        0.1 * jax.random.normal(next(ks),
                                (out_channels, hidden_layers[-1], 3, 3),
                                jnp.float32))
    p["head_b"] = 0.01 * jax.random.normal(next(ks), (out_channels,), jnp.float32)
    return p


def decoder_forward(params, z, origin_shape, out_pad=(1, 1)):
    B = z.shape[0]
    C0, H0, W0 = origin_shape

    # fc (bias fused) -> NCHW feature map; activations stay bf16 from here on.
    x = pallas_matmul(z, params["fc_w"], bias=params["fc_b"], bias_axis="col",
                      out_dtype=ACT_DTYPE)
    x = x.reshape(B, C0, H0, W0)

    for i, blk in enumerate(params["blocks"]):
        # ConvBlock, residual (x) fused into the GN+ELU kernel: elu(gn(conv(x))) + x
        c = conv_taps(x, blk["conv_w"], kh=3, kw=3, pad=((1, 1), (1, 1)))
        h = groupnorm_elu(c, blk["conv_gamma"], blk["conv_beta"], residual=x)
        # ConvTpBlock
        if i == 0:
            t = conv_transpose2d_s2(h, blk["convt_w"], out_pad)
        else:
            t = conv_taps(upsample2x_bilinear(h), blk["convt_w"],
                          kh=3, kw=3, pad=((1, 1), (1, 1)))
        x = groupnorm_elu(t, blk["convt_gamma"], blk["convt_beta"])

    # head conv keeps an f32 output
    return conv_taps(x, params["head_w"], kh=3, kw=3, pad=((1, 1), (1, 1)),
                     bias=params["head_b"], out_dtype=jnp.float32)


# ---------------------------------------------------------------------------
if __name__ == "__main__":
    # Small config consistent with the module:
    #   latent_dim=32, origin_shape=(8, 4, 4), hidden_layers=(8, 8),
    #   out_channels=3, batch=2  ->  output (2, 3, 16, 16).
    out_channels = 3
    latent_dim = 32
    origin_shape = (8, 4, 4)
    hidden_layers = (8, 8)
    B = 2

    key = jax.random.PRNGKey(0)
    k_param, k_in = jax.random.split(key)
    params = init_decoder_params(k_param, out_channels, latent_dim,
                                 origin_shape, hidden_layers)
    z = jax.random.normal(k_in, (B, latent_dim), jnp.float32)

    fwd = jax.jit(decoder_forward, static_argnums=(2, 3))
    out = jax.block_until_ready(fwd(params, z, origin_shape, (1, 1)))
    assert out.shape == (B, out_channels, 16, 16), out.shape
    assert out.dtype == jnp.float32
    assert bool(jnp.all(jnp.isfinite(out)))
    print("KERNEL_OK")
</pallas_src>

<mosaic_0001>
module attributes {stable_mosaic.version = 11 : i64} {
  func.func @_matmul_bias_kernel(%arg0: i32, %arg1: i32, %arg2: i32, %arg3: memref<2x32xbf16, #tpu.memory_space<vmem>>, %arg4: memref<32x128xbf16, #tpu.memory_space<vmem>>, %arg5: memref<1x128xf32, #tpu.memory_space<vmem>>, %arg6: memref<2x128xbf16, #tpu.memory_space<vmem>>, %arg7: memref<2x128xf32, #tpu.memory_space<vmem>>) attributes {dimension_semantics = [#tpu.dimension_semantics<parallel>, #tpu.dimension_semantics<parallel>, #tpu.dimension_semantics<arbitrary>], iteration_bounds = array<i64: 1, 1, 1>, scalar_prefetch = 0 : i64, scratch_operands = 1 : i64, tpu.core_type = #tpu.core_type<tc>, window_params = [{transform_indices = @transform_0, window_bounds = array<i64: 2, 32>}, {transform_indices = @transform_1, window_bounds = array<i64: 32, 128>}, {transform_indices = @transform_2, window_bounds = array<i64: 1, 128>}, {transform_indices = @transform_3, window_bounds = array<i64: 2, 128>}]} {
    %c0_i32 = arith.constant 0 : i32
    %0 = arith.cmpi eq, %arg2, %c0_i32 : i32
    %1 = arith.extui %0 : i1 to i32
    %c0_i32_0 = arith.constant 0 : i32
    %2 = arith.cmpi ne, %1, %c0_i32_0 : i32
    scf.if %2 {
      %cst_10 = arith.constant 0.000000e+00 : f32
      %12 = vector.broadcast %cst_10 : f32 to vector<2x128xf32>
      %c0_11 = arith.constant 0 : index
      %c0_12 = arith.constant 0 : index
      %13 = vector.load %arg7[%c0_11, %c0_12] : memref<2x128xf32, #tpu.memory_space<vmem>>, vector<2x128xf32>
      tpu.vector_store %arg7[%c0_11, %c0_12], %12 {strides = array<i32>} : memref<2x128xf32, #tpu.memory_space<vmem>>, vector<2x128xf32>,
    } else {
    }
    %c0 = arith.constant 0 : index
    %c0_1 = arith.constant 0 : index
    %3 = vector.load %arg7[%c0, %c0_1] : memref<2x128xf32, #tpu.memory_space<vmem>>, vector<2x128xf32>
    %c0_2 = arith.constant 0 : index
    %c0_3 = arith.constant 0 : index
    %4 = vector.load %arg3[%c0_2, %c0_3] : memref<2x32xbf16, #tpu.memory_space<vmem>>, vector<2x32xbf16>
    %c0_4 = arith.constant 0 : index
    %c0_5 = arith.constant 0 : index
    %5 = vector.load %arg4[%c0_4, %c0_5] : memref<32x128xbf16, #tpu.memory_space<vmem>>, vector<32x128xbf16>
    %cst = arith.constant dense<0.000000e+00> : vector<2x128xf32>
    %6 = tpu.matmul %4, %5, %cst {dimension_numbers = #tpu.dot_dimension_numbers<[1], [0], [0], [1], [0, 0, 1, 1], [], []>} : vector<2x32xbf16>, vector<32x128xbf16>, vector<2x128xf32> -> vector<2x128xf32>
    %7 = arith.addf %3, %6 : vector<2x128xf32>
    %c0_6 = arith.constant 0 : index
    %c0_7 = arith.constant 0 : index
    %8 = vector.load %arg7[%c0_6, %c0_7] : memref<2x128xf32, #tpu.memory_space<vmem>>, vector<2x128xf32>
    tpu.vector_store %arg7[%c0_6, %c0_7], %7 {strides = array<i32>} : memref<2x128xf32, #tpu.memory_space<vmem>>, vector<2x128xf32>,
    %c0_i32_8 = arith.constant 0 : i32
    %9 = arith.cmpi eq, %arg2, %c0_i32_8 : i32
    %10 = arith.extui %9 : i1 to i32
    %c0_i32_9 = arith.constant 0 : i32
    %11 = arith.cmpi ne, %10, %c0_i32_9 : i32
    scf.if %11 {
      %c0_10 = arith.constant 0 : index
      %c0_11 = arith.constant 0 : index
      %12 = vector.load %arg7[%c0_10, %c0_11] : memref<2x128xf32, #tpu.memory_space<vmem>>, vector<2x128xf32>
      %c0_12 = arith.constant 0 : index
      %c0_13 = arith.constant 0 : index
      %13 = vector.load %arg5[%c0_12, %c0_13] : memref<1x128xf32, #tpu.memory_space<vmem>>, vector<1x128xf32>
      %14 = vector.broadcast %13 : vector<1x128xf32> to vector<2x128xf32>
      %15 = arith.addf %12, %14 : vector<2x128xf32>
      %16 = arith.truncf %15 : vector<2x128xf32> to vector<2x128xbf16>
      %c0_14 = arith.constant 0 : index
      %c0_15 = arith.constant 0 : index
      %17 = vector.load %arg6[%c0_14, %c0_15] : memref<2x128xbf16, #tpu.memory_space<vmem>>, vector<2x128xbf16>
      tpu.vector_store %arg6[%c0_14, %c0_15], %16 {strides = array<i32>} : memref<2x128xbf16, #tpu.memory_space<vmem>>, vector<2x128xbf16>,
    } else {
    }
    return
  }
  func.func @transform_0(%arg0: i32, %arg1: i32, %arg2: i32) -> (i32, i32) {
    %c0_i32 = arith.constant 0 : i32
    return %arg0, %arg2 : i32, i32
  }
  func.func @transform_1(%arg0: i32, %arg1: i32, %arg2: i32) -> (i32, i32) {
    %c0_i32 = arith.constant 0 : i32
    return %arg2, %arg1 : i32, i32
  }
  func.func @transform_2(%arg0: i32, %arg1: i32, %arg2: i32) -> (i32, i32) {
    %c0_i32 = arith.constant 0 : i32
    %c0_i32_0 = arith.constant 0 : i32
    return %c0_i32, %arg1 : i32, i32
  }
  func.func @transform_3(%arg0: i32, %arg1: i32, %arg2: i32) -> (i32, i32) {
    %c0_i32 = arith.constant 0 : i32
    return %arg0, %arg1 : i32, i32
  }
}

module attributes {stable_mosaic.version = 11 : i64} {
  func.func @_conv_taps_kernel(%arg0: i32, %arg1: memref<1x8x36xbf16, #tpu.memory_space<vmem>>, %arg2: memref<9x8x8xbf16, #tpu.memory_space<vmem>>, %arg3: memref<8x1xf32, #tpu.memory_space<vmem>>, %arg4: memref<1x8x4x4xbf16, #tpu.memory_space<vmem>>) attributes {dimension_semantics = [#tpu.dimension_semantics<parallel>], iteration_bounds = array<i64: 2>, scalar_prefetch = 0 : i64, scratch_operands = 0 : i64, tpu.core_type = #tpu.core_type<tc>, window_params = [{transform_indices = @transform_0, window_bounds = array<i64: 1, 8, 36>}, {pipeline_mode = #tpu.pipeline_mode<synchronous>, transform_indices = @transform_1, window_bounds = array<i64: 9, 8, 8>}, {pipeline_mode = #tpu.pipeline_mode<synchronous>, transform_indices = @transform_2, window_bounds = array<i64: 8, 1>}, {transform_indices = @transform_3, window_bounds = array<i64: 1, 8, 4, 4>}]} {
    %cst = arith.constant 0.000000e+00 : f32
    %0 = vector.broadcast %cst : f32 to vector<8x22xf32>
    %c0 = arith.constant 0 : index
    %c0_0 = arith.constant 0 : index
    %c0_1 = arith.constant 0 : index
    %1 = vector.load %arg2[%c0, %c0_0, %c0_1] : memref<9x8x8xbf16, #tpu.memory_space<vmem>>, vector<1x8x8xbf16>
    %2 = vector.shape_cast %1 : vector<1x8x8xbf16> to vector<8x8xbf16>
    %c0_2 = arith.constant 0 : index
    %c0_3 = arith.constant 0 : index
    %c0_4 = arith.constant 0 : index
    %3 = vector.load %arg1[%c0_2, %c0_3, %c0_4] : memref<1x8x36xbf16, #tpu.memory_space<vmem>>, vector<1x8x22xbf16>
    %4 = vector.shape_cast %3 : vector<1x8x22xbf16> to vector<8x22xbf16>
    %cst_5 = arith.constant dense<0.000000e+00> : vector<8x22xf32>
    %5 = tpu.matmul %2, %4, %cst_5 {dimension_numbers = #tpu.dot_dimension_numbers<[1], [0], [0], [1], [0, 0, 1, 1], [], []>} : vector<8x8xbf16>, vector<8x22xbf16>, vector<8x22xf32> -> vector<8x22xf32>
    %6 = arith.addf %0, %5 : vector<8x22xf32>
    %c1 = arith.constant 1 : index
    %c0_6 = arith.constant 0 : index
    %c0_7 = arith.constant 0 : index
    %7 = vector.load %arg2[%c1, %c0_6, %c0_7] : memref<9x8x8xbf16, #tpu.memory_space<vmem>>, vector<1x8x8xbf16>
    %8 = vector.shape_cast %7 : vector<1x8x8xbf16> to vector<8x8xbf16>
    %c0_8 = arith.constant 0 : index
    %c0_9 = arith.constant 0 : index
    %c1_10 = arith.constant 1 : index
    %9 = vector.load %arg1[%c0_8, %c0_9, %c1_10] : memref<1x8x36xbf16, #tpu.memory_space<vmem>>, vector<1x8x22xbf16>
    %10 = vector.shape_cast %9 : vector<1x8x22xbf16> to vector<8x22xbf16>
    %cst_11 = arith.constant dense<0.000000e+00> : vector<8x22xf32>
    %11 = tpu.matmul %8, %10, %cst_11 {dimension_numbers = #tpu.dot_dimension_numbers<[1], [0], [0], [1], [0, 0, 1, 1], [], []>} : vector<8x8xbf16>, vector<8x22xbf16>, vector<8x22xf32> -> vector<8x22xf32>
    %12 = arith.addf %6, %11 : vector<8x22xf32>
    %c2 = arith.constant 2 : index
    %c0_12 = arith.constant 0 : index
    %c0_13 = arith.constant 0 : index
    %13 = vector.load %arg2[%c2, %c0_12, %c0_13] : memref<9x8x8xbf16, #tpu.memory_space<vmem>>, vector<1x8x8xbf16>
    %14 = vector.shape_cast %13 : vector<1x8x8xbf16> to vector<8x8xbf16>
    %c0_14 = arith.constant 0 : index
    %c0_15 = arith.constant 0 : index
    %c2_16 = arith.constant 2 : index
    %15 = vector.load %arg1[%c0_14, %c0_15, %c2_16] : memref<1x8x36xbf16, #tpu.memory_space<vmem>>, vector<1x8x22xbf16>
    %16 = vector.shape_cast %15 : vector<1x8x22xbf16> to vector<8x22xbf16>
    %cst_17 = arith.constant dense<0.000000e+00> : vector<8x22xf32>
    %17 = tpu.matmul %14, %16, %cst_17 {dimension_numbers = #tpu.dot_dimension_numbers<[1], [0], [0], [1], [0, 0, 1, 1], [], []>} : vector<8x8xbf16>, vector<8x22xbf16>, vector<8x22xf32> -> vector<8x22xf32>
    %18 = arith.addf %12, %17 : vector<8x22xf32>
    %c3 = arith.constant 3 : index
    %c0_18 = arith.constant 0 : index
    %c0_19 = arith.constant 0 : index
    %19 = vector.load %arg2[%c3, %c0_18, %c0_19] : memref<9x8x8xbf16, #tpu.memory_space<vmem>>, vector<1x8x8xbf16>
    %20 = vector.shape_cast %19 : vector<1x8x8xbf16> to vector<8x8xbf16>
    %c0_20 = arith.constant 0 : index
    %c0_21 = arith.constant 0 : index
    %c6 = arith.constant 6 : index
    %21 = vector.load %arg1[%c0_20, %c0_21, %c6] : memref<1x8x36xbf16, #tpu.memory_space<vmem>>, vector<1x8x22xbf16>
    %22 = vector.shape_cast %21 : vector<1x8x22xbf16> to vector<8x22xbf16>
    %cst_22 = arith.constant dense<0.000000e+00> : vector<8x22xf32>
    %23 = tpu.matmul %20, %22, %cst_22 {dimension_numbers = #tpu.dot_dimension_numbers<[1], [0], [0], [1], [0, 0, 1, 1], [], []>} : vector<8x8xbf16>, vector<8x22xbf16>, vector<8x22xf32> -> vector<8x22xf32>
    %24 = arith.addf %18, %23 : vector<8x22xf32>
    %c4 = arith.constant 4 : index
    %c0_23 = arith.constant 0 : index
    %c0_24 = arith.constant 0 : index
    %25 = vector.load %arg2[%c4, %c0_23, %c0_24] : memref<9x8x8xbf16, #tpu.memory_space<vmem>>, vector<1x8x8xbf16>
    %26 = vector.shape_cast %25 : vector<1x8x8xbf16> to vector<8x8xbf16>
    %c0_25 = arith.constant 0 : index
    %c0_26 = arith.constant 0 : index
    %c7 = arith.constant 7 : index
    %27 = vector.load %arg1[%c0_25, %c0_26, %c7] : memref<1x8x36xbf16, #tpu.memory_space<vmem>>, vector<1x8x22xbf16>
    %28 = vector.shape_cast %27 : vector<1x8x22xbf16> to vector<8x22xbf16>
    %cst_27 = arith.constant dense<0.000000e+00> : vector<8x22xf32>
    %29 = tpu.matmul %26, %28, %cst_27 {dimension_numbers = #tpu.dot_dimension_numbers<[1], [0], [0], [1], [0, 0, 1, 1], [], []>} : vector<8x8xbf16>, vector<8x22xbf16>, vector<8x22xf32> -> vector<8x22xf32>
    %30 = arith.addf %24, %29 : vector<8x22xf32>
    %c5 = arith.constant 5 : index
    %c0_28 = arith.constant 0 : index
    %c0_29 = arith.constant 0 : index
    %31 = vector.load %arg2[%c5, %c0_28, %c0_29] : memref<9x8x8xbf16, #tpu.memory_space<vmem>>, vector<1x8x8xbf16>
    %32 = vector.shape_cast %31 : vector<1x8x8xbf16> to vector<8x8xbf16>
    %c0_30 = arith.constant 0 : index
    %c0_31 = arith.constant 0 : index
    %c8 = arith.constant 8 : index
    %33 = vector.load %arg1[%c0_30, %c0_31, %c8] : memref<1x8x36xbf16, #tpu.memory_space<vmem>>, vector<1x8x22xbf16>
    %34 = vector.shape_cast %33 : vector<1x8x22xbf16> to vector<8x22xbf16>
    %cst_32 = arith.constant dense<0.000000e+00> : vector<8x22xf32>
    %35 = tpu.matmul %32, %34, %cst_32 {dimension_numbers = #tpu.dot_dimension_numbers<[1], [0], [0], [1], [0, 0, 1, 1], [], []>} : vector<8x8xbf16>, vector<8x22xbf16>, vector<8x22xf32> -> vector<8x22xf32>
    %36 = arith.addf %30, %35 : vector<8x22xf32>
    %c6_33 = arith.constant 6 : index
    %c0_34 = arith.constant 0 : index
    %c0_35 = arith.constant 0 : index
    %37 = vector.load %arg2[%c6_33, %c0_34, %c0_35] : memref<9x8x8xbf16, #tpu.memory_space<vmem>>, vector<1x8x8xbf16>
    %38 = vector.shape_cast %37 : vector<1x8x8xbf16> to vector<8x8xbf16>
    %c0_36 = arith.constant 0 : index
    %c0_37 = arith.constant 0 : index
    %c12 = arith.constant 12 : index
    %39 = vector.load %arg1[%c0_36, %c0_37, %c12] : memref<1x8x36xbf16, #tpu.memory_space<vmem>>, vector<1x8x22xbf16>
    %40 = vector.shape_cast %39 : vector<1x8x22xbf16> to vector<8x22xbf16>
    %cst_38 = arith.constant dense<0.000000e+00> : vector<8x22xf32>
    %41 = tpu.matmul %38, %40, %cst_38 {dimension_numbers = #tpu.dot_dimension_numbers<[1], [0], [0], [1], [0, 0, 1, 1], [], []>} : vector<8x8xbf16>, vector<8x22xbf16>, vector<8x22xf32> -> vector<8x22xf32>
    %42 = arith.addf %36, %41 : vector<8x22xf32>
    %c7_39 = arith.constant 7 : index
    %c0_40 = arith.constant 0 : index
    %c0_41 = arith.constant 0 : index
    %43 = vector.load %arg2[%c7_39, %c0_40, %c0_41] : memref<9x8x8xbf16, #tpu.memory_space<vmem>>, vector<1x8x8xbf16>
    %44 = vector.shape_cast %43 : vector<1x8x8xbf16> to vector<8x8xbf16>
    %c0_42 = arith.constant 0 : index
    %c0_43 = arith.constant 0 : index
    %c13 = arith.constant 13 : index
    %45 = vector.load %arg1[%c0_42, %c0_43, %c13] : memref<1x8x36xbf16, #tpu.memory_space<vmem>>, vector<1x8x22xbf16>
    %46 = vector.shape_cast %45 : vector<1x8x22xbf16> to vector<8x22xbf16>
    %cst_44 = arith.constant dense<0.000000e+00> : vector<8x22xf32>
    %47 = tpu.matmul %44, %46, %cst_44 {dimension_numbers = #tpu.dot_dimension_numbers<[1], [0], [0], [1], [0, 0, 1, 1], [], []>} : vector<8x8xbf16>, vector<8x22xbf16>, vector<8x22xf32> -> vector<8x22xf32>
    %48 = arith.addf %42, %47 : vector<8x22xf32>
    %c8_45 = arith.constant 8 : index
    %c0_46 = arith.constant 0 : index
    %c0_47 = arith.constant 0 : index
    %49 = vector.load %arg2[%c8_45, %c0_46, %c0_47] : memref<9x8x8xbf16, #tpu.memory_space<vmem>>, vector<1x8x8xbf16>
    %50 = vector.shape_cast %49 : vector<1x8x8xbf16> to vector<8x8xbf16>
    %c0_48 = arith.constant 0 : index
    %c0_49 = arith.constant 0 : index
    %c14 = arith.constant 14 : index
    %51 = vector.load %arg1[%c0_48, %c0_49, %c14] : memref<1x8x36xbf16, #tpu.memory_space<vmem>>, vector<1x8x22xbf16>
    %52 = vector.shape_cast %51 : vector<1x8x22xbf16> to vector<8x22xbf16>
    %cst_50 = arith.constant dense<0.000000e+00> : vector<8x22xf32>
    %53 = tpu.matmul %50, %52, %cst_50 {dimension_numbers = #tpu.dot_dimension_numbers<[1], [0], [0], [1], [0, 0, 1, 1], [], []>} : vector<8x8xbf16>, vector<8x22xbf16>, vector<8x22xf32> -> vector<8x22xf32>
    %54 = arith.addf %48, %53 : vector<8x22xf32>
    %55 = arith.truncf %54 : vector<8x22xf32> to vector<8x22xbf16>
    %56 = vector.extract_strided_slice %55 {offsets = [0, 0], sizes = [8, 4], strides = [1, 1]} : vector<8x22xbf16> to vector<8x4xbf16>
    %c0_51 = arith.constant 0 : index
    %c0_52 = arith.constant 0 : index
    %c0_53 = arith.constant 0 : index
    %c0_54 = arith.constant 0 : index
    %57 = vector.load %arg4[%c0_51, %c0_52, %c0_53, %c0_54] : memref<1x8x4x4xbf16, #tpu.memory_space<vmem>>, vector<1x8x1x4xbf16>
    %58 = vector.shape_cast %57 : vector<1x8x1x4xbf16> to vector<8x4xbf16>
    %59 = vector.shape_cast %56 : vector<8x4xbf16> to vector<1x8x1x4xbf16>
    tpu.vector_store %arg4[%c0_51, %c0_52, %c0_53, %c0_54], %59 {strides = array<i32>} : memref<1x8x4x4xbf16, #tpu.memory_space<vmem>>, vector<1x8x1x4xbf16>,
    %60 = vector.extract_strided_slice %55 {offsets = [0, 6], sizes = [8, 4], strides = [1, 1]} : vector<8x22xbf16> to vector<8x4xbf16>
    %c0_55 = arith.constant 0 : index
    %c0_56 = arith.constant 0 : index
    %c1_57 = arith.constant 1 : index
    %c0_58 = arith.constant 0 : index
    %61 = vector.load %arg4[%c0_55, %c0_56, %c1_57, %c0_58] : memref<1x8x4x4xbf16, #tpu.memory_space<vmem>>, vector<1x8x1x4xbf16>
    %62 = vector.shape_cast %61 : vector<1x8x1x4xbf16> to vector<8x4xbf16>
    %63 = vector.shape_cast %60 : vector<8x4xbf16> to vector<1x8x1x4xbf16>
    tpu.vector_store %arg4[%c0_55, %c0_56, %c1_57, %c0_58], %63 {strides = array<i32>} : memref<1x8x4x4xbf16, #tpu.memory_space<vmem>>, vector<1x8x1x4xbf16>,
    %64 = vector.extract_strided_slice %55 {offsets = [0, 12], sizes = [8, 4], strides = [1, 1]} : vector<8x22xbf16> to vector<8x4xbf16>
    %c0_59 = arith.constant 0 : index
    %c0_60 = arith.constant 0 : index
    %c2_61 = arith.constant 2 : index
    %c0_62 = arith.constant 0 : index
    %65 = vector.load %arg4[%c0_59, %c0_60, %c2_61, %c0_62] : memref<1x8x4x4xbf16, #tpu.memory_space<vmem>>, vector<1x8x1x4xbf16>
    %66 = vector.shape_cast %65 : vector<1x8x1x4xbf16> to vector<8x4xbf16>
    %67 = vector.shape_cast %64 : vector<8x4xbf16> to vector<1x8x1x4xbf16>
    tpu.vector_store %arg4[%c0_59, %c0_60, %c2_61, %c0_62], %67 {strides = array<i32>} : memref<1x8x4x4xbf16, #tpu.memory_space<vmem>>, vector<1x8x1x4xbf16>,
    %68 = vector.extract_strided_slice %55 {offsets = [0, 18], sizes = [8, 4], strides = [1, 1]} : vector<8x22xbf16> to vector<8x4xbf16>
    %c0_63 = arith.constant 0 : index
    %c0_64 = arith.constant 0 : index
    %c3_65 = arith.constant 3 : index
    %c0_66 = arith.constant 0 : index
    %69 = vector.load %arg4[%c0_63, %c0_64, %c3_65, %c0_66] : memref<1x8x4x4xbf16, #tpu.memory_space<vmem>>, vector<1x8x1x4xbf16>
    %70 = vector.shape_cast %69 : vector<1x8x1x4xbf16> to vector<8x4xbf16>
    %71 = vector.shape_cast %68 : vector<8x4xbf16> to vector<1x8x1x4xbf16>
    tpu.vector_store %arg4[%c0_63, %c0_64, %c3_65, %c0_66], %71 {strides = array<i32>} : memref<1x8x4x4xbf16, #tpu.memory_space<vmem>>, vector<1x8x1x4xbf16>,
    return
  }
  func.func @transform_0(%arg0: i32) -> (i32, i32, i32) {
    %c0_i32 = arith.constant 0 : i32
    %c0_i32_0 = arith.constant 0 : i32
    %c0_i32_1 = arith.constant 0 : i32
    return %arg0, %c0_i32, %c0_i32_0 : i32, i32, i32
  }
  func.func @transform_1(%arg0: i32) -> (i32, i32, i32) {
    %c0_i32 = arith.constant 0 : i32
    %c0_i32_0 = arith.constant 0 : i32
    %c0_i32_1 = arith.constant 0 : i32
    %c0_i32_2 = arith.constant 0 : i32
    return %c0_i32, %c0_i32_0, %c0_i32_1 : i32, i32, i32
  }
  func.func @transform_2(%arg0: i32) -> (i32, i32) {
    %c0_i32 = arith.constant 0 : i32
    %c0_i32_0 = arith.constant 0 : i32
    %c0_i32_1 = arith.constant 0 : i32
    return %c0_i32, %c0_i32_0 : i32, i32
  }
  func.func @transform_3(%arg0: i32) -> (i32, i32, i32, i32) {
    %c0_i32 = arith.constant 0 : i32
    %c0_i32_0 = arith.constant 0 : i32
    %c0_i32_1 = arith.constant 0 : i32
    %c0_i32_2 = arith.constant 0 : i32
    return %arg0, %c0_i32, %c0_i32_0, %c0_i32_1 : i32, i32, i32, i32
  }
}

module attributes {stable_mosaic.version = 11 : i64} {
  func.func @_gn_elu_res_kernel(%arg0: i32, %arg1: i32, %arg2: memref<1x1x4x16xbf16, #tpu.memory_space<vmem>>, %arg3: memref<1x1x4x16xbf16, #tpu.memory_space<vmem>>, %arg4: memref<1x4x1xf32, #tpu.memory_space<vmem>>, %arg5: memref<1x4x1xf32, #tpu.memory_space<vmem>>, %arg6: memref<1x1x4x16xbf16, #tpu.memory_space<vmem>>) attributes {dimension_semantics = [#tpu.dimension_semantics<parallel>, #tpu.dimension_semantics<parallel>], iteration_bounds = array<i64: 2, 2>, scalar_prefetch = 0 : i64, scratch_operands = 0 : i64, tpu.core_type = #tpu.core_type<tc>, window_params = [{transform_indices = @transform_0, window_bounds = array<i64: 1, 1, 4, 16>}, {transform_indices = @transform_1, window_bounds = array<i64: 1, 1, 4, 16>}, {transform_indices = @transform_2, window_bounds = array<i64: 1, 4, 1>}, {transform_indices = @transform_3, window_bounds = array<i64: 1, 4, 1>}, {transform_indices = @transform_4, window_bounds = array<i64: 1, 1, 4, 16>}]} {
    %c0 = arith.constant 0 : index
    %c0_0 = arith.constant 0 : index
    %c0_1 = arith.constant 0 : index
    %c0_2 = arith.constant 0 : index
    %0 = vector.load %arg2[%c0, %c0_0, %c0_1, %c0_2] : memref<1x1x4x16xbf16, #tpu.memory_space<vmem>>, vector<1x1x4x16xbf16>
    %1 = vector.shape_cast %0 : vector<1x1x4x16xbf16> to vector<4x16xbf16>
    %2 = arith.extf %1 : vector<4x16xbf16> to vector<4x16xf32>
    %c0_3 = arith.constant 0 : index
    %c0_4 = arith.constant 0 : index
    %c0_5 = arith.constant 0 : index
    %c0_6 = arith.constant 0 : index
    %3 = vector.load %arg3[%c0_3, %c0_4, %c0_5, %c0_6] : memref<1x1x4x16xbf16, #tpu.memory_space<vmem>>, vector<1x1x4x16xbf16>
    %4 = vector.shape_cast %3 : vector<1x1x4x16xbf16> to vector<4x16xbf16>
    %5 = arith.extf %4 : vector<4x16xbf16> to vector<4x16xf32>
    %c0_7 = arith.constant 0 : index
    %c0_8 = arith.constant 0 : index
    %c0_9 = arith.constant 0 : index
    %6 = vector.load %arg4[%c0_7, %c0_8, %c0_9] : memref<1x4x1xf32, #tpu.memory_space<vmem>>, vector<1x4x1xf32>
    %7 = vector.shape_cast %6 : vector<1x4x1xf32> to vector<4x1xf32>
    %c0_10 = arith.constant 0 : index
    %c0_11 = arith.constant 0 : index
    %c0_12 = arith.constant 0 : index
    %8 = vector.load %arg5[%c0_10, %c0_11, %c0_12] : memref<1x4x1xf32, #tpu.memory_space<vmem>>, vector<1x4x1xf32>
    %9 = vector.shape_cast %8 : vector<1x4x1xf32> to vector<4x1xf32>
    %cst = arith.constant dense<0.000000e+00> : vector<4xf32>
    %10 = vector.multi_reduction <add>, %2, %cst [1] : vector<4x16xf32> to vector<4xf32>
    %11 = vector.shape_cast %10 : vector<4xf32> to vector<4x1xf32>
    %cst_13 = arith.constant dense<0.000000e+00> : vector<1xf32>
    %12 = vector.multi_reduction <add>, %11, %cst_13 [0] : vector<4x1xf32> to vector<1xf32>
    %13 = vector.shape_cast %12 : vector<1xf32> to vector<1x1xf32>
    %cst_14 = arith.constant 6.400000e+01 : f32
    %14 = vector.broadcast %cst_14 : f32 to vector<1x1xf32>
    %15 = arith.divf %13, %14 : vector<1x1xf32>
    %16 = vector.broadcast %15 : vector<1x1xf32> to vector<4x16xf32>
    %17 = arith.subf %2, %16 : vector<4x16xf32>
    %18 = arith.mulf %17, %17 : vector<4x16xf32>
    %cst_15 = arith.constant dense<0.000000e+00> : vector<4xf32>
    %19 = vector.multi_reduction <add>, %18, %cst_15 [1] : vector<4x16xf32> to vector<4xf32>
    %20 = vector.shape_cast %19 : vector<4xf32> to vector<4x1xf32>
    %cst_16 = arith.constant dense<0.000000e+00> : vector<1xf32>
    %21 = vector.multi_reduction <add>, %20, %cst_16 [0] : vector<4x1xf32> to vector<1xf32>
    %22 = vector.shape_cast %21 : vector<1xf32> to vector<1x1xf32>
    %cst_17 = arith.constant 6.400000e+01 : f32
    %23 = vector.broadcast %cst_17 : f32 to vector<1x1xf32>
    %24 = arith.divf %22, %23 : vector<1x1xf32>
    %cst_18 = arith.constant 9.99999974E-6 : f32
    %25 = vector.broadcast %cst_18 : f32 to vector<1x1xf32>
    %26 = arith.addf %24, %25 : vector<1x1xf32>
    %27 = math.rsqrt %26 : vector<1x1xf32>
    %28 = vector.broadcast %27 : vector<1x1xf32> to vector<4x16xf32>
    %29 = arith.mulf %17, %28 : vector<4x16xf32>
    %30 = vector.broadcast %7 : vector<4x1xf32> to vector<4x16xf32>
    %31 = arith.mulf %29, %30 : vector<4x16xf32>
    %32 = vector.broadcast %9 : vector<4x1xf32> to vector<4x16xf32>
    %33 = arith.addf %31, %32 : vector<4x16xf32>
    %cst_19 = arith.constant 0.000000e+00 : f32
    %34 = vector.broadcast %cst_19 : f32 to vector<4x16xf32>
    %35 = arith.cmpf ogt, %33, %34 : vector<4x16xf32>
    %cst_20 = arith.constant 0.000000e+00 : f32
    %36 = vector.broadcast %cst_20 : f32 to vector<4x16xf32>
    %37 = arith.minimumf %33, %36 : vector<4x16xf32>
    %38 = math.exp %37 : vector<4x16xf32>
    %cst_21 = arith.constant 1.000000e+00 : f32
    %39 = vector.broadcast %cst_21 : f32 to vector<4x16xf32>
    %40 = arith.subf %38, %39 : vector<4x16xf32>
    %41 = arith.select %35, %33, %40 : vector<4x16xi1>, vector<4x16xf32>
    %42 = arith.addf %41, %5 : vector<4x16xf32>
    %43 = arith.truncf %42 : vector<4x16xf32> to vector<4x16xbf16>
    %c0_22 = arith.constant 0 : index
    %c0_23 = arith.constant 0 : index
    %c0_24 = arith.constant 0 : index
    %c0_25 = arith.constant 0 : index
    %44 = vector.load %arg6[%c0_22, %c0_23, %c0_24, %c0_25] : memref<1x1x4x16xbf16, #tpu.memory_space<vmem>>, vector<1x1x4x16xbf16>
    %45 = vector.shape_cast %44 : vector<1x1x4x16xbf16> to vector<4x16xbf16>
    %46 = vector.shape_cast %43 : vector<4x16xbf16> to vector<1x1x4x16xbf16>
    tpu.vector_store %arg6[%c0_22, %c0_23, %c0_24, %c0_25], %46 {strides = array<i32>} : memref<1x1x4x16xbf16, #tpu.memory_space<vmem>>, vector<1x1x4x16xbf16>,
    return
  }
  func.func @transform_0(%arg0: i32, %arg1: i32) -> (i32, i32, i32, i32) {
    %c0_i32 = arith.constant 0 : i32
    %c0_i32_0 = arith.constant 0 : i32
    %c0_i32_1 = arith.constant 0 : i32
    return %arg0, %arg1, %c0_i32, %c0_i32_0 : i32, i32, i32, i32
  }
  func.func @transform_1(%arg0: i32, %arg1: i32) -> (i32, i32, i32, i32) {
    %c0_i32 = arith.constant 0 : i32
    %c0_i32_0 = arith.constant 0 : i32
    %c0_i32_1 = arith.constant 0 : i32
    return %arg0, %arg1, %c0_i32, %c0_i32_0 : i32, i32, i32, i32
  }
  func.func @transform_2(%arg0: i32, %arg1: i32) -> (i32, i32, i32) {
    %c0_i32 = arith.constant 0 : i32
    %c0_i32_0 = arith.constant 0 : i32
    %c0_i32_1 = arith.constant 0 : i32
    return %arg1, %c0_i32, %c0_i32_0 : i32, i32, i32
  }
  func.func @transform_3(%arg0: i32, %arg1: i32) -> (i32, i32, i32) {
    %c0_i32 = arith.constant 0 : i32
    %c0_i32_0 = arith.constant 0 : i32
    %c0_i32_1 = arith.constant 0 : i32
    return %arg1, %c0_i32, %c0_i32_0 : i32, i32, i32
  }
  func.func @transform_4(%arg0: i32, %arg1: i32) -> (i32, i32, i32, i32) {
    %c0_i32 = arith.constant 0 : i32
    %c0_i32_0 = arith.constant 0 : i32
    %c0_i32_1 = arith.constant 0 : i32
    return %arg0, %arg1, %c0_i32, %c0_i32_0 : i32, i32, i32, i32
  }
}

module attributes {stable_mosaic.version = 11 : i64} {
  func.func @_conv_taps_kernel(%arg0: i32, %arg1: memref<1x8x25xbf16, #tpu.memory_space<vmem>>, %arg2: memref<4x32x8xbf16, #tpu.memory_space<vmem>>, %arg3: memref<32x1xf32, #tpu.memory_space<vmem>>, %arg4: memref<1x32x4x4xbf16, #tpu.memory_space<vmem>>) attributes {dimension_semantics = [#tpu.dimension_semantics<parallel>], iteration_bounds = array<i64: 2>, scalar_prefetch = 0 : i64, scratch_operands = 0 : i64, tpu.core_type = #tpu.core_type<tc>, window_params = [{transform_indices = @transform_0, window_bounds = array<i64: 1, 8, 25>}, {pipeline_mode = #tpu.pipeline_mode<synchronous>, transform_indices = @transform_1, window_bounds = array<i64: 4, 32, 8>}, {pipeline_mode = #tpu.pipeline_mode<synchronous>, transform_indices = @transform_2, window_bounds = array<i64: 32, 1>}, {transform_indices = @transform_3, window_bounds = array<i64: 1, 32, 4, 4>}]} {
    %cst = arith.constant 0.000000e+00 : f32
    %0 = vector.broadcast %cst : f32 to vector<32x19xf32>
    %c0 = arith.constant 0 : index
    %c0_0 = arith.constant 0 : index
    %c0_1 = arith.constant 0 : index
    %1 = vector.load %arg2[%c0, %c0_0, %c0_1] : memref<4x32x8xbf16, #tpu.memory_space<vmem>>, vector<1x32x8xbf16>
    %2 = vector.shape_cast %1 : vector<1x32x8xbf16> to vector<32x8xbf16>
    %c0_2 = arith.constant 0 : index
    %c0_3 = arith.constant 0 : index
    %c0_4 = arith.constant 0 : index
    %3 = vector.load %arg1[%c0_2, %c0_3, %c0_4] : memref<1x8x25xbf16, #tpu.memory_space<vmem>>, vector<1x8x19xbf16>
    %4 = vector.shape_cast %3 : vector<1x8x19xbf16> to vector<8x19xbf16>
    %cst_5 = arith.constant dense<0.000000e+00> : vector<32x19xf32>
    %5 = tpu.matmul %2, %4, %cst_5 {dimension_numbers = #tpu.dot_dimension_numbers<[1], [0], [0], [1], [0, 0, 1, 1], [], []>} : vector<32x8xbf16>, vector<8x19xbf16>, vector<32x19xf32> -> vector<32x19xf32>
    %6 = arith.addf %0, %5 : vector<32x19xf32>
    %c1 = arith.constant 1 : index
    %c0_6 = arith.constant 0 : index
    %c0_7 = arith.constant 0 : index
    %7 = vector.load %arg2[%c1, %c0_6, %c0_7] : memref<4x32x8xbf16, #tpu.memory_space<vmem>>, vector<1x32x8xbf16>
    %8 = vector.shape_cast %7 : vector<1x32x8xbf16> to vector<32x8xbf16>
    %c0_8 = arith.constant 0 : index
    %c0_9 = arith.constant 0 : index
    %c1_10 = arith.constant 1 : index
    %9 = vector.load %arg1[%c0_8, %c0_9, %c1_10] : memref<1x8x25xbf16, #tpu.memory_space<vmem>>, vector<1x8x19xbf16>
    %10 = vector.shape_cast %9 : vector<1x8x19xbf16> to vector<8x19xbf16>
    %cst_11 = arith.constant dense<0.000000e+00> : vector<32x19xf32>
    %11 = tpu.matmul %8, %10, %cst_11 {dimension_numbers = #tpu.dot_dimension_numbers<[1], [0], [0], [1], [0, 0, 1, 1], [], []>} : vector<32x8xbf16>, vector<8x19xbf16>, vector<32x19xf32> -> vector<32x19xf32>
    %12 = arith.addf %6, %11 : vector<32x19xf32>
    %c2 = arith.constant 2 : index
    %c0_12 = arith.constant 0 : index
    %c0_13 = arith.constant 0 : index
    %13 = vector.load %arg2[%c2, %c0_12, %c0_13] : memref<4x32x8xbf16, #tpu.memory_space<vmem>>, vector<1x32x8xbf16>
    %14 = vector.shape_cast %13 : vector<1x32x8xbf16> to vector<32x8xbf16>
    %c0_14 = arith.constant 0 : index
    %c0_15 = arith.constant 0 : index
    %c5 = arith.constant 5 : index
    %15 = vector.load %arg1[%c0_14, %c0_15, %c5] : memref<1x8x25xbf16, #tpu.memory_space<vmem>>, vector<1x8x19xbf16>
    %16 = vector.shape_cast %15 : vector<1x8x19xbf16> to vector<8x19xbf16>
    %cst_16 = arith.constant dense<0.000000e+00> : vector<32x19xf32>
    %17 = tpu.matmul %14, %16, %cst_16 {dimension_numbers = #tpu.dot_dimension_numbers<[1], [0], [0], [1], [0, 0, 1, 1], [], []>} : vector<32x8xbf16>, vector<8x19xbf16>, vector<32x19xf32> -> vector<32x19xf32>
    %18 = arith.addf %12, %17 : vector<32x19xf32>
    %c3 = arith.constant 3 : index
    %c0_17 = arith.constant 0 : index
    %c0_18 = arith.constant 0 : index
    %19 = vector.load %arg2[%c3, %c0_17, %c0_18] : memref<4x32x8xbf16, #tpu.memory_space<vmem>>, vector<1x32x8xbf16>
    %20 = vector.shape_cast %19 : vector<1x32x8xbf16> to vector<32x8xbf16>
    %c0_19 = arith.constant 0 : index
    %c0_20 = arith.constant 0 : index
    %c6 = arith.constant 6 : index
    %21 = vector.load %arg1[%c0_19, %c0_20, %c6] : memref<1x8x25xbf16, #tpu.memory_space<vmem>>, vector<1x8x19xbf16>
    %22 = vector.shape_cast %21 : vector<1x8x19xbf16> to vector<8x19xbf16>
    %cst_21 = arith.constant dense<0.000000e+00> : vector<32x19xf32>
    %23 = tpu.matmul %20, %22, %cst_21 {dimension_numbers = #tpu.dot_dimension_numbers<[1], [0], [0], [1], [0, 0, 1, 1], [], []>} : vector<32x8xbf16>, vector<8x19xbf16>, vector<32x19xf32> -> vector<32x19xf32>
    %24 = arith.addf %18, %23 : vector<32x19xf32>
    %25 = arith.truncf %24 : vector<32x19xf32> to vector<32x19xbf16>
    %26 = vector.extract_strided_slice %25 {offsets = [0, 0], sizes = [32, 4], strides = [1, 1]} : vector<32x19xbf16> to vector<32x4xbf16>
    %c0_22 = arith.constant 0 : index
    %c0_23 = arith.constant 0 : index
    %c0_24 = arith.constant 0 : index
    %c0_25 = arith.constant 0 : index
    %27 = vector.load %arg4[%c0_22, %c0_23, %c0_24, %c0_25] : memref<1x32x4x4xbf16, #tpu.memory_space<vmem>>, vector<1x32x1x4xbf16>
    %28 = vector.shape_cast %27 : vector<1x32x1x4xbf16> to vector<32x4xbf16>
    %29 = vector.shape_cast %26 : vector<32x4xbf16> to vector<1x32x1x4xbf16>
    tpu.vector_store %arg4[%c0_22, %c0_23, %c0_24, %c0_25], %29 {strides = array<i32>} : memref<1x32x4x4xbf16, #tpu.memory_space<vmem>>, vector<1x32x1x4xbf16>,
    %30 = vector.extract_strided_slice %25 {offsets = [0, 5], sizes = [32, 4], strides = [1, 1]} : vector<32x19xbf16> to vector<32x4xbf16>
    %c0_26 = arith.constant 0 : index
    %c0_27 = arith.constant 0 : index
    %c1_28 = arith.constant 1 : index
    %c0_29 = arith.constant 0 : index
    %31 = vector.load %arg4[%c0_26, %c0_27, %c1_28, %c0_29] : memref<1x32x4x4xbf16, #tpu.memory_space<vmem>>, vector<1x32x1x4xbf16>
    %32 = vector.shape_cast %31 : vector<1x32x1x4xbf16> to vector<32x4xbf16>
    %33 = vector.shape_cast %30 : vector<32x4xbf16> to vector<1x32x1x4xbf16>
    tpu.vector_store %arg4[%c0_26, %c0_27, %c1_28, %c0_29], %33 {strides = array<i32>} : memref<1x32x4x4xbf16, #tpu.memory_space<vmem>>, vector<1x32x1x4xbf16>,
    %34 = vector.extract_strided_slice %25 {offsets = [0, 10], sizes = [32, 4], strides = [1, 1]} : vector<32x19xbf16> to vector<32x4xbf16>
    %c0_30 = arith.constant 0 : index
    %c0_31 = arith.constant 0 : index
    %c2_32 = arith.constant 2 : index
    %c0_33 = arith.constant 0 : index
    %35 = vector.load %arg4[%c0_30, %c0_31, %c2_32, %c0_33] : memref<1x32x4x4xbf16, #tpu.memory_space<vmem>>, vector<1x32x1x4xbf16>
    %36 = vector.shape_cast %35 : vector<1x32x1x4xbf16> to vector<32x4xbf16>
    %37 = vector.shape_cast %34 : vector<32x4xbf16> to vector<1x32x1x4xbf16>
    tpu.vector_store %arg4[%c0_30, %c0_31, %c2_32, %c0_33], %37 {strides = array<i32>} : memref<1x32x4x4xbf16, #tpu.memory_space<vmem>>, vector<1x32x1x4xbf16>,
    %38 = vector.extract_strided_slice %25 {offsets = [0, 15], sizes = [32, 4], strides = [1, 1]} : vector<32x19xbf16> to vector<32x4xbf16>
    %c0_34 = arith.constant 0 : index
    %c0_35 = arith.constant 0 : index
    %c3_36 = arith.constant 3 : index
    %c0_37 = arith.constant 0 : index
    %39 = vector.load %arg4[%c0_34, %c0_35, %c3_36, %c0_37] : memref<1x32x4x4xbf16, #tpu.memory_space<vmem>>, vector<1x32x1x4xbf16>
    %40 = vector.shape_cast %39 : vector<1x32x1x4xbf16> to vector<32x4xbf16>
    %41 = vector.shape_cast %38 : vector<32x4xbf16> to vector<1x32x1x4xbf16>
    tpu.vector_store %arg4[%c0_34, %c0_35, %c3_36, %c0_37], %41 {strides = array<i32>} : memref<1x32x4x4xbf16, #tpu.memory_space<vmem>>, vector<1x32x1x4xbf16>,
    return
  }
  func.func @transform_0(%arg0: i32) -> (i32, i32, i32) {
    %c0_i32 = arith.constant 0 : i32
    %c0_i32_0 = arith.constant 0 : i32
    %c0_i32_1 = arith.constant 0 : i32
    return %arg0, %c0_i32, %c0_i32_0 : i32, i32, i32
  }
  func.func @transform_1(%arg0: i32) -> (i32, i32, i32) {
    %c0_i32 = arith.constant 0 : i32
    %c0_i32_0 = arith.constant 0 : i32
    %c0_i32_1 = arith.constant 0 : i32
    %c0_i32_2 = arith.constant 0 : i32
    return %c0_i32, %c0_i32_0, %c0_i32_1 : i32, i32, i32
  }
  func.func @transform_2(%arg0: i32) -> (i32, i32) {
    %c0_i32 = arith.constant 0 : i32
    %c0_i32_0 = arith.constant 0 : i32
    %c0_i32_1 = arith.constant 0 : i32
    return %c0_i32, %c0_i32_0 : i32, i32
  }
  func.func @transform_3(%arg0: i32) -> (i32, i32, i32, i32) {
    %c0_i32 = arith.constant 0 : i32
    %c0_i32_0 = arith.constant 0 : i32
    %c0_i32_1 = arith.constant 0 : i32
    %c0_i32_2 = arith.constant 0 : i32
    return %arg0, %c0_i32, %c0_i32_0, %c0_i32_1 : i32, i32, i32, i32
  }
}

module attributes {stable_mosaic.version = 11 : i64} {
  func.func @_gn_elu_kernel(%arg0: i32, %arg1: i32, %arg2: memref<1x1x4x64xbf16, #tpu.memory_space<vmem>>, %arg3: memref<1x4x1xf32, #tpu.memory_space<vmem>>, %arg4: memref<1x4x1xf32, #tpu.memory_space<vmem>>, %arg5: memref<1x1x4x64xbf16, #tpu.memory_space<vmem>>) attributes {dimension_semantics = [#tpu.dimension_semantics<parallel>, #tpu.dimension_semantics<parallel>], iteration_bounds = array<i64: 2, 2>, scalar_prefetch = 0 : i64, scratch_operands = 0 : i64, tpu.core_type = #tpu.core_type<tc>, window_params = [{transform_indices = @transform_0, window_bounds = array<i64: 1, 1, 4, 64>}, {transform_indices = @transform_1, window_bounds = array<i64: 1, 4, 1>}, {transform_indices = @transform_2, window_bounds = array<i64: 1, 4, 1>}, {transform_indices = @transform_3, window_bounds = array<i64: 1, 1, 4, 64>}]} {
    %c0 = arith.constant 0 : index
    %c0_0 = arith.constant 0 : index
    %c0_1 = arith.constant 0 : index
    %c0_2 = arith.constant 0 : index
    %0 = vector.load %arg2[%c0, %c0_0, %c0_1, %c0_2] : memref<1x1x4x64xbf16, #tpu.memory_space<vmem>>, vector<1x1x4x64xbf16>
    %1 = vector.shape_cast %0 : vector<1x1x4x64xbf16> to vector<4x64xbf16>
    %2 = arith.extf %1 : vector<4x64xbf16> to vector<4x64xf32>
    %c0_3 = arith.constant 0 : index
    %c0_4 = arith.constant 0 : index
    %c0_5 = arith.constant 0 : index
    %3 = vector.load %arg3[%c0_3, %c0_4, %c0_5] : memref<1x4x1xf32, #tpu.memory_space<vmem>>, vector<1x4x1xf32>
    %4 = vector.shape_cast %3 : vector<1x4x1xf32> to vector<4x1xf32>
    %c0_6 = arith.constant 0 : index
    %c0_7 = arith.constant 0 : index
    %c0_8 = arith.constant 0 : index
    %5 = vector.load %arg4[%c0_6, %c0_7, %c0_8] : memref<1x4x1xf32, #tpu.memory_space<vmem>>, vector<1x4x1xf32>
    %6 = vector.shape_cast %5 : vector<1x4x1xf32> to vector<4x1xf32>
    %cst = arith.constant dense<0.000000e+00> : vector<4xf32>
    %7 = vector.multi_reduction <add>, %2, %cst [1] : vector<4x64xf32> to vector<4xf32>
    %8 = vector.shape_cast %7 : vector<4xf32> to vector<4x1xf32>
    %cst_9 = arith.constant dense<0.000000e+00> : vector<1xf32>
    %9 = vector.multi_reduction <add>, %8, %cst_9 [0] : vector<4x1xf32> to vector<1xf32>
    %10 = vector.shape_cast %9 : vector<1xf32> to vector<1x1xf32>
    %cst_10 = arith.constant 2.560000e+02 : f32
    %11 = vector.broadcast %cst_10 : f32 to vector<1x1xf32>
    %12 = arith.divf %10, %11 : vector<1x1xf32>
    %13 = vector.broadcast %12 : vector<1x1xf32> to vector<4x64xf32>
    %14 = arith.subf %2, %13 : vector<4x64xf32>
    %15 = arith.mulf %14, %14 : vector<4x64xf32>
    %cst_11 = arith.constant dense<0.000000e+00> : vector<4xf32>
    %16 = vector.multi_reduction <add>, %15, %cst_11 [1] : vector<4x64xf32> to vector<4xf32>
    %17 = vector.shape_cast %16 : vector<4xf32> to vector<4x1xf32>
    %cst_12 = arith.constant dense<0.000000e+00> : vector<1xf32>
    %18 = vector.multi_reduction <add>, %17, %cst_12 [0] : vector<4x1xf32> to vector<1xf32>
    %19 = vector.shape_cast %18 : vector<1xf32> to vector<1x1xf32>
    %cst_13 = arith.constant 2.560000e+02 : f32
    %20 = vector.broadcast %cst_13 : f32 to vector<1x1xf32>
    %21 = arith.divf %19, %20 : vector<1x1xf32>
    %cst_14 = arith.constant 9.99999974E-6 : f32
    %22 = vector.broadcast %cst_14 : f32 to vector<1x1xf32>
    %23 = arith.addf %21, %22 : vector<1x1xf32>
    %24 = math.rsqrt %23 : vector<1x1xf32>
    %25 = vector.broadcast %24 : vector<1x1xf32> to vector<4x64xf32>
    %26 = arith.mulf %14, %25 : vector<4x64xf32>
    %27 = vector.broadcast %4 : vector<4x1xf32> to vector<4x64xf32>
    %28 = arith.mulf %26, %27 : vector<4x64xf32>
    %29 = vector.broadcast %6 : vector<4x1xf32> to vector<4x64xf32>
    %30 = arith.addf %28, %29 : vector<4x64xf32>
    %cst_15 = arith.constant 0.000000e+00 : f32
    %31 = vector.broadcast %cst_15 : f32 to vector<4x64xf32>
    %32 = arith.cmpf ogt, %30, %31 : vector<4x64xf32>
    %cst_16 = arith.constant 0.000000e+00 : f32
    %33 = vector.broadcast %cst_16 : f32 to vector<4x64xf32>
    %34 = arith.minimumf %30, %33 : vector<4x64xf32>
    %35 = math.exp %34 : vector<4x64xf32>
    %cst_17 = arith.constant 1.000000e+00 : f32
    %36 = vector.broadcast %cst_17 : f32 to vector<4x64xf32>
    %37 = arith.subf %35, %36 : vector<4x64xf32>
    %38 = arith.select %32, %30, %37 : vector<4x64xi1>, vector<4x64xf32>
    %39 = arith.truncf %38 : vector<4x64xf32> to vector<4x64xbf16>
    %c0_18 = arith.constant 0 : index
    %c0_19 = arith.constant 0 : index
    %c0_20 = arith.constant 0 : index
    %c0_21 = arith.constant 0 : index
    %40 = vector.load %arg5[%c0_18, %c0_19, %c0_20, %c0_21] : memref<1x1x4x64xbf16, #tpu.memory_space<vmem>>, vector<1x1x4x64xbf16>
    %41 = vector.shape_cast %40 : vector<1x1x4x64xbf16> to vector<4x64xbf16>
    %42 = vector.shape_cast %39 : vector<4x64xbf16> to vector<1x1x4x64xbf16>
    tpu.vector_store %arg5[%c0_18, %c0_19, %c0_20, %c0_21], %42 {strides = array<i32>} : memref<1x1x4x64xbf16, #tpu.memory_space<vmem>>, vector<1x1x4x64xbf16>,
    return
  }
  func.func @transform_0(%arg0: i32, %arg1: i32) -> (i32, i32, i32, i32) {
    %c0_i32 = arith.constant 0 : i32
    %c0_i32_0 = arith.constant 0 : i32
    %c0_i32_1 = arith.constant 0 : i32
    return %arg0, %arg1, %c0_i32, %c0_i32_0 : i32, i32, i32, i32
  }
  func.func @transform_1(%arg0: i32, %arg1: i32) -> (i32, i32, i32) {
    %c0_i32 = arith.constant 0 : i32
    %c0_i32_0 = arith.constant 0 : i32
    %c0_i32_1 = arith.constant 0 : i32
    return %arg1, %c0_i32, %c0_i32_0 : i32, i32, i32
  }
  func.func @transform_2(%arg0: i32, %arg1: i32) -> (i32, i32, i32) {
    %c0_i32 = arith.constant 0 : i32
    %c0_i32_0 = arith.constant 0 : i32
    %c0_i32_1 = arith.constant 0 : i32
    return %arg1, %c0_i32, %c0_i32_0 : i32, i32, i32
  }
  func.func @transform_3(%arg0: i32, %arg1: i32) -> (i32, i32, i32, i32) {
    %c0_i32 = arith.constant 0 : i32
    %c0_i32_0 = arith.constant 0 : i32
    %c0_i32_1 = arith.constant 0 : i32
    return %arg0, %arg1, %c0_i32, %c0_i32_0 : i32, i32, i32, i32
  }
}

module attributes {stable_mosaic.version = 11 : i64} {
  func.func @_conv_taps_kernel(%arg0: i32, %arg1: memref<1x8x100xbf16, #tpu.memory_space<vmem>>, %arg2: memref<9x8x8xbf16, #tpu.memory_space<vmem>>, %arg3: memref<8x1xf32, #tpu.memory_space<vmem>>, %arg4: memref<1x8x8x8xbf16, #tpu.memory_space<vmem>>) attributes {dimension_semantics = [#tpu.dimension_semantics<parallel>], iteration_bounds = array<i64: 2>, scalar_prefetch = 0 : i64, scratch_operands = 0 : i64, tpu.core_type = #tpu.core_type<tc>, window_params = [{transform_indices = @transform_0, window_bounds = array<i64: 1, 8, 100>}, {pipeline_mode = #tpu.pipeline_mode<synchronous>, transform_indices = @transform_1, window_bounds = array<i64: 9, 8, 8>}, {pipeline_mode = #tpu.pipeline_mode<synchronous>, transform_indices = @transform_2, window_bounds = array<i64: 8, 1>}, {transform_indices = @transform_3, window_bounds = array<i64: 1, 8, 8, 8>}]} {
    %cst = arith.constant 0.000000e+00 : f32
    %0 = vector.broadcast %cst : f32 to vector<8x78xf32>
    %c0 = arith.constant 0 : index
    %c0_0 = arith.constant 0 : index
    %c0_1 = arith.constant 0 : index
    %1 = vector.load %arg2[%c0, %c0_0, %c0_1] : memref<9x8x8xbf16, #tpu.memory_space<vmem>>, vector<1x8x8xbf16>
    %2 = vector.shape_cast %1 : vector<1x8x8xbf16> to vector<8x8xbf16>
    %c0_2 = arith.constant 0 : index
    %c0_3 = arith.constant 0 : index
    %c0_4 = arith.constant 0 : index
    %3 = vector.load %arg1[%c0_2, %c0_3, %c0_4] : memref<1x8x100xbf16, #tpu.memory_space<vmem>>, vector<1x8x78xbf16>
    %4 = vector.shape_cast %3 : vector<1x8x78xbf16> to vector<8x78xbf16>
    %cst_5 = arith.constant dense<0.000000e+00> : vector<8x78xf32>
    %5 = tpu.matmul %2, %4, %cst_5 {dimension_numbers = #tpu.dot_dimension_numbers<[1], [0], [0], [1], [0, 0, 1, 1], [], []>} : vector<8x8xbf16>, vector<8x78xbf16>, vector<8x78xf32> -> vector<8x78xf32>
    %6 = arith.addf %0, %5 : vector<8x78xf32>
    %c1 = arith.constant 1 : index
    %c0_6 = arith.constant 0 : index
    %c0_7 = arith.constant 0 : index
    %7 = vector.load %arg2[%c1, %c0_6, %c0_7] : memref<9x8x8xbf16, #tpu.memory_space<vmem>>, vector<1x8x8xbf16>
    %8 = vector.shape_cast %7 : vector<1x8x8xbf16> to vector<8x8xbf16>
    %c0_8 = arith.constant 0 : index
    %c0_9 = arith.constant 0 : index
    %c1_10 = arith.constant 1 : index
    %9 = vector.load %arg1[%c0_8, %c0_9, %c1_10] : memref<1x8x100xbf16, #tpu.memory_space<vmem>>, vector<1x8x78xbf16>
    %10 = vector.shape_cast %9 : vector<1x8x78xbf16> to vector<8x78xbf16>
    %cst_11 = arith.constant dense<0.000000e+00> : vector<8x78xf32>
    %11 = tpu.matmul %8, %10, %cst_11 {dimension_numbers = #tpu.dot_dimension_numbers<[1], [0], [0], [1], [0, 0, 1, 1], [], []>} : vector<8x8xbf16>, vector<8x78xbf16>, vector<8x78xf32> -> vector<8x78xf32>
    %12 = arith.addf %6, %11 : vector<8x78xf32>
    %c2 = arith.constant 2 : index
    %c0_12 = arith.constant 0 : index
    %c0_13 = arith.constant 0 : index
    %13 = vector.load %arg2[%c2, %c0_12, %c0_13] : memref<9x8x8xbf16, #tpu.memory_space<vmem>>, vector<1x8x8xbf16>
    %14 = vector.shape_cast %13 : vector<1x8x8xbf16> to vector<8x8xbf16>
    %c0_14 = arith.constant 0 : index
    %c0_15 = arith.constant 0 : index
    %c2_16 = arith.constant 2 : index
    %15 = vector.load %arg1[%c0_14, %c0_15, %c2_16] : memref<1x8x100xbf16, #tpu.memory_space<vmem>>, vector<1x8x78xbf16>
    %16 = vector.shape_cast %15 : vector<1x8x78xbf16> to vector<8x78xbf16>
    %cst_17 = arith.constant dense<0.000000e+00> : vector<8x78xf32>
    %17 = tpu.matmul %14, %16, %cst_17 {dimension_numbers = #tpu.dot_dimension_numbers<[1], [0], [0], [1], [0, 0, 1, 1], [], []>} : vector<8x8xbf16>, vector<8x78xbf16>, vector<8x78xf32> -> vector<8x78xf32>
    %18 = arith.addf %12, %17 : vector<8x78xf32>
    %c3 = arith.constant 3 : index
    %c0_18 = arith.constant 0 : index
    %c0_19 = arith.constant 0 : index
    %19 = vector.load %arg2[%c3, %c0_18, %c0_19] : memref<9x8x8xbf16, #tpu.memory_space<vmem>>, vector<1x8x8xbf16>
    %20 = vector.shape_cast %19 : vector<1x8x8xbf16> to vector<8x8xbf16>
    %c0_20 = arith.constant 0 : index
    %c0_21 = arith.constant 0 : index
    %c10 = arith.constant 10 : index
    %21 = vector.load %arg1[%c0_20, %c0_21, %c10] : memref<1x8x100xbf16, #tpu.memory_space<vmem>>, vector<1x8x78xbf16>
    %22 = vector.shape_cast %21 : vector<1x8x78xbf16> to vector<8x78xbf16>
    %cst_22 = arith.constant dense<0.000000e+00> : vector<8x78xf32>
    %23 = tpu.matmul %20, %22, %cst_22 {dimension_numbers = #tpu.dot_dimension_numbers<[1], [0], [0], [1], [0, 0, 1, 1], [], []>} : vector<8x8xbf16>, vector<8x78xbf16>, vector<8x78xf32> -> vector<8x78xf32>
    %24 = arith.addf %18, %23 : vector<8x78xf32>
    %c4 = arith.constant 4 : index
    %c0_23 = arith.constant 0 : index
    %c0_24 = arith.constant 0 : index
    %25 = vector.load %arg2[%c4, %c0_23, %c0_24] : memref<9x8x8xbf16, #tpu.memory_space<vmem>>, vector<1x8x8xbf16>
    %26 = vector.shape_cast %25 : vector<1x8x8xbf16> to vector<8x8xbf16>
    %c0_25 = arith.constant 0 : index
    %c0_26 = arith.constant 0 : index
    %c11 = arith.constant 11 : index
    %27 = vector.load %arg1[%c0_25, %c0_26, %c11] : memref<1x8x100xbf16, #tpu.memory_space<vmem>>, vector<1x8x78xbf16>
    %28 = vector.shape_cast %27 : vector<1x8x78xbf16> to vector<8x78xbf16>
    %cst_27 = arith.constant dense<0.000000e+00> : vector<8x78xf32>
    %29 = tpu.matmul %26, %28, %cst_27 {dimension_numbers = #tpu.dot_dimension_numbers<[1], [0], [0], [1], [0, 0, 1, 1], [], []>} : vector<8x8xbf16>, vector<8x78xbf16>, vector<8x78xf32> -> vector<8x78xf32>
    %30 = arith.addf %24, %29 : vector<8x78xf32>
    %c5 = arith.constant 5 : index
    %c0_28 = arith.constant 0 : index
    %c0_29 = arith.constant 0 : index
    %31 = vector.load %arg2[%c5, %c0_28, %c0_29] : memref<9x8x8xbf16, #tpu.memory_space<vmem>>, vector<1x8x8xbf16>
    %32 = vector.shape_cast %31 : vector<1x8x8xbf16> to vector<8x8xbf16>
    %c0_30 = arith.constant 0 : index
    %c0_31 = arith.constant 0 : index
    %c12 = arith.constant 12 : index
    %33 = vector.load %arg1[%c0_30, %c0_31, %c12] : memref<1x8x100xbf16, #tpu.memory_space<vmem>>, vector<1x8x78xbf16>
    %34 = vector.shape_cast %33 : vector<1x8x78xbf16> to vector<8x78xbf16>
    %cst_32 = arith.constant dense<0.000000e+00> : vector<8x78xf32>
    %35 = tpu.matmul %32, %34, %cst_32 {dimension_numbers = #tpu.dot_dimension_numbers<[1], [0], [0], [1], [0, 0, 1, 1], [], []>} : vector<8x8xbf16>, vector<8x78xbf16>, vector<8x78xf32> -> vector<8x78xf32>
    %36 = arith.addf %30, %35 : vector<8x78xf32>
    %c6 = arith.constant 6 : index
    %c0_33 = arith.constant 0 : index
    %c0_34 = arith.constant 0 : index
    %37 = vector.load %arg2[%c6, %c0_33, %c0_34] : memref<9x8x8xbf16, #tpu.memory_space<vmem>>, vector<1x8x8xbf16>
    %38 = vector.shape_cast %37 : vector<1x8x8xbf16> to vector<8x8xbf16>
    %c0_35 = arith.constant 0 : index
    %c0_36 = arith.constant 0 : index
    %c20 = arith.constant 20 : index
    %39 = vector.load %arg1[%c0_35, %c0_36, %c20] : memref<1x8x100xbf16, #tpu.memory_space<vmem>>, vector<1x8x78xbf16>
    %40 = vector.shape_cast %39 : vector<1x8x78xbf16> to vector<8x78xbf16>
    %cst_37 = arith.constant dense<0.000000e+00> : vector<8x78xf32>
    %41 = tpu.matmul %38, %40, %cst_37 {dimension_numbers = #tpu.dot_dimension_numbers<[1], [0], [0], [1], [0, 0, 1, 1], [], []>} : vector<8x8xbf16>, vector<8x78xbf16>, vector<8x78xf32> -> vector<8x78xf32>
    %42 = arith.addf %36, %41 : vector<8x78xf32>
    %c7 = arith.constant 7 : index
    %c0_38 = arith.constant 0 : index
    %c0_39 = arith.constant 0 : index
    %43 = vector.load %arg2[%c7, %c0_38, %c0_39] : memref<9x8x8xbf16, #tpu.memory_space<vmem>>, vector<1x8x8xbf16>
    %44 = vector.shape_cast %43 : vector<1x8x8xbf16> to vector<8x8xbf16>
    %c0_40 = arith.constant 0 : index
    %c0_41 = arith.constant 0 : index
    %c21 = arith.constant 21 : index
    %45 = vector.load %arg1[%c0_40, %c0_41, %c21] : memref<1x8x100xbf16, #tpu.memory_space<vmem>>, vector<1x8x78xbf16>
    %46 = vector.shape_cast %45 : vector<1x8x78xbf16> to vector<8x78xbf16>
    %cst_42 = arith.constant dense<0.000000e+00> : vector<8x78xf32>
    %47 = tpu.matmul %44, %46, %cst_42 {dimension_numbers = #tpu.dot_dimension_numbers<[1], [0], [0], [1], [0, 0, 1, 1], [], []>} : vector<8x8xbf16>, vector<8x78xbf16>, vector<8x78xf32> -> vector<8x78xf32>
    %48 = arith.addf %42, %47 : vector<8x78xf32>
    %c8 = arith.constant 8 : index
    %c0_43 = arith.constant 0 : index
    %c0_44 = arith.constant 0 : index
    %49 = vector.load %arg2[%c8, %c0_43, %c0_44] : memref<9x8x8xbf16, #tpu.memory_space<vmem>>, vector<1x8x8xbf16>
    %50 = vector.shape_cast %49 : vector<1x8x8xbf16> to vector<8x8xbf16>
    %c0_45 = arith.constant 0 : index
    %c0_46 = arith.constant 0 : index
    %c22 = arith.constant 22 : index
    %51 = vector.load %arg1[%c0_45, %c0_46, %c22] : memref<1x8x100xbf16, #tpu.memory_space<vmem>>, vector<1x8x78xbf16>
    %52 = vector.shape_cast %51 : vector<1x8x78xbf16> to vector<8x78xbf16>
    %cst_47 = arith.constant dense<0.000000e+00> : vector<8x78xf32>
    %53 = tpu.matmul %50, %52, %cst_47 {dimension_numbers = #tpu.dot_dimension_numbers<[1], [0], [0], [1], [0, 0, 1, 1], [], []>} : vector<8x8xbf16>, vector<8x78xbf16>, vector<8x78xf32> -> vector<8x78xf32>
    %54 = arith.addf %48, %53 : vector<8x78xf32>
    %55 = arith.truncf %54 : vector<8x78xf32> to vector<8x78xbf16>
    %56 = vector.extract_strided_slice %55 {offsets = [0, 0], sizes = [8, 8], strides = [1, 1]} : vector<8x78xbf16> to vector<8x8xbf16>
    %c0_48 = arith.constant 0 : index
    %c0_49 = arith.constant 0 : index
    %c0_50 = arith.constant 0 : index
    %c0_51 = arith.constant 0 : index
    %57 = vector.load %arg4[%c0_48, %c0_49, %c0_50, %c0_51] : memref<1x8x8x8xbf16, #tpu.memory_space<vmem>>, vector<1x8x1x8xbf16>
    %58 = vector.shape_cast %57 : vector<1x8x1x8xbf16> to vector<8x8xbf16>
    %59 = vector.shape_cast %56 : vector<8x8xbf16> to vector<1x8x1x8xbf16>
    tpu.vector_store %arg4[%c0_48, %c0_49, %c0_50, %c0_51], %59 {strides = array<i32>} : memref<1x8x8x8xbf16, #tpu.memory_space<vmem>>, vector<1x8x1x8xbf16>,
    %60 = vector.extract_strided_slice %55 {offsets = [0, 10], sizes = [8, 8], strides = [1, 1]} : vector<8x78xbf16> to vector<8x8xbf16>
    %c0_52 = arith.constant 0 : index
    %c0_53 = arith.constant 0 : index
    %c1_54 = arith.constant 1 : index
    %c0_55 = arith.constant 0 : index
    %61 = vector.load %arg4[%c0_52, %c0_53, %c1_54, %c0_55] : memref<1x8x8x8xbf16, #tpu.memory_space<vmem>>, vector<1x8x1x8xbf16>
    %62 = vector.shape_cast %61 : vector<1x8x1x8xbf16> to vector<8x8xbf16>
    %63 = vector.shape_cast %60 : vector<8x8xbf16> to vector<1x8x1x8xbf16>
    tpu.vector_store %arg4[%c0_52, %c0_53, %c1_54, %c0_55], %63 {strides = array<i32>} : memref<1x8x8x8xbf16, #tpu.memory_space<vmem>>, vector<1x8x1x8xbf16>,
    %64 = vector.extract_strided_slice %55 {offsets = [0, 20], sizes = [8, 8], strides = [1, 1]} : vector<8x78xbf16> to vector<8x8xbf16>
    %c0_56 = arith.constant 0 : index
    %c0_57 = arith.constant 0 : index
    %c2_58 = arith.constant 2 : index
    %c0_59 = arith.constant 0 : index
    %65 = vector.load %arg4[%c0_56, %c0_57, %c2_58, %c0_59] : memref<1x8x8x8xbf16, #tpu.memory_space<vmem>>, vector<1x8x1x8xbf16>
    %66 = vector.shape_cast %65 : vector<1x8x1x8xbf16> to vector<8x8xbf16>
    %67 = vector.shape_cast %64 : vector<8x8xbf16> to vector<1x8x1x8xbf16>
    tpu.vector_store %arg4[%c0_56, %c0_57, %c2_58, %c0_59], %67 {strides = array<i32>} : memref<1x8x8x8xbf16, #tpu.memory_space<vmem>>, vector<1x8x1x8xbf16>,
    %68 = vector.extract_strided_slice %55 {offsets = [0, 30], sizes = [8, 8], strides = [1, 1]} : vector<8x78xbf16> to vector<8x8xbf16>
    %c0_60 = arith.constant 0 : index
    %c0_61 = arith.constant 0 : index
    %c3_62 = arith.constant 3 : index
    %c0_63 = arith.constant 0 : index
    %69 = vector.load %arg4[%c0_60, %c0_61, %c3_62, %c0_63] : memref<1x8x8x8xbf16, #tpu.memory_space<vmem>>, vector<1x8x1x8xbf16>
    %70 = vector.shape_cast %69 : vector<1x8x1x8xbf16> to vector<8x8xbf16>
    %71 = vector.shape_cast %68 : vector<8x8xbf16> to vector<1x8x1x8xbf16>
    tpu.vector_store %arg4[%c0_60, %c0_61, %c3_62, %c0_63], %71 {strides = array<i32>} : memref<1x8x8x8xbf16, #tpu.memory_space<vmem>>, vector<1x8x1x8xbf16>,
    %72 = vector.extract_strided_slice %55 {offsets = [0, 40], sizes = [8, 8], strides = [1, 1]} : vector<8x78xbf16> to vector<8x8xbf16>
    %c0_64 = arith.constant 0 : index
    %c0_65 = arith.constant 0 : index
    %c4_66 = arith.constant 4 : index
    %c0_67 = arith.constant 0 : index
    %73 = vector.load %arg4[%c0_64, %c0_65, %c4_66, %c0_67] : memref<1x8x8x8xbf16, #tpu.memory_space<vmem>>, vector<1x8x1x8xbf16>
    %74 = vector.shape_cast %73 : vector<1x8x1x8xbf16> to vector<8x8xbf16>
    %75 = vector.shape_cast %72 : vector<8x8xbf16> to vector<1x8x1x8xbf16>
    tpu.vector_store %arg4[%c0_64, %c0_65, %c4_66, %c0_67], %75 {strides = array<i32>} : memref<1x8x8x8xbf16, #tpu.memory_space<vmem>>, vector<1x8x1x8xbf16>,
    %76 = vector.extract_strided_slice %55 {offsets = [0, 50], sizes = [8, 8], strides = [1, 1]} : vector<8x78xbf16> to vector<8x8xbf16>
    %c0_68 = arith.constant 0 : index
    %c0_69 = arith.constant 0 : index
    %c5_70 = arith.constant 5 : index
    %c0_71 = arith.constant 0 : index
    %77 = vector.load %arg4[%c0_68, %c0_69, %c5_70, %c0_71] : memref<1x8x8x8xbf16, #tpu.memory_space<vmem>>, vector<1x8x1x8xbf16>
    %78 = vector.shape_cast %77 : vector<1x8x1x8xbf16> to vector<8x8xbf16>
    %79 = vector.shape_cast %76 : vector<8x8xbf16> to vector<1x8x1x8xbf16>
    tpu.vector_store %arg4[%c0_68, %c0_69, %c5_70, %c0_71], %79 {strides = array<i32>} : memref<1x8x8x8xbf16, #tpu.memory_space<vmem>>, vector<1x8x1x8xbf16>,
    %80 = vector.extract_strided_slice %55 {offsets = [0, 60], sizes = [8, 8], strides = [1, 1]} : vector<8x78xbf16> to vector<8x8xbf16>
    %c0_72 = arith.constant 0 : index
    %c0_73 = arith.constant 0 : index
    %c6_74 = arith.constant 6 : index
    %c0_75 = arith.constant 0 : index
    %81 = vector.load %arg4[%c0_72, %c0_73, %c6_74, %c0_75] : memref<1x8x8x8xbf16, #tpu.memory_space<vmem>>, vector<1x8x1x8xbf16>
    %82 = vector.shape_cast %81 : vector<1x8x1x8xbf16> to vector<8x8xbf16>
    %83 = vector.shape_cast %80 : vector<8x8xbf16> to vector<1x8x1x8xbf16>
    tpu.vector_store %arg4[%c0_72, %c0_73, %c6_74, %c0_75], %83 {strides = array<i32>} : memref<1x8x8x8xbf16, #tpu.memory_space<vmem>>, vector<1x8x1x8xbf16>,
    %84 = vector.extract_strided_slice %55 {offsets = [0, 70], sizes = [8, 8], strides = [1, 1]} : vector<8x78xbf16> to vector<8x8xbf16>
    %c0_76 = arith.constant 0 : index
    %c0_77 = arith.constant 0 : index
    %c7_78 = arith.constant 7 : index
    %c0_79 = arith.constant 0 : index
    %85 = vector.load %arg4[%c0_76, %c0_77, %c7_78, %c0_79] : memref<1x8x8x8xbf16, #tpu.memory_space<vmem>>, vector<1x8x1x8xbf16>
    %86 = vector.shape_cast %85 : vector<1x8x1x8xbf16> to vector<8x8xbf16>
    %87 = vector.shape_cast %84 : vector<8x8xbf16> to vector<1x8x1x8xbf16>
    tpu.vector_store %arg4[%c0_76, %c0_77, %c7_78, %c0_79], %87 {strides = array<i32>} : memref<1x8x8x8xbf16, #tpu.memory_space<vmem>>, vector<1x8x1x8xbf16>,
    return
  }
  func.func @transform_0(%arg0: i32) -> (i32, i32, i32) {
    %c0_i32 = arith.constant 0 : i32
    %c0_i32_0 = arith.constant 0 : i32
    %c0_i32_1 = arith.constant 0 : i32
    return %arg0, %c0_i32, %c0_i32_0 : i32, i32, i32
  }
  func.func @transform_1(%arg0: i32) -> (i32, i32, i32) {
    %c0_i32 = arith.constant 0 : i32
    %c0_i32_0 = arith.constant 0 : i32
    %c0_i32_1 = arith.constant 0 : i32
    %c0_i32_2 = arith.constant 0 : i32
    return %c0_i32, %c0_i32_0, %c0_i32_1 : i32, i32, i32
  }
  func.func @transform_2(%arg0: i32) -> (i32, i32) {
    %c0_i32 = arith.constant 0 : i32
    %c0_i32_0 = arith.constant 0 : i32
    %c0_i32_1 = arith.constant 0 : i32
    return %c0_i32, %c0_i32_0 : i32, i32
  }
  func.func @transform_3(%arg0: i32) -> (i32, i32, i32, i32) {
    %c0_i32 = arith.constant 0 : i32
    %c0_i32_0 = arith.constant 0 : i32
    %c0_i32_1 = arith.constant 0 : i32
    %c0_i32_2 = arith.constant 0 : i32
    return %arg0, %c0_i32, %c0_i32_0, %c0_i32_1 : i32, i32, i32, i32
  }
}

module attributes {stable_mosaic.version = 11 : i64} {
  func.func @_gn_elu_res_kernel(%arg0: i32, %arg1: i32, %arg2: memref<1x1x4x64xbf16, #tpu.memory_space<vmem>>, %arg3: memref<1x1x4x64xbf16, #tpu.memory_space<vmem>>, %arg4: memref<1x4x1xf32, #tpu.memory_space<vmem>>, %arg5: memref<1x4x1xf32, #tpu.memory_space<vmem>>, %arg6: memref<1x1x4x64xbf16, #tpu.memory_space<vmem>>) attributes {dimension_semantics = [#tpu.dimension_semantics<parallel>, #tpu.dimension_semantics<parallel>], iteration_bounds = array<i64: 2, 2>, scalar_prefetch = 0 : i64, scratch_operands = 0 : i64, tpu.core_type = #tpu.core_type<tc>, window_params = [{transform_indices = @transform_0, window_bounds = array<i64: 1, 1, 4, 64>}, {transform_indices = @transform_1, window_bounds = array<i64: 1, 1, 4, 64>}, {transform_indices = @transform_2, window_bounds = array<i64: 1, 4, 1>}, {transform_indices = @transform_3, window_bounds = array<i64: 1, 4, 1>}, {transform_indices = @transform_4, window_bounds = array<i64: 1, 1, 4, 64>}]} {
    %c0 = arith.constant 0 : index
    %c0_0 = arith.constant 0 : index
    %c0_1 = arith.constant 0 : index
    %c0_2 = arith.constant 0 : index
    %0 = vector.load %arg2[%c0, %c0_0, %c0_1, %c0_2] : memref<1x1x4x64xbf16, #tpu.memory_space<vmem>>, vector<1x1x4x64xbf16>
    %1 = vector.shape_cast %0 : vector<1x1x4x64xbf16> to vector<4x64xbf16>
    %2 = arith.extf %1 : vector<4x64xbf16> to vector<4x64xf32>
    %c0_3 = arith.constant 0 : index
    %c0_4 = arith.constant 0 : index
    %c0_5 = arith.constant 0 : index
    %c0_6 = arith.constant 0 : index
    %3 = vector.load %arg3[%c0_3, %c0_4, %c0_5, %c0_6] : memref<1x1x4x64xbf16, #tpu.memory_space<vmem>>, vector<1x1x4x64xbf16>
    %4 = vector.shape_cast %3 : vector<1x1x4x64xbf16> to vector<4x64xbf16>
    %5 = arith.extf %4 : vector<4x64xbf16> to vector<4x64xf32>
    %c0_7 = arith.constant 0 : index
    %c0_8 = arith.constant 0 : index
    %c0_9 = arith.constant 0 : index
    %6 = vector.load %arg4[%c0_7, %c0_8, %c0_9] : memref<1x4x1xf32, #tpu.memory_space<vmem>>, vector<1x4x1xf32>
    %7 = vector.shape_cast %6 : vector<1x4x1xf32> to vector<4x1xf32>
    %c0_10 = arith.constant 0 : index
    %c0_11 = arith.constant 0 : index
    %c0_12 = arith.constant 0 : index
    %8 = vector.load %arg5[%c0_10, %c0_11, %c0_12] : memref<1x4x1xf32, #tpu.memory_space<vmem>>, vector<1x4x1xf32>
    %9 = vector.shape_cast %8 : vector<1x4x1xf32> to vector<4x1xf32>
    %cst = arith.constant dense<0.000000e+00> : vector<4xf32>
    %10 = vector.multi_reduction <add>, %2, %cst [1] : vector<4x64xf32> to vector<4xf32>
    %11 = vector.shape_cast %10 : vector<4xf32> to vector<4x1xf32>
    %cst_13 = arith.constant dense<0.000000e+00> : vector<1xf32>
    %12 = vector.multi_reduction <add>, %11, %cst_13 [0] : vector<4x1xf32> to vector<1xf32>
    %13 = vector.shape_cast %12 : vector<1xf32> to vector<1x1xf32>
    %cst_14 = arith.constant 2.560000e+02 : f32
    %14 = vector.broadcast %cst_14 : f32 to vector<1x1xf32>
    %15 = arith.divf %13, %14 : vector<1x1xf32>
    %16 = vector.broadcast %15 : vector<1x1xf32> to vector<4x64xf32>
    %17 = arith.subf %2, %16 : vector<4x64xf32>
    %18 = arith.mulf %17, %17 : vector<4x64xf32>
    %cst_15 = arith.constant dense<0.000000e+00> : vector<4xf32>
    %19 = vector.multi_reduction <add>, %18, %cst_15 [1] : vector<4x64xf32> to vector<4xf32>
    %20 = vector.shape_cast %19 : vector<4xf32> to vector<4x1xf32>
    %cst_16 = arith.constant dense<0.000000e+00> : vector<1xf32>
    %21 = vector.multi_reduction <add>, %20, %cst_16 [0] : vector<4x1xf32> to vector<1xf32>
    %22 = vector.shape_cast %21 : vector<1xf32> to vector<1x1xf32>
    %cst_17 = arith.constant 2.560000e+02 : f32
    %23 = vector.broadcast %cst_17 : f32 to vector<1x1xf32>
    %24 = arith.divf %22, %23 : vector<1x1xf32>
    %cst_18 = arith.constant 9.99999974E-6 : f32
    %25 = vector.broadcast %cst_18 : f32 to vector<1x1xf32>
    %26 = arith.addf %24, %25 : vector<1x1xf32>
    %27 = math.rsqrt %26 : vector<1x1xf32>
    %28 = vector.broadcast %27 : vector<1x1xf32> to vector<4x64xf32>
    %29 = arith.mulf %17, %28 : vector<4x64xf32>
    %30 = vector.broadcast %7 : vector<4x1xf32> to vector<4x64xf32>
    %31 = arith.mulf %29, %30 : vector<4x64xf32>
    %32 = vector.broadcast %9 : vector<4x1xf32> to vector<4x64xf32>
    %33 = arith.addf %31, %32 : vector<4x64xf32>
    %cst_19 = arith.constant 0.000000e+00 : f32
    %34 = vector.broadcast %cst_19 : f32 to vector<4x64xf32>
    %35 = arith.cmpf ogt, %33, %34 : vector<4x64xf32>
    %cst_20 = arith.constant 0.000000e+00 : f32
    %36 = vector.broadcast %cst_20 : f32 to vector<4x64xf32>
    %37 = arith.minimumf %33, %36 : vector<4x64xf32>
    %38 = math.exp %37 : vector<4x64xf32>
    %cst_21 = arith.constant 1.000000e+00 : f32
    %39 = vector.broadcast %cst_21 : f32 to vector<4x64xf32>
    %40 = arith.subf %38, %39 : vector<4x64xf32>
    %41 = arith.select %35, %33, %40 : vector<4x64xi1>, vector<4x64xf32>
    %42 = arith.addf %41, %5 : vector<4x64xf32>
    %43 = arith.truncf %42 : vector<4x64xf32> to vector<4x64xbf16>
    %c0_22 = arith.constant 0 : index
    %c0_23 = arith.constant 0 : index
    %c0_24 = arith.constant 0 : index
    %c0_25 = arith.constant 0 : index
    %44 = vector.load %arg6[%c0_22, %c0_23, %c0_24, %c0_25] : memref<1x1x4x64xbf16, #tpu.memory_space<vmem>>, vector<1x1x4x64xbf16>
    %45 = vector.shape_cast %44 : vector<1x1x4x64xbf16> to vector<4x64xbf16>
    %46 = vector.shape_cast %43 : vector<4x64xbf16> to vector<1x1x4x64xbf16>
    tpu.vector_store %arg6[%c0_22, %c0_23, %c0_24, %c0_25], %46 {strides = array<i32>} : memref<1x1x4x64xbf16, #tpu.memory_space<vmem>>, vector<1x1x4x64xbf16>,
    return
  }
  func.func @transform_0(%arg0: i32, %arg1: i32) -> (i32, i32, i32, i32) {
    %c0_i32 = arith.constant 0 : i32
    %c0_i32_0 = arith.constant 0 : i32
    %c0_i32_1 = arith.constant 0 : i32
    return %arg0, %arg1, %c0_i32, %c0_i32_0 : i32, i32, i32, i32
  }
  func.func @transform_1(%arg0: i32, %arg1: i32) -> (i32, i32, i32, i32) {
    %c0_i32 = arith.constant 0 : i32
    %c0_i32_0 = arith.constant 0 : i32
    %c0_i32_1 = arith.constant 0 : i32
    return %arg0, %arg1, %c0_i32, %c0_i32_0 : i32, i32, i32, i32
  }
  func.func @transform_2(%arg0: i32, %arg1: i32) -> (i32, i32, i32) {
    %c0_i32 = arith.constant 0 : i32
    %c0_i32_0 = arith.constant 0 : i32
    %c0_i32_1 = arith.constant 0 : i32
    return %arg1, %c0_i32, %c0_i32_0 : i32, i32, i32
  }
  func.func @transform_3(%arg0: i32, %arg1: i32) -> (i32, i32, i32) {
    %c0_i32 = arith.constant 0 : i32
    %c0_i32_0 = arith.constant 0 : i32
    %c0_i32_1 = arith.constant 0 : i32
    return %arg1, %c0_i32, %c0_i32_0 : i32, i32, i32
  }
  func.func @transform_4(%arg0: i32, %arg1: i32) -> (i32, i32, i32, i32) {
    %c0_i32 = arith.constant 0 : i32
    %c0_i32_0 = arith.constant 0 : i32
    %c0_i32_1 = arith.constant 0 : i32
    return %arg0, %arg1, %c0_i32, %c0_i32_0 : i32, i32, i32, i32
  }
}

module attributes {stable_mosaic.version = 11 : i64} {
  func.func @_conv_taps_kernel(%arg0: i32, %arg1: memref<1x8x324xbf16, #tpu.memory_space<vmem>>, %arg2: memref<9x8x8xbf16, #tpu.memory_space<vmem>>, %arg3: memref<8x1xf32, #tpu.memory_space<vmem>>, %arg4: memref<1x8x16x16xbf16, #tpu.memory_space<vmem>>) attributes {dimension_semantics = [#tpu.dimension_semantics<parallel>], iteration_bounds = array<i64: 2>, scalar_prefetch = 0 : i64, scratch_operands = 0 : i64, tpu.core_type = #tpu.core_type<tc>, window_params = [{transform_indices = @transform_0, window_bounds = array<i64: 1, 8, 324>}, {pipeline_mode = #tpu.pipeline_mode<synchronous>, transform_indices = @transform_1, window_bounds = array<i64: 9, 8, 8>}, {pipeline_mode = #tpu.pipeline_mode<synchronous>, transform_indices = @transform_2, window_bounds = array<i64: 8, 1>}, {transform_indices = @transform_3, window_bounds = array<i64: 1, 8, 16, 16>}]} {
    %cst = arith.constant 0.000000e+00 : f32
    %0 = vector.broadcast %cst : f32 to vector<8x286xf32>
    %c0 = arith.constant 0 : index
    %c0_0 = arith.constant 0 : index
    %c0_1 = arith.constant 0 : index
    %1 = vector.load %arg2[%c0, %c0_0, %c0_1] : memref<9x8x8xbf16, #tpu.memory_space<vmem>>, vector<1x8x8xbf16>
    %2 = vector.shape_cast %1 : vector<1x8x8xbf16> to vector<8x8xbf16>
    %c0_2 = arith.constant 0 : index
    %c0_3 = arith.constant 0 : index
    %c0_4 = arith.constant 0 : index
    %3 = vector.load %arg1[%c0_2, %c0_3, %c0_4] : memref<1x8x324xbf16, #tpu.memory_space<vmem>>, vector<1x8x286xbf16>
    %4 = vector.shape_cast %3 : vector<1x8x286xbf16> to vector<8x286xbf16>
    %cst_5 = arith.constant dense<0.000000e+00> : vector<8x286xf32>
    %5 = tpu.matmul %2, %4, %cst_5 {dimension_numbers = #tpu.dot_dimension_numbers<[1], [0], [0], [1], [0, 0, 1, 1], [], []>} : vector<8x8xbf16>, vector<8x286xbf16>, vector<8x286xf32> -> vector<8x286xf32>
    %6 = arith.addf %0, %5 : vector<8x286xf32>
    %c1 = arith.constant 1 : index
    %c0_6 = arith.constant 0 : index
    %c0_7 = arith.constant 0 : index
    %7 = vector.load %arg2[%c1, %c0_6, %c0_7] : memref<9x8x8xbf16, #tpu.memory_space<vmem>>, vector<1x8x8xbf16>
    %8 = vector.shape_cast %7 : vector<1x8x8xbf16> to vector<8x8xbf16>
    %c0_8 = arith.constant 0 : index
    %c0_9 = arith.constant 0 : index
    %c1_10 = arith.constant 1 : index
    %9 = vector.load %arg1[%c0_8, %c0_9, %c1_10] : memref<1x8x324xbf16, #tpu.memory_space<vmem>>, vector<1x8x286xbf16>
    %10 = vector.shape_cast %9 : vector<1x8x286xbf16> to vector<8x286xbf16>
    %cst_11 = arith.constant dense<0.000000e+00> : vector<8x286xf32>
    %11 = tpu.matmul %8, %10, %cst_11 {dimension_numbers = #tpu.dot_dimension_numbers<[1], [0], [0], [1], [0, 0, 1, 1], [], []>} : vector<8x8xbf16>, vector<8x286xbf16>, vector<8x286xf32> -> vector<8x286xf32>
    %12 = arith.addf %6, %11 : vector<8x286xf32>
    %c2 = arith.constant 2 : index
    %c0_12 = arith.constant 0 : index
    %c0_13 = arith.constant 0 : index
    %13 = vector.load %arg2[%c2, %c0_12, %c0_13] : memref<9x8x8xbf16, #tpu.memory_space<vmem>>, vector<1x8x8xbf16>
    %14 = vector.shape_cast %13 : vector<1x8x8xbf16> to vector<8x8xbf16>
    %c0_14 = arith.constant 0 : index
    %c0_15 = arith.constant 0 : index
    %c2_16 = arith.constant 2 : index
    %15 = vector.load %arg1[%c0_14, %c0_15, %c2_16] : memref<1x8x324xbf16, #tpu.memory_space<vmem>>, vector<1x8x286xbf16>
    %16 = vector.shape_cast %15 : vector<1x8x286xbf16> to vector<8x286xbf16>
    %cst_17 = arith.constant dense<0.000000e+00> : vector<8x286xf32>
    %17 = tpu.matmul %14, %16, %cst_17 {dimension_numbers = #tpu.dot_dimension_numbers<[1], [0], [0], [1], [0, 0, 1, 1], [], []>} : vector<8x8xbf16>, vector<8x286xbf16>, vector<8x286xf32> -> vector<8x286xf32>
    %18 = arith.addf %12, %17 : vector<8x286xf32>
    %c3 = arith.constant 3 : index
    %c0_18 = arith.constant 0 : index
    %c0_19 = arith.constant 0 : index
    %19 = vector.load %arg2[%c3, %c0_18, %c0_19] : memref<9x8x8xbf16, #tpu.memory_space<vmem>>, vector<1x8x8xbf16>
    %20 = vector.shape_cast %19 : vector<1x8x8xbf16> to vector<8x8xbf16>
    %c0_20 = arith.constant 0 : index
    %c0_21 = arith.constant 0 : index
    %c18 = arith.constant 18 : index
    %21 = vector.load %arg1[%c0_20, %c0_21, %c18] : memref<1x8x324xbf16, #tpu.memory_space<vmem>>, vector<1x8x286xbf16>
    %22 = vector.shape_cast %21 : vector<1x8x286xbf16> to vector<8x286xbf16>
    %cst_22 = arith.constant dense<0.000000e+00> : vector<8x286xf32>
    %23 = tpu.matmul %20, %22, %cst_22 {dimension_numbers = #tpu.dot_dimension_numbers<[1], [0], [0], [1], [0, 0, 1, 1], [], []>} : vector<8x8xbf16>, vector<8x286xbf16>, vector<8x286xf32> -> vector<8x286xf32>
    %24 = arith.addf %18, %23 : vector<8x286xf32>
    %c4 = arith.constant 4 : index
    %c0_23 = arith.constant 0 : index
    %c0_24 = arith.constant 0 : index
    %25 = vector.load %arg2[%c4, %c0_23, %c0_24] : memref<9x8x8xbf16, #tpu.memory_space<vmem>>, vector<1x8x8xbf16>
    %26 = vector.shape_cast %25 : vector<1x8x8xbf16> to vector<8x8xbf16>
    %c0_25 = arith.constant 0 : index
    %c0_26 = arith.constant 0 : index
    %c19 = arith.constant 19 : index
    %27 = vector.load %arg1[%c0_25, %c0_26, %c19] : memref<1x8x324xbf16, #tpu.memory_space<vmem>>, vector<1x8x286xbf16>
    %28 = vector.shape_cast %27 : vector<1x8x286xbf16> to vector<8x286xbf16>
    %cst_27 = arith.constant dense<0.000000e+00> : vector<8x286xf32>
    %29 = tpu.matmul %26, %28, %cst_27 {dimension_numbers = #tpu.dot_dimension_numbers<[1], [0], [0], [1], [0, 0, 1, 1], [], []>} : vector<8x8xbf16>, vector<8x286xbf16>, vector<8x286xf32> -> vector<8x286xf32>
    %30 = arith.addf %24, %29 : vector<8x286xf32>
    %c5 = arith.constant 5 : index
    %c0_28 = arith.constant 0 : index
    %c0_29 = arith.constant 0 : index
    %31 = vector.load %arg2[%c5, %c0_28, %c0_29] : memref<9x8x8xbf16, #tpu.memory_space<vmem>>, vector<1x8x8xbf16>
    %32 = vector.shape_cast %31 : vector<1x8x8xbf16> to vector<8x8xbf16>
    %c0_30 = arith.constant 0 : index
    %c0_31 = arith.constant 0 : index
    %c20 = arith.constant 20 : index
    %33 = vector.load %arg1[%c0_30, %c0_31, %c20] : memref<1x8x324xbf16, #tpu.memory_space<vmem>>, vector<1x8x286xbf16>
    %34 = vector.shape_cast %33 : vector<1x8x286xbf16> to vector<8x286xbf16>
    %cst_32 = arith.constant dense<0.000000e+00> : vector<8x286xf32>
    %35 = tpu.matmul %32, %34, %cst_32 {dimension_numbers = #tpu.dot_dimension_numbers<[1], [0], [0], [1], [0, 0, 1, 1], [], []>} : vector<8x8xbf16>, vector<8x286xbf16>, vector<8x286xf32> -> vector<8x286xf32>
    %36 = arith.addf %30, %35 : vector<8x286xf32>
    %c6 = arith.constant 6 : index
    %c0_33 = arith.constant 0 : index
    %c0_34 = arith.constant 0 : index
    %37 = vector.load %arg2[%c6, %c0_33, %c0_34] : memref<9x8x8xbf16, #tpu.memory_space<vmem>>, vector<1x8x8xbf16>
    %38 = vector.shape_cast %37 : vector<1x8x8xbf16> to vector<8x8xbf16>
    %c0_35 = arith.constant 0 : index
    %c0_36 = arith.constant 0 : index
    %c36 = arith.constant 36 : index
    %39 = vector.load %arg1[%c0_35, %c0_36, %c36] : memref<1x8x324xbf16, #tpu.memory_space<vmem>>, vector<1x8x286xbf16>
    %40 = vector.shape_cast %39 : vector<1x8x286xbf16> to vector<8x286xbf16>
    %cst_37 = arith.constant dense<0.000000e+00> : vector<8x286xf32>
    %41 = tpu.matmul %38, %40, %cst_37 {dimension_numbers = #tpu.dot_dimension_numbers<[1], [0], [0], [1], [0, 0, 1, 1], [], []>} : vector<8x8xbf16>, vector<8x286xbf16>, vector<8x286xf32> -> vector<8x286xf32>
    %42 = arith.addf %36, %41 : vector<8x286xf32>
    %c7 = arith.constant 7 : index
    %c0_38 = arith.constant 0 : index
    %c0_39 = arith.constant 0 : index
    %43 = vector.load %arg2[%c7, %c0_38, %c0_39] : memref<9x8x8xbf16, #tpu.memory_space<vmem>>, vector<1x8x8xbf16>
    %44 = vector.shape_cast %43 : vector<1x8x8xbf16> to vector<8x8xbf16>
    %c0_40 = arith.constant 0 : index
    %c0_41 = arith.constant 0 : index
    %c37 = arith.constant 37 : index
    %45 = vector.load %arg1[%c0_40, %c0_41, %c37] : memref<1x8x324xbf16, #tpu.memory_space<vmem>>, vector<1x8x286xbf16>
    %46 = vector.shape_cast %45 : vector<1x8x286xbf16> to vector<8x286xbf16>
    %cst_42 = arith.constant dense<0.000000e+00> : vector<8x286xf32>
    %47 = tpu.matmul %44, %46, %cst_42 {dimension_numbers = #tpu.dot_dimension_numbers<[1], [0], [0], [1], [0, 0, 1, 1], [], []>} : vector<8x8xbf16>, vector<8x286xbf16>, vector<8x286xf32> -> vector<8x286xf32>
    %48 = arith.addf %42, %47 : vector<8x286xf32>
    %c8 = arith.constant 8 : index
    %c0_43 = arith.constant 0 : index
    %c0_44 = arith.constant 0 : index
    %49 = vector.load %arg2[%c8, %c0_43, %c0_44] : memref<9x8x8xbf16, #tpu.memory_space<vmem>>, vector<1x8x8xbf16>
    %50 = vector.shape_cast %49 : vector<1x8x8xbf16> to vector<8x8xbf16>
    %c0_45 = arith.constant 0 : index
    %c0_46 = arith.constant 0 : index
    %c38 = arith.constant 38 : index
    %51 = vector.load %arg1[%c0_45, %c0_46, %c38] : memref<1x8x324xbf16, #tpu.memory_space<vmem>>, vector<1x8x286xbf16>
    %52 = vector.shape_cast %51 : vector<1x8x286xbf16> to vector<8x286xbf16>
    %cst_47 = arith.constant dense<0.000000e+00> : vector<8x286xf32>
    %53 = tpu.matmul %50, %52, %cst_47 {dimension_numbers = #tpu.dot_dimension_numbers<[1], [0], [0], [1], [0, 0, 1, 1], [], []>} : vector<8x8xbf16>, vector<8x286xbf16>, vector<8x286xf32> -> vector<8x286xf32>
    %54 = arith.addf %48, %53 : vector<8x286xf32>
    %55 = arith.truncf %54 : vector<8x286xf32> to vector<8x286xbf16>
    %56 = vector.extract_strided_slice %55 {offsets = [0, 0], sizes = [8, 16], strides = [1, 1]} : vector<8x286xbf16> to vector<8x16xbf16>
    %c0_48 = arith.constant 0 : index
    %c0_49 = arith.constant 0 : index
    %c0_50 = arith.constant 0 : index
    %c0_51 = arith.constant 0 : index
    %57 = vector.load %arg4[%c0_48, %c0_49, %c0_50, %c0_51] : memref<1x8x16x16xbf16, #tpu.memory_space<vmem>>, vector<1x8x1x16xbf16>
    %58 = vector.shape_cast %57 : vector<1x8x1x16xbf16> to vector<8x16xbf16>
    %59 = vector.shape_cast %56 : vector<8x16xbf16> to vector<1x8x1x16xbf16>
    tpu.vector_store %arg4[%c0_48, %c0_49, %c0_50, %c0_51], %59 {strides = array<i32>} : memref<1x8x16x16xbf16, #tpu.memory_space<vmem>>, vector<1x8x1x16xbf16>,
    %60 = vector.extract_strided_slice %55 {offsets = [0, 18], sizes = [8, 16], strides = [1, 1]} : vector<8x286xbf16> to vector<8x16xbf16>
    %c0_52 = arith.constant 0 : index
    %c0_53 = arith.constant 0 : index
    %c1_54 = arith.constant 1 : index
    %c0_55 = arith.constant 0 : index
    %61 = vector.load %arg4[%c0_52, %c0_53, %c1_54, %c0_55] : memref<1x8x16x16xbf16, #tpu.memory_space<vmem>>, vector<1x8x1x16xbf16>
    %62 = vector.shape_cast %61 : vector<1x8x1x16xbf16> to vector<8x16xbf16>
    %63 = vector.shape_cast %60 : vector<8x16xbf16> to vector<1x8x1x16xbf16>
    tpu.vector_store %arg4[%c0_52, %c0_53, %c1_54, %c0_55], %63 {strides = array<i32>} : memref<1x8x16x16xbf16, #tpu.memory_space<vmem>>, vector<1x8x1x16xbf16>,
    %64 = vector.extract_strided_slice %55 {offsets = [0, 36], sizes = [8, 16], strides = [1, 1]} : vector<8x286xbf16> to vector<8x16xbf16>
    %c0_56 = arith.constant 0 : index
    %c0_57 = arith.constant 0 : index
    %c2_58 = arith.constant 2 : index
    %c0_59 = arith.constant 0 : index
    %65 = vector.load %arg4[%c0_56, %c0_57, %c2_58, %c0_59] : memref<1x8x16x16xbf16, #tpu.memory_space<vmem>>, vector<1x8x1x16xbf16>
    %66 = vector.shape_cast %65 : vector<1x8x1x16xbf16> to vector<8x16xbf16>
    %67 = vector.shape_cast %64 : vector<8x16xbf16> to vector<1x8x1x16xbf16>
    tpu.vector_store %arg4[%c0_56, %c0_57, %c2_58, %c0_59], %67 {strides = array<i32>} : memref<1x8x16x16xbf16, #tpu.memory_space<vmem>>, vector<1x8x1x16xbf16>,
    %68 = vector.extract_strided_slice %55 {offsets = [0, 54], sizes = [8, 16], strides = [1, 1]} : vector<8x286xbf16> to vector<8x16xbf16>
    %c0_60 = arith.constant 0 : index
    %c0_61 = arith.constant 0 : index
    %c3_62 = arith.constant 3 : index
    %c0_63 = arith.constant 0 : index
    %69 = vector.load %arg4[%c0_60, %c0_61, %c3_62, %c0_63] : memref<1x8x16x16xbf16, #tpu.memory_space<vmem>>, vector<1x8x1x16xbf16>
    %70 = vector.shape_cast %69 : vector<1x8x1x16xbf16> to vector<8x16xbf16>
    %71 = vector.shape_cast %68 : vector<8x16xbf16> to vector<1x8x1x16xbf16>
    tpu.vector_store %arg4[%c0_60, %c0_61, %c3_62, %c0_63], %71 {strides = array<i32>} : memref<1x8x16x16xbf16, #tpu.memory_space<vmem>>, vector<1x8x1x16xbf16>,
    %72 = vector.extract_strided_slice %55 {offsets = [0, 72], sizes = [8, 16], strides = [1, 1]} : vector<8x286xbf16> to vector<8x16xbf16>
    %c0_64 = arith.constant 0 : index
    %c0_65 = arith.constant 0 : index
    %c4_66 = arith.constant 4 : index
    %c0_67 = arith.constant 0 : index
    %73 = vector.load %arg4[%c0_64, %c0_65, %c4_66, %c0_67] : memref<1x8x16x16xbf16, #tpu.memory_space<vmem>>, vector<1x8x1x16xbf16>
    %74 = vector.shape_cast %73 : vector<1x8x1x16xbf16> to vector<8x16xbf16>
    %75 = vector.shape_cast %72 : vector<8x16xbf16> to vector<1x8x1x16xbf16>
    tpu.vector_store %arg4[%c0_64, %c0_65, %c4_66, %c0_67], %75 {strides = array<i32>} : memref<1x8x16x16xbf16, #tpu.memory_space<vmem>>, vector<1x8x1x16xbf16>,
    %76 = vector.extract_strided_slice %55 {offsets = [0, 90], sizes = [8, 16], strides = [1, 1]} : vector<8x286xbf16> to vector<8x16xbf16>
    %c0_68 = arith.constant 0 : index
    %c0_69 = arith.constant 0 : index
    %c5_70 = arith.constant 5 : index
    %c0_71 = arith.constant 0 : index
    %77 = vector.load %arg4[%c0_68, %c0_69, %c5_70, %c0_71] : memref<1x8x16x16xbf16, #tpu.memory_space<vmem>>, vector<1x8x1x16xbf16>
    %78 = vector.shape_cast %77 : vector<1x8x1x16xbf16> to vector<8x16xbf16>
    %79 = vector.shape_cast %76 : vector<8x16xbf16> to vector<1x8x1x16xbf16>
    tpu.vector_store %arg4[%c0_68, %c0_69, %c5_70, %c0_71], %79 {strides = array<i32>} : memref<1x8x16x16xbf16, #tpu.memory_space<vmem>>, vector<1x8x1x16xbf16>,
    %80 = vector.extract_strided_slice %55 {offsets = [0, 108], sizes = [8, 16], strides = [1, 1]} : vector<8x286xbf16> to vector<8x16xbf16>
    %c0_72 = arith.constant 0 : index
    %c0_73 = arith.constant 0 : index
    %c6_74 = arith.constant 6 : index
    %c0_75 = arith.constant 0 : index
    %81 = vector.load %arg4[%c0_72, %c0_73, %c6_74, %c0_75] : memref<1x8x16x16xbf16, #tpu.memory_space<vmem>>, vector<1x8x1x16xbf16>
    %82 = vector.shape_cast %81 : vector<1x8x1x16xbf16> to vector<8x16xbf16>
    %83 = vector.shape_cast %80 : vector<8x16xbf16> to vector<1x8x1x16xbf16>
    tpu.vector_store %arg4[%c0_72, %c0_73, %c6_74, %c0_75], %83 {strides = array<i32>} : memref<1x8x16x16xbf16, #tpu.memory_space<vmem>>, vector<1x8x1x16xbf16>,
    %84 = vector.extract_strided_slice %55 {offsets = [0, 126], sizes = [8, 16], strides = [1, 1]} : vector<8x286xbf16> to vector<8x16xbf16>
    %c0_76 = arith.constant 0 : index
    %c0_77 = arith.constant 0 : index
    %c7_78 = arith.constant 7 : index
    %c0_79 = arith.constant 0 : index
    %85 = vector.load %arg4[%c0_76, %c0_77, %c7_78, %c0_79] : memref<1x8x16x16xbf16, #tpu.memory_space<vmem>>, vector<1x8x1x16xbf16>
    %86 = vector.shape_cast %85 : vector<1x8x1x16xbf16> to vector<8x16xbf16>
    %87 = vector.shape_cast %84 : vector<8x16xbf16> to vector<1x8x1x16xbf16>
    tpu.vector_store %arg4[%c0_76, %c0_77, %c7_78, %c0_79], %87 {strides = array<i32>} : memref<1x8x16x16xbf16, #tpu.memory_space<vmem>>, vector<1x8x1x16xbf16>,
    %88 = vector.extract_strided_slice %55 {offsets = [0, 144], sizes = [8, 16], strides = [1, 1]} : vector<8x286xbf16> to vector<8x16xbf16>
    %c0_80 = arith.constant 0 : index
    %c0_81 = arith.constant 0 : index
    %c8_82 = arith.constant 8 : index
    %c0_83 = arith.constant 0 : index
    %89 = vector.load %arg4[%c0_80, %c0_81, %c8_82, %c0_83] : memref<1x8x16x16xbf16, #tpu.memory_space<vmem>>, vector<1x8x1x16xbf16>
    %90 = vector.shape_cast %89 : vector<1x8x1x16xbf16> to vector<8x16xbf16>
    %91 = vector.shape_cast %88 : vector<8x16xbf16> to vector<1x8x1x16xbf16>
    tpu.vector_store %arg4[%c0_80, %c0_81, %c8_82, %c0_83], %91 {strides = array<i32>} : memref<1x8x16x16xbf16, #tpu.memory_space<vmem>>, vector<1x8x1x16xbf16>,
    %92 = vector.extract_strided_slice %55 {offsets = [0, 162], sizes = [8, 16], strides = [1, 1]} : vector<8x286xbf16> to vector<8x16xbf16>
    %c0_84 = arith.constant 0 : index
    %c0_85 = arith.constant 0 : index
    %c9 = arith.constant 9 : index
    %c0_86 = arith.constant 0 : index
    %93 = vector.load %arg4[%c0_84, %c0_85, %c9, %c0_86] : memref<1x8x16x16xbf16, #tpu.memory_space<vmem>>, vector<1x8x1x16xbf16>
    %94 = vector.shape_cast %93 : vector<1x8x1x16xbf16> to vector<8x16xbf16>
    %95 = vector.shape_cast %92 : vector<8x16xbf16> to vector<1x8x1x16xbf16>
    tpu.vector_store %arg4[%c0_84, %c0_85, %c9, %c0_86], %95 {strides = array<i32>} : memref<1x8x16x16xbf16, #tpu.memory_space<vmem>>, vector<1x8x1x16xbf16>,
    %96 = vector.extract_strided_slice %55 {offsets = [0, 180], sizes = [8, 16], strides = [1, 1]} : vector<8x286xbf16> to vector<8x16xbf16>
    %c0_87 = arith.constant 0 : index
    %c0_88 = arith.constant 0 : index
    %c10 = arith.constant 10 : index
    %c0_89 = arith.constant 0 : index
    %97 = vector.load %arg4[%c0_87, %c0_88, %c10, %c0_89] : memref<1x8x16x16xbf16, #tpu.memory_space<vmem>>, vector<1x8x1x16xbf16>
    %98 = vector.shape_cast %97 : vector<1x8x1x16xbf16> to vector<8x16xbf16>
    %99 = vector.shape_cast %96 : vector<8x16xbf16> to vector<1x8x1x16xbf16>
    tpu.vector_store %arg4[%c0_87, %c0_88, %c10, %c0_89], %99 {strides = array<i32>} : memref<1x8x16x16xbf16, #tpu.memory_space<vmem>>, vector<1x8x1x16xbf16>,
    %100 = vector.extract_strided_slice %55 {offsets = [0, 198], sizes = [8, 16], strides = [1, 1]} : vector<8x286xbf16> to vector<8x16xbf16>
    %c0_90 = arith.constant 0 : index
    %c0_91 = arith.constant 0 : index
    %c11 = arith.constant 11 : index
    %c0_92 = arith.constant 0 : index
    %101 = vector.load %arg4[%c0_90, %c0_91, %c11, %c0_92] : memref<1x8x16x16xbf16, #tpu.memory_space<vmem>>, vector<1x8x1x16xbf16>
    %102 = vector.shape_cast %101 : vector<1x8x1x16xbf16> to vector<8x16xbf16>
    %103 = vector.shape_cast %100 : vector<8x16xbf16> to vector<1x8x1x16xbf16>
    tpu.vector_store %arg4[%c0_90, %c0_91, %c11, %c0_92], %103 {strides = array<i32>} : memref<1x8x16x16xbf16, #tpu.memory_space<vmem>>, vector<1x8x1x16xbf16>,
    %104 = vector.extract_strided_slice %55 {offsets = [0, 216], sizes = [8, 16], strides = [1, 1]} : vector<8x286xbf16> to vector<8x16xbf16>
    %c0_93 = arith.constant 0 : index
    %c0_94 = arith.constant 0 : index
    %c12 = arith.constant 12 : index
    %c0_95 = arith.constant 0 : index
    %105 = vector.load %arg4[%c0_93, %c0_94, %c12, %c0_95] : memref<1x8x16x16xbf16, #tpu.memory_space<vmem>>, vector<1x8x1x16xbf16>
    %106 = vector.shape_cast %105 : vector<1x8x1x16xbf16> to vector<8x16xbf16>
    %107 = vector.shape_cast %104 : vector<8x16xbf16> to vector<1x8x1x16xbf16>
    tpu.vector_store %arg4[%c0_93, %c0_94, %c12, %c0_95], %107 {strides = array<i32>} : memref<1x8x16x16xbf16, #tpu.memory_space<vmem>>, vector<1x8x1x16xbf16>,
    %108 = vector.extract_strided_slice %55 {offsets = [0, 234], sizes = [8, 16], strides = [1, 1]} : vector<8x286xbf16> to vector<8x16xbf16>
    %c0_96 = arith.constant 0 : index
    %c0_97 = arith.constant 0 : index
    %c13 = arith.constant 13 : index
    %c0_98 = arith.constant 0 : index
    %109 = vector.load %arg4[%c0_96, %c0_97, %c13, %c0_98] : memref<1x8x16x16xbf16, #tpu.memory_space<vmem>>, vector<1x8x1x16xbf16>
    %110 = vector.shape_cast %109 : vector<1x8x1x16xbf16> to vector<8x16xbf16>
    %111 = vector.shape_cast %108 : vector<8x16xbf16> to vector<1x8x1x16xbf16>
    tpu.vector_store %arg4[%c0_96, %c0_97, %c13, %c0_98], %111 {strides = array<i32>} : memref<1x8x16x16xbf16, #tpu.memory_space<vmem>>, vector<1x8x1x16xbf16>,
    %112 = vector.extract_strided_slice %55 {offsets = [0, 252], sizes = [8, 16], strides = [1, 1]} : vector<8x286xbf16> to vector<8x16xbf16>
    %c0_99 = arith.constant 0 : index
    %c0_100 = arith.constant 0 : index
    %c14 = arith.constant 14 : index
    %c0_101 = arith.constant 0 : index
    %113 = vector.load %arg4[%c0_99, %c0_100, %c14, %c0_101] : memref<1x8x16x16xbf16, #tpu.memory_space<vmem>>, vector<1x8x1x16xbf16>
    %114 = vector.shape_cast %113 : vector<1x8x1x16xbf16> to vector<8x16xbf16>
    %115 = vector.shape_cast %112 : vector<8x16xbf16> to vector<1x8x1x16xbf16>
    tpu.vector_store %arg4[%c0_99, %c0_100, %c14, %c0_101], %115 {strides = array<i32>} : memref<1x8x16x16xbf16, #tpu.memory_space<vmem>>, vector<1x8x1x16xbf16>,
    %116 = vector.extract_strided_slice %55 {offsets = [0, 270], sizes = [8, 16], strides = [1, 1]} : vector<8x286xbf16> to vector<8x16xbf16>
    %c0_102 = arith.constant 0 : index
    %c0_103 = arith.constant 0 : index
    %c15 = arith.constant 15 : index
    %c0_104 = arith.constant 0 : index
    %117 = vector.load %arg4[%c0_102, %c0_103, %c15, %c0_104] : memref<1x8x16x16xbf16, #tpu.memory_space<vmem>>, vector<1x8x1x16xbf16>
    %118 = vector.shape_cast %117 : vector<1x8x1x16xbf16> to vector<8x16xbf16>
    %119 = vector.shape_cast %116 : vector<8x16xbf16> to vector<1x8x1x16xbf16>
    tpu.vector_store %arg4[%c0_102, %c0_103, %c15, %c0_104], %119 {strides = array<i32>} : memref<1x8x16x16xbf16, #tpu.memory_space<vmem>>, vector<1x8x1x16xbf16>,
    return
  }
  func.func @transform_0(%arg0: i32) -> (i32, i32, i32) {
    %c0_i32 = arith.constant 0 : i32
    %c0_i32_0 = arith.constant 0 : i32
    %c0_i32_1 = arith.constant 0 : i32
    return %arg0, %c0_i32, %c0_i32_0 : i32, i32, i32
  }
  func.func @transform_1(%arg0: i32) -> (i32, i32, i32) {
    %c0_i32 = arith.constant 0 : i32
    %c0_i32_0 = arith.constant 0 : i32
    %c0_i32_1 = arith.constant 0 : i32
    %c0_i32_2 = arith.constant 0 : i32
    return %c0_i32, %c0_i32_0, %c0_i32_1 : i32, i32, i32
  }
  func.func @transform_2(%arg0: i32) -> (i32, i32) {
    %c0_i32 = arith.constant 0 : i32
    %c0_i32_0 = arith.constant 0 : i32
    %c0_i32_1 = arith.constant 0 : i32
    return %c0_i32, %c0_i32_0 : i32, i32
  }
  func.func @transform_3(%arg0: i32) -> (i32, i32, i32, i32) {
    %c0_i32 = arith.constant 0 : i32
    %c0_i32_0 = arith.constant 0 : i32
    %c0_i32_1 = arith.constant 0 : i32
    %c0_i32_2 = arith.constant 0 : i32
    return %arg0, %c0_i32, %c0_i32_0, %c0_i32_1 : i32, i32, i32, i32
  }
}

module attributes {stable_mosaic.version = 11 : i64} {
  func.func @_gn_elu_kernel(%arg0: i32, %arg1: i32, %arg2: memref<1x1x4x256xbf16, #tpu.memory_space<vmem>>, %arg3: memref<1x4x1xf32, #tpu.memory_space<vmem>>, %arg4: memref<1x4x1xf32, #tpu.memory_space<vmem>>, %arg5: memref<1x1x4x256xbf16, #tpu.memory_space<vmem>>) attributes {dimension_semantics = [#tpu.dimension_semantics<parallel>, #tpu.dimension_semantics<parallel>], iteration_bounds = array<i64: 2, 2>, scalar_prefetch = 0 : i64, scratch_operands = 0 : i64, tpu.core_type = #tpu.core_type<tc>, window_params = [{transform_indices = @transform_0, window_bounds = array<i64: 1, 1, 4, 256>}, {transform_indices = @transform_1, window_bounds = array<i64: 1, 4, 1>}, {transform_indices = @transform_2, window_bounds = array<i64: 1, 4, 1>}, {transform_indices = @transform_3, window_bounds = array<i64: 1, 1, 4, 256>}]} {
    %c0 = arith.constant 0 : index
    %c0_0 = arith.constant 0 : index
    %c0_1 = arith.constant 0 : index
    %c0_2 = arith.constant 0 : index
    %0 = vector.load %arg2[%c0, %c0_0, %c0_1, %c0_2] : memref<1x1x4x256xbf16, #tpu.memory_space<vmem>>, vector<1x1x4x256xbf16>
    %1 = vector.shape_cast %0 : vector<1x1x4x256xbf16> to vector<4x256xbf16>
    %2 = arith.extf %1 : vector<4x256xbf16> to vector<4x256xf32>
    %c0_3 = arith.constant 0 : index
    %c0_4 = arith.constant 0 : index
    %c0_5 = arith.constant 0 : index
    %3 = vector.load %arg3[%c0_3, %c0_4, %c0_5] : memref<1x4x1xf32, #tpu.memory_space<vmem>>, vector<1x4x1xf32>
    %4 = vector.shape_cast %3 : vector<1x4x1xf32> to vector<4x1xf32>
    %c0_6 = arith.constant 0 : index
    %c0_7 = arith.constant 0 : index
    %c0_8 = arith.constant 0 : index
    %5 = vector.load %arg4[%c0_6, %c0_7, %c0_8] : memref<1x4x1xf32, #tpu.memory_space<vmem>>, vector<1x4x1xf32>
    %6 = vector.shape_cast %5 : vector<1x4x1xf32> to vector<4x1xf32>
    %cst = arith.constant dense<0.000000e+00> : vector<4xf32>
    %7 = vector.multi_reduction <add>, %2, %cst [1] : vector<4x256xf32> to vector<4xf32>
    %8 = vector.shape_cast %7 : vector<4xf32> to vector<4x1xf32>
    %cst_9 = arith.constant dense<0.000000e+00> : vector<1xf32>
    %9 = vector.multi_reduction <add>, %8, %cst_9 [0] : vector<4x1xf32> to vector<1xf32>
    %10 = vector.shape_cast %9 : vector<1xf32> to vector<1x1xf32>
    %cst_10 = arith.constant 1.024000e+03 : f32
    %11 = vector.broadcast %cst_10 : f32 to vector<1x1xf32>
    %12 = arith.divf %10, %11 : vector<1x1xf32>
    %13 = vector.broadcast %12 : vector<1x1xf32> to vector<4x256xf32>
    %14 = arith.subf %2, %13 : vector<4x256xf32>
    %15 = arith.mulf %14, %14 : vector<4x256xf32>
    %cst_11 = arith.constant dense<0.000000e+00> : vector<4xf32>
    %16 = vector.multi_reduction <add>, %15, %cst_11 [1] : vector<4x256xf32> to vector<4xf32>
    %17 = vector.shape_cast %16 : vector<4xf32> to vector<4x1xf32>
    %cst_12 = arith.constant dense<0.000000e+00> : vector<1xf32>
    %18 = vector.multi_reduction <add>, %17, %cst_12 [0] : vector<4x1xf32> to vector<1xf32>
    %19 = vector.shape_cast %18 : vector<1xf32> to vector<1x1xf32>
    %cst_13 = arith.constant 1.024000e+03 : f32
    %20 = vector.broadcast %cst_13 : f32 to vector<1x1xf32>
    %21 = arith.divf %19, %20 : vector<1x1xf32>
    %cst_14 = arith.constant 9.99999974E-6 : f32
    %22 = vector.broadcast %cst_14 : f32 to vector<1x1xf32>
    %23 = arith.addf %21, %22 : vector<1x1xf32>
    %24 = math.rsqrt %23 : vector<1x1xf32>
    %25 = vector.broadcast %24 : vector<1x1xf32> to vector<4x256xf32>
    %26 = arith.mulf %14, %25 : vector<4x256xf32>
    %27 = vector.broadcast %4 : vector<4x1xf32> to vector<4x256xf32>
    %28 = arith.mulf %26, %27 : vector<4x256xf32>
    %29 = vector.broadcast %6 : vector<4x1xf32> to vector<4x256xf32>
    %30 = arith.addf %28, %29 : vector<4x256xf32>
    %cst_15 = arith.constant 0.000000e+00 : f32
    %31 = vector.broadcast %cst_15 : f32 to vector<4x256xf32>
    %32 = arith.cmpf ogt, %30, %31 : vector<4x256xf32>
    %cst_16 = arith.constant 0.000000e+00 : f32
    %33 = vector.broadcast %cst_16 : f32 to vector<4x256xf32>
    %34 = arith.minimumf %30, %33 : vector<4x256xf32>
    %35 = math.exp %34 : vector<4x256xf32>
    %cst_17 = arith.constant 1.000000e+00 : f32
    %36 = vector.broadcast %cst_17 : f32 to vector<4x256xf32>
    %37 = arith.subf %35, %36 : vector<4x256xf32>
    %38 = arith.select %32, %30, %37 : vector<4x256xi1>, vector<4x256xf32>
    %39 = arith.truncf %38 : vector<4x256xf32> to vector<4x256xbf16>
    %c0_18 = arith.constant 0 : index
    %c0_19 = arith.constant 0 : index
    %c0_20 = arith.constant 0 : index
    %c0_21 = arith.constant 0 : index
    %40 = vector.load %arg5[%c0_18, %c0_19, %c0_20, %c0_21] : memref<1x1x4x256xbf16, #tpu.memory_space<vmem>>, vector<1x1x4x256xbf16>
    %41 = vector.shape_cast %40 : vector<1x1x4x256xbf16> to vector<4x256xbf16>
    %42 = vector.shape_cast %39 : vector<4x256xbf16> to vector<1x1x4x256xbf16>
    tpu.vector_store %arg5[%c0_18, %c0_19, %c0_20, %c0_21], %42 {strides = array<i32>} : memref<1x1x4x256xbf16, #tpu.memory_space<vmem>>, vector<1x1x4x256xbf16>,
    return
  }
  func.func @transform_0(%arg0: i32, %arg1: i32) -> (i32, i32, i32, i32) {
    %c0_i32 = arith.constant 0 : i32
    %c0_i32_0 = arith.constant 0 : i32
    %c0_i32_1 = arith.constant 0 : i32
    return %arg0, %arg1, %c0_i32, %c0_i32_0 : i32, i32, i32, i32
  }
  func.func @transform_1(%arg0: i32, %arg1: i32) -> (i32, i32, i32) {
    %c0_i32 = arith.constant 0 : i32
    %c0_i32_0 = arith.constant 0 : i32
    %c0_i32_1 = arith.constant 0 : i32
    return %arg1, %c0_i32, %c0_i32_0 : i32, i32, i32
  }
  func.func @transform_2(%arg0: i32, %arg1: i32) -> (i32, i32, i32) {
    %c0_i32 = arith.constant 0 : i32
    %c0_i32_0 = arith.constant 0 : i32
    %c0_i32_1 = arith.constant 0 : i32
    return %arg1, %c0_i32, %c0_i32_0 : i32, i32, i32
  }
  func.func @transform_3(%arg0: i32, %arg1: i32) -> (i32, i32, i32, i32) {
    %c0_i32 = arith.constant 0 : i32
    %c0_i32_0 = arith.constant 0 : i32
    %c0_i32_1 = arith.constant 0 : i32
    return %arg0, %arg1, %c0_i32, %c0_i32_0 : i32, i32, i32, i32
  }
}

module attributes {stable_mosaic.version = 11 : i64} {
  func.func @_conv_taps_kernel(%arg0: i32, %arg1: memref<1x8x324xbf16, #tpu.memory_space<vmem>>, %arg2: memref<9x3x8xbf16, #tpu.memory_space<vmem>>, %arg3: memref<3x1xf32, #tpu.memory_space<vmem>>, %arg4: memref<1x3x16x16xf32, #tpu.memory_space<vmem>>) attributes {dimension_semantics = [#tpu.dimension_semantics<parallel>], iteration_bounds = array<i64: 2>, scalar_prefetch = 0 : i64, scratch_operands = 0 : i64, tpu.core_type = #tpu.core_type<tc>, window_params = [{transform_indices = @transform_0, window_bounds = array<i64: 1, 8, 324>}, {pipeline_mode = #tpu.pipeline_mode<synchronous>, transform_indices = @transform_1, window_bounds = array<i64: 9, 3, 8>}, {pipeline_mode = #tpu.pipeline_mode<synchronous>, transform_indices = @transform_2, window_bounds = array<i64: 3, 1>}, {transform_indices = @transform_3, window_bounds = array<i64: 1, 3, 16, 16>}]} {
    %cst = arith.constant 0.000000e+00 : f32
    %0 = vector.broadcast %cst : f32 to vector<3x286xf32>
    %c0 = arith.constant 0 : index
    %c0_0 = arith.constant 0 : index
    %c0_1 = arith.constant 0 : index
    %1 = vector.load %arg2[%c0, %c0_0, %c0_1] : memref<9x3x8xbf16, #tpu.memory_space<vmem>>, vector<1x3x8xbf16>
    %2 = vector.shape_cast %1 : vector<1x3x8xbf16> to vector<3x8xbf16>
    %c0_2 = arith.constant 0 : index
    %c0_3 = arith.constant 0 : index
    %c0_4 = arith.constant 0 : index
    %3 = vector.load %arg1[%c0_2, %c0_3, %c0_4] : memref<1x8x324xbf16, #tpu.memory_space<vmem>>, vector<1x8x286xbf16>
    %4 = vector.shape_cast %3 : vector<1x8x286xbf16> to vector<8x286xbf16>
    %cst_5 = arith.constant dense<0.000000e+00> : vector<3x286xf32>
    %5 = tpu.matmul %2, %4, %cst_5 {dimension_numbers = #tpu.dot_dimension_numbers<[1], [0], [0], [1], [0, 0, 1, 1], [], []>} : vector<3x8xbf16>, vector<8x286xbf16>, vector<3x286xf32> -> vector<3x286xf32>
    %6 = arith.addf %0, %5 : vector<3x286xf32>
    %c1 = arith.constant 1 : index
    %c0_6 = arith.constant 0 : index
    %c0_7 = arith.constant 0 : index
    %7 = vector.load %arg2[%c1, %c0_6, %c0_7] : memref<9x3x8xbf16, #tpu.memory_space<vmem>>, vector<1x3x8xbf16>
    %8 = vector.shape_cast %7 : vector<1x3x8xbf16> to vector<3x8xbf16>
    %c0_8 = arith.constant 0 : index
    %c0_9 = arith.constant 0 : index
    %c1_10 = arith.constant 1 : index
    %9 = vector.load %arg1[%c0_8, %c0_9, %c1_10] : memref<1x8x324xbf16, #tpu.memory_space<vmem>>, vector<1x8x286xbf16>
    %10 = vector.shape_cast %9 : vector<1x8x286xbf16> to vector<8x286xbf16>
    %cst_11 = arith.constant dense<0.000000e+00> : vector<3x286xf32>
    %11 = tpu.matmul %8, %10, %cst_11 {dimension_numbers = #tpu.dot_dimension_numbers<[1], [0], [0], [1], [0, 0, 1, 1], [], []>} : vector<3x8xbf16>, vector<8x286xbf16>, vector<3x286xf32> -> vector<3x286xf32>
    %12 = arith.addf %6, %11 : vector<3x286xf32>
    %c2 = arith.constant 2 : index
    %c0_12 = arith.constant 0 : index
    %c0_13 = arith.constant 0 : index
    %13 = vector.load %arg2[%c2, %c0_12, %c0_13] : memref<9x3x8xbf16, #tpu.memory_space<vmem>>, vector<1x3x8xbf16>
    %14 = vector.shape_cast %13 : vector<1x3x8xbf16> to vector<3x8xbf16>
    %c0_14 = arith.constant 0 : index
    %c0_15 = arith.constant 0 : index
    %c2_16 = arith.constant 2 : index
    %15 = vector.load %arg1[%c0_14, %c0_15, %c2_16] : memref<1x8x324xbf16, #tpu.memory_space<vmem>>, vector<1x8x286xbf16>
    %16 = vector.shape_cast %15 : vector<1x8x286xbf16> to vector<8x286xbf16>
    %cst_17 = arith.constant dense<0.000000e+00> : vector<3x286xf32>
    %17 = tpu.matmul %14, %16, %cst_17 {dimension_numbers = #tpu.dot_dimension_numbers<[1], [0], [0], [1], [0, 0, 1, 1], [], []>} : vector<3x8xbf16>, vector<8x286xbf16>, vector<3x286xf32> -> vector<3x286xf32>
    %18 = arith.addf %12, %17 : vector<3x286xf32>
    %c3 = arith.constant 3 : index
    %c0_18 = arith.constant 0 : index
    %c0_19 = arith.constant 0 : index
    %19 = vector.load %arg2[%c3, %c0_18, %c0_19] : memref<9x3x8xbf16, #tpu.memory_space<vmem>>, vector<1x3x8xbf16>
    %20 = vector.shape_cast %19 : vector<1x3x8xbf16> to vector<3x8xbf16>
    %c0_20 = arith.constant 0 : index
    %c0_21 = arith.constant 0 : index
    %c18 = arith.constant 18 : index
    %21 = vector.load %arg1[%c0_20, %c0_21, %c18] : memref<1x8x324xbf16, #tpu.memory_space<vmem>>, vector<1x8x286xbf16>
    %22 = vector.shape_cast %21 : vector<1x8x286xbf16> to vector<8x286xbf16>
    %cst_22 = arith.constant dense<0.000000e+00> : vector<3x286xf32>
    %23 = tpu.matmul %20, %22, %cst_22 {dimension_numbers = #tpu.dot_dimension_numbers<[1], [0], [0], [1], [0, 0, 1, 1], [], []>} : vector<3x8xbf16>, vector<8x286xbf16>, vector<3x286xf32> -> vector<3x286xf32>
    %24 = arith.addf %18, %23 : vector<3x286xf32>
    %c4 = arith.constant 4 : index
    %c0_23 = arith.constant 0 : index
    %c0_24 = arith.constant 0 : index
    %25 = vector.load %arg2[%c4, %c0_23, %c0_24] : memref<9x3x8xbf16, #tpu.memory_space<vmem>>, vector<1x3x8xbf16>
    %26 = vector.shape_cast %25 : vector<1x3x8xbf16> to vector<3x8xbf16>
    %c0_25 = arith.constant 0 : index
    %c0_26 = arith.constant 0 : index
    %c19 = arith.constant 19 : index
    %27 = vector.load %arg1[%c0_25, %c0_26, %c19] : memref<1x8x324xbf16, #tpu.memory_space<vmem>>, vector<1x8x286xbf16>
    %28 = vector.shape_cast %27 : vector<1x8x286xbf16> to vector<8x286xbf16>
    %cst_27 = arith.constant dense<0.000000e+00> : vector<3x286xf32>
    %29 = tpu.matmul %26, %28, %cst_27 {dimension_numbers = #tpu.dot_dimension_numbers<[1], [0], [0], [1], [0, 0, 1, 1], [], []>} : vector<3x8xbf16>, vector<8x286xbf16>, vector<3x286xf32> -> vector<3x286xf32>
    %30 = arith.addf %24, %29 : vector<3x286xf32>
    %c5 = arith.constant 5 : index
    %c0_28 = arith.constant 0 : index
    %c0_29 = arith.constant 0 : index
    %31 = vector.load %arg2[%c5, %c0_28, %c0_29] : memref<9x3x8xbf16, #tpu.memory_space<vmem>>, vector<1x3x8xbf16>
    %32 = vector.shape_cast %31 : vector<1x3x8xbf16> to vector<3x8xbf16>
    %c0_30 = arith.constant 0 : index
    %c0_31 = arith.constant 0 : index
    %c20 = arith.constant 20 : index
    %33 = vector.load %arg1[%c0_30, %c0_31, %c20] : memref<1x8x324xbf16, #tpu.memory_space<vmem>>, vector<1x8x286xbf16>
    %34 = vector.shape_cast %33 : vector<1x8x286xbf16> to vector<8x286xbf16>
    %cst_32 = arith.constant dense<0.000000e+00> : vector<3x286xf32>
    %35 = tpu.matmul %32, %34, %cst_32 {dimension_numbers = #tpu.dot_dimension_numbers<[1], [0], [0], [1], [0, 0, 1, 1], [], []>} : vector<3x8xbf16>, vector<8x286xbf16>, vector<3x286xf32> -> vector<3x286xf32>
    %36 = arith.addf %30, %35 : vector<3x286xf32>
    %c6 = arith.constant 6 : index
    %c0_33 = arith.constant 0 : index
    %c0_34 = arith.constant 0 : index
    %37 = vector.load %arg2[%c6, %c0_33, %c0_34] : memref<9x3x8xbf16, #tpu.memory_space<vmem>>, vector<1x3x8xbf16>
    %38 = vector.shape_cast %37 : vector<1x3x8xbf16> to vector<3x8xbf16>
    %c0_35 = arith.constant 0 : index
    %c0_36 = arith.constant 0 : index
    %c36 = arith.constant 36 : index
    %39 = vector.load %arg1[%c0_35, %c0_36, %c36] : memref<1x8x324xbf16, #tpu.memory_space<vmem>>, vector<1x8x286xbf16>
    %40 = vector.shape_cast %39 : vector<1x8x286xbf16> to vector<8x286xbf16>
    %cst_37 = arith.constant dense<0.000000e+00> : vector<3x286xf32>
    %41 = tpu.matmul %38, %40, %cst_37 {dimension_numbers = #tpu.dot_dimension_numbers<[1], [0], [0], [1], [0, 0, 1, 1], [], []>} : vector<3x8xbf16>, vector<8x286xbf16>, vector<3x286xf32> -> vector<3x286xf32>
    %42 = arith.addf %36, %41 : vector<3x286xf32>
    %c7 = arith.constant 7 : index
    %c0_38 = arith.constant 0 : index
    %c0_39 = arith.constant 0 : index
    %43 = vector.load %arg2[%c7, %c0_38, %c0_39] : memref<9x3x8xbf16, #tpu.memory_space<vmem>>, vector<1x3x8xbf16>
    %44 = vector.shape_cast %43 : vector<1x3x8xbf16> to vector<3x8xbf16>
    %c0_40 = arith.constant 0 : index
    %c0_41 = arith.constant 0 : index
    %c37 = arith.constant 37 : index
    %45 = vector.load %arg1[%c0_40, %c0_41, %c37] : memref<1x8x324xbf16, #tpu.memory_space<vmem>>, vector<1x8x286xbf16>
    %46 = vector.shape_cast %45 : vector<1x8x286xbf16> to vector<8x286xbf16>
    %cst_42 = arith.constant dense<0.000000e+00> : vector<3x286xf32>
    %47 = tpu.matmul %44, %46, %cst_42 {dimension_numbers = #tpu.dot_dimension_numbers<[1], [0], [0], [1], [0, 0, 1, 1], [], []>} : vector<3x8xbf16>, vector<8x286xbf16>, vector<3x286xf32> -> vector<3x286xf32>
    %48 = arith.addf %42, %47 : vector<3x286xf32>
    %c8 = arith.constant 8 : index
    %c0_43 = arith.constant 0 : index
    %c0_44 = arith.constant 0 : index
    %49 = vector.load %arg2[%c8, %c0_43, %c0_44] : memref<9x3x8xbf16, #tpu.memory_space<vmem>>, vector<1x3x8xbf16>
    %50 = vector.shape_cast %49 : vector<1x3x8xbf16> to vector<3x8xbf16>
    %c0_45 = arith.constant 0 : index
    %c0_46 = arith.constant 0 : index
    %c38 = arith.constant 38 : index
    %51 = vector.load %arg1[%c0_45, %c0_46, %c38] : memref<1x8x324xbf16, #tpu.memory_space<vmem>>, vector<1x8x286xbf16>
    %52 = vector.shape_cast %51 : vector<1x8x286xbf16> to vector<8x286xbf16>
    %cst_47 = arith.constant dense<0.000000e+00> : vector<3x286xf32>
    %53 = tpu.matmul %50, %52, %cst_47 {dimension_numbers = #tpu.dot_dimension_numbers<[1], [0], [0], [1], [0, 0, 1, 1], [], []>} : vector<3x8xbf16>, vector<8x286xbf16>, vector<3x286xf32> -> vector<3x286xf32>
    %54 = arith.addf %48, %53 : vector<3x286xf32>
    %c0_48 = arith.constant 0 : index
    %c0_49 = arith.constant 0 : index
    %55 = vector.load %arg3[%c0_48, %c0_49] : memref<3x1xf32, #tpu.memory_space<vmem>>, vector<3x1xf32>
    %56 = vector.broadcast %55 : vector<3x1xf32> to vector<3x286xf32>
    %57 = arith.addf %54, %56 : vector<3x286xf32>
    %58 = vector.extract_strided_slice %57 {offsets = [0, 0], sizes = [3, 16], strides = [1, 1]} : vector<3x286xf32> to vector<3x16xf32>
    %c0_50 = arith.constant 0 : index
    %c0_51 = arith.constant 0 : index
    %c0_52 = arith.constant 0 : index
    %c0_53 = arith.constant 0 : index
    %59 = vector.load %arg4[%c0_50, %c0_51, %c0_52, %c0_53] : memref<1x3x16x16xf32, #tpu.memory_space<vmem>>, vector<1x3x1x16xf32>
    %60 = vector.shape_cast %59 : vector<1x3x1x16xf32> to vector<3x16xf32>
    %61 = vector.shape_cast %58 : vector<3x16xf32> to vector<1x3x1x16xf32>
    tpu.vector_store %arg4[%c0_50, %c0_51, %c0_52, %c0_53], %61 {strides = array<i32>} : memref<1x3x16x16xf32, #tpu.memory_space<vmem>>, vector<1x3x1x16xf32>,
    %62 = vector.extract_strided_slice %57 {offsets = [0, 18], sizes = [3, 16], strides = [1, 1]} : vector<3x286xf32> to vector<3x16xf32>
    %c0_54 = arith.constant 0 : index
    %c0_55 = arith.constant 0 : index
    %c1_56 = arith.constant 1 : index
    %c0_57 = arith.constant 0 : index
    %63 = vector.load %arg4[%c0_54, %c0_55, %c1_56, %c0_57] : memref<1x3x16x16xf32, #tpu.memory_space<vmem>>, vector<1x3x1x16xf32>
    %64 = vector.shape_cast %63 : vector<1x3x1x16xf32> to vector<3x16xf32>
    %65 = vector.shape_cast %62 : vector<3x16xf32> to vector<1x3x1x16xf32>
    tpu.vector_store %arg4[%c0_54, %c0_55, %c1_56, %c0_57], %65 {strides = array<i32>} : memref<1x3x16x16xf32, #tpu.memory_space<vmem>>, vector<1x3x1x16xf32>,
    %66 = vector.extract_strided_slice %57 {offsets = [0, 36], sizes = [3, 16], strides = [1, 1]} : vector<3x286xf32> to vector<3x16xf32>
    %c0_58 = arith.constant 0 : index
    %c0_59 = arith.constant 0 : index
    %c2_60 = arith.constant 2 : index
    %c0_61 = arith.constant 0 : index
    %67 = vector.load %arg4[%c0_58, %c0_59, %c2_60, %c0_61] : memref<1x3x16x16xf32, #tpu.memory_space<vmem>>, vector<1x3x1x16xf32>
    %68 = vector.shape_cast %67 : vector<1x3x1x16xf32> to vector<3x16xf32>
    %69 = vector.shape_cast %66 : vector<3x16xf32> to vector<1x3x1x16xf32>
    tpu.vector_store %arg4[%c0_58, %c0_59, %c2_60, %c0_61], %69 {strides = array<i32>} : memref<1x3x16x16xf32, #tpu.memory_space<vmem>>, vector<1x3x1x16xf32>,
    %70 = vector.extract_strided_slice %57 {offsets = [0, 54], sizes = [3, 16], strides = [1, 1]} : vector<3x286xf32> to vector<3x16xf32>
    %c0_62 = arith.constant 0 : index
    %c0_63 = arith.constant 0 : index
    %c3_64 = arith.constant 3 : index
    %c0_65 = arith.constant 0 : index
    %71 = vector.load %arg4[%c0_62, %c0_63, %c3_64, %c0_65] : memref<1x3x16x16xf32, #tpu.memory_space<vmem>>, vector<1x3x1x16xf32>
    %72 = vector.shape_cast %71 : vector<1x3x1x16xf32> to vector<3x16xf32>
    %73 = vector.shape_cast %70 : vector<3x16xf32> to vector<1x3x1x16xf32>
    tpu.vector_store %arg4[%c0_62, %c0_63, %c3_64, %c0_65], %73 {strides = array<i32>} : memref<1x3x16x16xf32, #tpu.memory_space<vmem>>, vector<1x3x1x16xf32>,
    %74 = vector.extract_strided_slice %57 {offsets = [0, 72], sizes = [3, 16], strides = [1, 1]} : vector<3x286xf32> to vector<3x16xf32>
    %c0_66 = arith.constant 0 : index
    %c0_67 = arith.constant 0 : index
    %c4_68 = arith.constant 4 : index
    %c0_69 = arith.constant 0 : index
    %75 = vector.load %arg4[%c0_66, %c0_67, %c4_68, %c0_69] : memref<1x3x16x16xf32, #tpu.memory_space<vmem>>, vector<1x3x1x16xf32>
    %76 = vector.shape_cast %75 : vector<1x3x1x16xf32> to vector<3x16xf32>
    %77 = vector.shape_cast %74 : vector<3x16xf32> to vector<1x3x1x16xf32>
    tpu.vector_store %arg4[%c0_66, %c0_67, %c4_68, %c0_69], %77 {strides = array<i32>} : memref<1x3x16x16xf32, #tpu.memory_space<vmem>>, vector<1x3x1x16xf32>,
    %78 = vector.extract_strided_slice %57 {offsets = [0, 90], sizes = [3, 16], strides = [1, 1]} : vector<3x286xf32> to vector<3x16xf32>
    %c0_70 = arith.constant 0 : index
    %c0_71 = arith.constant 0 : index
    %c5_72 = arith.constant 5 : index
    %c0_73 = arith.constant 0 : index
    %79 = vector.load %arg4[%c0_70, %c0_71, %c5_72, %c0_73] : memref<1x3x16x16xf32, #tpu.memory_space<vmem>>, vector<1x3x1x16xf32>
    %80 = vector.shape_cast %79 : vector<1x3x1x16xf32> to vector<3x16xf32>
    %81 = vector.shape_cast %78 : vector<3x16xf32> to vector<1x3x1x16xf32>
    tpu.vector_store %arg4[%c0_70, %c0_71, %c5_72, %c0_73], %81 {strides = array<i32>} : memref<1x3x16x16xf32, #tpu.memory_space<vmem>>, vector<1x3x1x16xf32>,
    %82 = vector.extract_strided_slice %57 {offsets = [0, 108], sizes = [3, 16], strides = [1, 1]} : vector<3x286xf32> to vector<3x16xf32>
    %c0_74 = arith.constant 0 : index
    %c0_75 = arith.constant 0 : index
    %c6_76 = arith.constant 6 : index
    %c0_77 = arith.constant 0 : index
    %83 = vector.load %arg4[%c0_74, %c0_75, %c6_76, %c0_77] : memref<1x3x16x16xf32, #tpu.memory_space<vmem>>, vector<1x3x1x16xf32>
    %84 = vector.shape_cast %83 : vector<1x3x1x16xf32> to vector<3x16xf32>
    %85 = vector.shape_cast %82 : vector<3x16xf32> to vector<1x3x1x16xf32>
    tpu.vector_store %arg4[%c0_74, %c0_75, %c6_76, %c0_77], %85 {strides = array<i32>} : memref<1x3x16x16xf32, #tpu.memory_space<vmem>>, vector<1x3x1x16xf32>,
    %86 = vector.extract_strided_slice %57 {offsets = [0, 126], sizes = [3, 16], strides = [1, 1]} : vector<3x286xf32> to vector<3x16xf32>
    %c0_78 = arith.constant 0 : index
    %c0_79 = arith.constant 0 : index
    %c7_80 = arith.constant 7 : index
    %c0_81 = arith.constant 0 : index
    %87 = vector.load %arg4[%c0_78, %c0_79, %c7_80, %c0_81] : memref<1x3x16x16xf32, #tpu.memory_space<vmem>>, vector<1x3x1x16xf32>
    %88 = vector.shape_cast %87 : vector<1x3x1x16xf32> to vector<3x16xf32>
    %89 = vector.shape_cast %86 : vector<3x16xf32> to vector<1x3x1x16xf32>
    tpu.vector_store %arg4[%c0_78, %c0_79, %c7_80, %c0_81], %89 {strides = array<i32>} : memref<1x3x16x16xf32, #tpu.memory_space<vmem>>, vector<1x3x1x16xf32>,
    %90 = vector.extract_strided_slice %57 {offsets = [0, 144], sizes = [3, 16], strides = [1, 1]} : vector<3x286xf32> to vector<3x16xf32>
    %c0_82 = arith.constant 0 : index
    %c0_83 = arith.constant 0 : index
    %c8_84 = arith.constant 8 : index
    %c0_85 = arith.constant 0 : index
    %91 = vector.load %arg4[%c0_82, %c0_83, %c8_84, %c0_85] : memref<1x3x16x16xf32, #tpu.memory_space<vmem>>, vector<1x3x1x16xf32>
    %92 = vector.shape_cast %91 : vector<1x3x1x16xf32> to vector<3x16xf32>
    %93 = vector.shape_cast %90 : vector<3x16xf32> to vector<1x3x1x16xf32>
    tpu.vector_store %arg4[%c0_82, %c0_83, %c8_84, %c0_85], %93 {strides = array<i32>} : memref<1x3x16x16xf32, #tpu.memory_space<vmem>>, vector<1x3x1x16xf32>,
    %94 = vector.extract_strided_slice %57 {offsets = [0, 162], sizes = [3, 16], strides = [1, 1]} : vector<3x286xf32> to vector<3x16xf32>
    %c0_86 = arith.constant 0 : index
    %c0_87 = arith.constant 0 : index
    %c9 = arith.constant 9 : index
    %c0_88 = arith.constant 0 : index
    %95 = vector.load %arg4[%c0_86, %c0_87, %c9, %c0_88] : memref<1x3x16x16xf32, #tpu.memory_space<vmem>>, vector<1x3x1x16xf32>
    %96 = vector.shape_cast %95 : vector<1x3x1x16xf32> to vector<3x16xf32>
    %97 = vector.shape_cast %94 : vector<3x16xf32> to vector<1x3x1x16xf32>
    tpu.vector_store %arg4[%c0_86, %c0_87, %c9, %c0_88], %97 {strides = array<i32>} : memref<1x3x16x16xf32, #tpu.memory_space<vmem>>, vector<1x3x1x16xf32>,
    %98 = vector.extract_strided_slice %57 {offsets = [0, 180], sizes = [3, 16], strides = [1, 1]} : vector<3x286xf32> to vector<3x16xf32>
    %c0_89 = arith.constant 0 : index
    %c0_90 = arith.constant 0 : index
    %c10 = arith.constant 10 : index
    %c0_91 = arith.constant 0 : index
    %99 = vector.load %arg4[%c0_89, %c0_90, %c10, %c0_91] : memref<1x3x16x16xf32, #tpu.memory_space<vmem>>, vector<1x3x1x16xf32>
    %100 = vector.shape_cast %99 : vector<1x3x1x16xf32> to vector<3x16xf32>
    %101 = vector.shape_cast %98 : vector<3x16xf32> to vector<1x3x1x16xf32>
    tpu.vector_store %arg4[%c0_89, %c0_90, %c10, %c0_91], %101 {strides = array<i32>} : memref<1x3x16x16xf32, #tpu.memory_space<vmem>>, vector<1x3x1x16xf32>,
    %102 = vector.extract_strided_slice %57 {offsets = [0, 198], sizes = [3, 16], strides = [1, 1]} : vector<3x286xf32> to vector<3x16xf32>
    %c0_92 = arith.constant 0 : index
    %c0_93 = arith.constant 0 : index
    %c11 = arith.constant 11 : index
    %c0_94 = arith.constant 0 : index
    %103 = vector.load %arg4[%c0_92, %c0_93, %c11, %c0_94] : memref<1x3x16x16xf32, #tpu.memory_space<vmem>>, vector<1x3x1x16xf32>
    %104 = vector.shape_cast %103 : vector<1x3x1x16xf32> to vector<3x16xf32>
    %105 = vector.shape_cast %102 : vector<3x16xf32> to vector<1x3x1x16xf32>
    tpu.vector_store %arg4[%c0_92, %c0_93, %c11, %c0_94], %105 {strides = array<i32>} : memref<1x3x16x16xf32, #tpu.memory_space<vmem>>, vector<1x3x1x16xf32>,
    %106 = vector.extract_strided_slice %57 {offsets = [0, 216], sizes = [3, 16], strides = [1, 1]} : vector<3x286xf32> to vector<3x16xf32>
    %c0_95 = arith.constant 0 : index
    %c0_96 = arith.constant 0 : index
    %c12 = arith.constant 12 : index
    %c0_97 = arith.constant 0 : index
    %107 = vector.load %arg4[%c0_95, %c0_96, %c12, %c0_97] : memref<1x3x16x16xf32, #tpu.memory_space<vmem>>, vector<1x3x1x16xf32>
    %108 = vector.shape_cast %107 : vector<1x3x1x16xf32> to vector<3x16xf32>
    %109 = vector.shape_cast %106 : vector<3x16xf32> to vector<1x3x1x16xf32>
    tpu.vector_store %arg4[%c0_95, %c0_96, %c12, %c0_97], %109 {strides = array<i32>} : memref<1x3x16x16xf32, #tpu.memory_space<vmem>>, vector<1x3x1x16xf32>,
    %110 = vector.extract_strided_slice %57 {offsets = [0, 234], sizes = [3, 16], strides = [1, 1]} : vector<3x286xf32> to vector<3x16xf32>
    %c0_98 = arith.constant 0 : index
    %c0_99 = arith.constant 0 : index
    %c13 = arith.constant 13 : index
    %c0_100 = arith.constant 0 : index
    %111 = vector.load %arg4[%c0_98, %c0_99, %c13, %c0_100] : memref<1x3x16x16xf32, #tpu.memory_space<vmem>>, vector<1x3x1x16xf32>
    %112 = vector.shape_cast %111 : vector<1x3x1x16xf32> to vector<3x16xf32>
    %113 = vector.shape_cast %110 : vector<3x16xf32> to vector<1x3x1x16xf32>
    tpu.vector_store %arg4[%c0_98, %c0_99, %c13, %c0_100], %113 {strides = array<i32>} : memref<1x3x16x16xf32, #tpu.memory_space<vmem>>, vector<1x3x1x16xf32>,
    %114 = vector.extract_strided_slice %57 {offsets = [0, 252], sizes = [3, 16], strides = [1, 1]} : vector<3x286xf32> to vector<3x16xf32>
    %c0_101 = arith.constant 0 : index
    %c0_102 = arith.constant 0 : index
    %c14 = arith.constant 14 : index
    %c0_103 = arith.constant 0 : index
    %115 = vector.load %arg4[%c0_101, %c0_102, %c14, %c0_103] : memref<1x3x16x16xf32, #tpu.memory_space<vmem>>, vector<1x3x1x16xf32>
    %116 = vector.shape_cast %115 : vector<1x3x1x16xf32> to vector<3x16xf32>
    %117 = vector.shape_cast %114 : vector<3x16xf32> to vector<1x3x1x16xf32>
    tpu.vector_store %arg4[%c0_101, %c0_102, %c14, %c0_103], %117 {strides = array<i32>} : memref<1x3x16x16xf32, #tpu.memory_space<vmem>>, vector<1x3x1x16xf32>,
    %118 = vector.extract_strided_slice %57 {offsets = [0, 270], sizes = [3, 16], strides = [1, 1]} : vector<3x286xf32> to vector<3x16xf32>
    %c0_104 = arith.constant 0 : index
    %c0_105 = arith.constant 0 : index
    %c15 = arith.constant 15 : index
    %c0_106 = arith.constant 0 : index
    %119 = vector.load %arg4[%c0_104, %c0_105, %c15, %c0_106] : memref<1x3x16x16xf32, #tpu.memory_space<vmem>>, vector<1x3x1x16xf32>
    %120 = vector.shape_cast %119 : vector<1x3x1x16xf32> to vector<3x16xf32>
    %121 = vector.shape_cast %118 : vector<3x16xf32> to vector<1x3x1x16xf32>
    tpu.vector_store %arg4[%c0_104, %c0_105, %c15, %c0_106], %121 {strides = array<i32>} : memref<1x3x16x16xf32, #tpu.memory_space<vmem>>, vector<1x3x1x16xf32>,
    return
  }
  func.func @transform_0(%arg0: i32) -> (i32, i32, i32) {
    %c0_i32 = arith.constant 0 : i32
    %c0_i32_0 = arith.constant 0 : i32
    %c0_i32_1 = arith.constant 0 : i32
    return %arg0, %c0_i32, %c0_i32_0 : i32, i32, i32
  }
  func.func @transform_1(%arg0: i32) -> (i32, i32, i32) {
    %c0_i32 = arith.constant 0 : i32
    %c0_i32_0 = arith.constant 0 : i32
    %c0_i32_1 = arith.constant 0 : i32
    %c0_i32_2 = arith.constant 0 : i32
    return %c0_i32, %c0_i32_0, %c0_i32_1 : i32, i32, i32
  }
  func.func @transform_2(%arg0: i32) -> (i32, i32) {
    %c0_i32 = arith.constant 0 : i32
    %c0_i32_0 = arith.constant 0 : i32
    %c0_i32_1 = arith.constant 0 : i32
    return %c0_i32, %c0_i32_0 : i32, i32
  }
  func.func @transform_3(%arg0: i32) -> (i32, i32, i32, i32) {
    %c0_i32 = arith.constant 0 : i32
    %c0_i32_0 = arith.constant 0 : i32
    %c0_i32_1 = arith.constant 0 : i32
    %c0_i32_2 = arith.constant 0 : i32
    return %arg0, %c0_i32, %c0_i32_0, %c0_i32_1 : i32, i32, i32, i32
  }
}

</mosaic_0001>

<llo_original>
// kernel: decoder_forward.10
$region0: #{decoder_forward.10}
  #allocation0 [shape = 'u32[]', space=smem, size = 0x4, offset = 0x4, fixed_abs, tag = 'smem constant byte address 0x4 - core index']
  #allocation1 [shape = 'u32[72,128]{1,0:T(1,128)}', space=vmem, size = 0x9000, scoped, tag = 'internal scratch']
  #allocation2 [shape = 'f32[2,128]{1,0:T(2,128)}', space=vmem, size = 0x400, scoped, tag = 'scratch operand']
  %s0 = inlined_call_operand.vmem [shape: bf16[2,32], index: 0, kind: input, shape index: {}]
  %s1 = inlined_call_operand.vmem [shape: bf16[32,128], index: 1, kind: input, shape index: {}]
  %s2 = inlined_call_operand.vmem [shape: f32[1,128], index: 2, kind: input, shape index: {}]
  %s3 = inlined_call_operand.vmem [shape: bf16[2,128], index: 3, kind: output, shape index: {}]
  %s4 = sld [smem:[#allocation0]]
  $region30: #{decoder_forward.10} parent=0
    _
  %s6 = ssub.s32 1, %s4
  %s7 = scalar_select 0, %s6, %s4
  // Predicated region
  $region2: #{decoder_forward.10} parent=0 // pred_check
    _
  $region3: #{decoder_forward.10} parent=0 // pred_check_branch
    %9 = sbr.rel (0) target = $region5
  $region4: #{decoder_forward.10} parent=0 // pred_region
    _
  $region5: #{decoder_forward.10} parent=0 // pred_fallthru
    _
  // Predicated region
  $region6: #{decoder_forward.10} parent=0 // pred_check
    _
  $region7: #{decoder_forward.10} parent=0 // pred_check_branch
    %11 = sbr.rel (0) target = $region9
  $region8: #{decoder_forward.10} parent=0 // pred_region
    _
  $region9: #{decoder_forward.10} parent=0 // pred_fallthru
    _
  // Predicated region
  $region10: #{decoder_forward.10} parent=0 // pred_check
    _
  $region11: #{decoder_forward.10} parent=0 // pred_check_branch
    %13 = sbr.rel (0) target = $region13
  $region12: #{decoder_forward.10} parent=0 // pred_region
    _
  $region13: #{decoder_forward.10} parent=0 // pred_fallthru
    _
  %p15 = scmp.eq.s32.totalorder 0, 0
  // Predicated region
  $region14: #{decoder_forward.10} parent=0 // pred_check
    %p16 = pneg %p15
  $region15: #{decoder_forward.10} parent=0 // pred_check_branch
    %18 = sbr.rel (%p16) target = $region17
  $region16: #{decoder_forward.10} parent=0 // pred_region
    %19 = vst [vmem:[#allocation2] sm:$0x3] 0.0
  $region17: #{decoder_forward.10} parent=0 // pred_fallthru
    _
  %v20 = vld [vmem:[#allocation2] sm:$0x3]
  %v21 = vld [vmem:[%s0] sm:$0x1]
  %v22 = vld [vmem:[%s1] sm:$0xf]
  %v23 = vld [vmem:[%s1 + $0x4] sm:$0xf]
  %v24 = vld [vmem:[%s1 + $0x8] sm:$0xf]
  %v25 = vld [vmem:[%s1 + $0xc] sm:$0xf]
  %v30 = vunpack.c.l.b16 %v22
  %v31 = vunpack.c.l.b16 %v23
  %v32 = vunpack.c.l.b16 %v24
  %v33 = vunpack.c.l.b16 %v25
  %v34 = vpack.c.b16 %v31, %v30
  %v35 = vpack.c.b16 %v33, %v32
  %vm38 = vcmask 261120
  %v40 = vsel %vm38, %v21, 0
  %42 = vmatpush.bf16.msra.mxu0 0
  %43 = vmatpush.bf16.msra.mxu0 0
  %44 = vmatpush.bf16.msra.mxu0 0
  %45 = vmatpush.bf16.msra.mxu0 0
  %46 = vmatpush.bf16.msra.mxu0 0
  %47 = vmatpush.bf16.msra.mxu0 0
  %48 = vmatpush.bf16.msra.mxu0 %v35
  %49 = vmatpush.bf16.msra.mxu0 %v34
  %50 = vmatmul.bf16.gmra.mxu0 %v40
  %v51 = vpop.f32.mrf.mxu0
  %v52 = vadd.f32 0.0, %v51
  %v53 = vpop.f32.mrf.mxu0
  %54 = vdwg.mxu0
  %v55 = vadd.f32 %v20, %v52
  %56 = vst [vmem:[#allocation2] sm:$0x3] %v55
  // Predicated region
  $region18: #{decoder_forward.10} parent=0 // pred_check
    %p57 = pneg %p15
  $region19: #{decoder_forward.10} parent=0 // pred_check_branch
    %59 = sbr.rel (%p57) target = $region21
  $region20: #{decoder_forward.10} parent=0 // pred_region
    %v60 = vld [vmem:[#allocation2] sm:$0x3]
    %v61 = vld [vmem:[%s2] sm:$0x1]
    %v63 = vperm.slane %v61, 0
    %v65 = vadd.f32 %v60, %v63
    %v66 = vpack.c.bf16 %v65, %v65
    %67 = vst [vmem:[%s3] sm:$0x1] %v66
  $region21: #{decoder_forward.10} parent=0 // pred_fallthru
    _
  // Predicated region
  $region22: #{decoder_forward.10} parent=0 // pred_check
    _
  $region23: #{decoder_forward.10} parent=0 // pred_check_branch
    %69 = sbr.rel (0) target = $region25
  $region24: #{decoder_forward.10} parent=0 // pred_region
    _
  $region25: #{decoder_forward.10} parent=0 // pred_fallthru
    _
  // Predicated region
  $region26: #{decoder_forward.10} parent=0 // pred_check
    _
  $region27: #{decoder_forward.10} parent=0 // pred_check_branch
    %71 = sbr.rel (0) target = $region29
  $region28: #{decoder_forward.10} parent=0 // pred_region
    _
  $region29: #{decoder_forward.10} parent=0 // pred_fallthru
    _

// kernel: decoder_forward.12
$region0: #{decoder_forward.12}
  #allocation0 [shape = 'u32[]', space=smem, size = 0x4, offset = 0x4, fixed_abs, tag = 'smem constant byte address 0x4 - core index']
  #allocation1 [shape = 'u32[72,128]{1,0:T(1,128)}', space=vmem, size = 0x9000, scoped, tag = 'internal scratch']
  %s0 = inlined_call_operand.vmem [shape: bf16[2,2,4,16], index: 0, kind: input, shape index: {}]
  %s1 = inlined_call_operand.vmem [shape: bf16[2,2,4,16], index: 1, kind: input, shape index: {}]
  %s2 = inlined_call_operand.vmem [shape: f32[2,4,1], index: 2, kind: input, shape index: {}]
  %s3 = inlined_call_operand.vmem [shape: f32[2,4,1], index: 3, kind: input, shape index: {}]
  %s4 = inlined_call_operand.vmem [shape: bf16[2,2,4,16], index: 4, kind: output, shape index: {}]
  %s5 = sld [smem:[#allocation0]]
  $region49: #{decoder_forward.12} parent=0
    _
  %s7 = ssub.s32 1, %s5
  %s8 = scalar_select 0, %s7, %s5
  loop: start=0, step=1, limit=6
  $region2: #{decoder_forward.12} parent=0 // loop_pre_header
    _
  $region3: #{decoder_forward.12} parent=0 // loop_header
    %s10 = sphi 0, %s14
    %p11 = scmp.ge.s32.totalorder %s10, 6
    %s17 = sphi 0, %s29
    %s18 = sphi 0, %s25
    %s19 = sphi 0, %s17
    %s20 = sphi 0, %s18
    %s21 = sphi 0, %s19
    %s22 = sphi 0, %s20
    %s34 = sphi 0, %s36
    %s37 = sphi 0, %s34
    %s38 = sphi 0, %s37
    %s54 = sphi 0, %s38
    %s62 = sphi 0, %s64
    %s65 = sphi 0, %s62
    %s66 = sphi 0, %s65
    %s82 = sphi 0, %s66
    %s88 = sphi 0, %s90
    %s91 = sphi 0, %s88
    %s92 = sphi 0, %s91
    %s108 = sphi 0, %s92
    %s114 = sphi 0, %s116
    %s117 = sphi 0, %s114
    %s118 = sphi 0, %s117
    %s134 = sphi 0, %s118
    %s142 = sphi 0, %s144
    %s145 = sphi 0, %s142
    %s146 = sphi 0, %s145
    %s162 = sphi 0, %s146
  $region4: #{decoder_forward.12} parent=0 // loop_header_branch
    %13 = sbr.rel (%p11) target = $region8
  $region5: #{decoder_forward.12} parent=0 // loop_body
    %s15 = ssub.s32 %s10, 1
    %s16 = ssub.s32 %s10, 2
    %s23 = sadd.s32 1, %s18
    %p24 = scmp.ge.s32.totalorder %s23, 2
    %s25 = scalar_select %p24, 0, %s23
    %s26 = sadd.s32 1, %s17
    %s27 = scalar_select %p24, %s26, %s17
    %p28 = scmp.ge.s32.totalorder %s27, 2
    %s29 = scalar_select %p28, 0, %s27
    %s30 = ssub.s32 %s17, %s29
    %s31 = ssub.s32 %s18, %s25
    %s32 = sor.u32 %s30, %s31
    %p33 = scmp.eq.s32.totalorder %s32, 0
    %s35 = sadd.s32 %s34, 1
    %s36 = scalar_select %p33, %s34, %s35
    %p39 = pneg %p33
    %p40 = scmp.eq.s32.totalorder %s10, 3
    %p41 = por %p39, %p40
    %p42 = scmp.ne.s32.totalorder %s34, %s37
    %p43 = scmp.eq.s32.totalorder %s10, 0
    %p44 = por %p42, %p43
    %p45 = scmp.ne.s32.totalorder %s34, %s37
    %p46 = scmp.eq.s32.totalorder %s15, 3
    %p47 = por %p45, %p46
    %p48 = scmp.ne.s32.totalorder %s37, %s38
    %p49 = scmp.eq.s32.totalorder %s15, 0
    %p50 = por %p48, %p49
    %p51 = scmp.ne.s32.totalorder %s37, %s38
    %p52 = scmp.eq.s32.totalorder %s16, 3
    %p53 = por %p51, %p52
    %p55 = scmp.ne.s32.totalorder %s38, %s54
    %p56 = scmp.eq.s32.totalorder %s16, 0
    %p57 = por %p55, %p56
    %s58 = ssub.s32 %s17, %s29
    %s59 = ssub.s32 %s18, %s25
    %s60 = sor.u32 %s58, %s59
    %p61 = scmp.eq.s32.totalorder %s60, 0
    %s63 = sadd.s32 %s62, 1
    %s64 = scalar_select %p61, %s62, %s63
    %p67 = pneg %p61
    %p68 = scmp.eq.s32.totalorder %s10, 3
    %p69 = por %p67, %p68
    %p70 = scmp.ne.s32.totalorder %s62, %s65
    %p71 = scmp.eq.s32.totalorder %s10, 0
    %p72 = por %p70, %p71
    %p73 = scmp.ne.s32.totalorder %s62, %s65
    %p74 = scmp.eq.s32.totalorder %s15, 3
    %p75 = por %p73, %p74
    %p76 = scmp.ne.s32.totalorder %s65, %s66
    %p77 = scmp.eq.s32.totalorder %s15, 0
    %p78 = por %p76, %p77
    %p79 = scmp.ne.s32.totalorder %s65, %s66
    %p80 = scmp.eq.s32.totalorder %s16, 3
    %p81 = por %p79, %p80
    %p83 = scmp.ne.s32.totalorder %s66, %s82
    %p84 = scmp.eq.s32.totalorder %s16, 0
    %p85 = por %p83, %p84
    %s86 = ssub.s32 %s18, %s25
    %p87 = scmp.eq.s32.totalorder %s86, 0
    %s89 = sadd.s32 %s88, 1
    %s90 = scalar_select %p87, %s88, %s89
    %p93 = pneg %p87
    %p94 = scmp.eq.s32.totalorder %s10, 3
    %p95 = por %p93, %p94
    %p96 = scmp.ne.s32.totalorder %s88, %s91
    %p97 = scmp.eq.s32.totalorder %s10, 0
    %p98 = por %p96, %p97
    %p99 = scmp.ne.s32.totalorder %s88, %s91
    %p100 = scmp.eq.s32.totalorder %s15, 3
    %p101 = por %p99, %p100
    %p102 = scmp.ne.s32.totalorder %s91, %s92
    %p103 = scmp.eq.s32.totalorder %s15, 0
    %p104 = por %p102, %p103
    %p105 = scmp.ne.s32.totalorder %s91, %s92
    %p106 = scmp.eq.s32.totalorder %s16, 3
    %p107 = por %p105, %p106
    %p109 = scmp.ne.s32.totalorder %s92, %s108
    %p110 = scmp.eq.s32.totalorder %s16, 0
    %p111 = por %p109, %p110
    %s112 = ssub.s32 %s18, %s25
    %p113 = scmp.eq.s32.totalorder %s112, 0
    %s115 = sadd.s32 %s114, 1
    %s116 = scalar_select %p113, %s114, %s115
    %p119 = pneg %p113
    %p120 = scmp.eq.s32.totalorder %s10, 3
    %p121 = por %p119, %p120
    %p122 = scmp.ne.s32.totalorder %s114, %s117
    %p123 = scmp.eq.s32.totalorder %s10, 0
    %p124 = por %p122, %p123
    %p125 = scmp.ne.s32.totalorder %s114, %s117
    %p126 = scmp.eq.s32.totalorder %s15, 3
    %p127 = por %p125, %p126
    %p128 = scmp.ne.s32.totalorder %s117, %s118
    %p129 = scmp.eq.s32.totalorder %s15, 0
    %p130 = por %p128, %p129
    %p131 = scmp.ne.s32.totalorder %s117, %s118
    %p132 = scmp.eq.s32.totalorder %s16, 3
    %p133 = por %p131, %p132
    %p135 = scmp.ne.s32.totalorder %s118, %s134
    %p136 = scmp.eq.s32.totalorder %s16, 0
    %p137 = por %p135, %p136
    %s138 = ssub.s32 %s17, %s29
    %s139 = ssub.s32 %s18, %s25
    %s140 = sor.u32 %s138, %s139
    %p141 = scmp.eq.s32.totalorder %s140, 0
    %s143 = sadd.s32 %s142, 1
    %s144 = scalar_select %p141, %s142, %s143
    %p147 = pneg %p141
    %p148 = scmp.eq.s32.totalorder %s10, 3
    %p149 = por %p147, %p148
    %p150 = scmp.ne.s32.totalorder %s142, %s145
    %p151 = scmp.eq.s32.totalorder %s10, 0
    %p152 = por %p150, %p151
    %p153 = scmp.ne.s32.totalorder %s142, %s145
    %p154 = scmp.eq.s32.totalorder %s15, 3
    %p155 = por %p153, %p154
    %p156 = scmp.ne.s32.totalorder %s145, %s146
    %p157 = scmp.eq.s32.totalorder %s15, 0
    %p158 = por %p156, %p157
    %p159 = scmp.ne.s32.totalorder %s145, %s146
    %p160 = scmp.eq.s32.totalorder %s16, 3
    %p161 = por %p159, %p160
    %p163 = scmp.ne.s32.totalorder %s146, %s162
    %p164 = scmp.eq.s32.totalorder %s16, 0
    %p165 = por %p163, %p164
    %p166 = scmp.le.s32.totalorder 1, %s10
    %p167 = scmp.lt.s32.totalorder %s10, 5
    %p168 = pnand %p166, %p167
    %p169 = pneg %p168
    // Predicated region
    $region9: #{decoder_forward.12} parent=5 // pred_check
      _
    $region10: #{decoder_forward.12} parent=5 // pred_check_branch
      %171 = sbr.rel (%p168) target = $region12
    $region11: #{decoder_forward.12} parent=5 // pred_region
      %s172 = ssub.s32 %s10, 1
    $region12: #{decoder_forward.12} parent=5 // pred_fallthru
      _
    %p173 = scmp.lt.s32.totalorder %s10, 4
    // Predicated region
    $region13: #{decoder_forward.12} parent=5 // pred_check
      %p174 = pneg %p173
    $region14: #{decoder_forward.12} parent=5 // pred_check_branch
      %176 = sbr.rel (%p174) target = $region16
    $region15: #{decoder_forward.12} parent=5 // pred_region
      // Predicated region
      $region17: #{decoder_forward.12} parent=15 // pred_check
        %p177 = pneg %p44
      $region18: #{decoder_forward.12} parent=15 // pred_check_branch
        %179 = sbr.rel (%p177) target = $region20
      $region19: #{decoder_forward.12} parent=15 // pred_region
        %p180 = scmp.lt.s32.totalorder %s17, 1
        %s181 = scalar_select %p180, %s17, 1
        %p182 = scmp.lt.s32.totalorder %s18, 1
        %s183 = scalar_select %p182, %s18, 1
        %s184 = smul.addr %s181, 2
        %s185 = sadd.s32 %s183, %s184
        %s186 = smul.addr %s185, 2
        %s187 = scalar_lea.vmem %s0, %s186
      $region20: #{decoder_forward.12} parent=15 // pred_fallthru
        _
      // Predicated region
      $region21: #{decoder_forward.12} parent=15 // pred_check
        %p188 = pneg %p72
      $region22: #{decoder_forward.12} parent=15 // pred_check_branch
        %190 = sbr.rel (%p188) target = $region24
      $region23: #{decoder_forward.12} parent=15 // pred_region
        %p191 = scmp.lt.s32.totalorder %s17, 1
        %s192 = scalar_select %p191, %s17, 1
        %p193 = scmp.lt.s32.totalorder %s18, 1
        %s194 = scalar_select %p193, %s18, 1
        %s195 = smul.addr %s192, 2
        %s196 = sadd.s32 %s194, %s195
        %s197 = smul.addr %s196, 2
        %s198 = scalar_lea.vmem %s1, %s197
      $region24: #{decoder_forward.12} parent=15 // pred_fallthru
        _
      // Predicated region
      $region25: #{decoder_forward.12} parent=15 // pred_check
        %p199 = pneg %p98
      $region26: #{decoder_forward.12} parent=15 // pred_check_branch
        %201 = sbr.rel (%p199) target = $region28
      $region27: #{decoder_forward.12} parent=15 // pred_region
        %p202 = scmp.lt.s32.totalorder %s18, 1
        %s203 = scalar_select %p202, %s18, 1
        %s204 = smul.addr %s203, 4
        %s205 = scalar_lea.vmem %s2, %s204
      $region28: #{decoder_forward.12} parent=15 // pred_fallthru
        _
      // Predicated region
      $region29: #{decoder_forward.12} parent=15 // pred_check
        %p206 = pneg %p124
      $region30: #{decoder_forward.12} parent=15 // pred_check_branch
        %208 = sbr.rel (%p206) target = $region32
      $region31: #{decoder_forward.12} parent=15 // pred_region
        %p209 = scmp.lt.s32.totalorder %s18, 1
        %s210 = scalar_select %p209, %s18, 1
        %s211 = smul.addr %s210, 4
        %s212 = scalar_lea.vmem %s3, %s211
      $region32: #{decoder_forward.12} parent=15 // pred_fallthru
        _
    $region16: #{decoder_forward.12} parent=5 // pred_fallthru
      _
    %p213 = scmp.le.s32.totalorder 1, %s10
    %p214 = scmp.lt.s32.totalorder %s10, 5
    %p215 = pnand %p213, %p214
    %p216 = pneg %p215
    // Predicated region
    $region33: #{decoder_forward.12} parent=5 // pred_check
      _
    $region34: #{decoder_forward.12} parent=5 // pred_check_branch
      %218 = sbr.rel (%p215) target = $region36
    $region35: #{decoder_forward.12} parent=5 // pred_region
      %s219 = ssub.s32 %s10, 1
      %p220 = scmp.lt.s32.totalorder %s19, 1
      %s221 = scalar_select %p220, %s19, 1
      %p222 = scmp.lt.s32.totalorder %s20, 1
      %s223 = scalar_select %p222, %s20, 1
      %s224 = smul.addr %s221, 2
      %s225 = sadd.s32 %s223, %s224
      %s226 = smul.addr %s225, 2
      %s227 = scalar_lea.vmem %s0, %s226
      %p228 = pneg %p50
      %p229 = pneg %p47
      %p230 = scmp.lt.s32.totalorder %s19, 1
      %s231 = scalar_select %p230, %s19, 1
      %p232 = scmp.lt.s32.totalorder %s20, 1
      %s233 = scalar_select %p232, %s20, 1
      %s234 = smul.addr %s231, 2
      %s235 = sadd.s32 %s233, %s234
      %s236 = smul.addr %s235, 2
      %s237 = scalar_lea.vmem %s1, %s236
      %p238 = pneg %p78
      %p239 = pneg %p75
      %p240 = scmp.lt.s32.totalorder %s20, 1
      %s241 = scalar_select %p240, %s20, 1
      %s242 = smul.addr %s241, 4
      %s243 = scalar_lea.vmem %s2, %s242
      %p244 = pneg %p104
      %p245 = pneg %p101
      %p246 = scmp.lt.s32.totalorder %s20, 1
      %s247 = scalar_select %p246, %s20, 1
      %s248 = smul.addr %s247, 4
      %s249 = scalar_lea.vmem %s3, %s248
      %p250 = pneg %p130
      %p251 = pneg %p127
      %p252 = pneg %p158
      %p253 = pneg %p155
      %p254 = scmp.lt.s32.totalorder %s19, 1
      %s255 = scalar_select %p254, %s19, 1
      %p256 = scmp.lt.s32.totalorder %s20, 1
      %s257 = scalar_select %p256, %s20, 1
      %s258 = smul.addr %s255, 2
      %s259 = sadd.s32 %s257, %s258
      %s260 = smul.addr %s259, 2
      %s261 = scalar_lea.vmem %s4, %s260
      %p262 = scmp.lt.s32.totalorder %s19, 1
      %s263 = scalar_select %p262, %s19, 1
      %p264 = scmp.lt.s32.totalorder %s20, 1
      %s265 = scalar_select %p264, %s20, 1
      %s266 = smul.addr %s263, 2
      %s267 = sadd.s32 %s265, %s266
      %s268 = smul.addr %s267, 2
      %s269 = scalar_lea.vmem %s0, %s268
      %p270 = scmp.lt.s32.totalorder %s19, 1
      %s271 = scalar_select %p270, %s19, 1
      %p272 = scmp.lt.s32.totalorder %s20, 1
      %s273 = scalar_select %p272, %s20, 1
      %s274 = smul.addr %s271, 2
      %s275 = sadd.s32 %s273, %s274
      %s276 = smul.addr %s275, 2
      %s277 = scalar_lea.vmem %s1, %s276
      %p278 = scmp.lt.s32.totalorder %s20, 1
      %s279 = scalar_select %p278, %s20, 1
      %s280 = smul.addr %s279, 4
      %s281 = scalar_lea.vmem %s2, %s280
      %p282 = scmp.lt.s32.totalorder %s20, 1
      %s283 = scalar_select %p282, %s20, 1
      %s284 = smul.addr %s283, 4
      %s285 = scalar_lea.vmem %s3, %s284
      %p286 = scmp.lt.s32.totalorder %s19, 1
      %s287 = scalar_select %p286, %s19, 1
      %p288 = scmp.lt.s32.totalorder %s20, 1
      %s289 = scalar_select %p288, %s20, 1
      %s290 = smul.addr %s287, 2
      %s291 = sadd.s32 %s289, %s290
      %s292 = smul.addr %s291, 2
      %s293 = scalar_lea.vmem %s4, %s292
      %v294 = vld [vmem:[%s269] sm:$0x3]
      %v295 = vunpack.c.l.bf16 %v294
      %v296 = vld [vmem:[%s277] sm:$0x3]
      %v297 = vunpack.c.l.bf16 %v296
      %v298 = vld [vmem:[%s281] sm:$0xf]
      %v299 = vld [vmem:[%s285] sm:$0xf]
      %vm300 = vcmask 125952
      %v301 = vsel %vm300, %v295, 0.0
      %302 = vadd.xlane.f32.xlu0 %v301
      %v303 = vpop.xlane.xlu0 %302
      %vm304 = vcmask 1043456
      %v305 = vsel %vm304, %v303, 0.0
      %v306 = vrot.slane %v305, 4
      %v307 = vadd.f32 %v305, %v306
      %v308 = vrot.slane %v307, 2
      %v309 = vadd.f32 %v307, %v308
      %v310 = vrot.slane %v309, 1
      %v311 = vadd.f32 %v309, %v310
      %v312 = vrcp.pop 64.0
      %v313 = vmul.f32 64.0, %v312
      %v314 = vsub.f32 1.0, %v313
      %v315 = vmul.f32 %v312, %v314
      %v316 = vadd.f32 %v312, %v315
      %vm317 = vweird.f32 %v312
      %v318 = vsel %vm317, %v312, %v316
      %v319 = vmul.f32 %v311, %v318
      %v320 = vsub.f32 %v295, %v319
      %v321 = vmul.f32 %v320, %v320
      %v322 = vsel %vm300, %v321, 0.0
      %323 = vadd.xlane.f32.xlu0 %v322
      %v324 = vpop.xlane.xlu0 %323
      %v325 = vsel %vm304, %v324, 0.0
      %v326 = vrot.slane %v325, 4
      %v327 = vadd.f32 %v325, %v326
      %v328 = vrot.slane %v327, 2
      %v329 = vadd.f32 %v327, %v328
      %v330 = vrot.slane %v329, 1
      %v331 = vadd.f32 %v329, %v330
      %v332 = vmul.f32 %v331, %v318
      %v333 = vadd.f32 %v332, 1e-05
      %v334 = vrsqrt.pop %v333
      %v335 = vmul.f32 %v334, %v333
      %v336 = vmul.f32 %v335, %v334
      %v337 = vmul.f32 0.5, %v336
      %v338 = vsub.f32 1.5, %v337
      %v339 = vmul.f32 %v334, %v338
      %vm340 = vweird.f32 %v333
      %vm341 = vweird.f32 %v334
      %vm342 = vmor %vm340, %vm341
      %v343 = vsel %vm342, %v334, %v339
      %v344 = vmul.f32 %v320, %v343
      %346 = vset.pattern.permute.xlu0 0
      %347 = vperm.xlu0 %346, %v298
      %v348 = vpop.permute.xlu0 %347
      %v350 = vmul.f32 %v344, %v348
      %352 = vset.pattern.permute.xlu0 0
      %353 = vperm.xlu0 %352, %v299
      %v354 = vpop.permute.xlu0 %353
      %v356 = vadd.f32 %v350, %v354
      %vm357 = vcmp.gt.f32.partialorder %v356, 0.0
      %v358 = vmin.f32 %v356, 0.0
      %v359 = vmul.f32 %v358, 1.442695
      %v360 = vpow.pop %v359
      %v361 = vsub.f32 %v360, 1.0
      %v362 = vsel %vm357, %v356, %v361
      %v363 = vadd.f32 %v362, %v297
      %v364 = vpack.c.bf16 %v363, %v363
      %vm365 = vcmask 123904
      %366 = vst.msk [vmem:[%s293] sm:$0x3] %vm365, %v364
      %p367 = scmp.lt.s32.totalorder %s19, 1
      %s368 = scalar_select %p367, %s19, 1
      %p369 = scmp.lt.s32.totalorder %s20, 1
      %s370 = scalar_select %p369, %s20, 1
      %s371 = smul.addr %s368, 2
      %s372 = sadd.s32 %s370, %s371
      %s373 = smul.addr %s372, 2
      %s374 = scalar_lea.vmem %s4, %s373
      // Predicated region
      $region37: #{decoder_forward.12} parent=35 // pred_check
        %p375 = pneg %p155
      $region38: #{decoder_forward.12} parent=35 // pred_check_branch
        %377 = sbr.rel (%p375) target = $region40
      $region39: #{decoder_forward.12} parent=35 // pred_region
        _
      $region40: #{decoder_forward.12} parent=35 // pred_fallthru
        _
    $region36: #{decoder_forward.12} parent=5 // pred_fallthru
      _
    %p378 = scmp.le.s32.totalorder 2, %s10
    // Predicated region
    $region41: #{decoder_forward.12} parent=5 // pred_check
      %p379 = pneg %p378
    $region42: #{decoder_forward.12} parent=5 // pred_check_branch
      %381 = sbr.rel (%p379) target = $region44
    $region43: #{decoder_forward.12} parent=5 // pred_region
      %s382 = ssub.s32 %s10, 2
      // Predicated region
      $region45: #{decoder_forward.12} parent=43 // pred_check
        %p383 = pneg %p161
      $region46: #{decoder_forward.12} parent=43 // pred_check_branch
        %385 = sbr.rel (%p383) target = $region48
      $region47: #{decoder_forward.12} parent=43 // pred_region
        %p386 = scmp.lt.s32.totalorder %s21, 1
        %s387 = scalar_select %p386, %s21, 1
        %p388 = scmp.lt.s32.totalorder %s22, 1
        %s389 = scalar_select %p388, %s22, 1
        %s390 = smul.addr %s387, 2
        %s391 = sadd.s32 %s389, %s390
        %s392 = smul.addr %s391, 2
        %s393 = scalar_lea.vmem %s4, %s392
      $region48: #{decoder_forward.12} parent=43 // pred_fallthru
        _
    $region44: #{decoder_forward.12} parent=5 // pred_fallthru
      _
  $region6: #{decoder_forward.12} parent=0 // loop_footer
    %s14 = sadd.s32 1, %s10
  $region7: #{decoder_forward.12} parent=0 // loop_footer_branch
    %9 = sbr.rel target = $region3
  $region8: #{decoder_forward.12} parent=0 // loop_exit
    _

// kernel: decoder_forward.11
$region0: #{decoder_forward.11}
  #allocation0 [shape = 'u32[]', space=smem, size = 0x4, offset = 0x4, fixed_abs, tag = 'smem constant byte address 0x4 - core index']
  #allocation1 [shape = 'u32[72,128]{1,0:T(1,128)}', space=vmem, size = 0x9000, scoped, tag = 'internal scratch']
  %s0 = inlined_call_operand.vmem [shape: bf16[2,8,36], index: 0, kind: input, shape index: {}]
  %s1 = inlined_call_operand.vmem [shape: bf16[9,8,8], index: 1, kind: input, shape index: {}]
  %s2 = inlined_call_operand.vmem [shape: f32[8,1], index: 2, kind: input, shape index: {}]
  %s3 = inlined_call_operand.vmem [shape: bf16[2,8,4,4], index: 3, kind: output, shape index: {}]
  %s4 = sld [smem:[#allocation0]]
  $region45: #{decoder_forward.11} parent=0
    _
  %s6 = ssub.s32 1, %s4
  %s7 = scalar_select 0, %s6, %s4
  loop: start=0, step=1, limit=4
  $region2: #{decoder_forward.11} parent=0 // loop_pre_header
    _
  $region3: #{decoder_forward.11} parent=0 // loop_header
    %s9 = sphi 0, %s13
    %p10 = scmp.ge.s32.totalorder %s9, 4
    %s19 = sphi 0, %s21
    %s22 = sphi 0, %s19
    %s23 = sphi 0, %s22
    %s39 = sphi 0, %s23
    %s43 = sphi 0, %s43
    %s45 = sphi 0, %s43
    %s46 = sphi 0, %s45
    %s60 = sphi 0, %s46
    %s64 = sphi 0, %s64
    %s66 = sphi 0, %s64
    %s67 = sphi 0, %s66
    %s81 = sphi 0, %s67
    %s87 = sphi 0, %s89
    %s90 = sphi 0, %s87
    %s91 = sphi 0, %s90
    %s107 = sphi 0, %s91
  $region4: #{decoder_forward.11} parent=0 // loop_header_branch
    %12 = sbr.rel (%p10) target = $region8
  $region5: #{decoder_forward.11} parent=0 // loop_body
    %s14 = ssub.s32 %s9, 1
    %s15 = ssub.s32 %s9, 2
    %s16 = sadd.s32 %s9, 1
    %s17 = ssub.s32 %s9, %s16
    %p18 = scmp.eq.s32.totalorder %s17, 0
    %s20 = sadd.s32 %s19, 1
    %s21 = scalar_select %p18, %s19, %s20
    %p24 = pneg %p18
    %p25 = scmp.eq.s32.totalorder %s9, 1
    %p26 = por %p24, %p25
    %p27 = scmp.ne.s32.totalorder %s19, %s22
    %p28 = scmp.eq.s32.totalorder %s9, 0
    %p29 = por %p27, %p28
    %p30 = scmp.ne.s32.totalorder %s19, %s22
    %p31 = scmp.eq.s32.totalorder %s14, 1
    %p32 = por %p30, %p31
    %p33 = scmp.ne.s32.totalorder %s22, %s23
    %p34 = scmp.eq.s32.totalorder %s14, 0
    %p35 = por %p33, %p34
    %p36 = scmp.ne.s32.totalorder %s22, %s23
    %p37 = scmp.eq.s32.totalorder %s15, 1
    %p38 = por %p36, %p37
    %p40 = scmp.ne.s32.totalorder %s23, %s39
    %p41 = scmp.eq.s32.totalorder %s15, 0
    %p42 = por %p40, %p41
    %s44 = sadd.s32 %s43, 1
    %p47 = scmp.eq.s32.totalorder %s9, 1
    %p48 = scmp.ne.s32.totalorder %s43, %s45
    %p49 = scmp.eq.s32.totalorder %s9, 0
    %p50 = por %p48, %p49
    %p51 = scmp.ne.s32.totalorder %s43, %s45
    %p52 = scmp.eq.s32.totalorder %s14, 1
    %p53 = por %p51, %p52
    %p54 = scmp.ne.s32.totalorder %s45, %s46
    %p55 = scmp.eq.s32.totalorder %s14, 0
    %p56 = por %p54, %p55
    %p57 = scmp.ne.s32.totalorder %s45, %s46
    %p58 = scmp.eq.s32.totalorder %s15, 1
    %p59 = por %p57, %p58
    %p61 = scmp.ne.s32.totalorder %s46, %s60
    %p62 = scmp.eq.s32.totalorder %s15, 0
    %p63 = por %p61, %p62
    %s65 = sadd.s32 %s64, 1
    %p68 = scmp.eq.s32.totalorder %s9, 1
    %p69 = scmp.ne.s32.totalorder %s64, %s66
    %p70 = scmp.eq.s32.totalorder %s9, 0
    %p71 = por %p69, %p70
    %p72 = scmp.ne.s32.totalorder %s64, %s66
    %p73 = scmp.eq.s32.totalorder %s14, 1
    %p74 = por %p72, %p73
    %p75 = scmp.ne.s32.totalorder %s66, %s67
    %p76 = scmp.eq.s32.totalorder %s14, 0
    %p77 = por %p75, %p76
    %p78 = scmp.ne.s32.totalorder %s66, %s67
    %p79 = scmp.eq.s32.totalorder %s15, 1
    %p80 = por %p78, %p79
    %p82 = scmp.ne.s32.totalorder %s67, %s81
    %p83 = scmp.eq.s32.totalorder %s15, 0
    %p84 = por %p82, %p83
    %s85 = ssub.s32 %s9, %s16
    %p86 = scmp.eq.s32.totalorder %s85, 0
    %s88 = sadd.s32 %s87, 1
    %s89 = scalar_select %p86, %s87, %s88
    %p92 = pneg %p86
    %p93 = scmp.eq.s32.totalorder %s9, 1
    %p94 = por %p92, %p93
    %p95 = scmp.ne.s32.totalorder %s87, %s90
    %p96 = scmp.eq.s32.totalorder %s9, 0
    %p97 = por %p95, %p96
    %p98 = scmp.ne.s32.totalorder %s87, %s90
    %p99 = scmp.eq.s32.totalorder %s14, 1
    %p100 = por %p98, %p99
    %p101 = scmp.ne.s32.totalorder %s90, %s91
    %p102 = scmp.eq.s32.totalorder %s14, 0
    %p103 = por %p101, %p102
    %p104 = scmp.ne.s32.totalorder %s90, %s91
    %p105 = scmp.eq.s32.totalorder %s15, 1
    %p106 = por %p104, %p105
    %p108 = scmp.ne.s32.totalorder %s91, %s107
    %p109 = scmp.eq.s32.totalorder %s15, 0
    %p110 = por %p108, %p109
    %p111 = scmp.le.s32.totalorder 1, %s9
    %p112 = scmp.lt.s32.totalorder %s9, 3
    %p113 = pnand %p111, %p112
    %p114 = pneg %p113
    // Predicated region
    $region9: #{decoder_forward.11} parent=5 // pred_check
      _
    $region10: #{decoder_forward.11} parent=5 // pred_check_branch
      %116 = sbr.rel (%p113) target = $region12
    $region11: #{decoder_forward.11} parent=5 // pred_region
      %s117 = ssub.s32 %s9, 1
      // Predicated region
      $region13: #{decoder_forward.11} parent=11 // pred_check
        %p118 = pneg %p56
      $region14: #{decoder_forward.11} parent=11 // pred_check_branch
        %120 = sbr.rel (%p118) target = $region16
      $region15: #{decoder_forward.11} parent=11 // pred_region
        _
      $region16: #{decoder_forward.11} parent=11 // pred_fallthru
        _
      // Predicated region
      $region17: #{decoder_forward.11} parent=11 // pred_check
        %p121 = pneg %p77
      $region18: #{decoder_forward.11} parent=11 // pred_check_branch
        %123 = sbr.rel (%p121) target = $region20
      $region19: #{decoder_forward.11} parent=11 // pred_region
        _
      $region20: #{decoder_forward.11} parent=11 // pred_fallthru
        _
    $region12: #{decoder_forward.11} parent=5 // pred_fallthru
      _
    %p124 = scmp.lt.s32.totalorder %s9, 2
    // Predicated region
    $region21: #{decoder_forward.11} parent=5 // pred_check
      %p125 = pneg %p124
    $region22: #{decoder_forward.11} parent=5 // pred_check_branch
      %127 = sbr.rel (%p125) target = $region24
    $region23: #{decoder_forward.11} parent=5 // pred_region
      // Predicated region
      $region25: #{decoder_forward.11} parent=23 // pred_check
        %p128 = pneg %p29
      $region26: #{decoder_forward.11} parent=23 // pred_check_branch
        %130 = sbr.rel (%p128) target = $region28
      $region27: #{decoder_forward.11} parent=23 // pred_region
        %p131 = scmp.lt.s32.totalorder %s9, 1
        %s132 = scalar_select %p131, %s9, 1
        %s133 = smul.addr %s132, 4
        %s134 = scalar_lea.vmem %s0, %s133
      $region28: #{decoder_forward.11} parent=23 // pred_fallthru
        _
    $region24: #{decoder_forward.11} parent=5 // pred_fallthru
      _
    %p135 = scmp.le.s32.totalorder 1, %s9
    %p136 = scmp.lt.s32.totalorder %s9, 3
    %p137 = pnand %p135, %p136
    %p138 = pneg %p137
    // Predicated region
    $region29: #{decoder_forward.11} parent=5 // pred_check
      _
    $region30: #{decoder_forward.11} parent=5 // pred_check_branch
      %140 = sbr.rel (%p137) target = $region32
    $region31: #{decoder_forward.11} parent=5 // pred_region
      %s141 = ssub.s32 %s9, 1
      %p142 = scmp.lt.s32.totalorder %s14, 1
      %s143 = scalar_select %p142, %s14, 1
      %s144 = smul.addr %s143, 4
      %s145 = scalar_lea.vmem %s0, %s144
      %p146 = pneg %p35
      %p147 = pneg %p32
      %p148 = pneg %p56
      %p149 = pneg %p53
      %p150 = pneg %p77
      %p151 = pneg %p74
      %p152 = pneg %p103
      %p153 = pneg %p100
      %p154 = scmp.lt.s32.totalorder %s14, 1
      %s155 = scalar_select %p154, %s14, 1
      %s156 = smul.addr %s155, 8
      %s157 = smul.addr %s156, 2
      %s158 = scalar_lea.vmem %s3, %s157
      %p159 = scmp.lt.s32.totalorder %s14, 1
      %s160 = scalar_select %p159, %s14, 1
      %s161 = smul.addr %s160, 4
      %s162 = scalar_lea.vmem %s0, %s161
      %p163 = scmp.lt.s32.totalorder %s14, 1
      %s164 = scalar_select %p163, %s14, 1
      %s165 = smul.addr %s164, 8
      %s166 = smul.addr %s165, 2
      %s167 = scalar_lea.vmem %s3, %s166
      %v169 = vld [vmem:[%s1] sm:$0xf]
      %v170 = vld [vmem:[%s162] sm:$0xf]
      %s171 = scalar_lea.vmem %s1, 4
      %v172 = vld [vmem:[%s171] sm:$0xf]
      %v174 = vunpack.c.l.b16 %v170
      %v175 = vpack.c.b16 %v174, %v174
      %176 = vrot.lane.b32.xlu0 %v175, 127
      %v177 = vpop.permute.xlu0 %176
      %vm178 = vcmask 64512
      %v180 = vsel %vm178, %v172, 0
      %vm182 = vcmask 1043456
      %v184 = vsel %vm182, %v177, 0
      %186 = vmatpush.bf16.msra.mxu0 0
      %187 = vmatpush.bf16.msra.mxu0 0
      %188 = vmatpush.bf16.msra.mxu0 0
      %189 = vmatpush.bf16.msra.mxu0 0
      %190 = vmatpush.bf16.msra.mxu0 0
      %191 = vmatpush.bf16.msra.mxu0 0
      %192 = vmatpush.bf16.msra.mxu0 0
      %193 = vmatpush.bf16.msra.mxu0 %v184
      %194 = vmatmul.bf16.gmra.mxu0 %v180
      %v195 = vpop.f32.mrf.mxu0
      %v196 = vadd.f32 0.0, %v195
      %v197 = vpop.f32.mrf.mxu0
      %198 = vdwg.mxu0
      %v200 = vsel %vm178, %v169, 0
      %v203 = vsel %vm182, %v170, 0
      %205 = vmatpush.bf16.msra.mxu0 0
      %206 = vmatpush.bf16.msra.mxu0 0
      %207 = vmatpush.bf16.msra.mxu0 0
      %208 = vmatpush.bf16.msra.mxu0 0
      %209 = vmatpush.bf16.msra.mxu0 0
      %210 = vmatpush.bf16.msra.mxu0 0
      %211 = vmatpush.bf16.msra.mxu0 0
      %212 = vmatpush.bf16.msra.mxu0 %v203
      %213 = vmatmul.bf16.gmra.mxu0 %v200
      %v214 = vpop.f32.mrf.mxu0
      %v215 = vadd.f32 %v196, %v214
      %v216 = vpop.f32.mrf.mxu0
      %217 = vdwg.mxu0
      %s218 = scalar_lea.vmem %s1, 8
      %v219 = vld [vmem:[%s218] sm:$0xf]
      %220 = vrot.lane.b32.xlu0 %v175, 126
      %v221 = vpop.permute.xlu0 %220
      %v223 = vsel %vm178, %v219, 0
      %v226 = vsel %vm182, %v221, 0
      %228 = vmatpush.bf16.msra.mxu0 0
      %229 = vmatpush.bf16.msra.mxu0 0
      %230 = vmatpush.bf16.msra.mxu0 0
      %231 = vmatpush.bf16.msra.mxu0 0
      %232 = vmatpush.bf16.msra.mxu0 0
      %233 = vmatpush.bf16.msra.mxu0 0
      %234 = vmatpush.bf16.msra.mxu0 0
      %235 = vmatpush.bf16.msra.mxu0 %v226
      %236 = vmatmul.bf16.gmra.mxu0 %v223
      %v237 = vpop.f32.mrf.mxu0
      %v238 = vadd.f32 0.0, %v237
      %v239 = vpop.f32.mrf.mxu0
      %240 = vdwg.mxu0
      %v241 = vadd.f32 %v215, %v238
      %s242 = scalar_lea.vmem %s1, 12
      %v243 = vld [vmem:[%s242] sm:$0xf]
      %244 = vrot.lane.b32.xlu0 %v175, 122
      %v245 = vpop.permute.xlu0 %244
      %v247 = vsel %vm178, %v243, 0
      %v250 = vsel %vm182, %v245, 0
      %252 = vmatpush.bf16.msra.mxu0 0
      %253 = vmatpush.bf16.msra.mxu0 0
      %254 = vmatpush.bf16.msra.mxu0 0
      %255 = vmatpush.bf16.msra.mxu0 0
      %256 = vmatpush.bf16.msra.mxu0 0
      %257 = vmatpush.bf16.msra.mxu0 0
      %258 = vmatpush.bf16.msra.mxu0 0
      %259 = vmatpush.bf16.msra.mxu0 %v250
      %260 = vmatmul.bf16.gmra.mxu0 %v247
      %v261 = vpop.f32.mrf.mxu0
      %v262 = vadd.f32 0.0, %v261
      %v263 = vpop.f32.mrf.mxu0
      %264 = vdwg.mxu0
      %v265 = vadd.f32 %v241, %v262
      %s266 = scalar_lea.vmem %s1, 16
      %v267 = vld [vmem:[%s266] sm:$0xf]
      %268 = vrot.lane.b32.xlu0 %v175, 121
      %v269 = vpop.permute.xlu0 %268
      %v271 = vsel %vm178, %v267, 0
      %v274 = vsel %vm182, %v269, 0
      %276 = vmatpush.bf16.msra.mxu0 0
      %277 = vmatpush.bf16.msra.mxu0 0
      %278 = vmatpush.bf16.msra.mxu0 0
      %279 = vmatpush.bf16.msra.mxu0 0
      %280 = vmatpush.bf16.msra.mxu0 0
      %281 = vmatpush.bf16.msra.mxu0 0
      %282 = vmatpush.bf16.msra.mxu0 0
      %283 = vmatpush.bf16.msra.mxu0 %v274
      %284 = vmatmul.bf16.gmra.mxu0 %v271
      %v285 = vpop.f32.mrf.mxu0
      %v286 = vadd.f32 0.0, %v285
      %v287 = vpop.f32.mrf.mxu0
      %288 = vdwg.mxu0
      %v289 = vadd.f32 %v265, %v286
      %s290 = scalar_lea.vmem %s1, 20
      %v291 = vld [vmem:[%s290] sm:$0xf]
      %292 = vrot.lane.b32.xlu0 %v175, 120
      %v293 = vpop.permute.xlu0 %292
      %v295 = vsel %vm178, %v291, 0
      %v298 = vsel %vm182, %v293, 0
      %300 = vmatpush.bf16.msra.mxu0 0
      %301 = vmatpush.bf16.msra.mxu0 0
      %302 = vmatpush.bf16.msra.mxu0 0
      %303 = vmatpush.bf16.msra.mxu0 0
      %304 = vmatpush.bf16.msra.mxu0 0
      %305 = vmatpush.bf16.msra.mxu0 0
      %306 = vmatpush.bf16.msra.mxu0 0
      %307 = vmatpush.bf16.msra.mxu0 %v298
      %308 = vmatmul.bf16.gmra.mxu0 %v295
      %v309 = vpop.f32.mrf.mxu0
      %v310 = vadd.f32 0.0, %v309
      %v311 = vpop.f32.mrf.mxu0
      %312 = vdwg.mxu0
      %v313 = vadd.f32 %v289, %v310
      %s314 = scalar_lea.vmem %s1, 24
      %v315 = vld [vmem:[%s314] sm:$0xf]
      %316 = vrot.lane.b32.xlu0 %v175, 116
      %v317 = vpop.permute.xlu0 %316
      %v319 = vsel %vm178, %v315, 0
      %v322 = vsel %vm182, %v317, 0
      %324 = vmatpush.bf16.msra.mxu0 0
      %325 = vmatpush.bf16.msra.mxu0 0
      %326 = vmatpush.bf16.msra.mxu0 0
      %327 = vmatpush.bf16.msra.mxu0 0
      %328 = vmatpush.bf16.msra.mxu0 0
      %329 = vmatpush.bf16.msra.mxu0 0
      %330 = vmatpush.bf16.msra.mxu0 0
      %331 = vmatpush.bf16.msra.mxu0 %v322
      %332 = vmatmul.bf16.gmra.mxu0 %v319
      %v333 = vpop.f32.mrf.mxu0
      %v334 = vadd.f32 0.0, %v333
      %v335 = vpop.f32.mrf.mxu0
      %336 = vdwg.mxu0
      %v337 = vadd.f32 %v313, %v334
      %s338 = scalar_lea.vmem %s1, 28
      %v339 = vld [vmem:[%s338] sm:$0xf]
      %340 = vrot.lane.b32.xlu0 %v175, 115
      %v341 = vpop.permute.xlu0 %340
      %v343 = vsel %vm178, %v339, 0
      %v346 = vsel %vm182, %v341, 0
      %348 = vmatpush.bf16.msra.mxu0 0
      %349 = vmatpush.bf16.msra.mxu0 0
      %350 = vmatpush.bf16.msra.mxu0 0
      %351 = vmatpush.bf16.msra.mxu0 0
      %352 = vmatpush.bf16.msra.mxu0 0
      %353 = vmatpush.bf16.msra.mxu0 0
      %354 = vmatpush.bf16.msra.mxu0 0
      %355 = vmatpush.bf16.msra.mxu0 %v346
      %356 = vmatmul.bf16.gmra.mxu0 %v343
      %v357 = vpop.f32.mrf.mxu0
      %v358 = vadd.f32 0.0, %v357
      %v359 = vpop.f32.mrf.mxu0
      %360 = vdwg.mxu0
      %v361 = vadd.f32 %v337, %v358
      %s362 = scalar_lea.vmem %s1, 32
      %v363 = vld [vmem:[%s362] sm:$0xf]
      %364 = vrot.lane.b32.xlu0 %v175, 114
      %v365 = vpop.permute.xlu0 %364
      %v367 = vsel %vm178, %v363, 0
      %v370 = vsel %vm182, %v365, 0
      %372 = vmatpush.bf16.msra.mxu0 0
      %373 = vmatpush.bf16.msra.mxu0 0
      %374 = vmatpush.bf16.msra.mxu0 0
      %375 = vmatpush.bf16.msra.mxu0 0
      %376 = vmatpush.bf16.msra.mxu0 0
      %377 = vmatpush.bf16.msra.mxu0 0
      %378 = vmatpush.bf16.msra.mxu0 0
      %379 = vmatpush.bf16.msra.mxu0 %v370
      %380 = vmatmul.bf16.gmra.mxu0 %v367
      %v381 = vpop.f32.mrf.mxu0
      %v382 = vadd.f32 0.0, %v381
      %v383 = vpop.f32.mrf.mxu0
      %384 = vdwg.mxu0
      %v385 = vadd.f32 %v361, %v382
      %v386 = vpack.c.bf16 %v385, %v385
      %v388 = vrot.slane %v386, 3
      %vm389 = vcmask 1040384
      %v392 = vsel %vm389, %v386, %v388
      %vm394 = vcmask 1041409
      %v395 = vsel %vm394, %v386, %v388
      %v397 = vrot.slane %v395, 1
      %vm398 = vcmask 1042434
      %v399 = vsel %vm398, %v386, %v388
      %v401 = vrot.slane %v399, 2
      %vm402 = vcmask 1043459
      %v403 = vsel %vm402, %v386, %v388
      %v405 = vrot.slane %v403, 3
      %v406 = vunpack.i.l.s16 %v392
      %v407 = vunpack.i.h.s16 %v392
      %v408 = vunpack.i.l.s16 %v397
      %v409 = vunpack.i.h.s16 %v397
      %v410 = vunpack.i.l.s16 %v401
      %v411 = vunpack.i.h.s16 %v401
      %v412 = vunpack.i.l.s16 %v405
      %v413 = vunpack.i.h.s16 %v405
      %v414 = vpack.i.b16 %v406, %v406
      %v415 = vpack.i.b16 %v407, %v407
      %v416 = vpack.i.b16 %v408, %v408
      %v417 = vpack.i.b16 %v409, %v409
      %v418 = vpack.i.b16 %v410, %v410
      %v419 = vpack.i.b16 %v411, %v411
      %v420 = vpack.i.b16 %v412, %v412
      %v421 = vpack.i.b16 %v413, %v413
      %v423 = vunpack.c.l.s4 857870592
      %v424 = vunpack.c.0.s8 %v423
      %v425 = vperm.slane %v414, %v424
      %v427 = vunpack.c.l.s4 857870592
      %v428 = vunpack.c.0.s8 %v427
      %v429 = vperm.slane %v415, %v428
      %v431 = vunpack.c.l.s4 857870592
      %v432 = vunpack.c.0.s8 %v431
      %v433 = vperm.slane %v416, %v432
      %v435 = vunpack.c.l.s4 857870592
      %v436 = vunpack.c.0.s8 %v435
      %v437 = vperm.slane %v417, %v436
      %v439 = vunpack.c.l.s4 857870592
      %v440 = vunpack.c.0.s8 %v439
      %v441 = vperm.slane %v418, %v440
      %v443 = vunpack.c.l.s4 857870592
      %v444 = vunpack.c.0.s8 %v443
      %v445 = vperm.slane %v419, %v444
      %v447 = vunpack.c.l.s4 857870592
      %v448 = vunpack.c.0.s8 %v447
      %v449 = vperm.slane %v420, %v448
      %v451 = vunpack.c.l.s4 857870592
      %v452 = vunpack.c.0.s8 %v451
      %v453 = vperm.slane %v421, %v452
      %vm462 = vcmask 24576
      %vm463 = vsmask.f32 256
      %vm464 = vmand %vm462, %vm463
      %v465 = vld [vmem:[%s167] sm:$0x1]
      %v466 = vsel %vm464, %v425, %v465
      %467 = vst [vmem:[%s167] sm:$0x1] %v466
      %v468 = vld [vmem:[%s167 + $0x2] sm:$0x1]
      %v469 = vsel %vm464, %v429, %v468
      %470 = vst [vmem:[%s167 + $0x2] sm:$0x1] %v469
      %v471 = vld [vmem:[%s167 + $0x4] sm:$0x1]
      %v472 = vsel %vm464, %v433, %v471
      %473 = vst [vmem:[%s167 + $0x4] sm:$0x1] %v472
      %v474 = vld [vmem:[%s167 + $0x6] sm:$0x1]
      %v475 = vsel %vm464, %v437, %v474
      %476 = vst [vmem:[%s167 + $0x6] sm:$0x1] %v475
      %v477 = vld [vmem:[%s167 + $0x8] sm:$0x1]
      %v478 = vsel %vm464, %v441, %v477
      %479 = vst [vmem:[%s167 + $0x8] sm:$0x1] %v478
      %v480 = vld [vmem:[%s167 + $0xa] sm:$0x1]
      %v481 = vsel %vm464, %v445, %v480
      %482 = vst [vmem:[%s167 + $0xa] sm:$0x1] %v481
      %v483 = vld [vmem:[%s167 + $0xc] sm:$0x1]
      %v484 = vsel %vm464, %v449, %v483
      %485 = vst [vmem:[%s167 + $0xc] sm:$0x1] %v484
      %v486 = vld [vmem:[%s167 + $0xe] sm:$0x1]
      %v487 = vsel %vm464, %v453, %v486
      %488 = vst [vmem:[%s167 + $0xe] sm:$0x1] %v487
      %489 = vrot.lane.b32.xlu0 %v425, 122
      %v490 = vpop.permute.xlu0 %489
      %491 = vrot.lane.b32.xlu0 %v429, 122
      %v492 = vpop.permute.xlu0 %491
      %493 = vrot.lane.b32.xlu0 %v433, 122
      %v494 = vpop.permute.xlu0 %493
      %495 = vrot.lane.b32.xlu0 %v437, 122
      %v496 = vpop.permute.xlu0 %495
      %497 = vrot.lane.b32.xlu0 %v441, 122
      %v498 = vpop.permute.xlu0 %497
      %499 = vrot.lane.b32.xlu0 %v445, 122
      %v500 = vpop.permute.xlu0 %499
      %501 = vrot.lane.b32.xlu0 %v449, 122
      %v502 = vpop.permute.xlu0 %501
      %503 = vrot.lane.b32.xlu0 %v453, 122
      %v504 = vpop.permute.xlu0 %503
      %vm513 = vsmask.f32 7938
      %vm514 = vmand %vm462, %vm513
      %v515 = vld [vmem:[%s167] sm:$0x1]
      %v516 = vsel %vm514, %v490, %v515
      %517 = vst [vmem:[%s167] sm:$0x1] %v516
      %v518 = vld [vmem:[%s167 + $0x2] sm:$0x1]
      %v519 = vsel %vm514, %v492, %v518
      %520 = vst [vmem:[%s167 + $0x2] sm:$0x1] %v519
      %v521 = vld [vmem:[%s167 + $0x4] sm:$0x1]
      %v522 = vsel %vm514, %v494, %v521
      %523 = vst [vmem:[%s167 + $0x4] sm:$0x1] %v522
      %v524 = vld [vmem:[%s167 + $0x6] sm:$0x1]
      %v525 = vsel %vm514, %v496, %v524
      %526 = vst [vmem:[%s167 + $0x6] sm:$0x1] %v525
      %v527 = vld [vmem:[%s167 + $0x8] sm:$0x1]
      %v528 = vsel %vm514, %v498, %v527
      %529 = vst [vmem:[%s167 + $0x8] sm:$0x1] %v528
      %v530 = vld [vmem:[%s167 + $0xa] sm:$0x1]
      %v531 = vsel %vm514, %v500, %v530
      %532 = vst [vmem:[%s167 + $0xa] sm:$0x1] %v531
      %v533 = vld [vmem:[%s167 + $0xc] sm:$0x1]
      %v534 = vsel %vm514, %v502, %v533
      %535 = vst [vmem:[%s167 + $0xc] sm:$0x1] %v534
      %v536 = vld [vmem:[%s167 + $0xe] sm:$0x1]
      %v537 = vsel %vm514, %v504, %v536
      %538 = vst [vmem:[%s167 + $0xe] sm:$0x1] %v537
      %539 = vrot.lane.b32.xlu0 %v425, 116
      %v540 = vpop.permute.xlu0 %539
      %541 = vrot.lane.b32.xlu0 %v429, 116
      %v542 = vpop.permute.xlu0 %541
      %543 = vrot.lane.b32.xlu0 %v433, 116
      %v544 = vpop.permute.xlu0 %543
      %545 = vrot.lane.b32.xlu0 %v437, 116
      %v546 = vpop.permute.xlu0 %545
      %547 = vrot.lane.b32.xlu0 %v441, 116
      %v548 = vpop.permute.xlu0 %547
      %549 = vrot.lane.b32.xlu0 %v445, 116
      %v550 = vpop.permute.xlu0 %549
      %551 = vrot.lane.b32.xlu0 %v449, 116
      %v552 = vpop.permute.xlu0 %551
      %553 = vrot.lane.b32.xlu0 %v453, 116
      %v554 = vpop.permute.xlu0 %553
      %vm563 = vcmask 25601
      %vm564 = vsmask.f32 1280
      %vm565 = vmand %vm563, %vm564
      %v566 = vld [vmem:[%s167] sm:$0x2]
      %v567 = vsel %vm565, %v540, %v566
      %568 = vst [vmem:[%s167] sm:$0x2] %v567
      %v569 = vld [vmem:[%s167 + $0x2] sm:$0x2]
      %v570 = vsel %vm565, %v542, %v569
      %571 = vst [vmem:[%s167 + $0x2] sm:$0x2] %v570
      %v572 = vld [vmem:[%s167 + $0x4] sm:$0x2]
      %v573 = vsel %vm565, %v544, %v572
      %574 = vst [vmem:[%s167 + $0x4] sm:$0x2] %v573
      %v575 = vld [vmem:[%s167 + $0x6] sm:$0x2]
      %v576 = vsel %vm565, %v546, %v575
      %577 = vst [vmem:[%s167 + $0x6] sm:$0x2] %v576
      %v578 = vld [vmem:[%s167 + $0x8] sm:$0x2]
      %v579 = vsel %vm565, %v548, %v578
      %580 = vst [vmem:[%s167 + $0x8] sm:$0x2] %v579
      %v581 = vld [vmem:[%s167 + $0xa] sm:$0x2]
      %v582 = vsel %vm565, %v550, %v581
      %583 = vst [vmem:[%s167 + $0xa] sm:$0x2] %v582
      %v584 = vld [vmem:[%s167 + $0xc] sm:$0x2]
      %v585 = vsel %vm565, %v552, %v584
      %586 = vst [vmem:[%s167 + $0xc] sm:$0x2] %v585
      %v587 = vld [vmem:[%s167 + $0xe] sm:$0x2]
      %v588 = vsel %vm565, %v554, %v587
      %589 = vst [vmem:[%s167 + $0xe] sm:$0x2] %v588
      %590 = vrot.lane.b32.xlu0 %v425, 110
      %v591 = vpop.permute.xlu0 %590
      %592 = vrot.lane.b32.xlu0 %v429, 110
      %v593 = vpop.permute.xlu0 %592
      %594 = vrot.lane.b32.xlu0 %v433, 110
      %v595 = vpop.permute.xlu0 %594
      %596 = vrot.lane.b32.xlu0 %v437, 110
      %v597 = vpop.permute.xlu0 %596
      %598 = vrot.lane.b32.xlu0 %v441, 110
      %v599 = vpop.permute.xlu0 %598
      %600 = vrot.lane.b32.xlu0 %v445, 110
      %v601 = vpop.permute.xlu0 %600
      %602 = vrot.lane.b32.xlu0 %v449, 110
      %v603 = vpop.permute.xlu0 %602
      %604 = vrot.lane.b32.xlu0 %v453, 110
      %v605 = vpop.permute.xlu0 %604
      %vm614 = vsmask.f32 7942
      %vm615 = vmand %vm563, %vm614
      %v616 = vld [vmem:[%s167] sm:$0x2]
      %v617 = vsel %vm615, %v591, %v616
      %618 = vst [vmem:[%s167] sm:$0x2] %v617
      %v619 = vld [vmem:[%s167 + $0x2] sm:$0x2]
      %v620 = vsel %vm615, %v593, %v619
      %621 = vst [vmem:[%s167 + $0x2] sm:$0x2] %v620
      %v622 = vld [vmem:[%s167 + $0x4] sm:$0x2]
      %v623 = vsel %vm615, %v595, %v622
      %624 = vst [vmem:[%s167 + $0x4] sm:$0x2] %v623
      %v625 = vld [vmem:[%s167 + $0x6] sm:$0x2]
      %v626 = vsel %vm615, %v597, %v625
      %627 = vst [vmem:[%s167 + $0x6] sm:$0x2] %v626
      %v628 = vld [vmem:[%s167 + $0x8] sm:$0x2]
      %v629 = vsel %vm615, %v599, %v628
      %630 = vst [vmem:[%s167 + $0x8] sm:$0x2] %v629
      %v631 = vld [vmem:[%s167 + $0xa] sm:$0x2]
      %v632 = vsel %vm615, %v601, %v631
      %633 = vst [vmem:[%s167 + $0xa] sm:$0x2] %v632
      %v634 = vld [vmem:[%s167 + $0xc] sm:$0x2]
      %v635 = vsel %vm615, %v603, %v634
      %636 = vst [vmem:[%s167 + $0xc] sm:$0x2] %v635
      %v637 = vld [vmem:[%s167 + $0xe] sm:$0x2]
      %v638 = vsel %vm615, %v605, %v637
      %639 = vst [vmem:[%s167 + $0xe] sm:$0x2] %v638
      %p640 = scmp.lt.s32.totalorder %s14, 1
      %s641 = scalar_select %p640, %s14, 1
      %s642 = smul.addr %s641, 8
      %s643 = smul.addr %s642, 2
      %s644 = scalar_lea.vmem %s3, %s643
      // Predicated region
      $region33: #{decoder_forward.11} parent=31 // pred_check
        %p645 = pneg %p100
      $region34: #{decoder_forward.11} parent=31 // pred_check_branch
        %647 = sbr.rel (%p645) target = $region36
      $region35: #{decoder_forward.11} parent=31 // pred_region
        _
      $region36: #{decoder_forward.11} parent=31 // pred_fallthru
        _
    $region32: #{decoder_forward.11} parent=5 // pred_fallthru
      _
    %p648 = scmp.le.s32.totalorder 2, %s9
    // Predicated region
    $region37: #{decoder_forward.11} parent=5 // pred_check
      %p649 = pneg %p648
    $region38: #{decoder_forward.11} parent=5 // pred_check_branch
      %651 = sbr.rel (%p649) target = $region40
    $region39: #{decoder_forward.11} parent=5 // pred_region
      %s652 = ssub.s32 %s9, 2
      // Predicated region
      $region41: #{decoder_forward.11} parent=39 // pred_check
        %p653 = pneg %p106
      $region42: #{decoder_forward.11} parent=39 // pred_check_branch
        %655 = sbr.rel (%p653) target = $region44
      $region43: #{decoder_forward.11} parent=39 // pred_region
        %p656 = scmp.lt.s32.totalorder %s15, 1
        %s657 = scalar_select %p656, %s15, 1
        %s658 = smul.addr %s657, 8
        %s659 = smul.addr %s658, 2
        %s660 = scalar_lea.vmem %s3, %s659
      $region44: #{decoder_forward.11} parent=39 // pred_fallthru
        _
    $region40: #{decoder_forward.11} parent=5 // pred_fallthru
      _
  $region6: #{decoder_forward.11} parent=0 // loop_footer
    %s13 = sadd.s32 1, %s9
  $region7: #{decoder_forward.11} parent=0 // loop_footer_branch
    %8 = sbr.rel target = $region3
  $region8: #{decoder_forward.11} parent=0 // loop_exit
    _

// kernel: decoder_forward.14
$region0: #{decoder_forward.14}
  #allocation0 [shape = 'u32[]', space=smem, size = 0x4, offset = 0x4, fixed_abs, tag = 'smem constant byte address 0x4 - core index']
  #allocation1 [shape = 'u32[72,128]{1,0:T(1,128)}', space=vmem, size = 0x9000, scoped, tag = 'internal scratch']
  %s0 = inlined_call_operand.vmem [shape: bf16[2,2,4,64], index: 0, kind: input, shape index: {}]
  %s1 = inlined_call_operand.vmem [shape: f32[2,4,1], index: 1, kind: input, shape index: {}]
  %s2 = inlined_call_operand.vmem [shape: f32[2,4,1], index: 2, kind: input, shape index: {}]
  %s3 = inlined_call_operand.vmem [shape: bf16[2,2,4,64], index: 3, kind: output, shape index: {}]
  %s4 = sld [smem:[#allocation0]]
  $region45: #{decoder_forward.14} parent=0
    _
  %s6 = ssub.s32 1, %s4
  %s7 = scalar_select 0, %s6, %s4
  loop: start=0, step=1, limit=6
  $region2: #{decoder_forward.14} parent=0 // loop_pre_header
    _
  $region3: #{decoder_forward.14} parent=0 // loop_header
    %s9 = sphi 0, %s13
    %p10 = scmp.ge.s32.totalorder %s9, 6
    %s16 = sphi 0, %s28
    %s17 = sphi 0, %s24
    %s18 = sphi 0, %s16
    %s19 = sphi 0, %s17
    %s20 = sphi 0, %s18
    %s21 = sphi 0, %s19
    %s33 = sphi 0, %s35
    %s36 = sphi 0, %s33
    %s37 = sphi 0, %s36
    %s53 = sphi 0, %s37
    %s59 = sphi 0, %s61
    %s62 = sphi 0, %s59
    %s63 = sphi 0, %s62
    %s79 = sphi 0, %s63
    %s85 = sphi 0, %s87
    %s88 = sphi 0, %s85
    %s89 = sphi 0, %s88
    %s105 = sphi 0, %s89
    %s113 = sphi 0, %s115
    %s116 = sphi 0, %s113
    %s117 = sphi 0, %s116
    %s133 = sphi 0, %s117
  $region4: #{decoder_forward.14} parent=0 // loop_header_branch
    %12 = sbr.rel (%p10) target = $region8
  $region5: #{decoder_forward.14} parent=0 // loop_body
    %s14 = ssub.s32 %s9, 1
    %s15 = ssub.s32 %s9, 2
    %s22 = sadd.s32 1, %s17
    %p23 = scmp.ge.s32.totalorder %s22, 2
    %s24 = scalar_select %p23, 0, %s22
    %s25 = sadd.s32 1, %s16
    %s26 = scalar_select %p23, %s25, %s16
    %p27 = scmp.ge.s32.totalorder %s26, 2
    %s28 = scalar_select %p27, 0, %s26
    %s29 = ssub.s32 %s16, %s28
    %s30 = ssub.s32 %s17, %s24
    %s31 = sor.u32 %s29, %s30
    %p32 = scmp.eq.s32.totalorder %s31, 0
    %s34 = sadd.s32 %s33, 1
    %s35 = scalar_select %p32, %s33, %s34
    %p38 = pneg %p32
    %p39 = scmp.eq.s32.totalorder %s9, 3
    %p40 = por %p38, %p39
    %p41 = scmp.ne.s32.totalorder %s33, %s36
    %p42 = scmp.eq.s32.totalorder %s9, 0
    %p43 = por %p41, %p42
    %p44 = scmp.ne.s32.totalorder %s33, %s36
    %p45 = scmp.eq.s32.totalorder %s14, 3
    %p46 = por %p44, %p45
    %p47 = scmp.ne.s32.totalorder %s36, %s37
    %p48 = scmp.eq.s32.totalorder %s14, 0
    %p49 = por %p47, %p48
    %p50 = scmp.ne.s32.totalorder %s36, %s37
    %p51 = scmp.eq.s32.totalorder %s15, 3
    %p52 = por %p50, %p51
    %p54 = scmp.ne.s32.totalorder %s37, %s53
    %p55 = scmp.eq.s32.totalorder %s15, 0
    %p56 = por %p54, %p55
    %s57 = ssub.s32 %s17, %s24
    %p58 = scmp.eq.s32.totalorder %s57, 0
    %s60 = sadd.s32 %s59, 1
    %s61 = scalar_select %p58, %s59, %s60
    %p64 = pneg %p58
    %p65 = scmp.eq.s32.totalorder %s9, 3
    %p66 = por %p64, %p65
    %p67 = scmp.ne.s32.totalorder %s59, %s62
    %p68 = scmp.eq.s32.totalorder %s9, 0
    %p69 = por %p67, %p68
    %p70 = scmp.ne.s32.totalorder %s59, %s62
    %p71 = scmp.eq.s32.totalorder %s14, 3
    %p72 = por %p70, %p71
    %p73 = scmp.ne.s32.totalorder %s62, %s63
    %p74 = scmp.eq.s32.totalorder %s14, 0
    %p75 = por %p73, %p74
    %p76 = scmp.ne.s32.totalorder %s62, %s63
    %p77 = scmp.eq.s32.totalorder %s15, 3
    %p78 = por %p76, %p77
    %p80 = scmp.ne.s32.totalorder %s63, %s79
    %p81 = scmp.eq.s32.totalorder %s15, 0
    %p82 = por %p80, %p81
    %s83 = ssub.s32 %s17, %s24
    %p84 = scmp.eq.s32.totalorder %s83, 0
    %s86 = sadd.s32 %s85, 1
    %s87 = scalar_select %p84, %s85, %s86
    %p90 = pneg %p84
    %p91 = scmp.eq.s32.totalorder %s9, 3
    %p92 = por %p90, %p91
    %p93 = scmp.ne.s32.totalorder %s85, %s88
    %p94 = scmp.eq.s32.totalorder %s9, 0
    %p95 = por %p93, %p94
    %p96 = scmp.ne.s32.totalorder %s85, %s88
    %p97 = scmp.eq.s32.totalorder %s14, 3
    %p98 = por %p96, %p97
    %p99 = scmp.ne.s32.totalorder %s88, %s89
    %p100 = scmp.eq.s32.totalorder %s14, 0
    %p101 = por %p99, %p100
    %p102 = scmp.ne.s32.totalorder %s88, %s89
    %p103 = scmp.eq.s32.totalorder %s15, 3
    %p104 = por %p102, %p103
    %p106 = scmp.ne.s32.totalorder %s89, %s105
    %p107 = scmp.eq.s32.totalorder %s15, 0
    %p108 = por %p106, %p107
    %s109 = ssub.s32 %s16, %s28
    %s110 = ssub.s32 %s17, %s24
    %s111 = sor.u32 %s109, %s110
    %p112 = scmp.eq.s32.totalorder %s111, 0
    %s114 = sadd.s32 %s113, 1
    %s115 = scalar_select %p112, %s113, %s114
    %p118 = pneg %p112
    %p119 = scmp.eq.s32.totalorder %s9, 3
    %p120 = por %p118, %p119
    %p121 = scmp.ne.s32.totalorder %s113, %s116
    %p122 = scmp.eq.s32.totalorder %s9, 0
    %p123 = por %p121, %p122
    %p124 = scmp.ne.s32.totalorder %s113, %s116
    %p125 = scmp.eq.s32.totalorder %s14, 3
    %p126 = por %p124, %p125
    %p127 = scmp.ne.s32.totalorder %s116, %s117
    %p128 = scmp.eq.s32.totalorder %s14, 0
    %p129 = por %p127, %p128
    %p130 = scmp.ne.s32.totalorder %s116, %s117
    %p131 = scmp.eq.s32.totalorder %s15, 3
    %p132 = por %p130, %p131
    %p134 = scmp.ne.s32.totalorder %s117, %s133
    %p135 = scmp.eq.s32.totalorder %s15, 0
    %p136 = por %p134, %p135
    %p137 = scmp.le.s32.totalorder 1, %s9
    %p138 = scmp.lt.s32.totalorder %s9, 5
    %p139 = pnand %p137, %p138
    %p140 = pneg %p139
    // Predicated region
    $region9: #{decoder_forward.14} parent=5 // pred_check
      _
    $region10: #{decoder_forward.14} parent=5 // pred_check_branch
      %142 = sbr.rel (%p139) target = $region12
    $region11: #{decoder_forward.14} parent=5 // pred_region
      %s143 = ssub.s32 %s9, 1
    $region12: #{decoder_forward.14} parent=5 // pred_fallthru
      _
    %p144 = scmp.lt.s32.totalorder %s9, 4
    // Predicated region
    $region13: #{decoder_forward.14} parent=5 // pred_check
      %p145 = pneg %p144
    $region14: #{decoder_forward.14} parent=5 // pred_check_branch
      %147 = sbr.rel (%p145) target = $region16
    $region15: #{decoder_forward.14} parent=5 // pred_region
      // Predicated region
      $region17: #{decoder_forward.14} parent=15 // pred_check
        %p148 = pneg %p43
      $region18: #{decoder_forward.14} parent=15 // pred_check_branch
        %150 = sbr.rel (%p148) target = $region20
      $region19: #{decoder_forward.14} parent=15 // pred_region
        %p151 = scmp.lt.s32.totalorder %s16, 1
        %s152 = scalar_select %p151, %s16, 1
        %p153 = scmp.lt.s32.totalorder %s17, 1
        %s154 = scalar_select %p153, %s17, 1
        %s155 = smul.addr %s152, 2
        %s156 = sadd.s32 %s154, %s155
        %s157 = smul.addr %s156, 2
        %s158 = scalar_lea.vmem %s0, %s157
      $region20: #{decoder_forward.14} parent=15 // pred_fallthru
        _
      // Predicated region
      $region21: #{decoder_forward.14} parent=15 // pred_check
        %p159 = pneg %p69
      $region22: #{decoder_forward.14} parent=15 // pred_check_branch
        %161 = sbr.rel (%p159) target = $region24
      $region23: #{decoder_forward.14} parent=15 // pred_region
        %p162 = scmp.lt.s32.totalorder %s17, 1
        %s163 = scalar_select %p162, %s17, 1
        %s164 = smul.addr %s163, 4
        %s165 = scalar_lea.vmem %s1, %s164
      $region24: #{decoder_forward.14} parent=15 // pred_fallthru
        _
      // Predicated region
      $region25: #{decoder_forward.14} parent=15 // pred_check
        %p166 = pneg %p95
      $region26: #{decoder_forward.14} parent=15 // pred_check_branch
        %168 = sbr.rel (%p166) target = $region28
      $region27: #{decoder_forward.14} parent=15 // pred_region
        %p169 = scmp.lt.s32.totalorder %s17, 1
        %s170 = scalar_select %p169, %s17, 1
        %s171 = smul.addr %s170, 4
        %s172 = scalar_lea.vmem %s2, %s171
      $region28: #{decoder_forward.14} parent=15 // pred_fallthru
        _
    $region16: #{decoder_forward.14} parent=5 // pred_fallthru
      _
    %p173 = scmp.le.s32.totalorder 1, %s9
    %p174 = scmp.lt.s32.totalorder %s9, 5
    %p175 = pnand %p173, %p174
    %p176 = pneg %p175
    // Predicated region
    $region29: #{decoder_forward.14} parent=5 // pred_check
      _
    $region30: #{decoder_forward.14} parent=5 // pred_check_branch
      %178 = sbr.rel (%p175) target = $region32
    $region31: #{decoder_forward.14} parent=5 // pred_region
      %s179 = ssub.s32 %s9, 1
      %p180 = scmp.lt.s32.totalorder %s18, 1
      %s181 = scalar_select %p180, %s18, 1
      %p182 = scmp.lt.s32.totalorder %s19, 1
      %s183 = scalar_select %p182, %s19, 1
      %s184 = smul.addr %s181, 2
      %s185 = sadd.s32 %s183, %s184
      %s186 = smul.addr %s185, 2
      %s187 = scalar_lea.vmem %s0, %s186
      %p188 = pneg %p49
      %p189 = pneg %p46
      %p190 = scmp.lt.s32.totalorder %s19, 1
      %s191 = scalar_select %p190, %s19, 1
      %s192 = smul.addr %s191, 4
      %s193 = scalar_lea.vmem %s1, %s192
      %p194 = pneg %p75
      %p195 = pneg %p72
      %p196 = scmp.lt.s32.totalorder %s19, 1
      %s197 = scalar_select %p196, %s19, 1
      %s198 = smul.addr %s197, 4
      %s199 = scalar_lea.vmem %s2, %s198
      %p200 = pneg %p101
      %p201 = pneg %p98
      %p202 = pneg %p129
      %p203 = pneg %p126
      %p204 = scmp.lt.s32.totalorder %s18, 1
      %s205 = scalar_select %p204, %s18, 1
      %p206 = scmp.lt.s32.totalorder %s19, 1
      %s207 = scalar_select %p206, %s19, 1
      %s208 = smul.addr %s205, 2
      %s209 = sadd.s32 %s207, %s208
      %s210 = smul.addr %s209, 2
      %s211 = scalar_lea.vmem %s3, %s210
      %p212 = scmp.lt.s32.totalorder %s18, 1
      %s213 = scalar_select %p212, %s18, 1
      %p214 = scmp.lt.s32.totalorder %s19, 1
      %s215 = scalar_select %p214, %s19, 1
      %s216 = smul.addr %s213, 2
      %s217 = sadd.s32 %s215, %s216
      %s218 = smul.addr %s217, 2
      %s219 = scalar_lea.vmem %s0, %s218
      %p220 = scmp.lt.s32.totalorder %s19, 1
      %s221 = scalar_select %p220, %s19, 1
      %s222 = smul.addr %s221, 4
      %s223 = scalar_lea.vmem %s1, %s222
      %p224 = scmp.lt.s32.totalorder %s19, 1
      %s225 = scalar_select %p224, %s19, 1
      %s226 = smul.addr %s225, 4
      %s227 = scalar_lea.vmem %s2, %s226
      %p228 = scmp.lt.s32.totalorder %s18, 1
      %s229 = scalar_select %p228, %s18, 1
      %p230 = scmp.lt.s32.totalorder %s19, 1
      %s231 = scalar_select %p230, %s19, 1
      %s232 = smul.addr %s229, 2
      %s233 = sadd.s32 %s231, %s232
      %s234 = smul.addr %s233, 2
      %s235 = scalar_lea.vmem %s3, %s234
      %v236 = vld [vmem:[%s219] sm:$0x3]
      %v237 = vunpack.c.l.bf16 %v236
      %v238 = vld [vmem:[%s223] sm:$0xf]
      %v239 = vld [vmem:[%s227] sm:$0xf]
      %vm240 = vcmask 519168
      %v241 = vsel %vm240, %v237, 0.0
      %242 = vadd.xlane.f32.xlu0 %v241
      %v243 = vpop.xlane.xlu0 %242
      %vm244 = vcmask 1043456
      %v245 = vsel %vm244, %v243, 0.0
      %v246 = vrot.slane %v245, 4
      %v247 = vadd.f32 %v245, %v246
      %v248 = vrot.slane %v247, 2
      %v249 = vadd.f32 %v247, %v248
      %v250 = vrot.slane %v249, 1
      %v251 = vadd.f32 %v249, %v250
      %v252 = vrcp.pop 256.0
      %v253 = vmul.f32 256.0, %v252
      %v254 = vsub.f32 1.0, %v253
      %v255 = vmul.f32 %v252, %v254
      %v256 = vadd.f32 %v252, %v255
      %vm257 = vweird.f32 %v252
      %v258 = vsel %vm257, %v252, %v256
      %v259 = vmul.f32 %v251, %v258
      %v260 = vsub.f32 %v237, %v259
      %v261 = vmul.f32 %v260, %v260
      %v262 = vsel %vm240, %v261, 0.0
      %263 = vadd.xlane.f32.xlu0 %v262
      %v264 = vpop.xlane.xlu0 %263
      %v265 = vsel %vm244, %v264, 0.0
      %v266 = vrot.slane %v265, 4
      %v267 = vadd.f32 %v265, %v266
      %v268 = vrot.slane %v267, 2
      %v269 = vadd.f32 %v267, %v268
      %v270 = vrot.slane %v269, 1
      %v271 = vadd.f32 %v269, %v270
      %v272 = vmul.f32 %v271, %v258
      %v273 = vadd.f32 %v272, 1e-05
      %v274 = vrsqrt.pop %v273
      %v275 = vmul.f32 %v274, %v273
      %v276 = vmul.f32 %v275, %v274
      %v277 = vmul.f32 0.5, %v276
      %v278 = vsub.f32 1.5, %v277
      %v279 = vmul.f32 %v274, %v278
      %vm280 = vweird.f32 %v273
      %vm281 = vweird.f32 %v274
      %vm282 = vmor %vm280, %vm281
      %v283 = vsel %vm282, %v274, %v279
      %v284 = vmul.f32 %v260, %v283
      %286 = vset.pattern.permute.xlu0 0
      %287 = vperm.xlu0 %286, %v238
      %v288 = vpop.permute.xlu0 %287
      %v290 = vmul.f32 %v284, %v288
      %292 = vset.pattern.permute.xlu0 0
      %293 = vperm.xlu0 %292, %v239
      %v294 = vpop.permute.xlu0 %293
      %v296 = vadd.f32 %v290, %v294
      %vm297 = vcmp.gt.f32.partialorder %v296, 0.0
      %v298 = vmin.f32 %v296, 0.0
      %v299 = vmul.f32 %v298, 1.442695
      %v300 = vpow.pop %v299
      %v301 = vsub.f32 %v300, 1.0
      %v302 = vsel %vm297, %v296, %v301
      %v303 = vpack.c.bf16 %v302, %v302
      %vm304 = vcmask 517120
      %305 = vst.msk [vmem:[%s235] sm:$0x3] %vm304, %v303
      %p306 = scmp.lt.s32.totalorder %s18, 1
      %s307 = scalar_select %p306, %s18, 1
      %p308 = scmp.lt.s32.totalorder %s19, 1
      %s309 = scalar_select %p308, %s19, 1
      %s310 = smul.addr %s307, 2
      %s311 = sadd.s32 %s309, %s310
      %s312 = smul.addr %s311, 2
      %s313 = scalar_lea.vmem %s3, %s312
      // Predicated region
      $region33: #{decoder_forward.14} parent=31 // pred_check
        %p314 = pneg %p126
      $region34: #{decoder_forward.14} parent=31 // pred_check_branch
        %316 = sbr.rel (%p314) target = $region36
      $region35: #{decoder_forward.14} parent=31 // pred_region
        _
      $region36: #{decoder_forward.14} parent=31 // pred_fallthru
        _
    $region32: #{decoder_forward.14} parent=5 // pred_fallthru
      _
    %p317 = scmp.le.s32.totalorder 2, %s9
    // Predicated region
    $region37: #{decoder_forward.14} parent=5 // pred_check
      %p318 = pneg %p317
    $region38: #{decoder_forward.14} parent=5 // pred_check_branch
      %320 = sbr.rel (%p318) target = $region40
    $region39: #{decoder_forward.14} parent=5 // pred_region
      %s321 = ssub.s32 %s9, 2
      // Predicated region
      $region41: #{decoder_forward.14} parent=39 // pred_check
        %p322 = pneg %p132
      $region42: #{decoder_forward.14} parent=39 // pred_check_branch
        %324 = sbr.rel (%p322) target = $region44
      $region43: #{decoder_forward.14} parent=39 // pred_region
        %p325 = scmp.lt.s32.totalorder %s20, 1
        %s326 = scalar_select %p325, %s20, 1
        %p327 = scmp.lt.s32.totalorder %s21, 1
        %s328 = scalar_select %p327, %s21, 1
        %s329 = smul.addr %s326, 2
        %s330 = sadd.s32 %s328, %s329
        %s331 = smul.addr %s330, 2
        %s332 = scalar_lea.vmem %s3, %s331
      $region44: #{decoder_forward.14} parent=39 // pred_fallthru
        _
    $region40: #{decoder_forward.14} parent=5 // pred_fallthru
      _
  $region6: #{decoder_forward.14} parent=0 // loop_footer
    %s13 = sadd.s32 1, %s9
  $region7: #{decoder_forward.14} parent=0 // loop_footer_branch
    %8 = sbr.rel target = $region3
  $region8: #{decoder_forward.14} parent=0 // loop_exit
    _

// kernel: decoder_forward.13
$region0: #{decoder_forward.13}
  #allocation0 [shape = 'u32[]', space=smem, size = 0x4, offset = 0x4, fixed_abs, tag = 'smem constant byte address 0x4 - core index']
  #allocation1 [shape = 'u32[72,128]{1,0:T(1,128)}', space=vmem, size = 0x9000, scoped, tag = 'internal scratch']
  %s0 = inlined_call_operand.vmem [shape: bf16[2,8,25], index: 0, kind: input, shape index: {}]
  %s1 = inlined_call_operand.vmem [shape: bf16[4,32,8], index: 1, kind: input, shape index: {}]
  %s2 = inlined_call_operand.vmem [shape: f32[32,1], index: 2, kind: input, shape index: {}]
  %s3 = inlined_call_operand.vmem [shape: bf16[2,32,4,4], index: 3, kind: output, shape index: {}]
  %s4 = sld [smem:[#allocation0]]
  $region45: #{decoder_forward.13} parent=0
    _
  %s6 = ssub.s32 1, %s4
  %s7 = scalar_select 0, %s6, %s4
  loop: start=0, step=1, limit=4
  $region2: #{decoder_forward.13} parent=0 // loop_pre_header
    _
  $region3: #{decoder_forward.13} parent=0 // loop_header
    %s9 = sphi 0, %s13
    %p10 = scmp.ge.s32.totalorder %s9, 4
    %s19 = sphi 0, %s21
    %s22 = sphi 0, %s19
    %s23 = sphi 0, %s22
    %s39 = sphi 0, %s23
    %s43 = sphi 0, %s43
    %s45 = sphi 0, %s43
    %s46 = sphi 0, %s45
    %s60 = sphi 0, %s46
    %s64 = sphi 0, %s64
    %s66 = sphi 0, %s64
    %s67 = sphi 0, %s66
    %s81 = sphi 0, %s67
    %s87 = sphi 0, %s89
    %s90 = sphi 0, %s87
    %s91 = sphi 0, %s90
    %s107 = sphi 0, %s91
  $region4: #{decoder_forward.13} parent=0 // loop_header_branch
    %12 = sbr.rel (%p10) target = $region8
  $region5: #{decoder_forward.13} parent=0 // loop_body
    %s14 = ssub.s32 %s9, 1
    %s15 = ssub.s32 %s9, 2
    %s16 = sadd.s32 %s9, 1
    %s17 = ssub.s32 %s9, %s16
    %p18 = scmp.eq.s32.totalorder %s17, 0
    %s20 = sadd.s32 %s19, 1
    %s21 = scalar_select %p18, %s19, %s20
    %p24 = pneg %p18
    %p25 = scmp.eq.s32.totalorder %s9, 1
    %p26 = por %p24, %p25
    %p27 = scmp.ne.s32.totalorder %s19, %s22
    %p28 = scmp.eq.s32.totalorder %s9, 0
    %p29 = por %p27, %p28
    %p30 = scmp.ne.s32.totalorder %s19, %s22
    %p31 = scmp.eq.s32.totalorder %s14, 1
    %p32 = por %p30, %p31
    %p33 = scmp.ne.s32.totalorder %s22, %s23
    %p34 = scmp.eq.s32.totalorder %s14, 0
    %p35 = por %p33, %p34
    %p36 = scmp.ne.s32.totalorder %s22, %s23
    %p37 = scmp.eq.s32.totalorder %s15, 1
    %p38 = por %p36, %p37
    %p40 = scmp.ne.s32.totalorder %s23, %s39
    %p41 = scmp.eq.s32.totalorder %s15, 0
    %p42 = por %p40, %p41
    %s44 = sadd.s32 %s43, 1
    %p47 = scmp.eq.s32.totalorder %s9, 1
    %p48 = scmp.ne.s32.totalorder %s43, %s45
    %p49 = scmp.eq.s32.totalorder %s9, 0
    %p50 = por %p48, %p49
    %p51 = scmp.ne.s32.totalorder %s43, %s45
    %p52 = scmp.eq.s32.totalorder %s14, 1
    %p53 = por %p51, %p52
    %p54 = scmp.ne.s32.totalorder %s45, %s46
    %p55 = scmp.eq.s32.totalorder %s14, 0
    %p56 = por %p54, %p55
    %p57 = scmp.ne.s32.totalorder %s45, %s46
    %p58 = scmp.eq.s32.totalorder %s15, 1
    %p59 = por %p57, %p58
    %p61 = scmp.ne.s32.totalorder %s46, %s60
    %p62 = scmp.eq.s32.totalorder %s15, 0
    %p63 = por %p61, %p62
    %s65 = sadd.s32 %s64, 1
    %p68 = scmp.eq.s32.totalorder %s9, 1
    %p69 = scmp.ne.s32.totalorder %s64, %s66
    %p70 = scmp.eq.s32.totalorder %s9, 0
    %p71 = por %p69, %p70
    %p72 = scmp.ne.s32.totalorder %s64, %s66
    %p73 = scmp.eq.s32.totalorder %s14, 1
    %p74 = por %p72, %p73
    %p75 = scmp.ne.s32.totalorder %s66, %s67
    %p76 = scmp.eq.s32.totalorder %s14, 0
    %p77 = por %p75, %p76
    %p78 = scmp.ne.s32.totalorder %s66, %s67
    %p79 = scmp.eq.s32.totalorder %s15, 1
    %p80 = por %p78, %p79
    %p82 = scmp.ne.s32.totalorder %s67, %s81
    %p83 = scmp.eq.s32.totalorder %s15, 0
    %p84 = por %p82, %p83
    %s85 = ssub.s32 %s9, %s16
    %p86 = scmp.eq.s32.totalorder %s85, 0
    %s88 = sadd.s32 %s87, 1
    %s89 = scalar_select %p86, %s87, %s88
    %p92 = pneg %p86
    %p93 = scmp.eq.s32.totalorder %s9, 1
    %p94 = por %p92, %p93
    %p95 = scmp.ne.s32.totalorder %s87, %s90
    %p96 = scmp.eq.s32.totalorder %s9, 0
    %p97 = por %p95, %p96
    %p98 = scmp.ne.s32.totalorder %s87, %s90
    %p99 = scmp.eq.s32.totalorder %s14, 1
    %p100 = por %p98, %p99
    %p101 = scmp.ne.s32.totalorder %s90, %s91
    %p102 = scmp.eq.s32.totalorder %s14, 0
    %p103 = por %p101, %p102
    %p104 = scmp.ne.s32.totalorder %s90, %s91
    %p105 = scmp.eq.s32.totalorder %s15, 1
    %p106 = por %p104, %p105
    %p108 = scmp.ne.s32.totalorder %s91, %s107
    %p109 = scmp.eq.s32.totalorder %s15, 0
    %p110 = por %p108, %p109
    %p111 = scmp.le.s32.totalorder 1, %s9
    %p112 = scmp.lt.s32.totalorder %s9, 3
    %p113 = pnand %p111, %p112
    %p114 = pneg %p113
    // Predicated region
    $region9: #{decoder_forward.13} parent=5 // pred_check
      _
    $region10: #{decoder_forward.13} parent=5 // pred_check_branch
      %116 = sbr.rel (%p113) target = $region12
    $region11: #{decoder_forward.13} parent=5 // pred_region
      %s117 = ssub.s32 %s9, 1
      // Predicated region
      $region13: #{decoder_forward.13} parent=11 // pred_check
        %p118 = pneg %p56
      $region14: #{decoder_forward.13} parent=11 // pred_check_branch
        %120 = sbr.rel (%p118) target = $region16
      $region15: #{decoder_forward.13} parent=11 // pred_region
        _
      $region16: #{decoder_forward.13} parent=11 // pred_fallthru
        _
      // Predicated region
      $region17: #{decoder_forward.13} parent=11 // pred_check
        %p121 = pneg %p77
      $region18: #{decoder_forward.13} parent=11 // pred_check_branch
        %123 = sbr.rel (%p121) target = $region20
      $region19: #{decoder_forward.13} parent=11 // pred_region
        _
      $region20: #{decoder_forward.13} parent=11 // pred_fallthru
        _
    $region12: #{decoder_forward.13} parent=5 // pred_fallthru
      _
    %p124 = scmp.lt.s32.totalorder %s9, 2
    // Predicated region
    $region21: #{decoder_forward.13} parent=5 // pred_check
      %p125 = pneg %p124
    $region22: #{decoder_forward.13} parent=5 // pred_check_branch
      %127 = sbr.rel (%p125) target = $region24
    $region23: #{decoder_forward.13} parent=5 // pred_region
      // Predicated region
      $region25: #{decoder_forward.13} parent=23 // pred_check
        %p128 = pneg %p29
      $region26: #{decoder_forward.13} parent=23 // pred_check_branch
        %130 = sbr.rel (%p128) target = $region28
      $region27: #{decoder_forward.13} parent=23 // pred_region
        %p131 = scmp.lt.s32.totalorder %s9, 1
        %s132 = scalar_select %p131, %s9, 1
        %s133 = smul.addr %s132, 4
        %s134 = scalar_lea.vmem %s0, %s133
      $region28: #{decoder_forward.13} parent=23 // pred_fallthru
        _
    $region24: #{decoder_forward.13} parent=5 // pred_fallthru
      _
    %p135 = scmp.le.s32.totalorder 1, %s9
    %p136 = scmp.lt.s32.totalorder %s9, 3
    %p137 = pnand %p135, %p136
    %p138 = pneg %p137
    // Predicated region
    $region29: #{decoder_forward.13} parent=5 // pred_check
      _
    $region30: #{decoder_forward.13} parent=5 // pred_check_branch
      %140 = sbr.rel (%p137) target = $region32
    $region31: #{decoder_forward.13} parent=5 // pred_region
      %s141 = ssub.s32 %s9, 1
      %p142 = scmp.lt.s32.totalorder %s14, 1
      %s143 = scalar_select %p142, %s14, 1
      %s144 = smul.addr %s143, 4
      %s145 = scalar_lea.vmem %s0, %s144
      %p146 = pneg %p35
      %p147 = pneg %p32
      %p148 = pneg %p56
      %p149 = pneg %p53
      %p150 = pneg %p77
      %p151 = pneg %p74
      %p152 = pneg %p103
      %p153 = pneg %p100
      %p154 = scmp.lt.s32.totalorder %s14, 1
      %s155 = scalar_select %p154, %s14, 1
      %s156 = smul.addr %s155, 32
      %s157 = smul.addr %s156, 2
      %s158 = scalar_lea.vmem %s3, %s157
      %p159 = scmp.lt.s32.totalorder %s14, 1
      %s160 = scalar_select %p159, %s14, 1
      %s161 = smul.addr %s160, 4
      %s162 = scalar_lea.vmem %s0, %s161
      %p163 = scmp.lt.s32.totalorder %s14, 1
      %s164 = scalar_select %p163, %s14, 1
      %s165 = smul.addr %s164, 32
      %s166 = smul.addr %s165, 2
      %s167 = scalar_lea.vmem %s3, %s166
      %v169 = vld [vmem:[%s1] sm:$0xf]
      %v170 = vld [vmem:[%s1 + $0x4] sm:$0xf]
      %v171 = vld [vmem:[%s1 + $0x8] sm:$0xf]
      %v172 = vld [vmem:[%s1 + $0xc] sm:$0xf]
      %v173 = vld [vmem:[%s162] sm:$0xf]
      %s174 = scalar_lea.vmem %s1, 16
      %v175 = vld [vmem:[%s174] sm:$0xf]
      %v176 = vld [vmem:[%s174 + $0x4] sm:$0xf]
      %v177 = vld [vmem:[%s174 + $0x8] sm:$0xf]
      %v178 = vld [vmem:[%s174 + $0xc] sm:$0xf]
      %v183 = vunpack.c.l.b16 %v175
      %v184 = vunpack.c.l.b16 %v176
      %v185 = vunpack.c.l.b16 %v177
      %v186 = vunpack.c.l.b16 %v178
      %v187 = vpack.c.b16 %v184, %v183
      %v188 = vpack.c.b16 %v186, %v185
      %v190 = vunpack.c.l.b16 %v173
      %v191 = vpack.c.b16 %v190, %v190
      %192 = vrot.lane.b32.xlu0 %v191, 127
      %v193 = vpop.permute.xlu0 %192
      %vm194 = vcmask 64512
      %v196 = vsel %vm194, %v187, 0
      %v199 = vsel %vm194, %v188, 0
      %vm201 = vcmask 1043456
      %v203 = vsel %vm201, %v193, 0
      %205 = vmatpush.bf16.msra.mxu0 0
      %206 = vmatpush.bf16.msra.mxu0 0
      %207 = vmatpush.bf16.msra.mxu0 0
      %208 = vmatpush.bf16.msra.mxu0 0
      %209 = vmatpush.bf16.msra.mxu0 0
      %210 = vmatpush.bf16.msra.mxu0 0
      %211 = vmatpush.bf16.msra.mxu0 0
      %212 = vmatpush.bf16.msra.mxu0 %v203
      %213 = vmatmul.bf16.gmra.mxu0 %v196
      %v214 = vpop.f32.mrf.mxu0
      %v215 = vadd.f32 0.0, %v214
      %v216 = vpop.f32.mrf.mxu0
      %v217 = vadd.f32 0.0, %v216
      %218 = vmatmul.bf16.gmra.mxu0 %v199
      %v219 = vpop.f32.mrf.mxu0
      %v220 = vadd.f32 0.0, %v219
      %v221 = vpop.f32.mrf.mxu0
      %v222 = vadd.f32 0.0, %v221
      %223 = vdwg.mxu0
      %v228 = vunpack.c.l.b16 %v169
      %v229 = vunpack.c.l.b16 %v170
      %v230 = vunpack.c.l.b16 %v171
      %v231 = vunpack.c.l.b16 %v172
      %v232 = vpack.c.b16 %v229, %v228
      %v233 = vpack.c.b16 %v231, %v230
      %v235 = vsel %vm194, %v232, 0
      %v238 = vsel %vm194, %v233, 0
      %v241 = vsel %vm201, %v173, 0
      %243 = vmatpush.bf16.msra.mxu0 0
      %244 = vmatpush.bf16.msra.mxu0 0
      %245 = vmatpush.bf16.msra.mxu0 0
      %246 = vmatpush.bf16.msra.mxu0 0
      %247 = vmatpush.bf16.msra.mxu0 0
      %248 = vmatpush.bf16.msra.mxu0 0
      %249 = vmatpush.bf16.msra.mxu0 0
      %250 = vmatpush.bf16.msra.mxu0 %v241
      %251 = vmatmul.bf16.gmra.mxu0 %v235
      %v252 = vpop.f32.mrf.mxu0
      %v253 = vadd.f32 %v215, %v252
      %v254 = vpop.f32.mrf.mxu0
      %v255 = vadd.f32 %v217, %v254
      %256 = vmatmul.bf16.gmra.mxu0 %v238
      %v257 = vpop.f32.mrf.mxu0
      %v258 = vadd.f32 %v220, %v257
      %v259 = vpop.f32.mrf.mxu0
      %v260 = vadd.f32 %v222, %v259
      %261 = vdwg.mxu0
      %s262 = scalar_lea.vmem %s1, 32
      %v263 = vld [vmem:[%s262] sm:$0xf]
      %v264 = vld [vmem:[%s262 + $0x4] sm:$0xf]
      %v265 = vld [vmem:[%s262 + $0x8] sm:$0xf]
      %v266 = vld [vmem:[%s262 + $0xc] sm:$0xf]
      %v271 = vunpack.c.l.b16 %v263
      %v272 = vunpack.c.l.b16 %v264
      %v273 = vunpack.c.l.b16 %v265
      %v274 = vunpack.c.l.b16 %v266
      %v275 = vpack.c.b16 %v272, %v271
      %v276 = vpack.c.b16 %v274, %v273
      %277 = vrot.lane.b32.xlu0 %v191, 123
      %v278 = vpop.permute.xlu0 %277
      %v280 = vsel %vm194, %v275, 0
      %v283 = vsel %vm194, %v276, 0
      %v286 = vsel %vm201, %v278, 0
      %288 = vmatpush.bf16.msra.mxu0 0
      %289 = vmatpush.bf16.msra.mxu0 0
      %290 = vmatpush.bf16.msra.mxu0 0
      %291 = vmatpush.bf16.msra.mxu0 0
      %292 = vmatpush.bf16.msra.mxu0 0
      %293 = vmatpush.bf16.msra.mxu0 0
      %294 = vmatpush.bf16.msra.mxu0 0
      %295 = vmatpush.bf16.msra.mxu0 %v286
      %296 = vmatmul.bf16.gmra.mxu0 %v280
      %v297 = vpop.f32.mrf.mxu0
      %v298 = vadd.f32 0.0, %v297
      %v299 = vpop.f32.mrf.mxu0
      %v300 = vadd.f32 0.0, %v299
      %301 = vmatmul.bf16.gmra.mxu0 %v283
      %v302 = vpop.f32.mrf.mxu0
      %v303 = vadd.f32 0.0, %v302
      %v304 = vpop.f32.mrf.mxu0
      %v305 = vadd.f32 0.0, %v304
      %306 = vdwg.mxu0
      %v307 = vadd.f32 %v253, %v298
      %v308 = vadd.f32 %v255, %v300
      %v309 = vadd.f32 %v258, %v303
      %v310 = vadd.f32 %v260, %v305
      %s311 = scalar_lea.vmem %s1, 48
      %v312 = vld [vmem:[%s311] sm:$0xf]
      %v313 = vld [vmem:[%s311 + $0x4] sm:$0xf]
      %v314 = vld [vmem:[%s311 + $0x8] sm:$0xf]
      %v315 = vld [vmem:[%s311 + $0xc] sm:$0xf]
      %v320 = vunpack.c.l.b16 %v312
      %v321 = vunpack.c.l.b16 %v313
      %v322 = vunpack.c.l.b16 %v314
      %v323 = vunpack.c.l.b16 %v315
      %v324 = vpack.c.b16 %v321, %v320
      %v325 = vpack.c.b16 %v323, %v322
      %326 = vrot.lane.b32.xlu0 %v191, 122
      %v327 = vpop.permute.xlu0 %326
      %v329 = vsel %vm194, %v324, 0
      %v332 = vsel %vm194, %v325, 0
      %v335 = vsel %vm201, %v327, 0
      %337 = vmatpush.bf16.msra.mxu0 0
      %338 = vmatpush.bf16.msra.mxu0 0
      %339 = vmatpush.bf16.msra.mxu0 0
      %340 = vmatpush.bf16.msra.mxu0 0
      %341 = vmatpush.bf16.msra.mxu0 0
      %342 = vmatpush.bf16.msra.mxu0 0
      %343 = vmatpush.bf16.msra.mxu0 0
      %344 = vmatpush.bf16.msra.mxu0 %v335
      %345 = vmatmul.bf16.gmra.mxu0 %v329
      %v346 = vpop.f32.mrf.mxu0
      %v347 = vadd.f32 0.0, %v346
      %v348 = vpop.f32.mrf.mxu0
      %v349 = vadd.f32 0.0, %v348
      %350 = vmatmul.bf16.gmra.mxu0 %v332
      %v351 = vpop.f32.mrf.mxu0
      %v352 = vadd.f32 0.0, %v351
      %v353 = vpop.f32.mrf.mxu0
      %v354 = vadd.f32 0.0, %v353
      %355 = vdwg.mxu0
      %v356 = vadd.f32 %v307, %v347
      %v357 = vadd.f32 %v308, %v349
      %v358 = vadd.f32 %v309, %v352
      %v359 = vadd.f32 %v310, %v354
      %v360 = vpack.c.bf16 %v356, %v356
      %v361 = vpack.c.bf16 %v357, %v357
      %v362 = vpack.c.bf16 %v358, %v358
      %v363 = vpack.c.bf16 %v359, %v359
      %v368 = vrot.slane %v360, 3
      %v369 = vrot.slane %v361, 3
      %v370 = vrot.slane %v362, 3
      %v371 = vrot.slane %v363, 3
      %vm372 = vcmask 1040384
      %v375 = vsel %vm372, %v360, %v368
      %vm377 = vcmask 1041409
      %v378 = vsel %vm377, %v360, %v368
      %v380 = vrot.slane %v378, 1
      %vm381 = vcmask 1042434
      %v382 = vsel %vm381, %v360, %v368
      %v384 = vrot.slane %v382, 2
      %vm385 = vcmask 1043459
      %v386 = vsel %vm385, %v360, %v368
      %v388 = vrot.slane %v386, 3
      %v391 = vsel %vm372, %v361, %v369
      %v393 = vsel %vm377, %v361, %v369
      %v395 = vrot.slane %v393, 1
      %v396 = vsel %vm381, %v361, %v369
      %v398 = vrot.slane %v396, 2
      %v399 = vsel %vm385, %v361, %v369
      %v401 = vrot.slane %v399, 3
      %v404 = vsel %vm372, %v362, %v370
      %v406 = vsel %vm377, %v362, %v370
      %v408 = vrot.slane %v406, 1
      %v409 = vsel %vm381, %v362, %v370
      %v411 = vrot.slane %v409, 2
      %v412 = vsel %vm385, %v362, %v370
      %v414 = vrot.slane %v412, 3
      %v417 = vsel %vm372, %v363, %v371
      %v419 = vsel %vm377, %v363, %v371
      %v421 = vrot.slane %v419, 1
      %v422 = vsel %vm381, %v363, %v371
      %v424 = vrot.slane %v422, 2
      %v425 = vsel %vm385, %v363, %v371
      %v427 = vrot.slane %v425, 3
      %v428 = vunpack.i.l.s16 %v375
      %v429 = vunpack.i.h.s16 %v375
      %v430 = vunpack.i.l.s16 %v380
      %v431 = vunpack.i.h.s16 %v380
      %v432 = vunpack.i.l.s16 %v384
      %v433 = vunpack.i.h.s16 %v384
      %v434 = vunpack.i.l.s16 %v388
      %v435 = vunpack.i.h.s16 %v388
      %v436 = vunpack.i.l.s16 %v391
      %v437 = vunpack.i.h.s16 %v391
      %v438 = vunpack.i.l.s16 %v395
      %v439 = vunpack.i.h.s16 %v395
      %v440 = vunpack.i.l.s16 %v398
      %v441 = vunpack.i.h.s16 %v398
      %v442 = vunpack.i.l.s16 %v401
      %v443 = vunpack.i.h.s16 %v401
      %v444 = vunpack.i.l.s16 %v404
      %v445 = vunpack.i.h.s16 %v404
      %v446 = vunpack.i.l.s16 %v408
      %v447 = vunpack.i.h.s16 %v408
      %v448 = vunpack.i.l.s16 %v411
      %v449 = vunpack.i.h.s16 %v411
      %v450 = vunpack.i.l.s16 %v414
      %v451 = vunpack.i.h.s16 %v414
      %v452 = vunpack.i.l.s16 %v417
      %v453 = vunpack.i.h.s16 %v417
      %v454 = vunpack.i.l.s16 %v421
      %v455 = vunpack.i.h.s16 %v421
      %v456 = vunpack.i.l.s16 %v424
      %v457 = vunpack.i.h.s16 %v424
      %v458 = vunpack.i.l.s16 %v427
      %v459 = vunpack.i.h.s16 %v427
      %v460 = vpack.i.b16 %v428, %v428
      %v461 = vpack.i.b16 %v429, %v429
      %v462 = vpack.i.b16 %v430, %v430
      %v463 = vpack.i.b16 %v431, %v431
      %v464 = vpack.i.b16 %v432, %v432
      %v465 = vpack.i.b16 %v433, %v433
      %v466 = vpack.i.b16 %v434, %v434
      %v467 = vpack.i.b16 %v435, %v435
      %v468 = vpack.i.b16 %v436, %v436
      %v469 = vpack.i.b16 %v437, %v437
      %v470 = vpack.i.b16 %v438, %v438
      %v471 = vpack.i.b16 %v439, %v439
      %v472 = vpack.i.b16 %v440, %v440
      %v473 = vpack.i.b16 %v441, %v441
      %v474 = vpack.i.b16 %v442, %v442
      %v475 = vpack.i.b16 %v443, %v443
      %v476 = vpack.i.b16 %v444, %v444
      %v477 = vpack.i.b16 %v445, %v445
      %v478 = vpack.i.b16 %v446, %v446
      %v479 = vpack.i.b16 %v447, %v447
      %v480 = vpack.i.b16 %v448, %v448
      %v481 = vpack.i.b16 %v449, %v449
      %v482 = vpack.i.b16 %v450, %v450
      %v483 = vpack.i.b16 %v451, %v451
      %v484 = vpack.i.b16 %v452, %v452
      %v485 = vpack.i.b16 %v453, %v453
      %v486 = vpack.i.b16 %v454, %v454
      %v487 = vpack.i.b16 %v455, %v455
      %v488 = vpack.i.b16 %v456, %v456
      %v489 = vpack.i.b16 %v457, %v457
      %v490 = vpack.i.b16 %v458, %v458
      %v491 = vpack.i.b16 %v459, %v459
      %v493 = vunpack.c.l.s4 857870592
      %v494 = vunpack.c.0.s8 %v493
      %v495 = vperm.slane %v460, %v494
      %v497 = vunpack.c.l.s4 857870592
      %v498 = vunpack.c.0.s8 %v497
      %v499 = vperm.slane %v461, %v498
      %v501 = vunpack.c.l.s4 857870592
      %v502 = vunpack.c.0.s8 %v501
      %v503 = vperm.slane %v462, %v502
      %v505 = vunpack.c.l.s4 857870592
      %v506 = vunpack.c.0.s8 %v505
      %v507 = vperm.slane %v463, %v506
      %v509 = vunpack.c.l.s4 857870592
      %v510 = vunpack.c.0.s8 %v509
      %v511 = vperm.slane %v464, %v510
      %v513 = vunpack.c.l.s4 857870592
      %v514 = vunpack.c.0.s8 %v513
      %v515 = vperm.slane %v465, %v514
      %v517 = vunpack.c.l.s4 857870592
      %v518 = vunpack.c.0.s8 %v517
      %v519 = vperm.slane %v466, %v518
      %v521 = vunpack.c.l.s4 857870592
      %v522 = vunpack.c.0.s8 %v521
      %v523 = vperm.slane %v467, %v522
      %v525 = vunpack.c.l.s4 857870592
      %v526 = vunpack.c.0.s8 %v525
      %v527 = vperm.slane %v468, %v526
      %v529 = vunpack.c.l.s4 857870592
      %v530 = vunpack.c.0.s8 %v529
      %v531 = vperm.slane %v469, %v530
      %v533 = vunpack.c.l.s4 857870592
      %v534 = vunpack.c.0.s8 %v533
      %v535 = vperm.slane %v470, %v534
      %v537 = vunpack.c.l.s4 857870592
      %v538 = vunpack.c.0.s8 %v537
      %v539 = vperm.slane %v471, %v538
      %v541 = vunpack.c.l.s4 857870592
      %v542 = vunpack.c.0.s8 %v541
      %v543 = vperm.slane %v472, %v542
      %v545 = vunpack.c.l.s4 857870592
      %v546 = vunpack.c.0.s8 %v545
      %v547 = vperm.slane %v473, %v546
      %v549 = vunpack.c.l.s4 857870592
      %v550 = vunpack.c.0.s8 %v549
      %v551 = vperm.slane %v474, %v550
      %v553 = vunpack.c.l.s4 857870592
      %v554 = vunpack.c.0.s8 %v553
      %v555 = vperm.slane %v475, %v554
      %v557 = vunpack.c.l.s4 857870592
      %v558 = vunpack.c.0.s8 %v557
      %v559 = vperm.slane %v476, %v558
      %v561 = vunpack.c.l.s4 857870592
      %v562 = vunpack.c.0.s8 %v561
      %v563 = vperm.slane %v477, %v562
      %v565 = vunpack.c.l.s4 857870592
      %v566 = vunpack.c.0.s8 %v565
      %v567 = vperm.slane %v478, %v566
      %v569 = vunpack.c.l.s4 857870592
      %v570 = vunpack.c.0.s8 %v569
      %v571 = vperm.slane %v479, %v570
      %v573 = vunpack.c.l.s4 857870592
      %v574 = vunpack.c.0.s8 %v573
      %v575 = vperm.slane %v480, %v574
      %v577 = vunpack.c.l.s4 857870592
      %v578 = vunpack.c.0.s8 %v577
      %v579 = vperm.slane %v481, %v578
      %v581 = vunpack.c.l.s4 857870592
      %v582 = vunpack.c.0.s8 %v581
      %v583 = vperm.slane %v482, %v582
      %v585 = vunpack.c.l.s4 857870592
      %v586 = vunpack.c.0.s8 %v585
      %v587 = vperm.slane %v483, %v586
      %v589 = vunpack.c.l.s4 857870592
      %v590 = vunpack.c.0.s8 %v589
      %v591 = vperm.slane %v484, %v590
      %v593 = vunpack.c.l.s4 857870592
      %v594 = vunpack.c.0.s8 %v593
      %v595 = vperm.slane %v485, %v594
      %v597 = vunpack.c.l.s4 857870592
      %v598 = vunpack.c.0.s8 %v597
      %v599 = vperm.slane %v486, %v598
      %v601 = vunpack.c.l.s4 857870592
      %v602 = vunpack.c.0.s8 %v601
      %v603 = vperm.slane %v487, %v602
      %v605 = vunpack.c.l.s4 857870592
      %v606 = vunpack.c.0.s8 %v605
      %v607 = vperm.slane %v488, %v606
      %v609 = vunpack.c.l.s4 857870592
      %v610 = vunpack.c.0.s8 %v609
      %v611 = vperm.slane %v489, %v610
      %v613 = vunpack.c.l.s4 857870592
      %v614 = vunpack.c.0.s8 %v613
      %v615 = vperm.slane %v490, %v614
      %v617 = vunpack.c.l.s4 857870592
      %v618 = vunpack.c.0.s8 %v617
      %v619 = vperm.slane %v491, %v618
      %vm652 = vcmask 24576
      %vm653 = vsmask.f32 256
      %vm654 = vmand %vm652, %vm653
      %v655 = vld [vmem:[%s167] sm:$0x1]
      %v656 = vsel %vm654, %v495, %v655
      %657 = vst [vmem:[%s167] sm:$0x1] %v656
      %v658 = vld [vmem:[%s167 + $0x2] sm:$0x1]
      %v659 = vsel %vm654, %v499, %v658
      %660 = vst [vmem:[%s167 + $0x2] sm:$0x1] %v659
      %v661 = vld [vmem:[%s167 + $0x4] sm:$0x1]
      %v662 = vsel %vm654, %v503, %v661
      %663 = vst [vmem:[%s167 + $0x4] sm:$0x1] %v662
      %v664 = vld [vmem:[%s167 + $0x6] sm:$0x1]
      %v665 = vsel %vm654, %v507, %v664
      %666 = vst [vmem:[%s167 + $0x6] sm:$0x1] %v665
      %v667 = vld [vmem:[%s167 + $0x8] sm:$0x1]
      %v668 = vsel %vm654, %v511, %v667
      %669 = vst [vmem:[%s167 + $0x8] sm:$0x1] %v668
      %v670 = vld [vmem:[%s167 + $0xa] sm:$0x1]
      %v671 = vsel %vm654, %v515, %v670
      %672 = vst [vmem:[%s167 + $0xa] sm:$0x1] %v671
      %v673 = vld [vmem:[%s167 + $0xc] sm:$0x1]
      %v674 = vsel %vm654, %v519, %v673
      %675 = vst [vmem:[%s167 + $0xc] sm:$0x1] %v674
      %v676 = vld [vmem:[%s167 + $0xe] sm:$0x1]
      %v677 = vsel %vm654, %v523, %v676
      %678 = vst [vmem:[%s167 + $0xe] sm:$0x1] %v677
      %v679 = vld [vmem:[%s167 + $0x10] sm:$0x1]
      %v680 = vsel %vm654, %v527, %v679
      %681 = vst [vmem:[%s167 + $0x10] sm:$0x1] %v680
      %v682 = vld [vmem:[%s167 + $0x12] sm:$0x1]
      %v683 = vsel %vm654, %v531, %v682
      %684 = vst [vmem:[%s167 + $0x12] sm:$0x1] %v683
      %v685 = vld [vmem:[%s167 + $0x14] sm:$0x1]
      %v686 = vsel %vm654, %v535, %v685
      %687 = vst [vmem:[%s167 + $0x14] sm:$0x1] %v686
      %v688 = vld [vmem:[%s167 + $0x16] sm:$0x1]
      %v689 = vsel %vm654, %v539, %v688
      %690 = vst [vmem:[%s167 + $0x16] sm:$0x1] %v689
      %v691 = vld [vmem:[%s167 + $0x18] sm:$0x1]
      %v692 = vsel %vm654, %v543, %v691
      %693 = vst [vmem:[%s167 + $0x18] sm:$0x1] %v692
      %v694 = vld [vmem:[%s167 + $0x1a] sm:$0x1]
      %v695 = vsel %vm654, %v547, %v694
      %696 = vst [vmem:[%s167 + $0x1a] sm:$0x1] %v695
      %v697 = vld [vmem:[%s167 + $0x1c] sm:$0x1]
      %v698 = vsel %vm654, %v551, %v697
      %699 = vst [vmem:[%s167 + $0x1c] sm:$0x1] %v698
      %v700 = vld [vmem:[%s167 + $0x1e] sm:$0x1]
      %v701 = vsel %vm654, %v555, %v700
      %702 = vst [vmem:[%s167 + $0x1e] sm:$0x1] %v701
      %v703 = vld [vmem:[%s167 + $0x20] sm:$0x1]
      %v704 = vsel %vm654, %v559, %v703
      %705 = vst [vmem:[%s167 + $0x20] sm:$0x1] %v704
      %v706 = vld [vmem:[%s167 + $0x22] sm:$0x1]
      %v707 = vsel %vm654, %v563, %v706
      %708 = vst [vmem:[%s167 + $0x22] sm:$0x1] %v707
      %v709 = vld [vmem:[%s167 + $0x24] sm:$0x1]
      %v710 = vsel %vm654, %v567, %v709
      %711 = vst [vmem:[%s167 + $0x24] sm:$0x1] %v710
      %v712 = vld [vmem:[%s167 + $0x26] sm:$0x1]
      %v713 = vsel %vm654, %v571, %v712
      %714 = vst [vmem:[%s167 + $0x26] sm:$0x1] %v713
      %v715 = vld [vmem:[%s167 + $0x28] sm:$0x1]
      %v716 = vsel %vm654, %v575, %v715
      %717 = vst [vmem:[%s167 + $0x28] sm:$0x1] %v716
      %v718 = vld [vmem:[%s167 + $0x2a] sm:$0x1]
      %v719 = vsel %vm654, %v579, %v718
      %720 = vst [vmem:[%s167 + $0x2a] sm:$0x1] %v719
      %v721 = vld [vmem:[%s167 + $0x2c] sm:$0x1]
      %v722 = vsel %vm654, %v583, %v721
      %723 = vst [vmem:[%s167 + $0x2c] sm:$0x1] %v722
      %v724 = vld [vmem:[%s167 + $0x2e] sm:$0x1]
      %v725 = vsel %vm654, %v587, %v724
      %726 = vst [vmem:[%s167 + $0x2e] sm:$0x1] %v725
      %v727 = vld [vmem:[%s167 + $0x30] sm:$0x1]
      %v728 = vsel %vm654, %v591, %v727
      %729 = vst [vmem:[%s167 + $0x30] sm:$0x1] %v728
      %v730 = vld [vmem:[%s167 + $0x32] sm:$0x1]
      %v731 = vsel %vm654, %v595, %v730
      %732 = vst [vmem:[%s167 + $0x32] sm:$0x1] %v731
      %v733 = vld [vmem:[%s167 + $0x34] sm:$0x1]
      %v734 = vsel %vm654, %v599, %v733
      %735 = vst [vmem:[%s167 + $0x34] sm:$0x1] %v734
      %v736 = vld [vmem:[%s167 + $0x36] sm:$0x1]
      %v737 = vsel %vm654, %v603, %v736
      %738 = vst [vmem:[%s167 + $0x36] sm:$0x1] %v737
      %v739 = vld [vmem:[%s167 + $0x38] sm:$0x1]
      %v740 = vsel %vm654, %v607, %v739
      %741 = vst [vmem:[%s167 + $0x38] sm:$0x1] %v740
      %v742 = vld [vmem:[%s167 + $0x3a] sm:$0x1]
      %v743 = vsel %vm654, %v611, %v742
      %744 = vst [vmem:[%s167 + $0x3a] sm:$0x1] %v743
      %v745 = vld [vmem:[%s167 + $0x3c] sm:$0x1]
      %v746 = vsel %vm654, %v615, %v745
      %747 = vst [vmem:[%s167 + $0x3c] sm:$0x1] %v746
      %v748 = vld [vmem:[%s167 + $0x3e] sm:$0x1]
      %v749 = vsel %vm654, %v619, %v748
      %750 = vst [vmem:[%s167 + $0x3e] sm:$0x1] %v749
      %751 = vrot.lane.b32.xlu0 %v495, 123
      %v752 = vpop.permute.xlu0 %751
      %753 = vrot.lane.b32.xlu0 %v499, 123
      %v754 = vpop.permute.xlu0 %753
      %755 = vrot.lane.b32.xlu0 %v503, 123
      %v756 = vpop.permute.xlu0 %755
      %757 = vrot.lane.b32.xlu0 %v507, 123
      %v758 = vpop.permute.xlu0 %757
      %759 = vrot.lane.b32.xlu0 %v511, 123
      %v760 = vpop.permute.xlu0 %759
      %761 = vrot.lane.b32.xlu0 %v515, 123
      %v762 = vpop.permute.xlu0 %761
      %763 = vrot.lane.b32.xlu0 %v519, 123
      %v764 = vpop.permute.xlu0 %763
      %765 = vrot.lane.b32.xlu0 %v523, 123
      %v766 = vpop.permute.xlu0 %765
      %767 = vrot.lane.b32.xlu0 %v527, 123
      %v768 = vpop.permute.xlu0 %767
      %769 = vrot.lane.b32.xlu0 %v531, 123
      %v770 = vpop.permute.xlu0 %769
      %771 = vrot.lane.b32.xlu0 %v535, 123
      %v772 = vpop.permute.xlu0 %771
      %773 = vrot.lane.b32.xlu0 %v539, 123
      %v774 = vpop.permute.xlu0 %773
      %775 = vrot.lane.b32.xlu0 %v543, 123
      %v776 = vpop.permute.xlu0 %775
      %777 = vrot.lane.b32.xlu0 %v547, 123
      %v778 = vpop.permute.xlu0 %777
      %779 = vrot.lane.b32.xlu0 %v551, 123
      %v780 = vpop.permute.xlu0 %779
      %781 = vrot.lane.b32.xlu0 %v555, 123
      %v782 = vpop.permute.xlu0 %781
      %783 = vrot.lane.b32.xlu0 %v559, 123
      %v784 = vpop.permute.xlu0 %783
      %785 = vrot.lane.b32.xlu0 %v563, 123
      %v786 = vpop.permute.xlu0 %785
      %787 = vrot.lane.b32.xlu0 %v567, 123
      %v788 = vpop.permute.xlu0 %787
      %789 = vrot.lane.b32.xlu0 %v571, 123
      %v790 = vpop.permute.xlu0 %789
      %791 = vrot.lane.b32.xlu0 %v575, 123
      %v792 = vpop.permute.xlu0 %791
      %793 = vrot.lane.b32.xlu0 %v579, 123
      %v794 = vpop.permute.xlu0 %793
      %795 = vrot.lane.b32.xlu0 %v583, 123
      %v796 = vpop.permute.xlu0 %795
      %797 = vrot.lane.b32.xlu0 %v587, 123
      %v798 = vpop.permute.xlu0 %797
      %799 = vrot.lane.b32.xlu0 %v591, 123
      %v800 = vpop.permute.xlu0 %799
      %801 = vrot.lane.b32.xlu0 %v595, 123
      %v802 = vpop.permute.xlu0 %801
      %803 = vrot.lane.b32.xlu0 %v599, 123
      %v804 = vpop.permute.xlu0 %803
      %805 = vrot.lane.b32.xlu0 %v603, 123
      %v806 = vpop.permute.xlu0 %805
      %807 = vrot.lane.b32.xlu0 %v607, 123
      %v808 = vpop.permute.xlu0 %807
      %809 = vrot.lane.b32.xlu0 %v611, 123
      %v810 = vpop.permute.xlu0 %809
      %811 = vrot.lane.b32.xlu0 %v615, 123
      %v812 = vpop.permute.xlu0 %811
      %813 = vrot.lane.b32.xlu0 %v619, 123
      %v814 = vpop.permute.xlu0 %813
      %vm847 = vsmask.f32 7938
      %vm848 = vmand %vm652, %vm847
      %v849 = vld [vmem:[%s167] sm:$0x1]
      %v850 = vsel %vm848, %v752, %v849
      %851 = vst [vmem:[%s167] sm:$0x1] %v850
      %v852 = vld [vmem:[%s167 + $0x2] sm:$0x1]
      %v853 = vsel %vm848, %v754, %v852
      %854 = vst [vmem:[%s167 + $0x2] sm:$0x1] %v853
      %v855 = vld [vmem:[%s167 + $0x4] sm:$0x1]
      %v856 = vsel %vm848, %v756, %v855
      %857 = vst [vmem:[%s167 + $0x4] sm:$0x1] %v856
      %v858 = vld [vmem:[%s167 + $0x6] sm:$0x1]
      %v859 = vsel %vm848, %v758, %v858
      %860 = vst [vmem:[%s167 + $0x6] sm:$0x1] %v859
      %v861 = vld [vmem:[%s167 + $0x8] sm:$0x1]
      %v862 = vsel %vm848, %v760, %v861
      %863 = vst [vmem:[%s167 + $0x8] sm:$0x1] %v862
      %v864 = vld [vmem:[%s167 + $0xa] sm:$0x1]
      %v865 = vsel %vm848, %v762, %v864
      %866 = vst [vmem:[%s167 + $0xa] sm:$0x1] %v865
      %v867 = vld [vmem:[%s167 + $0xc] sm:$0x1]
      %v868 = vsel %vm848, %v764, %v867
      %869 = vst [vmem:[%s167 + $0xc] sm:$0x1] %v868
      %v870 = vld [vmem:[%s167 + $0xe] sm:$0x1]
      %v871 = vsel %vm848, %v766, %v870
      %872 = vst [vmem:[%s167 + $0xe] sm:$0x1] %v871
      %v873 = vld [vmem:[%s167 + $0x10] sm:$0x1]
      %v874 = vsel %vm848, %v768, %v873
      %875 = vst [vmem:[%s167 + $0x10] sm:$0x1] %v874
      %v876 = vld [vmem:[%s167 + $0x12] sm:$0x1]
      %v877 = vsel %vm848, %v770, %v876
      %878 = vst [vmem:[%s167 + $0x12] sm:$0x1] %v877
      %v879 = vld [vmem:[%s167 + $0x14] sm:$0x1]
      %v880 = vsel %vm848, %v772, %v879
      %881 = vst [vmem:[%s167 + $0x14] sm:$0x1] %v880
      %v882 = vld [vmem:[%s167 + $0x16] sm:$0x1]
      %v883 = vsel %vm848, %v774, %v882
      %884 = vst [vmem:[%s167 + $0x16] sm:$0x1] %v883
      %v885 = vld [vmem:[%s167 + $0x18] sm:$0x1]
      %v886 = vsel %vm848, %v776, %v885
      %887 = vst [vmem:[%s167 + $0x18] sm:$0x1] %v886
      %v888 = vld [vmem:[%s167 + $0x1a] sm:$0x1]
      %v889 = vsel %vm848, %v778, %v888
      %890 = vst [vmem:[%s167 + $0x1a] sm:$0x1] %v889
      %v891 = vld [vmem:[%s167 + $0x1c] sm:$0x1]
      %v892 = vsel %vm848, %v780, %v891
      %893 = vst [vmem:[%s167 + $0x1c] sm:$0x1] %v892
      %v894 = vld [vmem:[%s167 + $0x1e] sm:$0x1]
      %v895 = vsel %vm848, %v782, %v894
      %896 = vst [vmem:[%s167 + $0x1e] sm:$0x1] %v895
      %v897 = vld [vmem:[%s167 + $0x20] sm:$0x1]
      %v898 = vsel %vm848, %v784, %v897
      %899 = vst [vmem:[%s167 + $0x20] sm:$0x1] %v898
      %v900 = vld [vmem:[%s167 + $0x22] sm:$0x1]
      %v901 = vsel %vm848, %v786, %v900
      %902 = vst [vmem:[%s167 + $0x22] sm:$0x1] %v901
      %v903 = vld [vmem:[%s167 + $0x24] sm:$0x1]
      %v904 = vsel %vm848, %v788, %v903
      %905 = vst [vmem:[%s167 + $0x24] sm:$0x1] %v904
      %v906 = vld [vmem:[%s167 + $0x26] sm:$0x1]
      %v907 = vsel %vm848, %v790, %v906
      %908 = vst [vmem:[%s167 + $0x26] sm:$0x1] %v907
      %v909 = vld [vmem:[%s167 + $0x28] sm:$0x1]
      %v910 = vsel %vm848, %v792, %v909
      %911 = vst [vmem:[%s167 + $0x28] sm:$0x1] %v910
      %v912 = vld [vmem:[%s167 + $0x2a] sm:$0x1]
      %v913 = vsel %vm848, %v794, %v912
      %914 = vst [vmem:[%s167 + $0x2a] sm:$0x1] %v913
      %v915 = vld [vmem:[%s167 + $0x2c] sm:$0x1]
      %v916 = vsel %vm848, %v796, %v915
      %917 = vst [vmem:[%s167 + $0x2c] sm:$0x1] %v916
      %v918 = vld [vmem:[%s167 + $0x2e] sm:$0x1]
      %v919 = vsel %vm848, %v798, %v918
      %920 = vst [vmem:[%s167 + $0x2e] sm:$0x1] %v919
      %v921 = vld [vmem:[%s167 + $0x30] sm:$0x1]
      %v922 = vsel %vm848, %v800, %v921
      %923 = vst [vmem:[%s167 + $0x30] sm:$0x1] %v922
      %v924 = vld [vmem:[%s167 + $0x32] sm:$0x1]
      %v925 = vsel %vm848, %v802, %v924
      %926 = vst [vmem:[%s167 + $0x32] sm:$0x1] %v925
      %v927 = vld [vmem:[%s167 + $0x34] sm:$0x1]
      %v928 = vsel %vm848, %v804, %v927
      %929 = vst [vmem:[%s167 + $0x34] sm:$0x1] %v928
      %v930 = vld [vmem:[%s167 + $0x36] sm:$0x1]
      %v931 = vsel %vm848, %v806, %v930
      %932 = vst [vmem:[%s167 + $0x36] sm:$0x1] %v931
      %v933 = vld [vmem:[%s167 + $0x38] sm:$0x1]
      %v934 = vsel %vm848, %v808, %v933
      %935 = vst [vmem:[%s167 + $0x38] sm:$0x1] %v934
      %v936 = vld [vmem:[%s167 + $0x3a] sm:$0x1]
      %v937 = vsel %vm848, %v810, %v936
      %938 = vst [vmem:[%s167 + $0x3a] sm:$0x1] %v937
      %v939 = vld [vmem:[%s167 + $0x3c] sm:$0x1]
      %v940 = vsel %vm848, %v812, %v939
      %941 = vst [vmem:[%s167 + $0x3c] sm:$0x1] %v940
      %v942 = vld [vmem:[%s167 + $0x3e] sm:$0x1]
      %v943 = vsel %vm848, %v814, %v942
      %944 = vst [vmem:[%s167 + $0x3e] sm:$0x1] %v943
      %945 = vrot.lane.b32.xlu0 %v495, 118
      %v946 = vpop.permute.xlu0 %945
      %947 = vrot.lane.b32.xlu0 %v499, 118
      %v948 = vpop.permute.xlu0 %947
      %949 = vrot.lane.b32.xlu0 %v503, 118
      %v950 = vpop.permute.xlu0 %949
      %951 = vrot.lane.b32.xlu0 %v507, 118
      %v952 = vpop.permute.xlu0 %951
      %953 = vrot.lane.b32.xlu0 %v511, 118
      %v954 = vpop.permute.xlu0 %953
      %955 = vrot.lane.b32.xlu0 %v515, 118
      %v956 = vpop.permute.xlu0 %955
      %957 = vrot.lane.b32.xlu0 %v519, 118
      %v958 = vpop.permute.xlu0 %957
      %959 = vrot.lane.b32.xlu0 %v523, 118
      %v960 = vpop.permute.xlu0 %959
      %961 = vrot.lane.b32.xlu0 %v527, 118
      %v962 = vpop.permute.xlu0 %961
      %963 = vrot.lane.b32.xlu0 %v531, 118
      %v964 = vpop.permute.xlu0 %963
      %965 = vrot.lane.b32.xlu0 %v535, 118
      %v966 = vpop.permute.xlu0 %965
      %967 = vrot.lane.b32.xlu0 %v539, 118
      %v968 = vpop.permute.xlu0 %967
      %969 = vrot.lane.b32.xlu0 %v543, 118
      %v970 = vpop.permute.xlu0 %969
      %971 = vrot.lane.b32.xlu0 %v547, 118
      %v972 = vpop.permute.xlu0 %971
      %973 = vrot.lane.b32.xlu0 %v551, 118
      %v974 = vpop.permute.xlu0 %973
      %975 = vrot.lane.b32.xlu0 %v555, 118
      %v976 = vpop.permute.xlu0 %975
      %977 = vrot.lane.b32.xlu0 %v559, 118
      %v978 = vpop.permute.xlu0 %977
      %979 = vrot.lane.b32.xlu0 %v563, 118
      %v980 = vpop.permute.xlu0 %979
      %981 = vrot.lane.b32.xlu0 %v567, 118
      %v982 = vpop.permute.xlu0 %981
      %983 = vrot.lane.b32.xlu0 %v571, 118
      %v984 = vpop.permute.xlu0 %983
      %985 = vrot.lane.b32.xlu0 %v575, 118
      %v986 = vpop.permute.xlu0 %985
      %987 = vrot.lane.b32.xlu0 %v579, 118
      %v988 = vpop.permute.xlu0 %987
      %989 = vrot.lane.b32.xlu0 %v583, 118
      %v990 = vpop.permute.xlu0 %989
      %991 = vrot.lane.b32.xlu0 %v587, 118
      %v992 = vpop.permute.xlu0 %991
      %993 = vrot.lane.b32.xlu0 %v591, 118
      %v994 = vpop.permute.xlu0 %993
      %995 = vrot.lane.b32.xlu0 %v595, 118
      %v996 = vpop.permute.xlu0 %995
      %997 = vrot.lane.b32.xlu0 %v599, 118
      %v998 = vpop.permute.xlu0 %997
      %999 = vrot.lane.b32.xlu0 %v603, 118
      %v1000 = vpop.permute.xlu0 %999
      %1001 = vrot.lane.b32.xlu0 %v607, 118
      %v1002 = vpop.permute.xlu0 %1001
      %1003 = vrot.lane.b32.xlu0 %v611, 118
      %v1004 = vpop.permute.xlu0 %1003
      %1005 = vrot.lane.b32.xlu0 %v615, 118
      %v1006 = vpop.permute.xlu0 %1005
      %1007 = vrot.lane.b32.xlu0 %v619, 118
      %v1008 = vpop.permute.xlu0 %1007
      %vm1041 = vcmask 25601
      %vm1042 = vsmask.f32 1280
      %vm1043 = vmand %vm1041, %vm1042
      %v1044 = vld [vmem:[%s167] sm:$0x2]
      %v1045 = vsel %vm1043, %v946, %v1044
      %1046 = vst [vmem:[%s167] sm:$0x2] %v1045
      %v1047 = vld [vmem:[%s167 + $0x2] sm:$0x2]
      %v1048 = vsel %vm1043, %v948, %v1047
      %1049 = vst [vmem:[%s167 + $0x2] sm:$0x2] %v1048
      %v1050 = vld [vmem:[%s167 + $0x4] sm:$0x2]
      %v1051 = vsel %vm1043, %v950, %v1050
      %1052 = vst [vmem:[%s167 + $0x4] sm:$0x2] %v1051
      %v1053 = vld [vmem:[%s167 + $0x6] sm:$0x2]
      %v1054 = vsel %vm1043, %v952, %v1053
      %1055 = vst [vmem:[%s167 + $0x6] sm:$0x2] %v1054
      %v1056 = vld [vmem:[%s167 + $0x8] sm:$0x2]
      %v1057 = vsel %vm1043, %v954, %v1056
      %1058 = vst [vmem:[%s167 + $0x8] sm:$0x2] %v1057
      %v1059 = vld [vmem:[%s167 + $0xa] sm:$0x2]
      %v1060 = vsel %vm1043, %v956, %v1059
      %1061 = vst [vmem:[%s167 + $0xa] sm:$0x2] %v1060
      %v1062 = vld [vmem:[%s167 + $0xc] sm:$0x2]
      %v1063 = vsel %vm1043, %v958, %v1062
      %1064 = vst [vmem:[%s167 + $0xc] sm:$0x2] %v1063
      %v1065 = vld [vmem:[%s167 + $0xe] sm:$0x2]
      %v1066 = vsel %vm1043, %v960, %v1065
      %1067 = vst [vmem:[%s167 + $0xe] sm:$0x2] %v1066
      %v1068 = vld [vmem:[%s167 + $0x10] sm:$0x2]
      %v1069 = vsel %vm1043, %v962, %v1068
      %1070 = vst [vmem:[%s167 + $0x10] sm:$0x2] %v1069
      %v1071 = vld [vmem:[%s167 + $0x12] sm:$0x2]
      %v1072 = vsel %vm1043, %v964, %v1071
      %1073 = vst [vmem:[%s167 + $0x12] sm:$0x2] %v1072
      %v1074 = vld [vmem:[%s167 + $0x14] sm:$0x2]
      %v1075 = vsel %vm1043, %v966, %v1074
      %1076 = vst [vmem:[%s167 + $0x14] sm:$0x2] %v1075
      %v1077 = vld [vmem:[%s167 + $0x16] sm:$0x2]
      %v1078 = vsel %vm1043, %v968, %v1077
      %1079 = vst [vmem:[%s167 + $0x16] sm:$0x2] %v1078
      %v1080 = vld [vmem:[%s167 + $0x18] sm:$0x2]
      %v1081 = vsel %vm1043, %v970, %v1080
      %1082 = vst [vmem:[%s167 + $0x18] sm:$0x2] %v1081
      %v1083 = vld [vmem:[%s167 + $0x1a] sm:$0x2]
      %v1084 = vsel %vm1043, %v972, %v1083
      %1085 = vst [vmem:[%s167 + $0x1a] sm:$0x2] %v1084
      %v1086 = vld [vmem:[%s167 + $0x1c] sm:$0x2]
      %v1087 = vsel %vm1043, %v974, %v1086
      %1088 = vst [vmem:[%s167 + $0x1c] sm:$0x2] %v1087
      %v1089 = vld [vmem:[%s167 + $0x1e] sm:$0x2]
      %v1090 = vsel %vm1043, %v976, %v1089
      %1091 = vst [vmem:[%s167 + $0x1e] sm:$0x2] %v1090
      %v1092 = vld [vmem:[%s167 + $0x20] sm:$0x2]
      %v1093 = vsel %vm1043, %v978, %v1092
      %1094 = vst [vmem:[%s167 + $0x20] sm:$0x2] %v1093
      %v1095 = vld [vmem:[%s167 + $0x22] sm:$0x2]
      %v1096 = vsel %vm1043, %v980, %v1095
      %1097 = vst [vmem:[%s167 + $0x22] sm:$0x2] %v1096
      %v1098 = vld [vmem:[%s167 + $0x24] sm:$0x2]
      %v1099 = vsel %vm1043, %v982, %v1098
      %1100 = vst [vmem:[%s167 + $0x24] sm:$0x2] %v1099
      %v1101 = vld [vmem:[%s167 + $0x26] sm:$0x2]
      %v1102 = vsel %vm1043, %v984, %v1101
      %1103 = vst [vmem:[%s167 + $0x26] sm:$0x2] %v1102
      %v1104 = vld [vmem:[%s167 + $0x28] sm:$0x2]
      %v1105 = vsel %vm1043, %v986, %v1104
      %1106 = vst [vmem:[%s167 + $0x28] sm:$0x2] %v1105
      %v1107 = vld [vmem:[%s167 + $0x2a] sm:$0x2]
      %v1108 = vsel %vm1043, %v988, %v1107
      %1109 = vst [vmem:[%s167 + $0x2a] sm:$0x2] %v1108
      %v1110 = vld [vmem:[%s167 + $0x2c] sm:$0x2]
      %v1111 = vsel %vm1043, %v990, %v1110
      %1112 = vst [vmem:[%s167 + $0x2c] sm:$0x2] %v1111
      %v1113 = vld [vmem:[%s167 + $0x2e] sm:$0x2]
      %v1114 = vsel %vm1043, %v992, %v1113
      %1115 = vst [vmem:[%s167 + $0x2e] sm:$0x2] %v1114
      %v1116 = vld [vmem:[%s167 + $0x30] sm:$0x2]
      %v1117 = vsel %vm1043, %v994, %v1116
      %1118 = vst [vmem:[%s167 + $0x30] sm:$0x2] %v1117
      %v1119 = vld [vmem:[%s167 + $0x32] sm:$0x2]
      %v1120 = vsel %vm1043, %v996, %v1119
      %1121 = vst [vmem:[%s167 + $0x32] sm:$0x2] %v1120
      %v1122 = vld [vmem:[%s167 + $0x34] sm:$0x2]
      %v1123 = vsel %vm1043, %v998, %v1122
      %1124 = vst [vmem:[%s167 + $0x34] sm:$0x2] %v1123
      %v1125 = vld [vmem:[%s167 + $0x36] sm:$0x2]
      %v1126 = vsel %vm1043, %v1000, %v1125
      %1127 = vst [vmem:[%s167 + $0x36] sm:$0x2] %v1126
      %v1128 = vld [vmem:[%s167 + $0x38] sm:$0x2]
      %v1129 = vsel %vm1043, %v1002, %v1128
      %1130 = vst [vmem:[%s167 + $0x38] sm:$0x2] %v1129
      %v1131 = vld [vmem:[%s167 + $0x3a] sm:$0x2]
      %v1132 = vsel %vm1043, %v1004, %v1131
      %1133 = vst [vmem:[%s167 + $0x3a] sm:$0x2] %v1132
      %v1134 = vld [vmem:[%s167 + $0x3c] sm:$0x2]
      %v1135 = vsel %vm1043, %v1006, %v1134
      %1136 = vst [vmem:[%s167 + $0x3c] sm:$0x2] %v1135
      %v1137 = vld [vmem:[%s167 + $0x3e] sm:$0x2]
      %v1138 = vsel %vm1043, %v1008, %v1137
      %1139 = vst [vmem:[%s167 + $0x3e] sm:$0x2] %v1138
      %1140 = vrot.lane.b32.xlu0 %v495, 113
      %v1141 = vpop.permute.xlu0 %1140
      %1142 = vrot.lane.b32.xlu0 %v499, 113
      %v1143 = vpop.permute.xlu0 %1142
      %1144 = vrot.lane.b32.xlu0 %v503, 113
      %v1145 = vpop.permute.xlu0 %1144
      %1146 = vrot.lane.b32.xlu0 %v507, 113
      %v1147 = vpop.permute.xlu0 %1146
      %1148 = vrot.lane.b32.xlu0 %v511, 113
      %v1149 = vpop.permute.xlu0 %1148
      %1150 = vrot.lane.b32.xlu0 %v515, 113
      %v1151 = vpop.permute.xlu0 %1150
      %1152 = vrot.lane.b32.xlu0 %v519, 113
      %v1153 = vpop.permute.xlu0 %1152
      %1154 = vrot.lane.b32.xlu0 %v523, 113
      %v1155 = vpop.permute.xlu0 %1154
      %1156 = vrot.lane.b32.xlu0 %v527, 113
      %v1157 = vpop.permute.xlu0 %1156
      %1158 = vrot.lane.b32.xlu0 %v531, 113
      %v1159 = vpop.permute.xlu0 %1158
      %1160 = vrot.lane.b32.xlu0 %v535, 113
      %v1161 = vpop.permute.xlu0 %1160
      %1162 = vrot.lane.b32.xlu0 %v539, 113
      %v1163 = vpop.permute.xlu0 %1162
      %1164 = vrot.lane.b32.xlu0 %v543, 113
      %v1165 = vpop.permute.xlu0 %1164
      %1166 = vrot.lane.b32.xlu0 %v547, 113
      %v1167 = vpop.permute.xlu0 %1166
      %1168 = vrot.lane.b32.xlu0 %v551, 113
      %v1169 = vpop.permute.xlu0 %1168
      %1170 = vrot.lane.b32.xlu0 %v555, 113
      %v1171 = vpop.permute.xlu0 %1170
      %1172 = vrot.lane.b32.xlu0 %v559, 113
      %v1173 = vpop.permute.xlu0 %1172
      %1174 = vrot.lane.b32.xlu0 %v563, 113
      %v1175 = vpop.permute.xlu0 %1174
      %1176 = vrot.lane.b32.xlu0 %v567, 113
      %v1177 = vpop.permute.xlu0 %1176
      %1178 = vrot.lane.b32.xlu0 %v571, 113
      %v1179 = vpop.permute.xlu0 %1178
      %1180 = vrot.lane.b32.xlu0 %v575, 113
      %v1181 = vpop.permute.xlu0 %1180
      %1182 = vrot.lane.b32.xlu0 %v579, 113
      %v1183 = vpop.permute.xlu0 %1182
      %1184 = vrot.lane.b32.xlu0 %v583, 113
      %v1185 = vpop.permute.xlu0 %1184
      %1186 = vrot.lane.b32.xlu0 %v587, 113
      %v1187 = vpop.permute.xlu0 %1186
      %1188 = vrot.lane.b32.xlu0 %v591, 113
      %v1189 = vpop.permute.xlu0 %1188
      %1190 = vrot.lane.b32.xlu0 %v595, 113
      %v1191 = vpop.permute.xlu0 %1190
      %1192 = vrot.lane.b32.xlu0 %v599, 113
      %v1193 = vpop.permute.xlu0 %1192
      %1194 = vrot.lane.b32.xlu0 %v603, 113
      %v1195 = vpop.permute.xlu0 %1194
      %1196 = vrot.lane.b32.xlu0 %v607, 113
      %v1197 = vpop.permute.xlu0 %1196
      %1198 = vrot.lane.b32.xlu0 %v611, 113
      %v1199 = vpop.permute.xlu0 %1198
      %1200 = vrot.lane.b32.xlu0 %v615, 113
      %v1201 = vpop.permute.xlu0 %1200
      %1202 = vrot.lane.b32.xlu0 %v619, 113
      %v1203 = vpop.permute.xlu0 %1202
      %vm1236 = vsmask.f32 7942
      %vm1237 = vmand %vm1041, %vm1236
      %v1238 = vld [vmem:[%s167] sm:$0x2]
      %v1239 = vsel %vm1237, %v1141, %v1238
      %1240 = vst [vmem:[%s167] sm:$0x2] %v1239
      %v1241 = vld [vmem:[%s167 + $0x2] sm:$0x2]
      %v1242 = vsel %vm1237, %v1143, %v1241
      %1243 = vst [vmem:[%s167 + $0x2] sm:$0x2] %v1242
      %v1244 = vld [vmem:[%s167 + $0x4] sm:$0x2]
      %v1245 = vsel %vm1237, %v1145, %v1244
      %1246 = vst [vmem:[%s167 + $0x4] sm:$0x2] %v1245
      %v1247 = vld [vmem:[%s167 + $0x6] sm:$0x2]
      %v1248 = vsel %vm1237, %v1147, %v1247
      %1249 = vst [vmem:[%s167 + $0x6] sm:$0x2] %v1248
      %v1250 = vld [vmem:[%s167 + $0x8] sm:$0x2]
      %v1251 = vsel %vm1237, %v1149, %v1250
      %1252 = vst [vmem:[%s167 + $0x8] sm:$0x2] %v1251
      %v1253 = vld [vmem:[%s167 + $0xa] sm:$0x2]
      %v1254 = vsel %vm1237, %v1151, %v1253
      %1255 = vst [vmem:[%s167 + $0xa] sm:$0x2] %v1254
      %v1256 = vld [vmem:[%s167 + $0xc] sm:$0x2]
      %v1257 = vsel %vm1237, %v1153, %v1256
      %1258 = vst [vmem:[%s167 + $0xc] sm:$0x2] %v1257
      %v1259 = vld [vmem:[%s167 + $0xe] sm:$0x2]
      %v1260 = vsel %vm1237, %v1155, %v1259
      %1261 = vst [vmem:[%s167 + $0xe] sm:$0x2] %v1260
      %v1262 = vld [vmem:[%s167 + $0x10] sm:$0x2]
      %v1263 = vsel %vm1237, %v1157, %v1262
      %1264 = vst [vmem:[%s167 + $0x10] sm:$0x2] %v1263
      %v1265 = vld [vmem:[%s167 + $0x12] sm:$0x2]
      %v1266 = vsel %vm1237, %v1159, %v1265
      %1267 = vst [vmem:[%s167 + $0x12] sm:$0x2] %v1266
      %v1268 = vld [vmem:[%s167 + $0x14] sm:$0x2]
      %v1269 = vsel %vm1237, %v1161, %v1268
      %1270 = vst [vmem:[%s167 + $0x14] sm:$0x2] %v1269
      %v1271 = vld [vmem:[%s167 + $0x16] sm:$0x2]
      %v1272 = vsel %vm1237, %v1163, %v1271
      %1273 = vst [vmem:[%s167 + $0x16] sm:$0x2] %v1272
      %v1274 = vld [vmem:[%s167 + $0x18] sm:$0x2]
      %v1275 = vsel %vm1237, %v1165, %v1274
      %1276 = vst [vmem:[%s167 + $0x18] sm:$0x2] %v1275
      %v1277 = vld [vmem:[%s167 + $0x1a] sm:$0x2]
      %v1278 = vsel %vm1237, %v1167, %v1277
      %1279 = vst [vmem:[%s167 + $0x1a] sm:$0x2] %v1278
      %v1280 = vld [vmem:[%s167 + $0x1c] sm:$0x2]
      %v1281 = vsel %vm1237, %v1169, %v1280
      %1282 = vst [vmem:[%s167 + $0x1c] sm:$0x2] %v1281
      %v1283 = vld [vmem:[%s167 + $0x1e] sm:$0x2]
      %v1284 = vsel %vm1237, %v1171, %v1283
      %1285 = vst [vmem:[%s167 + $0x1e] sm:$0x2] %v1284
      %v1286 = vld [vmem:[%s167 + $0x20] sm:$0x2]
      %v1287 = vsel %vm1237, %v1173, %v1286
      %1288 = vst [vmem:[%s167 + $0x20] sm:$0x2] %v1287
      %v1289 = vld [vmem:[%s167 + $0x22] sm:$0x2]
      %v1290 = vsel %vm1237, %v1175, %v1289
      %1291 = vst [vmem:[%s167 + $0x22] sm:$0x2] %v1290
      %v1292 = vld [vmem:[%s167 + $0x24] sm:$0x2]
      %v1293 = vsel %vm1237, %v1177, %v1292
      %1294 = vst [vmem:[%s167 + $0x24] sm:$0x2] %v1293
      %v1295 = vld [vmem:[%s167 + $0x26] sm:$0x2]
      %v1296 = vsel %vm1237, %v1179, %v1295
      %1297 = vst [vmem:[%s167 + $0x26] sm:$0x2] %v1296
      %v1298 = vld [vmem:[%s167 + $0x28] sm:$0x2]
      %v1299 = vsel %vm1237, %v1181, %v1298
      %1300 = vst [vmem:[%s167 + $0x28] sm:$0x2] %v1299
      %v1301 = vld [vmem:[%s167 + $0x2a] sm:$0x2]
      %v1302 = vsel %vm1237, %v1183, %v1301
      %1303 = vst [vmem:[%s167 + $0x2a] sm:$0x2] %v1302
      %v1304 = vld [vmem:[%s167 + $0x2c] sm:$0x2]
      %v1305 = vsel %vm1237, %v1185, %v1304
      %1306 = vst [vmem:[%s167 + $0x2c] sm:$0x2] %v1305
      %v1307 = vld [vmem:[%s167 + $0x2e] sm:$0x2]
      %v1308 = vsel %vm1237, %v1187, %v1307
      %1309 = vst [vmem:[%s167 + $0x2e] sm:$0x2] %v1308
      %v1310 = vld [vmem:[%s167 + $0x30] sm:$0x2]
      %v1311 = vsel %vm1237, %v1189, %v1310
      %1312 = vst [vmem:[%s167 + $0x30] sm:$0x2] %v1311
      %v1313 = vld [vmem:[%s167 + $0x32] sm:$0x2]
      %v1314 = vsel %vm1237, %v1191, %v1313
      %1315 = vst [vmem:[%s167 + $0x32] sm:$0x2] %v1314
      %v1316 = vld [vmem:[%s167 + $0x34] sm:$0x2]
      %v1317 = vsel %vm1237, %v1193, %v1316
      %1318 = vst [vmem:[%s167 + $0x34] sm:$0x2] %v1317
      %v1319 = vld [vmem:[%s167 + $0x36] sm:$0x2]
      %v1320 = vsel %vm1237, %v1195, %v1319
      %1321 = vst [vmem:[%s167 + $0x36] sm:$0x2] %v1320
      %v1322 = vld [vmem:[%s167 + $0x38] sm:$0x2]
      %v1323 = vsel %vm1237, %v1197, %v1322
      %1324 = vst [vmem:[%s167 + $0x38] sm:$0x2] %v1323
      %v1325 = vld [vmem:[%s167 + $0x3a] sm:$0x2]
      %v1326 = vsel %vm1237, %v1199, %v1325
      %1327 = vst [vmem:[%s167 + $0x3a] sm:$0x2] %v1326
      %v1328 = vld [vmem:[%s167 + $0x3c] sm:$0x2]
      %v1329 = vsel %vm1237, %v1201, %v1328
      %1330 = vst [vmem:[%s167 + $0x3c] sm:$0x2] %v1329
      %v1331 = vld [vmem:[%s167 + $0x3e] sm:$0x2]
      %v1332 = vsel %vm1237, %v1203, %v1331
      %1333 = vst [vmem:[%s167 + $0x3e] sm:$0x2] %v1332
      %p1334 = scmp.lt.s32.totalorder %s14, 1
      %s1335 = scalar_select %p1334, %s14, 1
      %s1336 = smul.addr %s1335, 32
      %s1337 = smul.addr %s1336, 2
      %s1338 = scalar_lea.vmem %s3, %s1337
      // Predicated region
      $region33: #{decoder_forward.13} parent=31 // pred_check
        %p1339 = pneg %p100
      $region34: #{decoder_forward.13} parent=31 // pred_check_branch
        %1341 = sbr.rel (%p1339) target = $region36
      $region35: #{decoder_forward.13} parent=31 // pred_region
        _
      $region36: #{decoder_forward.13} parent=31 // pred_fallthru
        _
    $region32: #{decoder_forward.13} parent=5 // pred_fallthru
      _
    %p1342 = scmp.le.s32.totalorder 2, %s9
    // Predicated region
    $region37: #{decoder_forward.13} parent=5 // pred_check
      %p1343 = pneg %p1342
    $region38: #{decoder_forward.13} parent=5 // pred_check_branch
      %1345 = sbr.rel (%p1343) target = $region40
    $region39: #{decoder_forward.13} parent=5 // pred_region
      %s1346 = ssub.s32 %s9, 2
      // Predicated region
      $region41: #{decoder_forward.13} parent=39 // pred_check
        %p1347 = pneg %p106
      $region42: #{decoder_forward.13} parent=39 // pred_check_branch
        %1349 = sbr.rel (%p1347) target = $region44
      $region43: #{decoder_forward.13} parent=39 // pred_region
        %p1350 = scmp.lt.s32.totalorder %s15, 1
        %s1351 = scalar_select %p1350, %s15, 1
        %s1352 = smul.addr %s1351, 32
        %s1353 = smul.addr %s1352, 2
        %s1354 = scalar_lea.vmem %s3, %s1353
      $region44: #{decoder_forward.13} parent=39 // pred_fallthru
        _
    $region40: #{decoder_forward.13} parent=5 // pred_fallthru
      _
  $region6: #{decoder_forward.13} parent=0 // loop_footer
    %s13 = sadd.s32 1, %s9
  $region7: #{decoder_forward.13} parent=0 // loop_footer_branch
    %8 = sbr.rel target = $region3
  $region8: #{decoder_forward.13} parent=0 // loop_exit
    _

// kernel: decoder_forward.16
$region0: #{decoder_forward.16}
  #allocation0 [shape = 'u32[]', space=smem, size = 0x4, offset = 0x4, fixed_abs, tag = 'smem constant byte address 0x4 - core index']
  #allocation1 [shape = 'u32[72,128]{1,0:T(1,128)}', space=vmem, size = 0x9000, scoped, tag = 'internal scratch']
  %s0 = inlined_call_operand.vmem [shape: bf16[2,2,4,64], index: 0, kind: input, shape index: {}]
  %s1 = inlined_call_operand.vmem [shape: bf16[2,2,4,64], index: 1, kind: input, shape index: {}]
  %s2 = inlined_call_operand.vmem [shape: f32[2,4,1], index: 2, kind: input, shape index: {}]
  %s3 = inlined_call_operand.vmem [shape: f32[2,4,1], index: 3, kind: input, shape index: {}]
  %s4 = inlined_call_operand.vmem [shape: bf16[2,2,4,64], index: 4, kind: output, shape index: {}]
  %s5 = sld [smem:[#allocation0]]
  $region49: #{decoder_forward.16} parent=0
    _
  %s7 = ssub.s32 1, %s5
  %s8 = scalar_select 0, %s7, %s5
  loop: start=0, step=1, limit=6
  $region2: #{decoder_forward.16} parent=0 // loop_pre_header
    _
  $region3: #{decoder_forward.16} parent=0 // loop_header
    %s10 = sphi 0, %s14
    %p11 = scmp.ge.s32.totalorder %s10, 6
    %s17 = sphi 0, %s29
    %s18 = sphi 0, %s25
    %s19 = sphi 0, %s17
    %s20 = sphi 0, %s18
    %s21 = sphi 0, %s19
    %s22 = sphi 0, %s20
    %s34 = sphi 0, %s36
    %s37 = sphi 0, %s34
    %s38 = sphi 0, %s37
    %s54 = sphi 0, %s38
    %s62 = sphi 0, %s64
    %s65 = sphi 0, %s62
    %s66 = sphi 0, %s65
    %s82 = sphi 0, %s66
    %s88 = sphi 0, %s90
    %s91 = sphi 0, %s88
    %s92 = sphi 0, %s91
    %s108 = sphi 0, %s92
    %s114 = sphi 0, %s116
    %s117 = sphi 0, %s114
    %s118 = sphi 0, %s117
    %s134 = sphi 0, %s118
    %s142 = sphi 0, %s144
    %s145 = sphi 0, %s142
    %s146 = sphi 0, %s145
    %s162 = sphi 0, %s146
  $region4: #{decoder_forward.16} parent=0 // loop_header_branch
    %13 = sbr.rel (%p11) target = $region8
  $region5: #{decoder_forward.16} parent=0 // loop_body
    %s15 = ssub.s32 %s10, 1
    %s16 = ssub.s32 %s10, 2
    %s23 = sadd.s32 1, %s18
    %p24 = scmp.ge.s32.totalorder %s23, 2
    %s25 = scalar_select %p24, 0, %s23
    %s26 = sadd.s32 1, %s17
    %s27 = scalar_select %p24, %s26, %s17
    %p28 = scmp.ge.s32.totalorder %s27, 2
    %s29 = scalar_select %p28, 0, %s27
    %s30 = ssub.s32 %s17, %s29
    %s31 = ssub.s32 %s18, %s25
    %s32 = sor.u32 %s30, %s31
    %p33 = scmp.eq.s32.totalorder %s32, 0
    %s35 = sadd.s32 %s34, 1
    %s36 = scalar_select %p33, %s34, %s35
    %p39 = pneg %p33
    %p40 = scmp.eq.s32.totalorder %s10, 3
    %p41 = por %p39, %p40
    %p42 = scmp.ne.s32.totalorder %s34, %s37
    %p43 = scmp.eq.s32.totalorder %s10, 0
    %p44 = por %p42, %p43
    %p45 = scmp.ne.s32.totalorder %s34, %s37
    %p46 = scmp.eq.s32.totalorder %s15, 3
    %p47 = por %p45, %p46
    %p48 = scmp.ne.s32.totalorder %s37, %s38
    %p49 = scmp.eq.s32.totalorder %s15, 0
    %p50 = por %p48, %p49
    %p51 = scmp.ne.s32.totalorder %s37, %s38
    %p52 = scmp.eq.s32.totalorder %s16, 3
    %p53 = por %p51, %p52
    %p55 = scmp.ne.s32.totalorder %s38, %s54
    %p56 = scmp.eq.s32.totalorder %s16, 0
    %p57 = por %p55, %p56
    %s58 = ssub.s32 %s17, %s29
    %s59 = ssub.s32 %s18, %s25
    %s60 = sor.u32 %s58, %s59
    %p61 = scmp.eq.s32.totalorder %s60, 0
    %s63 = sadd.s32 %s62, 1
    %s64 = scalar_select %p61, %s62, %s63
    %p67 = pneg %p61
    %p68 = scmp.eq.s32.totalorder %s10, 3
    %p69 = por %p67, %p68
    %p70 = scmp.ne.s32.totalorder %s62, %s65
    %p71 = scmp.eq.s32.totalorder %s10, 0
    %p72 = por %p70, %p71
    %p73 = scmp.ne.s32.totalorder %s62, %s65
    %p74 = scmp.eq.s32.totalorder %s15, 3
    %p75 = por %p73, %p74
    %p76 = scmp.ne.s32.totalorder %s65, %s66
    %p77 = scmp.eq.s32.totalorder %s15, 0
    %p78 = por %p76, %p77
    %p79 = scmp.ne.s32.totalorder %s65, %s66
    %p80 = scmp.eq.s32.totalorder %s16, 3
    %p81 = por %p79, %p80
    %p83 = scmp.ne.s32.totalorder %s66, %s82
    %p84 = scmp.eq.s32.totalorder %s16, 0
    %p85 = por %p83, %p84
    %s86 = ssub.s32 %s18, %s25
    %p87 = scmp.eq.s32.totalorder %s86, 0
    %s89 = sadd.s32 %s88, 1
    %s90 = scalar_select %p87, %s88, %s89
    %p93 = pneg %p87
    %p94 = scmp.eq.s32.totalorder %s10, 3
    %p95 = por %p93, %p94
    %p96 = scmp.ne.s32.totalorder %s88, %s91
    %p97 = scmp.eq.s32.totalorder %s10, 0
    %p98 = por %p96, %p97
    %p99 = scmp.ne.s32.totalorder %s88, %s91
    %p100 = scmp.eq.s32.totalorder %s15, 3
    %p101 = por %p99, %p100
    %p102 = scmp.ne.s32.totalorder %s91, %s92
    %p103 = scmp.eq.s32.totalorder %s15, 0
    %p104 = por %p102, %p103
    %p105 = scmp.ne.s32.totalorder %s91, %s92
    %p106 = scmp.eq.s32.totalorder %s16, 3
    %p107 = por %p105, %p106
    %p109 = scmp.ne.s32.totalorder %s92, %s108
    %p110 = scmp.eq.s32.totalorder %s16, 0
    %p111 = por %p109, %p110
    %s112 = ssub.s32 %s18, %s25
    %p113 = scmp.eq.s32.totalorder %s112, 0
    %s115 = sadd.s32 %s114, 1
    %s116 = scalar_select %p113, %s114, %s115
    %p119 = pneg %p113
    %p120 = scmp.eq.s32.totalorder %s10, 3
    %p121 = por %p119, %p120
    %p122 = scmp.ne.s32.totalorder %s114, %s117
    %p123 = scmp.eq.s32.totalorder %s10, 0
    %p124 = por %p122, %p123
    %p125 = scmp.ne.s32.totalorder %s114, %s117
    %p126 = scmp.eq.s32.totalorder %s15, 3
    %p127 = por %p125, %p126
    %p128 = scmp.ne.s32.totalorder %s117, %s118
    %p129 = scmp.eq.s32.totalorder %s15, 0
    %p130 = por %p128, %p129
    %p131 = scmp.ne.s32.totalorder %s117, %s118
    %p132 = scmp.eq.s32.totalorder %s16, 3
    %p133 = por %p131, %p132
    %p135 = scmp.ne.s32.totalorder %s118, %s134
    %p136 = scmp.eq.s32.totalorder %s16, 0
    %p137 = por %p135, %p136
    %s138 = ssub.s32 %s17, %s29
    %s139 = ssub.s32 %s18, %s25
    %s140 = sor.u32 %s138, %s139
    %p141 = scmp.eq.s32.totalorder %s140, 0
    %s143 = sadd.s32 %s142, 1
    %s144 = scalar_select %p141, %s142, %s143
    %p147 = pneg %p141
    %p148 = scmp.eq.s32.totalorder %s10, 3
    %p149 = por %p147, %p148
    %p150 = scmp.ne.s32.totalorder %s142, %s145
    %p151 = scmp.eq.s32.totalorder %s10, 0
    %p152 = por %p150, %p151
    %p153 = scmp.ne.s32.totalorder %s142, %s145
    %p154 = scmp.eq.s32.totalorder %s15, 3
    %p155 = por %p153, %p154
    %p156 = scmp.ne.s32.totalorder %s145, %s146
    %p157 = scmp.eq.s32.totalorder %s15, 0
    %p158 = por %p156, %p157
    %p159 = scmp.ne.s32.totalorder %s145, %s146
    %p160 = scmp.eq.s32.totalorder %s16, 3
    %p161 = por %p159, %p160
    %p163 = scmp.ne.s32.totalorder %s146, %s162
    %p164 = scmp.eq.s32.totalorder %s16, 0
    %p165 = por %p163, %p164
    %p166 = scmp.le.s32.totalorder 1, %s10
    %p167 = scmp.lt.s32.totalorder %s10, 5
    %p168 = pnand %p166, %p167
    %p169 = pneg %p168
    // Predicated region
    $region9: #{decoder_forward.16} parent=5 // pred_check
      _
    $region10: #{decoder_forward.16} parent=5 // pred_check_branch
      %171 = sbr.rel (%p168) target = $region12
    $region11: #{decoder_forward.16} parent=5 // pred_region
      %s172 = ssub.s32 %s10, 1
    $region12: #{decoder_forward.16} parent=5 // pred_fallthru
      _
    %p173 = scmp.lt.s32.totalorder %s10, 4
    // Predicated region
    $region13: #{decoder_forward.16} parent=5 // pred_check
      %p174 = pneg %p173
    $region14: #{decoder_forward.16} parent=5 // pred_check_branch
      %176 = sbr.rel (%p174) target = $region16
    $region15: #{decoder_forward.16} parent=5 // pred_region
      // Predicated region
      $region17: #{decoder_forward.16} parent=15 // pred_check
        %p177 = pneg %p44
      $region18: #{decoder_forward.16} parent=15 // pred_check_branch
        %179 = sbr.rel (%p177) target = $region20
      $region19: #{decoder_forward.16} parent=15 // pred_region
        %p180 = scmp.lt.s32.totalorder %s17, 1
        %s181 = scalar_select %p180, %s17, 1
        %p182 = scmp.lt.s32.totalorder %s18, 1
        %s183 = scalar_select %p182, %s18, 1
        %s184 = smul.addr %s181, 2
        %s185 = sadd.s32 %s183, %s184
        %s186 = smul.addr %s185, 2
        %s187 = scalar_lea.vmem %s0, %s186
      $region20: #{decoder_forward.16} parent=15 // pred_fallthru
        _
      // Predicated region
      $region21: #{decoder_forward.16} parent=15 // pred_check
        %p188 = pneg %p72
      $region22: #{decoder_forward.16} parent=15 // pred_check_branch
        %190 = sbr.rel (%p188) target = $region24
      $region23: #{decoder_forward.16} parent=15 // pred_region
        %p191 = scmp.lt.s32.totalorder %s17, 1
        %s192 = scalar_select %p191, %s17, 1
        %p193 = scmp.lt.s32.totalorder %s18, 1
        %s194 = scalar_select %p193, %s18, 1
        %s195 = smul.addr %s192, 2
        %s196 = sadd.s32 %s194, %s195
        %s197 = smul.addr %s196, 2
        %s198 = scalar_lea.vmem %s1, %s197
      $region24: #{decoder_forward.16} parent=15 // pred_fallthru
        _
      // Predicated region
      $region25: #{decoder_forward.16} parent=15 // pred_check
        %p199 = pneg %p98
      $region26: #{decoder_forward.16} parent=15 // pred_check_branch
        %201 = sbr.rel (%p199) target = $region28
      $region27: #{decoder_forward.16} parent=15 // pred_region
        %p202 = scmp.lt.s32.totalorder %s18, 1
        %s203 = scalar_select %p202, %s18, 1
        %s204 = smul.addr %s203, 4
        %s205 = scalar_lea.vmem %s2, %s204
      $region28: #{decoder_forward.16} parent=15 // pred_fallthru
        _
      // Predicated region
      $region29: #{decoder_forward.16} parent=15 // pred_check
        %p206 = pneg %p124
      $region30: #{decoder_forward.16} parent=15 // pred_check_branch
        %208 = sbr.rel (%p206) target = $region32
      $region31: #{decoder_forward.16} parent=15 // pred_region
        %p209 = scmp.lt.s32.totalorder %s18, 1
        %s210 = scalar_select %p209, %s18, 1
        %s211 = smul.addr %s210, 4
        %s212 = scalar_lea.vmem %s3, %s211
      $region32: #{decoder_forward.16} parent=15 // pred_fallthru
        _
    $region16: #{decoder_forward.16} parent=5 // pred_fallthru
      _
    %p213 = scmp.le.s32.totalorder 1, %s10
    %p214 = scmp.lt.s32.totalorder %s10, 5
    %p215 = pnand %p213, %p214
    %p216 = pneg %p215
    // Predicated region
    $region33: #{decoder_forward.16} parent=5 // pred_check
      _
    $region34: #{decoder_forward.16} parent=5 // pred_check_branch
      %218 = sbr.rel (%p215) target = $region36
    $region35: #{decoder_forward.16} parent=5 // pred_region
      %s219 = ssub.s32 %s10, 1
      %p220 = scmp.lt.s32.totalorder %s19, 1
      %s221 = scalar_select %p220, %s19, 1
      %p222 = scmp.lt.s32.totalorder %s20, 1
      %s223 = scalar_select %p222, %s20, 1
      %s224 = smul.addr %s221, 2
      %s225 = sadd.s32 %s223, %s224
      %s226 = smul.addr %s225, 2
      %s227 = scalar_lea.vmem %s0, %s226
      %p228 = pneg %p50
      %p229 = pneg %p47
      %p230 = scmp.lt.s32.totalorder %s19, 1
      %s231 = scalar_select %p230, %s19, 1
      %p232 = scmp.lt.s32.totalorder %s20, 1
      %s233 = scalar_select %p232, %s20, 1
      %s234 = smul.addr %s231, 2
      %s235 = sadd.s32 %s233, %s234
      %s236 = smul.addr %s235, 2
      %s237 = scalar_lea.vmem %s1, %s236
      %p238 = pneg %p78
      %p239 = pneg %p75
      %p240 = scmp.lt.s32.totalorder %s20, 1
      %s241 = scalar_select %p240, %s20, 1
      %s242 = smul.addr %s241, 4
      %s243 = scalar_lea.vmem %s2, %s242
      %p244 = pneg %p104
      %p245 = pneg %p101
      %p246 = scmp.lt.s32.totalorder %s20, 1
      %s247 = scalar_select %p246, %s20, 1
      %s248 = smul.addr %s247, 4
      %s249 = scalar_lea.vmem %s3, %s248
      %p250 = pneg %p130
      %p251 = pneg %p127
      %p252 = pneg %p158
      %p253 = pneg %p155
      %p254 = scmp.lt.s32.totalorder %s19, 1
      %s255 = scalar_select %p254, %s19, 1
      %p256 = scmp.lt.s32.totalorder %s20, 1
      %s257 = scalar_select %p256, %s20, 1
      %s258 = smul.addr %s255, 2
      %s259 = sadd.s32 %s257, %s258
      %s260 = smul.addr %s259, 2
      %s261 = scalar_lea.vmem %s4, %s260
      %p262 = scmp.lt.s32.totalorder %s19, 1
      %s263 = scalar_select %p262, %s19, 1
      %p264 = scmp.lt.s32.totalorder %s20, 1
      %s265 = scalar_select %p264, %s20, 1
      %s266 = smul.addr %s263, 2
      %s267 = sadd.s32 %s265, %s266
      %s268 = smul.addr %s267, 2
      %s269 = scalar_lea.vmem %s0, %s268
      %p270 = scmp.lt.s32.totalorder %s19, 1
      %s271 = scalar_select %p270, %s19, 1
      %p272 = scmp.lt.s32.totalorder %s20, 1
      %s273 = scalar_select %p272, %s20, 1
      %s274 = smul.addr %s271, 2
      %s275 = sadd.s32 %s273, %s274
      %s276 = smul.addr %s275, 2
      %s277 = scalar_lea.vmem %s1, %s276
      %p278 = scmp.lt.s32.totalorder %s20, 1
      %s279 = scalar_select %p278, %s20, 1
      %s280 = smul.addr %s279, 4
      %s281 = scalar_lea.vmem %s2, %s280
      %p282 = scmp.lt.s32.totalorder %s20, 1
      %s283 = scalar_select %p282, %s20, 1
      %s284 = smul.addr %s283, 4
      %s285 = scalar_lea.vmem %s3, %s284
      %p286 = scmp.lt.s32.totalorder %s19, 1
      %s287 = scalar_select %p286, %s19, 1
      %p288 = scmp.lt.s32.totalorder %s20, 1
      %s289 = scalar_select %p288, %s20, 1
      %s290 = smul.addr %s287, 2
      %s291 = sadd.s32 %s289, %s290
      %s292 = smul.addr %s291, 2
      %s293 = scalar_lea.vmem %s4, %s292
      %v294 = vld [vmem:[%s269] sm:$0x3]
      %v295 = vunpack.c.l.bf16 %v294
      %v296 = vld [vmem:[%s277] sm:$0x3]
      %v297 = vunpack.c.l.bf16 %v296
      %v298 = vld [vmem:[%s281] sm:$0xf]
      %v299 = vld [vmem:[%s285] sm:$0xf]
      %vm300 = vcmask 519168
      %v301 = vsel %vm300, %v295, 0.0
      %302 = vadd.xlane.f32.xlu0 %v301
      %v303 = vpop.xlane.xlu0 %302
      %vm304 = vcmask 1043456
      %v305 = vsel %vm304, %v303, 0.0
      %v306 = vrot.slane %v305, 4
      %v307 = vadd.f32 %v305, %v306
      %v308 = vrot.slane %v307, 2
      %v309 = vadd.f32 %v307, %v308
      %v310 = vrot.slane %v309, 1
      %v311 = vadd.f32 %v309, %v310
      %v312 = vrcp.pop 256.0
      %v313 = vmul.f32 256.0, %v312
      %v314 = vsub.f32 1.0, %v313
      %v315 = vmul.f32 %v312, %v314
      %v316 = vadd.f32 %v312, %v315
      %vm317 = vweird.f32 %v312
      %v318 = vsel %vm317, %v312, %v316
      %v319 = vmul.f32 %v311, %v318
      %v320 = vsub.f32 %v295, %v319
      %v321 = vmul.f32 %v320, %v320
      %v322 = vsel %vm300, %v321, 0.0
      %323 = vadd.xlane.f32.xlu0 %v322
      %v324 = vpop.xlane.xlu0 %323
      %v325 = vsel %vm304, %v324, 0.0
      %v326 = vrot.slane %v325, 4
      %v327 = vadd.f32 %v325, %v326
      %v328 = vrot.slane %v327, 2
      %v329 = vadd.f32 %v327, %v328
      %v330 = vrot.slane %v329, 1
      %v331 = vadd.f32 %v329, %v330
      %v332 = vmul.f32 %v331, %v318
      %v333 = vadd.f32 %v332, 1e-05
      %v334 = vrsqrt.pop %v333
      %v335 = vmul.f32 %v334, %v333
      %v336 = vmul.f32 %v335, %v334
      %v337 = vmul.f32 0.5, %v336
      %v338 = vsub.f32 1.5, %v337
      %v339 = vmul.f32 %v334, %v338
      %vm340 = vweird.f32 %v333
      %vm341 = vweird.f32 %v334
      %vm342 = vmor %vm340, %vm341
      %v343 = vsel %vm342, %v334, %v339
      %v344 = vmul.f32 %v320, %v343
      %346 = vset.pattern.permute.xlu0 0
      %347 = vperm.xlu0 %346, %v298
      %v348 = vpop.permute.xlu0 %347
      %v350 = vmul.f32 %v344, %v348
      %352 = vset.pattern.permute.xlu0 0
      %353 = vperm.xlu0 %352, %v299
      %v354 = vpop.permute.xlu0 %353
      %v356 = vadd.f32 %v350, %v354
      %vm357 = vcmp.gt.f32.partialorder %v356, 0.0
      %v358 = vmin.f32 %v356, 0.0
      %v359 = vmul.f32 %v358, 1.442695
      %v360 = vpow.pop %v359
      %v361 = vsub.f32 %v360, 1.0
      %v362 = vsel %vm357, %v356, %v361
      %v363 = vadd.f32 %v362, %v297
      %v364 = vpack.c.bf16 %v363, %v363
      %vm365 = vcmask 517120
      %366 = vst.msk [vmem:[%s293] sm:$0x3] %vm365, %v364
      %p367 = scmp.lt.s32.totalorder %s19, 1
      %s368 = scalar_select %p367, %s19, 1
      %p369 = scmp.lt.s32.totalorder %s20, 1
      %s370 = scalar_select %p369, %s20, 1
      %s371 = smul.addr %s368, 2
      %s372 = sadd.s32 %s370, %s371
      %s373 = smul.addr %s372, 2
      %s374 = scalar_lea.vmem %s4, %s373
      // Predicated region
      $region37: #{decoder_forward.16} parent=35 // pred_check
        %p375 = pneg %p155
      $region38: #{decoder_forward.16} parent=35 // pred_check_branch
        %377 = sbr.rel (%p375) target = $region40
      $region39: #{decoder_forward.16} parent=35 // pred_region
        _
      $region40: #{decoder_forward.16} parent=35 // pred_fallthru
        _
    $region36: #{decoder_forward.16} parent=5 // pred_fallthru
      _
    %p378 = scmp.le.s32.totalorder 2, %s10
    // Predicated region
    $region41: #{decoder_forward.16} parent=5 // pred_check
      %p379 = pneg %p378
    $region42: #{decoder_forward.16} parent=5 // pred_check_branch
      %381 = sbr.rel (%p379) target = $region44
    $region43: #{decoder_forward.16} parent=5 // pred_region
      %s382 = ssub.s32 %s10, 2
      // Predicated region
      $region45: #{decoder_forward.16} parent=43 // pred_check
        %p383 = pneg %p161
      $region46: #{decoder_forward.16} parent=43 // pred_check_branch
        %385 = sbr.rel (%p383) target = $region48
      $region47: #{decoder_forward.16} parent=43 // pred_region
        %p386 = scmp.lt.s32.totalorder %s21, 1
        %s387 = scalar_select %p386, %s21, 1
        %p388 = scmp.lt.s32.totalorder %s22, 1
        %s389 = scalar_select %p388, %s22, 1
        %s390 = smul.addr %s387, 2
        %s391 = sadd.s32 %s389, %s390
        %s392 = smul.addr %s391, 2
        %s393 = scalar_lea.vmem %s4, %s392
      $region48: #{decoder_forward.16} parent=43 // pred_fallthru
        _
    $region44: #{decoder_forward.16} parent=5 // pred_fallthru
      _
  $region6: #{decoder_forward.16} parent=0 // loop_footer
    %s14 = sadd.s32 1, %s10
  $region7: #{decoder_forward.16} parent=0 // loop_footer_branch
    %9 = sbr.rel target = $region3
  $region8: #{decoder_forward.16} parent=0 // loop_exit
    _

// kernel: decoder_forward.15
$region0: #{decoder_forward.15}
  #allocation0 [shape = 'u32[]', space=smem, size = 0x4, offset = 0x4, fixed_abs, tag = 'smem constant byte address 0x4 - core index']
  #allocation1 [shape = 'u32[72,128]{1,0:T(1,128)}', space=vmem, size = 0x9000, scoped, tag = 'internal scratch']
  %s0 = inlined_call_operand.vmem [shape: bf16[2,8,100], index: 0, kind: input, shape index: {}]
  %s1 = inlined_call_operand.vmem [shape: bf16[9,8,8], index: 1, kind: input, shape index: {}]
  %s2 = inlined_call_operand.vmem [shape: f32[8,1], index: 2, kind: input, shape index: {}]
  %s3 = inlined_call_operand.vmem [shape: bf16[2,8,8,8], index: 3, kind: output, shape index: {}]
  %s4 = sld [smem:[#allocation0]]
  $region45: #{decoder_forward.15} parent=0
    _
  %s6 = ssub.s32 1, %s4
  %s7 = scalar_select 0, %s6, %s4
  loop: start=0, step=1, limit=4
  $region2: #{decoder_forward.15} parent=0 // loop_pre_header
    _
  $region3: #{decoder_forward.15} parent=0 // loop_header
    %s9 = sphi 0, %s13
    %p10 = scmp.ge.s32.totalorder %s9, 4
    %s19 = sphi 0, %s21
    %s22 = sphi 0, %s19
    %s23 = sphi 0, %s22
    %s39 = sphi 0, %s23
    %s43 = sphi 0, %s43
    %s45 = sphi 0, %s43
    %s46 = sphi 0, %s45
    %s60 = sphi 0, %s46
    %s64 = sphi 0, %s64
    %s66 = sphi 0, %s64
    %s67 = sphi 0, %s66
    %s81 = sphi 0, %s67
    %s87 = sphi 0, %s89
    %s90 = sphi 0, %s87
    %s91 = sphi 0, %s90
    %s107 = sphi 0, %s91
  $region4: #{decoder_forward.15} parent=0 // loop_header_branch
    %12 = sbr.rel (%p10) target = $region8
  $region5: #{decoder_forward.15} parent=0 // loop_body
    %s14 = ssub.s32 %s9, 1
    %s15 = ssub.s32 %s9, 2
    %s16 = sadd.s32 %s9, 1
    %s17 = ssub.s32 %s9, %s16
    %p18 = scmp.eq.s32.totalorder %s17, 0
    %s20 = sadd.s32 %s19, 1
    %s21 = scalar_select %p18, %s19, %s20
    %p24 = pneg %p18
    %p25 = scmp.eq.s32.totalorder %s9, 1
    %p26 = por %p24, %p25
    %p27 = scmp.ne.s32.totalorder %s19, %s22
    %p28 = scmp.eq.s32.totalorder %s9, 0
    %p29 = por %p27, %p28
    %p30 = scmp.ne.s32.totalorder %s19, %s22
    %p31 = scmp.eq.s32.totalorder %s14, 1
    %p32 = por %p30, %p31
    %p33 = scmp.ne.s32.totalorder %s22, %s23
    %p34 = scmp.eq.s32.totalorder %s14, 0
    %p35 = por %p33, %p34
    %p36 = scmp.ne.s32.totalorder %s22, %s23
    %p37 = scmp.eq.s32.totalorder %s15, 1
    %p38 = por %p36, %p37
    %p40 = scmp.ne.s32.totalorder %s23, %s39
    %p41 = scmp.eq.s32.totalorder %s15, 0
    %p42 = por %p40, %p41
    %s44 = sadd.s32 %s43, 1
    %p47 = scmp.eq.s32.totalorder %s9, 1
    %p48 = scmp.ne.s32.totalorder %s43, %s45
    %p49 = scmp.eq.s32.totalorder %s9, 0
    %p50 = por %p48, %p49
    %p51 = scmp.ne.s32.totalorder %s43, %s45
    %p52 = scmp.eq.s32.totalorder %s14, 1
    %p53 = por %p51, %p52
    %p54 = scmp.ne.s32.totalorder %s45, %s46
    %p55 = scmp.eq.s32.totalorder %s14, 0
    %p56 = por %p54, %p55
    %p57 = scmp.ne.s32.totalorder %s45, %s46
    %p58 = scmp.eq.s32.totalorder %s15, 1
    %p59 = por %p57, %p58
    %p61 = scmp.ne.s32.totalorder %s46, %s60
    %p62 = scmp.eq.s32.totalorder %s15, 0
    %p63 = por %p61, %p62
    %s65 = sadd.s32 %s64, 1
    %p68 = scmp.eq.s32.totalorder %s9, 1
    %p69 = scmp.ne.s32.totalorder %s64, %s66
    %p70 = scmp.eq.s32.totalorder %s9, 0
    %p71 = por %p69, %p70
    %p72 = scmp.ne.s32.totalorder %s64, %s66
    %p73 = scmp.eq.s32.totalorder %s14, 1
    %p74 = por %p72, %p73
    %p75 = scmp.ne.s32.totalorder %s66, %s67
    %p76 = scmp.eq.s32.totalorder %s14, 0
    %p77 = por %p75, %p76
    %p78 = scmp.ne.s32.totalorder %s66, %s67
    %p79 = scmp.eq.s32.totalorder %s15, 1
    %p80 = por %p78, %p79
    %p82 = scmp.ne.s32.totalorder %s67, %s81
    %p83 = scmp.eq.s32.totalorder %s15, 0
    %p84 = por %p82, %p83
    %s85 = ssub.s32 %s9, %s16
    %p86 = scmp.eq.s32.totalorder %s85, 0
    %s88 = sadd.s32 %s87, 1
    %s89 = scalar_select %p86, %s87, %s88
    %p92 = pneg %p86
    %p93 = scmp.eq.s32.totalorder %s9, 1
    %p94 = por %p92, %p93
    %p95 = scmp.ne.s32.totalorder %s87, %s90
    %p96 = scmp.eq.s32.totalorder %s9, 0
    %p97 = por %p95, %p96
    %p98 = scmp.ne.s32.totalorder %s87, %s90
    %p99 = scmp.eq.s32.totalorder %s14, 1
    %p100 = por %p98, %p99
    %p101 = scmp.ne.s32.totalorder %s90, %s91
    %p102 = scmp.eq.s32.totalorder %s14, 0
    %p103 = por %p101, %p102
    %p104 = scmp.ne.s32.totalorder %s90, %s91
    %p105 = scmp.eq.s32.totalorder %s15, 1
    %p106 = por %p104, %p105
    %p108 = scmp.ne.s32.totalorder %s91, %s107
    %p109 = scmp.eq.s32.totalorder %s15, 0
    %p110 = por %p108, %p109
    %p111 = scmp.le.s32.totalorder 1, %s9
    %p112 = scmp.lt.s32.totalorder %s9, 3
    %p113 = pnand %p111, %p112
    %p114 = pneg %p113
    // Predicated region
    $region9: #{decoder_forward.15} parent=5 // pred_check
      _
    $region10: #{decoder_forward.15} parent=5 // pred_check_branch
      %116 = sbr.rel (%p113) target = $region12
    $region11: #{decoder_forward.15} parent=5 // pred_region
      %s117 = ssub.s32 %s9, 1
      // Predicated region
      $region13: #{decoder_forward.15} parent=11 // pred_check
        %p118 = pneg %p56
      $region14: #{decoder_forward.15} parent=11 // pred_check_branch
        %120 = sbr.rel (%p118) target = $region16
      $region15: #{decoder_forward.15} parent=11 // pred_region
        _
      $region16: #{decoder_forward.15} parent=11 // pred_fallthru
        _
      // Predicated region
      $region17: #{decoder_forward.15} parent=11 // pred_check
        %p121 = pneg %p77
      $region18: #{decoder_forward.15} parent=11 // pred_check_branch
        %123 = sbr.rel (%p121) target = $region20
      $region19: #{decoder_forward.15} parent=11 // pred_region
        _
      $region20: #{decoder_forward.15} parent=11 // pred_fallthru
        _
    $region12: #{decoder_forward.15} parent=5 // pred_fallthru
      _
    %p124 = scmp.lt.s32.totalorder %s9, 2
    // Predicated region
    $region21: #{decoder_forward.15} parent=5 // pred_check
      %p125 = pneg %p124
    $region22: #{decoder_forward.15} parent=5 // pred_check_branch
      %127 = sbr.rel (%p125) target = $region24
    $region23: #{decoder_forward.15} parent=5 // pred_region
      // Predicated region
      $region25: #{decoder_forward.15} parent=23 // pred_check
        %p128 = pneg %p29
      $region26: #{decoder_forward.15} parent=23 // pred_check_branch
        %130 = sbr.rel (%p128) target = $region28
      $region27: #{decoder_forward.15} parent=23 // pred_region
        %p131 = scmp.lt.s32.totalorder %s9, 1
        %s132 = scalar_select %p131, %s9, 1
        %s133 = smul.addr %s132, 4
        %s134 = scalar_lea.vmem %s0, %s133
      $region28: #{decoder_forward.15} parent=23 // pred_fallthru
        _
    $region24: #{decoder_forward.15} parent=5 // pred_fallthru
      _
    %p135 = scmp.le.s32.totalorder 1, %s9
    %p136 = scmp.lt.s32.totalorder %s9, 3
    %p137 = pnand %p135, %p136
    %p138 = pneg %p137
    // Predicated region
    $region29: #{decoder_forward.15} parent=5 // pred_check
      _
    $region30: #{decoder_forward.15} parent=5 // pred_check_branch
      %140 = sbr.rel (%p137) target = $region32
    $region31: #{decoder_forward.15} parent=5 // pred_region
      %s141 = ssub.s32 %s9, 1
      %p142 = scmp.lt.s32.totalorder %s14, 1
      %s143 = scalar_select %p142, %s14, 1
      %s144 = smul.addr %s143, 4
      %s145 = scalar_lea.vmem %s0, %s144
      %p146 = pneg %p35
      %p147 = pneg %p32
      %p148 = pneg %p56
      %p149 = pneg %p53
      %p150 = pneg %p77
      %p151 = pneg %p74
      %p152 = pneg %p103
      %p153 = pneg %p100
      %p154 = scmp.lt.s32.totalorder %s14, 1
      %s155 = scalar_select %p154, %s14, 1
      %s156 = smul.addr %s155, 8
      %s157 = smul.addr %s156, 4
      %s158 = scalar_lea.vmem %s3, %s157
      %p159 = scmp.lt.s32.totalorder %s14, 1
      %s160 = scalar_select %p159, %s14, 1
      %s161 = smul.addr %s160, 4
      %s162 = scalar_lea.vmem %s0, %s161
      %p163 = scmp.lt.s32.totalorder %s14, 1
      %s164 = scalar_select %p163, %s14, 1
      %s165 = smul.addr %s164, 8
      %s166 = smul.addr %s165, 4
      %s167 = scalar_lea.vmem %s3, %s166
      %v169 = vld [vmem:[%s1] sm:$0xf]
      %v170 = vld [vmem:[%s162] sm:$0xf]
      %s171 = scalar_lea.vmem %s1, 4
      %v172 = vld [vmem:[%s171] sm:$0xf]
      %v174 = vunpack.c.l.b16 %v170
      %v175 = vpack.c.b16 %v174, %v174
      %176 = vrot.lane.b32.xlu0 %v175, 127
      %v177 = vpop.permute.xlu0 %176
      %vm178 = vcmask 64512
      %v180 = vsel %vm178, %v172, 0
      %vm182 = vcmask 1043456
      %v184 = vsel %vm182, %v177, 0
      %186 = vmatpush.bf16.msra.mxu0 0
      %187 = vmatpush.bf16.msra.mxu0 0
      %188 = vmatpush.bf16.msra.mxu0 0
      %189 = vmatpush.bf16.msra.mxu0 0
      %190 = vmatpush.bf16.msra.mxu0 0
      %191 = vmatpush.bf16.msra.mxu0 0
      %192 = vmatpush.bf16.msra.mxu0 0
      %193 = vmatpush.bf16.msra.mxu0 %v184
      %194 = vmatmul.bf16.gmra.mxu0 %v180
      %v195 = vpop.f32.mrf.mxu0
      %v196 = vadd.f32 0.0, %v195
      %v197 = vpop.f32.mrf.mxu0
      %198 = vdwg.mxu0
      %v200 = vsel %vm178, %v169, 0
      %v203 = vsel %vm182, %v170, 0
      %205 = vmatpush.bf16.msra.mxu0 0
      %206 = vmatpush.bf16.msra.mxu0 0
      %207 = vmatpush.bf16.msra.mxu0 0
      %208 = vmatpush.bf16.msra.mxu0 0
      %209 = vmatpush.bf16.msra.mxu0 0
      %210 = vmatpush.bf16.msra.mxu0 0
      %211 = vmatpush.bf16.msra.mxu0 0
      %212 = vmatpush.bf16.msra.mxu0 %v203
      %213 = vmatmul.bf16.gmra.mxu0 %v200
      %v214 = vpop.f32.mrf.mxu0
      %v215 = vadd.f32 %v196, %v214
      %v216 = vpop.f32.mrf.mxu0
      %217 = vdwg.mxu0
      %s218 = scalar_lea.vmem %s1, 8
      %v219 = vld [vmem:[%s218] sm:$0xf]
      %220 = vrot.lane.b32.xlu0 %v175, 126
      %v221 = vpop.permute.xlu0 %220
      %v223 = vsel %vm178, %v219, 0
      %v226 = vsel %vm182, %v221, 0
      %228 = vmatpush.bf16.msra.mxu0 0
      %229 = vmatpush.bf16.msra.mxu0 0
      %230 = vmatpush.bf16.msra.mxu0 0
      %231 = vmatpush.bf16.msra.mxu0 0
      %232 = vmatpush.bf16.msra.mxu0 0
      %233 = vmatpush.bf16.msra.mxu0 0
      %234 = vmatpush.bf16.msra.mxu0 0
      %235 = vmatpush.bf16.msra.mxu0 %v226
      %236 = vmatmul.bf16.gmra.mxu0 %v223
      %v237 = vpop.f32.mrf.mxu0
      %v238 = vadd.f32 0.0, %v237
      %v239 = vpop.f32.mrf.mxu0
      %240 = vdwg.mxu0
      %v241 = vadd.f32 %v215, %v238
      %s242 = scalar_lea.vmem %s1, 12
      %v243 = vld [vmem:[%s242] sm:$0xf]
      %244 = vrot.lane.b32.xlu0 %v175, 118
      %v245 = vpop.permute.xlu0 %244
      %v247 = vsel %vm178, %v243, 0
      %v250 = vsel %vm182, %v245, 0
      %252 = vmatpush.bf16.msra.mxu0 0
      %253 = vmatpush.bf16.msra.mxu0 0
      %254 = vmatpush.bf16.msra.mxu0 0
      %255 = vmatpush.bf16.msra.mxu0 0
      %256 = vmatpush.bf16.msra.mxu0 0
      %257 = vmatpush.bf16.msra.mxu0 0
      %258 = vmatpush.bf16.msra.mxu0 0
      %259 = vmatpush.bf16.msra.mxu0 %v250
      %260 = vmatmul.bf16.gmra.mxu0 %v247
      %v261 = vpop.f32.mrf.mxu0
      %v262 = vadd.f32 0.0, %v261
      %v263 = vpop.f32.mrf.mxu0
      %264 = vdwg.mxu0
      %v265 = vadd.f32 %v241, %v262
      %s266 = scalar_lea.vmem %s1, 16
      %v267 = vld [vmem:[%s266] sm:$0xf]
      %268 = vrot.lane.b32.xlu0 %v175, 117
      %v269 = vpop.permute.xlu0 %268
      %v271 = vsel %vm178, %v267, 0
      %v274 = vsel %vm182, %v269, 0
      %276 = vmatpush.bf16.msra.mxu0 0
      %277 = vmatpush.bf16.msra.mxu0 0
      %278 = vmatpush.bf16.msra.mxu0 0
      %279 = vmatpush.bf16.msra.mxu0 0
      %280 = vmatpush.bf16.msra.mxu0 0
      %281 = vmatpush.bf16.msra.mxu0 0
      %282 = vmatpush.bf16.msra.mxu0 0
      %283 = vmatpush.bf16.msra.mxu0 %v274
      %284 = vmatmul.bf16.gmra.mxu0 %v271
      %v285 = vpop.f32.mrf.mxu0
      %v286 = vadd.f32 0.0, %v285
      %v287 = vpop.f32.mrf.mxu0
      %288 = vdwg.mxu0
      %v289 = vadd.f32 %v265, %v286
      %s290 = scalar_lea.vmem %s1, 20
      %v291 = vld [vmem:[%s290] sm:$0xf]
      %292 = vrot.lane.b32.xlu0 %v175, 116
      %v293 = vpop.permute.xlu0 %292
      %v295 = vsel %vm178, %v291, 0
      %v298 = vsel %vm182, %v293, 0
      %300 = vmatpush.bf16.msra.mxu0 0
      %301 = vmatpush.bf16.msra.mxu0 0
      %302 = vmatpush.bf16.msra.mxu0 0
      %303 = vmatpush.bf16.msra.mxu0 0
      %304 = vmatpush.bf16.msra.mxu0 0
      %305 = vmatpush.bf16.msra.mxu0 0
      %306 = vmatpush.bf16.msra.mxu0 0
      %307 = vmatpush.bf16.msra.mxu0 %v298
      %308 = vmatmul.bf16.gmra.mxu0 %v295
      %v309 = vpop.f32.mrf.mxu0
      %v310 = vadd.f32 0.0, %v309
      %v311 = vpop.f32.mrf.mxu0
      %312 = vdwg.mxu0
      %v313 = vadd.f32 %v289, %v310
      %s314 = scalar_lea.vmem %s1, 24
      %v315 = vld [vmem:[%s314] sm:$0xf]
      %316 = vrot.lane.b32.xlu0 %v175, 108
      %v317 = vpop.permute.xlu0 %316
      %v319 = vsel %vm178, %v315, 0
      %v322 = vsel %vm182, %v317, 0
      %324 = vmatpush.bf16.msra.mxu0 0
      %325 = vmatpush.bf16.msra.mxu0 0
      %326 = vmatpush.bf16.msra.mxu0 0
      %327 = vmatpush.bf16.msra.mxu0 0
      %328 = vmatpush.bf16.msra.mxu0 0
      %329 = vmatpush.bf16.msra.mxu0 0
      %330 = vmatpush.bf16.msra.mxu0 0
      %331 = vmatpush.bf16.msra.mxu0 %v322
      %332 = vmatmul.bf16.gmra.mxu0 %v319
      %v333 = vpop.f32.mrf.mxu0
      %v334 = vadd.f32 0.0, %v333
      %v335 = vpop.f32.mrf.mxu0
      %336 = vdwg.mxu0
      %v337 = vadd.f32 %v313, %v334
      %s338 = scalar_lea.vmem %s1, 28
      %v339 = vld [vmem:[%s338] sm:$0xf]
      %340 = vrot.lane.b32.xlu0 %v175, 107
      %v341 = vpop.permute.xlu0 %340
      %v343 = vsel %vm178, %v339, 0
      %v346 = vsel %vm182, %v341, 0
      %348 = vmatpush.bf16.msra.mxu0 0
      %349 = vmatpush.bf16.msra.mxu0 0
      %350 = vmatpush.bf16.msra.mxu0 0
      %351 = vmatpush.bf16.msra.mxu0 0
      %352 = vmatpush.bf16.msra.mxu0 0
      %353 = vmatpush.bf16.msra.mxu0 0
      %354 = vmatpush.bf16.msra.mxu0 0
      %355 = vmatpush.bf16.msra.mxu0 %v346
      %356 = vmatmul.bf16.gmra.mxu0 %v343
      %v357 = vpop.f32.mrf.mxu0
      %v358 = vadd.f32 0.0, %v357
      %v359 = vpop.f32.mrf.mxu0
      %360 = vdwg.mxu0
      %v361 = vadd.f32 %v337, %v358
      %s362 = scalar_lea.vmem %s1, 32
      %v363 = vld [vmem:[%s362] sm:$0xf]
      %364 = vrot.lane.b32.xlu0 %v175, 106
      %v365 = vpop.permute.xlu0 %364
      %v367 = vsel %vm178, %v363, 0
      %v370 = vsel %vm182, %v365, 0
      %372 = vmatpush.bf16.msra.mxu0 0
      %373 = vmatpush.bf16.msra.mxu0 0
      %374 = vmatpush.bf16.msra.mxu0 0
      %375 = vmatpush.bf16.msra.mxu0 0
      %376 = vmatpush.bf16.msra.mxu0 0
      %377 = vmatpush.bf16.msra.mxu0 0
      %378 = vmatpush.bf16.msra.mxu0 0
      %379 = vmatpush.bf16.msra.mxu0 %v370
      %380 = vmatmul.bf16.gmra.mxu0 %v367
      %v381 = vpop.f32.mrf.mxu0
      %v382 = vadd.f32 0.0, %v381
      %v383 = vpop.f32.mrf.mxu0
      %384 = vdwg.mxu0
      %v385 = vadd.f32 %v361, %v382
      %v386 = vpack.c.bf16 %v385, %v385
      %v388 = vrot.slane %v386, 3
      %vm389 = vcmask 1040384
      %v392 = vsel %vm389, %v386, %v388
      %vm394 = vcmask 1041409
      %v395 = vsel %vm394, %v386, %v388
      %v397 = vrot.slane %v395, 1
      %vm398 = vcmask 1042434
      %v399 = vsel %vm398, %v386, %v388
      %v401 = vrot.slane %v399, 2
      %vm402 = vcmask 1043459
      %v403 = vsel %vm402, %v386, %v388
      %v405 = vrot.slane %v403, 3
      %v406 = vunpack.i.l.s16 %v392
      %v407 = vunpack.i.h.s16 %v392
      %v408 = vunpack.i.l.s16 %v397
      %v409 = vunpack.i.h.s16 %v397
      %v410 = vunpack.i.l.s16 %v401
      %v411 = vunpack.i.h.s16 %v401
      %v412 = vunpack.i.l.s16 %v405
      %v413 = vunpack.i.h.s16 %v405
      %v414 = vpack.i.b16 %v406, %v406
      %v415 = vpack.i.b16 %v407, %v407
      %v416 = vpack.i.b16 %v408, %v408
      %v417 = vpack.i.b16 %v409, %v409
      %v418 = vpack.i.b16 %v410, %v410
      %v419 = vpack.i.b16 %v411, %v411
      %v420 = vpack.i.b16 %v412, %v412
      %v421 = vpack.i.b16 %v413, %v413
      %v423 = vunpack.c.l.s4 286326784
      %v424 = vunpack.c.0.s8 %v423
      %v425 = vperm.slane %v414, %v424
      %v427 = vunpack.c.l.s4 286326784
      %v428 = vunpack.c.0.s8 %v427
      %v429 = vperm.slane %v415, %v428
      %v431 = vunpack.c.l.s4 286326784
      %v432 = vunpack.c.0.s8 %v431
      %v433 = vperm.slane %v416, %v432
      %v435 = vunpack.c.l.s4 286326784
      %v436 = vunpack.c.0.s8 %v435
      %v437 = vperm.slane %v417, %v436
      %v439 = vunpack.c.l.s4 286326784
      %v440 = vunpack.c.0.s8 %v439
      %v441 = vperm.slane %v418, %v440
      %v443 = vunpack.c.l.s4 286326784
      %v444 = vunpack.c.0.s8 %v443
      %v445 = vperm.slane %v419, %v444
      %v447 = vunpack.c.l.s4 286326784
      %v448 = vunpack.c.0.s8 %v447
      %v449 = vperm.slane %v420, %v448
      %v451 = vunpack.c.l.s4 286326784
      %v452 = vunpack.c.0.s8 %v451
      %v453 = vperm.slane %v421, %v452
      %vm462 = vcmask 57344
      %vm463 = vsmask.f32 256
      %vm464 = vmand %vm462, %vm463
      %v465 = vld [vmem:[%s167] sm:$0x1]
      %v466 = vsel %vm464, %v425, %v465
      %467 = vst [vmem:[%s167] sm:$0x1] %v466
      %v468 = vld [vmem:[%s167 + $0x4] sm:$0x1]
      %v469 = vsel %vm464, %v429, %v468
      %470 = vst [vmem:[%s167 + $0x4] sm:$0x1] %v469
      %v471 = vld [vmem:[%s167 + $0x8] sm:$0x1]
      %v472 = vsel %vm464, %v433, %v471
      %473 = vst [vmem:[%s167 + $0x8] sm:$0x1] %v472
      %v474 = vld [vmem:[%s167 + $0xc] sm:$0x1]
      %v475 = vsel %vm464, %v437, %v474
      %476 = vst [vmem:[%s167 + $0xc] sm:$0x1] %v475
      %v477 = vld [vmem:[%s167 + $0x10] sm:$0x1]
      %v478 = vsel %vm464, %v441, %v477
      %479 = vst [vmem:[%s167 + $0x10] sm:$0x1] %v478
      %v480 = vld [vmem:[%s167 + $0x14] sm:$0x1]
      %v481 = vsel %vm464, %v445, %v480
      %482 = vst [vmem:[%s167 + $0x14] sm:$0x1] %v481
      %v483 = vld [vmem:[%s167 + $0x18] sm:$0x1]
      %v484 = vsel %vm464, %v449, %v483
      %485 = vst [vmem:[%s167 + $0x18] sm:$0x1] %v484
      %v486 = vld [vmem:[%s167 + $0x1c] sm:$0x1]
      %v487 = vsel %vm464, %v453, %v486
      %488 = vst [vmem:[%s167 + $0x1c] sm:$0x1] %v487
      %489 = vrot.lane.b32.xlu0 %v425, 118
      %v490 = vpop.permute.xlu0 %489
      %491 = vrot.lane.b32.xlu0 %v429, 118
      %v492 = vpop.permute.xlu0 %491
      %493 = vrot.lane.b32.xlu0 %v433, 118
      %v494 = vpop.permute.xlu0 %493
      %495 = vrot.lane.b32.xlu0 %v437, 118
      %v496 = vpop.permute.xlu0 %495
      %497 = vrot.lane.b32.xlu0 %v441, 118
      %v498 = vpop.permute.xlu0 %497
      %499 = vrot.lane.b32.xlu0 %v445, 118
      %v500 = vpop.permute.xlu0 %499
      %501 = vrot.lane.b32.xlu0 %v449, 118
      %v502 = vpop.permute.xlu0 %501
      %503 = vrot.lane.b32.xlu0 %v453, 118
      %v504 = vpop.permute.xlu0 %503
      %vm513 = vsmask.f32 7938
      %vm514 = vmand %vm462, %vm513
      %v515 = vld [vmem:[%s167] sm:$0x1]
      %v516 = vsel %vm514, %v490, %v515
      %517 = vst [vmem:[%s167] sm:$0x1] %v516
      %v518 = vld [vmem:[%s167 + $0x4] sm:$0x1]
      %v519 = vsel %vm514, %v492, %v518
      %520 = vst [vmem:[%s167 + $0x4] sm:$0x1] %v519
      %v521 = vld [vmem:[%s167 + $0x8] sm:$0x1]
      %v522 = vsel %vm514, %v494, %v521
      %523 = vst [vmem:[%s167 + $0x8] sm:$0x1] %v522
      %v524 = vld [vmem:[%s167 + $0xc] sm:$0x1]
      %v525 = vsel %vm514, %v496, %v524
      %526 = vst [vmem:[%s167 + $0xc] sm:$0x1] %v525
      %v527 = vld [vmem:[%s167 + $0x10] sm:$0x1]
      %v528 = vsel %vm514, %v498, %v527
      %529 = vst [vmem:[%s167 + $0x10] sm:$0x1] %v528
      %v530 = vld [vmem:[%s167 + $0x14] sm:$0x1]
      %v531 = vsel %vm514, %v500, %v530
      %532 = vst [vmem:[%s167 + $0x14] sm:$0x1] %v531
      %v533 = vld [vmem:[%s167 + $0x18] sm:$0x1]
      %v534 = vsel %vm514, %v502, %v533
      %535 = vst [vmem:[%s167 + $0x18] sm:$0x1] %v534
      %v536 = vld [vmem:[%s167 + $0x1c] sm:$0x1]
      %v537 = vsel %vm514, %v504, %v536
      %538 = vst [vmem:[%s167 + $0x1c] sm:$0x1] %v537
      %539 = vrot.lane.b32.xlu0 %v425, 108
      %v540 = vpop.permute.xlu0 %539
      %541 = vrot.lane.b32.xlu0 %v429, 108
      %v542 = vpop.permute.xlu0 %541
      %543 = vrot.lane.b32.xlu0 %v433, 108
      %v544 = vpop.permute.xlu0 %543
      %545 = vrot.lane.b32.xlu0 %v437, 108
      %v546 = vpop.permute.xlu0 %545
      %547 = vrot.lane.b32.xlu0 %v441, 108
      %v548 = vpop.permute.xlu0 %547
      %549 = vrot.lane.b32.xlu0 %v445, 108
      %v550 = vpop.permute.xlu0 %549
      %551 = vrot.lane.b32.xlu0 %v449, 108
      %v552 = vpop.permute.xlu0 %551
      %553 = vrot.lane.b32.xlu0 %v453, 108
      %v554 = vpop.permute.xlu0 %553
      %vm563 = vcmask 58369
      %vm564 = vsmask.f32 1280
      %vm565 = vmand %vm563, %vm564
      %v566 = vld [vmem:[%s167] sm:$0x2]
      %v567 = vsel %vm565, %v540, %v566
      %568 = vst [vmem:[%s167] sm:$0x2] %v567
      %v569 = vld [vmem:[%s167 + $0x4] sm:$0x2]
      %v570 = vsel %vm565, %v542, %v569
      %571 = vst [vmem:[%s167 + $0x4] sm:$0x2] %v570
      %v572 = vld [vmem:[%s167 + $0x8] sm:$0x2]
      %v573 = vsel %vm565, %v544, %v572
      %574 = vst [vmem:[%s167 + $0x8] sm:$0x2] %v573
      %v575 = vld [vmem:[%s167 + $0xc] sm:$0x2]
      %v576 = vsel %vm565, %v546, %v575
      %577 = vst [vmem:[%s167 + $0xc] sm:$0x2] %v576
      %v578 = vld [vmem:[%s167 + $0x10] sm:$0x2]
      %v579 = vsel %vm565, %v548, %v578
      %580 = vst [vmem:[%s167 + $0x10] sm:$0x2] %v579
      %v581 = vld [vmem:[%s167 + $0x14] sm:$0x2]
      %v582 = vsel %vm565, %v550, %v581
      %583 = vst [vmem:[%s167 + $0x14] sm:$0x2] %v582
      %v584 = vld [vmem:[%s167 + $0x18] sm:$0x2]
      %v585 = vsel %vm565, %v552, %v584
      %586 = vst [vmem:[%s167 + $0x18] sm:$0x2] %v585
      %v587 = vld [vmem:[%s167 + $0x1c] sm:$0x2]
      %v588 = vsel %vm565, %v554, %v587
      %589 = vst [vmem:[%s167 + $0x1c] sm:$0x2] %v588
      %590 = vrot.lane.b32.xlu0 %v425, 98
      %v591 = vpop.permute.xlu0 %590
      %592 = vrot.lane.b32.xlu0 %v429, 98
      %v593 = vpop.permute.xlu0 %592
      %594 = vrot.lane.b32.xlu0 %v433, 98
      %v595 = vpop.permute.xlu0 %594
      %596 = vrot.lane.b32.xlu0 %v437, 98
      %v597 = vpop.permute.xlu0 %596
      %598 = vrot.lane.b32.xlu0 %v441, 98
      %v599 = vpop.permute.xlu0 %598
      %600 = vrot.lane.b32.xlu0 %v445, 98
      %v601 = vpop.permute.xlu0 %600
      %602 = vrot.lane.b32.xlu0 %v449, 98
      %v603 = vpop.permute.xlu0 %602
      %604 = vrot.lane.b32.xlu0 %v453, 98
      %v605 = vpop.permute.xlu0 %604
      %vm614 = vsmask.f32 7942
      %vm615 = vmand %vm563, %vm614
      %v616 = vld [vmem:[%s167] sm:$0x2]
      %v617 = vsel %vm615, %v591, %v616
      %618 = vst [vmem:[%s167] sm:$0x2] %v617
      %v619 = vld [vmem:[%s167 + $0x4] sm:$0x2]
      %v620 = vsel %vm615, %v593, %v619
      %621 = vst [vmem:[%s167 + $0x4] sm:$0x2] %v620
      %v622 = vld [vmem:[%s167 + $0x8] sm:$0x2]
      %v623 = vsel %vm615, %v595, %v622
      %624 = vst [vmem:[%s167 + $0x8] sm:$0x2] %v623
      %v625 = vld [vmem:[%s167 + $0xc] sm:$0x2]
      %v626 = vsel %vm615, %v597, %v625
      %627 = vst [vmem:[%s167 + $0xc] sm:$0x2] %v626
      %v628 = vld [vmem:[%s167 + $0x10] sm:$0x2]
      %v629 = vsel %vm615, %v599, %v628
      %630 = vst [vmem:[%s167 + $0x10] sm:$0x2] %v629
      %v631 = vld [vmem:[%s167 + $0x14] sm:$0x2]
      %v632 = vsel %vm615, %v601, %v631
      %633 = vst [vmem:[%s167 + $0x14] sm:$0x2] %v632
      %v634 = vld [vmem:[%s167 + $0x18] sm:$0x2]
      %v635 = vsel %vm615, %v603, %v634
      %636 = vst [vmem:[%s167 + $0x18] sm:$0x2] %v635
      %v637 = vld [vmem:[%s167 + $0x1c] sm:$0x2]
      %v638 = vsel %vm615, %v605, %v637
      %639 = vst [vmem:[%s167 + $0x1c] sm:$0x2] %v638
      %640 = vrot.lane.b32.xlu0 %v425, 88
      %v641 = vpop.permute.xlu0 %640
      %642 = vrot.lane.b32.xlu0 %v429, 88
      %v643 = vpop.permute.xlu0 %642
      %644 = vrot.lane.b32.xlu0 %v433, 88
      %v645 = vpop.permute.xlu0 %644
      %646 = vrot.lane.b32.xlu0 %v437, 88
      %v647 = vpop.permute.xlu0 %646
      %648 = vrot.lane.b32.xlu0 %v441, 88
      %v649 = vpop.permute.xlu0 %648
      %650 = vrot.lane.b32.xlu0 %v445, 88
      %v651 = vpop.permute.xlu0 %650
      %652 = vrot.lane.b32.xlu0 %v449, 88
      %v653 = vpop.permute.xlu0 %652
      %654 = vrot.lane.b32.xlu0 %v453, 88
      %v655 = vpop.permute.xlu0 %654
      %vm664 = vcmask 59394
      %vm665 = vsmask.f32 2304
      %vm666 = vmand %vm664, %vm665
      %v667 = vld [vmem:[%s167] sm:$0x4]
      %v668 = vsel %vm666, %v641, %v667
      %669 = vst [vmem:[%s167] sm:$0x4] %v668
      %v670 = vld [vmem:[%s167 + $0x4] sm:$0x4]
      %v671 = vsel %vm666, %v643, %v670
      %672 = vst [vmem:[%s167 + $0x4] sm:$0x4] %v671
      %v673 = vld [vmem:[%s167 + $0x8] sm:$0x4]
      %v674 = vsel %vm666, %v645, %v673
      %675 = vst [vmem:[%s167 + $0x8] sm:$0x4] %v674
      %v676 = vld [vmem:[%s167 + $0xc] sm:$0x4]
      %v677 = vsel %vm666, %v647, %v676
      %678 = vst [vmem:[%s167 + $0xc] sm:$0x4] %v677
      %v679 = vld [vmem:[%s167 + $0x10] sm:$0x4]
      %v680 = vsel %vm666, %v649, %v679
      %681 = vst [vmem:[%s167 + $0x10] sm:$0x4] %v680
      %v682 = vld [vmem:[%s167 + $0x14] sm:$0x4]
      %v683 = vsel %vm666, %v651, %v682
      %684 = vst [vmem:[%s167 + $0x14] sm:$0x4] %v683
      %v685 = vld [vmem:[%s167 + $0x18] sm:$0x4]
      %v686 = vsel %vm666, %v653, %v685
      %687 = vst [vmem:[%s167 + $0x18] sm:$0x4] %v686
      %v688 = vld [vmem:[%s167 + $0x1c] sm:$0x4]
      %v689 = vsel %vm666, %v655, %v688
      %690 = vst [vmem:[%s167 + $0x1c] sm:$0x4] %v689
      %691 = vrot.lane.b32.xlu0 %v425, 78
      %v692 = vpop.permute.xlu0 %691
      %693 = vrot.lane.b32.xlu0 %v429, 78
      %v694 = vpop.permute.xlu0 %693
      %695 = vrot.lane.b32.xlu0 %v433, 78
      %v696 = vpop.permute.xlu0 %695
      %697 = vrot.lane.b32.xlu0 %v437, 78
      %v698 = vpop.permute.xlu0 %697
      %699 = vrot.lane.b32.xlu0 %v441, 78
      %v700 = vpop.permute.xlu0 %699
      %701 = vrot.lane.b32.xlu0 %v445, 78
      %v702 = vpop.permute.xlu0 %701
      %703 = vrot.lane.b32.xlu0 %v449, 78
      %v704 = vpop.permute.xlu0 %703
      %705 = vrot.lane.b32.xlu0 %v453, 78
      %v706 = vpop.permute.xlu0 %705
      %vm715 = vsmask.f32 7946
      %vm716 = vmand %vm664, %vm715
      %v717 = vld [vmem:[%s167] sm:$0x4]
      %v718 = vsel %vm716, %v692, %v717
      %719 = vst [vmem:[%s167] sm:$0x4] %v718
      %v720 = vld [vmem:[%s167 + $0x4] sm:$0x4]
      %v721 = vsel %vm716, %v694, %v720
      %722 = vst [vmem:[%s167 + $0x4] sm:$0x4] %v721
      %v723 = vld [vmem:[%s167 + $0x8] sm:$0x4]
      %v724 = vsel %vm716, %v696, %v723
      %725 = vst [vmem:[%s167 + $0x8] sm:$0x4] %v724
      %v726 = vld [vmem:[%s167 + $0xc] sm:$0x4]
      %v727 = vsel %vm716, %v698, %v726
      %728 = vst [vmem:[%s167 + $0xc] sm:$0x4] %v727
      %v729 = vld [vmem:[%s167 + $0x10] sm:$0x4]
      %v730 = vsel %vm716, %v700, %v729
      %731 = vst [vmem:[%s167 + $0x10] sm:$0x4] %v730
      %v732 = vld [vmem:[%s167 + $0x14] sm:$0x4]
      %v733 = vsel %vm716, %v702, %v732
      %734 = vst [vmem:[%s167 + $0x14] sm:$0x4] %v733
      %v735 = vld [vmem:[%s167 + $0x18] sm:$0x4]
      %v736 = vsel %vm716, %v704, %v735
      %737 = vst [vmem:[%s167 + $0x18] sm:$0x4] %v736
      %v738 = vld [vmem:[%s167 + $0x1c] sm:$0x4]
      %v739 = vsel %vm716, %v706, %v738
      %740 = vst [vmem:[%s167 + $0x1c] sm:$0x4] %v739
      %741 = vrot.lane.b32.xlu0 %v425, 68
      %v742 = vpop.permute.xlu0 %741
      %743 = vrot.lane.b32.xlu0 %v429, 68
      %v744 = vpop.permute.xlu0 %743
      %745 = vrot.lane.b32.xlu0 %v433, 68
      %v746 = vpop.permute.xlu0 %745
      %747 = vrot.lane.b32.xlu0 %v437, 68
      %v748 = vpop.permute.xlu0 %747
      %749 = vrot.lane.b32.xlu0 %v441, 68
      %v750 = vpop.permute.xlu0 %749
      %751 = vrot.lane.b32.xlu0 %v445, 68
      %v752 = vpop.permute.xlu0 %751
      %753 = vrot.lane.b32.xlu0 %v449, 68
      %v754 = vpop.permute.xlu0 %753
      %755 = vrot.lane.b32.xlu0 %v453, 68
      %v756 = vpop.permute.xlu0 %755
      %vm765 = vcmask 60419
      %vm766 = vsmask.f32 3328
      %vm767 = vmand %vm765, %vm766
      %v768 = vld [vmem:[%s167] sm:$0x8]
      %v769 = vsel %vm767, %v742, %v768
      %770 = vst [vmem:[%s167] sm:$0x8] %v769
      %v771 = vld [vmem:[%s167 + $0x4] sm:$0x8]
      %v772 = vsel %vm767, %v744, %v771
      %773 = vst [vmem:[%s167 + $0x4] sm:$0x8] %v772
      %v774 = vld [vmem:[%s167 + $0x8] sm:$0x8]
      %v775 = vsel %vm767, %v746, %v774
      %776 = vst [vmem:[%s167 + $0x8] sm:$0x8] %v775
      %v777 = vld [vmem:[%s167 + $0xc] sm:$0x8]
      %v778 = vsel %vm767, %v748, %v777
      %779 = vst [vmem:[%s167 + $0xc] sm:$0x8] %v778
      %v780 = vld [vmem:[%s167 + $0x10] sm:$0x8]
      %v781 = vsel %vm767, %v750, %v780
      %782 = vst [vmem:[%s167 + $0x10] sm:$0x8] %v781
      %v783 = vld [vmem:[%s167 + $0x14] sm:$0x8]
      %v784 = vsel %vm767, %v752, %v783
      %785 = vst [vmem:[%s167 + $0x14] sm:$0x8] %v784
      %v786 = vld [vmem:[%s167 + $0x18] sm:$0x8]
      %v787 = vsel %vm767, %v754, %v786
      %788 = vst [vmem:[%s167 + $0x18] sm:$0x8] %v787
      %v789 = vld [vmem:[%s167 + $0x1c] sm:$0x8]
      %v790 = vsel %vm767, %v756, %v789
      %791 = vst [vmem:[%s167 + $0x1c] sm:$0x8] %v790
      %792 = vrot.lane.b32.xlu0 %v425, 58
      %v793 = vpop.permute.xlu0 %792
      %794 = vrot.lane.b32.xlu0 %v429, 58
      %v795 = vpop.permute.xlu0 %794
      %796 = vrot.lane.b32.xlu0 %v433, 58
      %v797 = vpop.permute.xlu0 %796
      %798 = vrot.lane.b32.xlu0 %v437, 58
      %v799 = vpop.permute.xlu0 %798
      %800 = vrot.lane.b32.xlu0 %v441, 58
      %v801 = vpop.permute.xlu0 %800
      %802 = vrot.lane.b32.xlu0 %v445, 58
      %v803 = vpop.permute.xlu0 %802
      %804 = vrot.lane.b32.xlu0 %v449, 58
      %v805 = vpop.permute.xlu0 %804
      %806 = vrot.lane.b32.xlu0 %v453, 58
      %v807 = vpop.permute.xlu0 %806
      %vm816 = vsmask.f32 7950
      %vm817 = vmand %vm765, %vm816
      %v818 = vld [vmem:[%s167] sm:$0x8]
      %v819 = vsel %vm817, %v793, %v818
      %820 = vst [vmem:[%s167] sm:$0x8] %v819
      %v821 = vld [vmem:[%s167 + $0x4] sm:$0x8]
      %v822 = vsel %vm817, %v795, %v821
      %823 = vst [vmem:[%s167 + $0x4] sm:$0x8] %v822
      %v824 = vld [vmem:[%s167 + $0x8] sm:$0x8]
      %v825 = vsel %vm817, %v797, %v824
      %826 = vst [vmem:[%s167 + $0x8] sm:$0x8] %v825
      %v827 = vld [vmem:[%s167 + $0xc] sm:$0x8]
      %v828 = vsel %vm817, %v799, %v827
      %829 = vst [vmem:[%s167 + $0xc] sm:$0x8] %v828
      %v830 = vld [vmem:[%s167 + $0x10] sm:$0x8]
      %v831 = vsel %vm817, %v801, %v830
      %832 = vst [vmem:[%s167 + $0x10] sm:$0x8] %v831
      %v833 = vld [vmem:[%s167 + $0x14] sm:$0x8]
      %v834 = vsel %vm817, %v803, %v833
      %835 = vst [vmem:[%s167 + $0x14] sm:$0x8] %v834
      %v836 = vld [vmem:[%s167 + $0x18] sm:$0x8]
      %v837 = vsel %vm817, %v805, %v836
      %838 = vst [vmem:[%s167 + $0x18] sm:$0x8] %v837
      %v839 = vld [vmem:[%s167 + $0x1c] sm:$0x8]
      %v840 = vsel %vm817, %v807, %v839
      %841 = vst [vmem:[%s167 + $0x1c] sm:$0x8] %v840
      %p842 = scmp.lt.s32.totalorder %s14, 1
      %s843 = scalar_select %p842, %s14, 1
      %s844 = smul.addr %s843, 8
      %s845 = smul.addr %s844, 4
      %s846 = scalar_lea.vmem %s3, %s845
      // Predicated region
      $region33: #{decoder_forward.15} parent=31 // pred_check
        %p847 = pneg %p100
      $region34: #{decoder_forward.15} parent=31 // pred_check_branch
        %849 = sbr.rel (%p847) target = $region36
      $region35: #{decoder_forward.15} parent=31 // pred_region
        _
      $region36: #{decoder_forward.15} parent=31 // pred_fallthru
        _
    $region32: #{decoder_forward.15} parent=5 // pred_fallthru
      _
    %p850 = scmp.le.s32.totalorder 2, %s9
    // Predicated region
    $region37: #{decoder_forward.15} parent=5 // pred_check
      %p851 = pneg %p850
    $region38: #{decoder_forward.15} parent=5 // pred_check_branch
      %853 = sbr.rel (%p851) target = $region40
    $region39: #{decoder_forward.15} parent=5 // pred_region
      %s854 = ssub.s32 %s9, 2
      // Predicated region
      $region41: #{decoder_forward.15} parent=39 // pred_check
        %p855 = pneg %p106
      $region42: #{decoder_forward.15} parent=39 // pred_check_branch
        %857 = sbr.rel (%p855) target = $region44
      $region43: #{decoder_forward.15} parent=39 // pred_region
        %p858 = scmp.lt.s32.totalorder %s15, 1
        %s859 = scalar_select %p858, %s15, 1
        %s860 = smul.addr %s859, 8
        %s861 = smul.addr %s860, 4
        %s862 = scalar_lea.vmem %s3, %s861
      $region44: #{decoder_forward.15} parent=39 // pred_fallthru
        _
    $region40: #{decoder_forward.15} parent=5 // pred_fallthru
      _
  $region6: #{decoder_forward.15} parent=0 // loop_footer
    %s13 = sadd.s32 1, %s9
  $region7: #{decoder_forward.15} parent=0 // loop_footer_branch
    %8 = sbr.rel target = $region3
  $region8: #{decoder_forward.15} parent=0 // loop_exit
    _

// kernel: decoder_forward.18
$region0: #{decoder_forward.18}
  #allocation0 [shape = 'u32[]', space=smem, size = 0x4, offset = 0x4, fixed_abs, tag = 'smem constant byte address 0x4 - core index']
  #allocation1 [shape = 'u32[72,128]{1,0:T(1,128)}', space=vmem, size = 0x9000, scoped, tag = 'internal scratch']
  %s0 = inlined_call_operand.vmem [shape: bf16[2,2,4,256], index: 0, kind: input, shape index: {}]
  %s1 = inlined_call_operand.vmem [shape: f32[2,4,1], index: 1, kind: input, shape index: {}]
  %s2 = inlined_call_operand.vmem [shape: f32[2,4,1], index: 2, kind: input, shape index: {}]
  %s3 = inlined_call_operand.vmem [shape: bf16[2,2,4,256], index: 3, kind: output, shape index: {}]
  %s4 = sld [smem:[#allocation0]]
  $region45: #{decoder_forward.18} parent=0
    _
  %s6 = ssub.s32 1, %s4
  %s7 = scalar_select 0, %s6, %s4
  loop: start=0, step=1, limit=6
  $region2: #{decoder_forward.18} parent=0 // loop_pre_header
    _
  $region3: #{decoder_forward.18} parent=0 // loop_header
    %s9 = sphi 0, %s13
    %p10 = scmp.ge.s32.totalorder %s9, 6
    %s16 = sphi 0, %s28
    %s17 = sphi 0, %s24
    %s18 = sphi 0, %s16
    %s19 = sphi 0, %s17
    %s20 = sphi 0, %s18
    %s21 = sphi 0, %s19
    %s33 = sphi 0, %s35
    %s36 = sphi 0, %s33
    %s37 = sphi 0, %s36
    %s53 = sphi 0, %s37
    %s59 = sphi 0, %s61
    %s62 = sphi 0, %s59
    %s63 = sphi 0, %s62
    %s79 = sphi 0, %s63
    %s85 = sphi 0, %s87
    %s88 = sphi 0, %s85
    %s89 = sphi 0, %s88
    %s105 = sphi 0, %s89
    %s113 = sphi 0, %s115
    %s116 = sphi 0, %s113
    %s117 = sphi 0, %s116
    %s133 = sphi 0, %s117
  $region4: #{decoder_forward.18} parent=0 // loop_header_branch
    %12 = sbr.rel (%p10) target = $region8
  $region5: #{decoder_forward.18} parent=0 // loop_body
    %s14 = ssub.s32 %s9, 1
    %s15 = ssub.s32 %s9, 2
    %s22 = sadd.s32 1, %s17
    %p23 = scmp.ge.s32.totalorder %s22, 2
    %s24 = scalar_select %p23, 0, %s22
    %s25 = sadd.s32 1, %s16
    %s26 = scalar_select %p23, %s25, %s16
    %p27 = scmp.ge.s32.totalorder %s26, 2
    %s28 = scalar_select %p27, 0, %s26
    %s29 = ssub.s32 %s16, %s28
    %s30 = ssub.s32 %s17, %s24
    %s31 = sor.u32 %s29, %s30
    %p32 = scmp.eq.s32.totalorder %s31, 0
    %s34 = sadd.s32 %s33, 1
    %s35 = scalar_select %p32, %s33, %s34
    %p38 = pneg %p32
    %p39 = scmp.eq.s32.totalorder %s9, 3
    %p40 = por %p38, %p39
    %p41 = scmp.ne.s32.totalorder %s33, %s36
    %p42 = scmp.eq.s32.totalorder %s9, 0
    %p43 = por %p41, %p42
    %p44 = scmp.ne.s32.totalorder %s33, %s36
    %p45 = scmp.eq.s32.totalorder %s14, 3
    %p46 = por %p44, %p45
    %p47 = scmp.ne.s32.totalorder %s36, %s37
    %p48 = scmp.eq.s32.totalorder %s14, 0
    %p49 = por %p47, %p48
    %p50 = scmp.ne.s32.totalorder %s36, %s37
    %p51 = scmp.eq.s32.totalorder %s15, 3
    %p52 = por %p50, %p51
    %p54 = scmp.ne.s32.totalorder %s37, %s53
    %p55 = scmp.eq.s32.totalorder %s15, 0
    %p56 = por %p54, %p55
    %s57 = ssub.s32 %s17, %s24
    %p58 = scmp.eq.s32.totalorder %s57, 0
    %s60 = sadd.s32 %s59, 1
    %s61 = scalar_select %p58, %s59, %s60
    %p64 = pneg %p58
    %p65 = scmp.eq.s32.totalorder %s9, 3
    %p66 = por %p64, %p65
    %p67 = scmp.ne.s32.totalorder %s59, %s62
    %p68 = scmp.eq.s32.totalorder %s9, 0
    %p69 = por %p67, %p68
    %p70 = scmp.ne.s32.totalorder %s59, %s62
    %p71 = scmp.eq.s32.totalorder %s14, 3
    %p72 = por %p70, %p71
    %p73 = scmp.ne.s32.totalorder %s62, %s63
    %p74 = scmp.eq.s32.totalorder %s14, 0
    %p75 = por %p73, %p74
    %p76 = scmp.ne.s32.totalorder %s62, %s63
    %p77 = scmp.eq.s32.totalorder %s15, 3
    %p78 = por %p76, %p77
    %p80 = scmp.ne.s32.totalorder %s63, %s79
    %p81 = scmp.eq.s32.totalorder %s15, 0
    %p82 = por %p80, %p81
    %s83 = ssub.s32 %s17, %s24
    %p84 = scmp.eq.s32.totalorder %s83, 0
    %s86 = sadd.s32 %s85, 1
    %s87 = scalar_select %p84, %s85, %s86
    %p90 = pneg %p84
    %p91 = scmp.eq.s32.totalorder %s9, 3
    %p92 = por %p90, %p91
    %p93 = scmp.ne.s32.totalorder %s85, %s88
    %p94 = scmp.eq.s32.totalorder %s9, 0
    %p95 = por %p93, %p94
    %p96 = scmp.ne.s32.totalorder %s85, %s88
    %p97 = scmp.eq.s32.totalorder %s14, 3
    %p98 = por %p96, %p97
    %p99 = scmp.ne.s32.totalorder %s88, %s89
    %p100 = scmp.eq.s32.totalorder %s14, 0
    %p101 = por %p99, %p100
    %p102 = scmp.ne.s32.totalorder %s88, %s89
    %p103 = scmp.eq.s32.totalorder %s15, 3
    %p104 = por %p102, %p103
    %p106 = scmp.ne.s32.totalorder %s89, %s105
    %p107 = scmp.eq.s32.totalorder %s15, 0
    %p108 = por %p106, %p107
    %s109 = ssub.s32 %s16, %s28
    %s110 = ssub.s32 %s17, %s24
    %s111 = sor.u32 %s109, %s110
    %p112 = scmp.eq.s32.totalorder %s111, 0
    %s114 = sadd.s32 %s113, 1
    %s115 = scalar_select %p112, %s113, %s114
    %p118 = pneg %p112
    %p119 = scmp.eq.s32.totalorder %s9, 3
    %p120 = por %p118, %p119
    %p121 = scmp.ne.s32.totalorder %s113, %s116
    %p122 = scmp.eq.s32.totalorder %s9, 0
    %p123 = por %p121, %p122
    %p124 = scmp.ne.s32.totalorder %s113, %s116
    %p125 = scmp.eq.s32.totalorder %s14, 3
    %p126 = por %p124, %p125
    %p127 = scmp.ne.s32.totalorder %s116, %s117
    %p128 = scmp.eq.s32.totalorder %s14, 0
    %p129 = por %p127, %p128
    %p130 = scmp.ne.s32.totalorder %s116, %s117
    %p131 = scmp.eq.s32.totalorder %s15, 3
    %p132 = por %p130, %p131
    %p134 = scmp.ne.s32.totalorder %s117, %s133
    %p135 = scmp.eq.s32.totalorder %s15, 0
    %p136 = por %p134, %p135
    %p137 = scmp.le.s32.totalorder 1, %s9
    %p138 = scmp.lt.s32.totalorder %s9, 5
    %p139 = pnand %p137, %p138
    %p140 = pneg %p139
    // Predicated region
    $region9: #{decoder_forward.18} parent=5 // pred_check
      _
    $region10: #{decoder_forward.18} parent=5 // pred_check_branch
      %142 = sbr.rel (%p139) target = $region12
    $region11: #{decoder_forward.18} parent=5 // pred_region
      %s143 = ssub.s32 %s9, 1
    $region12: #{decoder_forward.18} parent=5 // pred_fallthru
      _
    %p144 = scmp.lt.s32.totalorder %s9, 4
    // Predicated region
    $region13: #{decoder_forward.18} parent=5 // pred_check
      %p145 = pneg %p144
    $region14: #{decoder_forward.18} parent=5 // pred_check_branch
      %147 = sbr.rel (%p145) target = $region16
    $region15: #{decoder_forward.18} parent=5 // pred_region
      // Predicated region
      $region17: #{decoder_forward.18} parent=15 // pred_check
        %p148 = pneg %p43
      $region18: #{decoder_forward.18} parent=15 // pred_check_branch
        %150 = sbr.rel (%p148) target = $region20
      $region19: #{decoder_forward.18} parent=15 // pred_region
        %p151 = scmp.lt.s32.totalorder %s16, 1
        %s152 = scalar_select %p151, %s16, 1
        %p153 = scmp.lt.s32.totalorder %s17, 1
        %s154 = scalar_select %p153, %s17, 1
        %s155 = smul.addr %s154, 2
        %s156 = smul.addr %s152, 4
        %s157 = sadd.s32 %s155, %s156
        %s158 = smul.addr %s157, 2
        %s159 = scalar_lea.vmem %s0, %s158
      $region20: #{decoder_forward.18} parent=15 // pred_fallthru
        _
      // Predicated region
      $region21: #{decoder_forward.18} parent=15 // pred_check
        %p160 = pneg %p69
      $region22: #{decoder_forward.18} parent=15 // pred_check_branch
        %162 = sbr.rel (%p160) target = $region24
      $region23: #{decoder_forward.18} parent=15 // pred_region
        %p163 = scmp.lt.s32.totalorder %s17, 1
        %s164 = scalar_select %p163, %s17, 1
        %s165 = smul.addr %s164, 4
        %s166 = scalar_lea.vmem %s1, %s165
      $region24: #{decoder_forward.18} parent=15 // pred_fallthru
        _
      // Predicated region
      $region25: #{decoder_forward.18} parent=15 // pred_check
        %p167 = pneg %p95
      $region26: #{decoder_forward.18} parent=15 // pred_check_branch
        %169 = sbr.rel (%p167) target = $region28
      $region27: #{decoder_forward.18} parent=15 // pred_region
        %p170 = scmp.lt.s32.totalorder %s17, 1
        %s171 = scalar_select %p170, %s17, 1
        %s172 = smul.addr %s171, 4
        %s173 = scalar_lea.vmem %s2, %s172
      $region28: #{decoder_forward.18} parent=15 // pred_fallthru
        _
    $region16: #{decoder_forward.18} parent=5 // pred_fallthru
      _
    %p174 = scmp.le.s32.totalorder 1, %s9
    %p175 = scmp.lt.s32.totalorder %s9, 5
    %p176 = pnand %p174, %p175
    %p177 = pneg %p176
    // Predicated region
    $region29: #{decoder_forward.18} parent=5 // pred_check
      _
    $region30: #{decoder_forward.18} parent=5 // pred_check_branch
      %179 = sbr.rel (%p176) target = $region32
    $region31: #{decoder_forward.18} parent=5 // pred_region
      %s180 = ssub.s32 %s9, 1
      %p181 = scmp.lt.s32.totalorder %s18, 1
      %s182 = scalar_select %p181, %s18, 1
      %p183 = scmp.lt.s32.totalorder %s19, 1
      %s184 = scalar_select %p183, %s19, 1
      %s185 = smul.addr %s184, 2
      %s186 = smul.addr %s182, 4
      %s187 = sadd.s32 %s185, %s186
      %s188 = smul.addr %s187, 2
      %s189 = scalar_lea.vmem %s0, %s188
      %p190 = pneg %p49
      %p191 = pneg %p46
      %p192 = scmp.lt.s32.totalorder %s19, 1
      %s193 = scalar_select %p192, %s19, 1
      %s194 = smul.addr %s193, 4
      %s195 = scalar_lea.vmem %s1, %s194
      %p196 = pneg %p75
      %p197 = pneg %p72
      %p198 = scmp.lt.s32.totalorder %s19, 1
      %s199 = scalar_select %p198, %s19, 1
      %s200 = smul.addr %s199, 4
      %s201 = scalar_lea.vmem %s2, %s200
      %p202 = pneg %p101
      %p203 = pneg %p98
      %p204 = pneg %p129
      %p205 = pneg %p126
      %p206 = scmp.lt.s32.totalorder %s18, 1
      %s207 = scalar_select %p206, %s18, 1
      %p208 = scmp.lt.s32.totalorder %s19, 1
      %s209 = scalar_select %p208, %s19, 1
      %s210 = smul.addr %s209, 2
      %s211 = smul.addr %s207, 4
      %s212 = sadd.s32 %s210, %s211
      %s213 = smul.addr %s212, 2
      %s214 = scalar_lea.vmem %s3, %s213
      %p215 = scmp.lt.s32.totalorder %s18, 1
      %s216 = scalar_select %p215, %s18, 1
      %p217 = scmp.lt.s32.totalorder %s19, 1
      %s218 = scalar_select %p217, %s19, 1
      %s219 = smul.addr %s218, 2
      %s220 = smul.addr %s216, 4
      %s221 = sadd.s32 %s219, %s220
      %s222 = smul.addr %s221, 2
      %s223 = scalar_lea.vmem %s0, %s222
      %p224 = scmp.lt.s32.totalorder %s19, 1
      %s225 = scalar_select %p224, %s19, 1
      %s226 = smul.addr %s225, 4
      %s227 = scalar_lea.vmem %s1, %s226
      %p228 = scmp.lt.s32.totalorder %s19, 1
      %s229 = scalar_select %p228, %s19, 1
      %s230 = smul.addr %s229, 4
      %s231 = scalar_lea.vmem %s2, %s230
      %p232 = scmp.lt.s32.totalorder %s18, 1
      %s233 = scalar_select %p232, %s18, 1
      %p234 = scmp.lt.s32.totalorder %s19, 1
      %s235 = scalar_select %p234, %s19, 1
      %s236 = smul.addr %s235, 2
      %s237 = smul.addr %s233, 4
      %s238 = sadd.s32 %s236, %s237
      %s239 = smul.addr %s238, 2
      %s240 = scalar_lea.vmem %s3, %s239
      %v241 = vld [vmem:[%s223] sm:$0xf]
      %v242 = vunpack.c.l.bf16 %v241
      %v243 = vld [vmem:[%s227] sm:$0xf]
      %v244 = vld [vmem:[%s231] sm:$0xf]
      %246 = vst [vmem:[#allocation1] ss:$2 sm:$0xff] %v242
      %v247 = vld.sshfl [vmem:[#allocation1] sm:$0xff pattern:$0x75316420]
      %v248 = vld.sshfl [vmem:[#allocation1 + $0x8] sm:$0xff pattern:$0x75316420]
      %vm251 = vcmask 1043456
      %v252 = vsel %vm251, %v247, 0.0
      %v253 = vsel %vm251, %v248, 0.0
      %v254 = vadd.f32 %v252, %v253
      %255 = vadd.xlane.f32.xlu0 %v254
      %v256 = vpop.xlane.xlu0 %255
      %v257 = vsel %vm251, %v256, 0.0
      %v258 = vrot.slane %v257, 4
      %v259 = vadd.f32 %v257, %v258
      %v260 = vrot.slane %v259, 2
      %v261 = vadd.f32 %v259, %v260
      %v262 = vrot.slane %v261, 1
      %v263 = vadd.f32 %v261, %v262
      %v264 = vrcp.pop 1024.0
      %v265 = vmul.f32 1024.0, %v264
      %v266 = vsub.f32 1.0, %v265
      %v267 = vmul.f32 %v264, %v266
      %v268 = vadd.f32 %v264, %v267
      %vm269 = vweird.f32 %v264
      %v270 = vsel %vm269, %v264, %v268
      %v271 = vmul.f32 %v263, %v270
      %v272 = vsub.f32 %v242, %v271
      %v273 = vmul.f32 %v272, %v272
      %275 = vst [vmem:[#allocation1] ss:$2 sm:$0xff] %v273
      %v276 = vld.sshfl [vmem:[#allocation1] sm:$0xff pattern:$0x75316420]
      %v277 = vld.sshfl [vmem:[#allocation1 + $0x8] sm:$0xff pattern:$0x75316420]
      %v280 = vsel %vm251, %v276, 0.0
      %v281 = vsel %vm251, %v277, 0.0
      %v282 = vadd.f32 %v280, %v281
      %283 = vadd.xlane.f32.xlu0 %v282
      %v284 = vpop.xlane.xlu0 %283
      %v285 = vsel %vm251, %v284, 0.0
      %v286 = vrot.slane %v285, 4
      %v287 = vadd.f32 %v285, %v286
      %v288 = vrot.slane %v287, 2
      %v289 = vadd.f32 %v287, %v288
      %v290 = vrot.slane %v289, 1
      %v291 = vadd.f32 %v289, %v290
      %v292 = vmul.f32 %v291, %v270
      %v293 = vadd.f32 %v292, 1e-05
      %v294 = vrsqrt.pop %v293
      %v295 = vmul.f32 %v294, %v293
      %v296 = vmul.f32 %v295, %v294
      %v297 = vmul.f32 0.5, %v296
      %v298 = vsub.f32 1.5, %v297
      %v299 = vmul.f32 %v294, %v298
      %vm300 = vweird.f32 %v293
      %vm301 = vweird.f32 %v294
      %vm302 = vmor %vm300, %vm301
      %v303 = vsel %vm302, %v294, %v299
      %v304 = vmul.f32 %v272, %v303
      %306 = vset.pattern.permute.xlu0 0
      %307 = vperm.xlu0 %306, %v243
      %v308 = vpop.permute.xlu0 %307
      %v310 = vunpack.c.l.s4 839922192
      %v311 = vunpack.c.0.s8 %v310
      %v312 = vperm.slane %v308, %v311
      %v314 = vmul.f32 %v304, %v312
      %316 = vset.pattern.permute.xlu0 0
      %317 = vperm.xlu0 %316, %v244
      %v318 = vpop.permute.xlu0 %317
      %v320 = vunpack.c.l.s4 839922192
      %v321 = vunpack.c.0.s8 %v320
      %v322 = vperm.slane %v318, %v321
      %v324 = vadd.f32 %v314, %v322
      %vm325 = vcmp.gt.f32.partialorder %v324, 0.0
      %v326 = vmin.f32 %v324, 0.0
      %v327 = vmul.f32 %v326, 1.442695
      %v328 = vpow.pop %v327
      %v329 = vsub.f32 %v328, 1.0
      %v330 = vsel %vm325, %v324, %v329
      %332 = vst [vmem:[#allocation1] ss:$2 sm:$0xff] %v330
      %v333 = vld.sshfl [vmem:[#allocation1] sm:$0xff pattern:$0x75316420]
      %v334 = vld.sshfl [vmem:[#allocation1 + $0x8] sm:$0xff pattern:$0x75316420]
      %v337 = vpack.c.bf16 %v334, %v333
      %v339 = vrot.slane %v337, 2
      %vm340 = vcmask 1041408
      %v343 = vsel %vm340, %v337, %v339
      %345 = vst [vmem:[%s240] sm:$0xf] %v343
      %p346 = scmp.lt.s32.totalorder %s18, 1
      %s347 = scalar_select %p346, %s18, 1
      %p348 = scmp.lt.s32.totalorder %s19, 1
      %s349 = scalar_select %p348, %s19, 1
      %s350 = smul.addr %s349, 2
      %s351 = smul.addr %s347, 4
      %s352 = sadd.s32 %s350, %s351
      %s353 = smul.addr %s352, 2
      %s354 = scalar_lea.vmem %s3, %s353
      // Predicated region
      $region33: #{decoder_forward.18} parent=31 // pred_check
        %p355 = pneg %p126
      $region34: #{decoder_forward.18} parent=31 // pred_check_branch
        %357 = sbr.rel (%p355) target = $region36
      $region35: #{decoder_forward.18} parent=31 // pred_region
        _
      $region36: #{decoder_forward.18} parent=31 // pred_fallthru
        _
    $region32: #{decoder_forward.18} parent=5 // pred_fallthru
      _
    %p358 = scmp.le.s32.totalorder 2, %s9
    // Predicated region
    $region37: #{decoder_forward.18} parent=5 // pred_check
      %p359 = pneg %p358
    $region38: #{decoder_forward.18} parent=5 // pred_check_branch
      %361 = sbr.rel (%p359) target = $region40
    $region39: #{decoder_forward.18} parent=5 // pred_region
      %s362 = ssub.s32 %s9, 2
      // Predicated region
      $region41: #{decoder_forward.18} parent=39 // pred_check
        %p363 = pneg %p132
      $region42: #{decoder_forward.18} parent=39 // pred_check_branch
        %365 = sbr.rel (%p363) target = $region44
      $region43: #{decoder_forward.18} parent=39 // pred_region
        %p366 = scmp.lt.s32.totalorder %s20, 1
        %s367 = scalar_select %p366, %s20, 1
        %p368 = scmp.lt.s32.totalorder %s21, 1
        %s369 = scalar_select %p368, %s21, 1
        %s370 = smul.addr %s369, 2
        %s371 = smul.addr %s367, 4
        %s372 = sadd.s32 %s370, %s371
        %s373 = smul.addr %s372, 2
        %s374 = scalar_lea.vmem %s3, %s373
      $region44: #{decoder_forward.18} parent=39 // pred_fallthru
        _
    $region40: #{decoder_forward.18} parent=5 // pred_fallthru
      _
  $region6: #{decoder_forward.18} parent=0 // loop_footer
    %s13 = sadd.s32 1, %s9
  $region7: #{decoder_forward.18} parent=0 // loop_footer_branch
    %8 = sbr.rel target = $region3
  $region8: #{decoder_forward.18} parent=0 // loop_exit
    _

// kernel: decoder_forward.19
$region0: #{decoder_forward.19}
  #allocation0 [shape = 'u32[]', space=smem, size = 0x4, offset = 0x4, fixed_abs, tag = 'smem constant byte address 0x4 - core index']
  #allocation1 [shape = 'u32[72,128]{1,0:T(1,128)}', space=vmem, size = 0x9000, scoped, tag = 'internal scratch']
  %s0 = inlined_call_operand.vmem [shape: bf16[2,8,324], index: 0, kind: input, shape index: {}]
  %s1 = inlined_call_operand.vmem [shape: bf16[9,3,8], index: 1, kind: input, shape index: {}]
  %s2 = inlined_call_operand.vmem [shape: f32[3,1], index: 2, kind: input, shape index: {}]
  %s3 = inlined_call_operand.hbm [shape: f32[2,3,16,16], index: 3, kind: output, shape index: {}]
  %s4 = sld [smem:[#allocation0]]
  $region45: #{decoder_forward.19} parent=0
    _
  %s6 = ssub.s32 1, %s4
  %s7 = scalar_select 0, %s6, %s4
  $region1: #{decoder_forward.19} parent=0
    #allocation2 [shape = 'u8[49152]{0}', space=vmem, size = 0xc000, scoped, tag = 'output window, operand 0']
    #allocation3 [shape = 's32[2]{0}', space=sflag, size = 0x8, scoped, tag = 'scoped memory for decoder_forward.19']
    %8 = vsyncpa [#allocation3], 0
    %s9 = scalar_lea.sflag [#allocation3], 1
    %10 = vsyncpa %s9, 0
    loop: start=0, step=1, limit=4
    $region2: #{decoder_forward.19} parent=1 // loop_pre_header
      _
    $region3: #{decoder_forward.19} parent=1 // loop_header
      %s12 = sphi 0, %s16
      %p13 = scmp.ge.s32.totalorder %s12, 4
      %s22 = sphi 0, %s24
      %s25 = sphi 0, %s22
      %s26 = sphi 0, %s25
      %s42 = sphi 0, %s26
      %s46 = sphi 0, %s46
      %s48 = sphi 0, %s46
      %s49 = sphi 0, %s48
      %s63 = sphi 0, %s49
      %s67 = sphi 0, %s67
      %s69 = sphi 0, %s67
      %s70 = sphi 0, %s69
      %s84 = sphi 0, %s70
      %s90 = sphi 0, %s92
      %s93 = sphi 0, %s90
      %s94 = sphi 0, %s93
      %s110 = sphi 0, %s94
    $region4: #{decoder_forward.19} parent=1 // loop_header_branch
      %15 = sbr.rel (%p13) target = $region8
    $region5: #{decoder_forward.19} parent=1 // loop_body
      %s17 = ssub.s32 %s12, 1
      %s18 = ssub.s32 %s12, 2
      %s19 = sadd.s32 %s12, 1
      %s20 = ssub.s32 %s12, %s19
      %p21 = scmp.eq.s32.totalorder %s20, 0
      %s23 = sadd.s32 %s22, 1
      %s24 = scalar_select %p21, %s22, %s23
      %p27 = pneg %p21
      %p28 = scmp.eq.s32.totalorder %s12, 1
      %p29 = por %p27, %p28
      %p30 = scmp.ne.s32.totalorder %s22, %s25
      %p31 = scmp.eq.s32.totalorder %s12, 0
      %p32 = por %p30, %p31
      %p33 = scmp.ne.s32.totalorder %s22, %s25
      %p34 = scmp.eq.s32.totalorder %s17, 1
      %p35 = por %p33, %p34
      %p36 = scmp.ne.s32.totalorder %s25, %s26
      %p37 = scmp.eq.s32.totalorder %s17, 0
      %p38 = por %p36, %p37
      %p39 = scmp.ne.s32.totalorder %s25, %s26
      %p40 = scmp.eq.s32.totalorder %s18, 1
      %p41 = por %p39, %p40
      %p43 = scmp.ne.s32.totalorder %s26, %s42
      %p44 = scmp.eq.s32.totalorder %s18, 0
      %p45 = por %p43, %p44
      %s47 = sadd.s32 %s46, 1
      %p50 = scmp.eq.s32.totalorder %s12, 1
      %p51 = scmp.ne.s32.totalorder %s46, %s48
      %p52 = scmp.eq.s32.totalorder %s12, 0
      %p53 = por %p51, %p52
      %p54 = scmp.ne.s32.totalorder %s46, %s48
      %p55 = scmp.eq.s32.totalorder %s17, 1
      %p56 = por %p54, %p55
      %p57 = scmp.ne.s32.totalorder %s48, %s49
      %p58 = scmp.eq.s32.totalorder %s17, 0
      %p59 = por %p57, %p58
      %p60 = scmp.ne.s32.totalorder %s48, %s49
      %p61 = scmp.eq.s32.totalorder %s18, 1
      %p62 = por %p60, %p61
      %p64 = scmp.ne.s32.totalorder %s49, %s63
      %p65 = scmp.eq.s32.totalorder %s18, 0
      %p66 = por %p64, %p65
      %s68 = sadd.s32 %s67, 1
      %p71 = scmp.eq.s32.totalorder %s12, 1
      %p72 = scmp.ne.s32.totalorder %s67, %s69
      %p73 = scmp.eq.s32.totalorder %s12, 0
      %p74 = por %p72, %p73
      %p75 = scmp.ne.s32.totalorder %s67, %s69
      %p76 = scmp.eq.s32.totalorder %s17, 1
      %p77 = por %p75, %p76
      %p78 = scmp.ne.s32.totalorder %s69, %s70
      %p79 = scmp.eq.s32.totalorder %s17, 0
      %p80 = por %p78, %p79
      %p81 = scmp.ne.s32.totalorder %s69, %s70
      %p82 = scmp.eq.s32.totalorder %s18, 1
      %p83 = por %p81, %p82
      %p85 = scmp.ne.s32.totalorder %s70, %s84
      %p86 = scmp.eq.s32.totalorder %s18, 0
      %p87 = por %p85, %p86
      %s88 = ssub.s32 %s12, %s19
      %p89 = scmp.eq.s32.totalorder %s88, 0
      %s91 = sadd.s32 %s90, 1
      %s92 = scalar_select %p89, %s90, %s91
      %p95 = pneg %p89
      %p96 = scmp.eq.s32.totalorder %s12, 1
      %p97 = por %p95, %p96
      %p98 = scmp.ne.s32.totalorder %s90, %s93
      %p99 = scmp.eq.s32.totalorder %s12, 0
      %p100 = por %p98, %p99
      %p101 = scmp.ne.s32.totalorder %s90, %s93
      %p102 = scmp.eq.s32.totalorder %s17, 1
      %p103 = por %p101, %p102
      %p104 = scmp.ne.s32.totalorder %s93, %s94
      %p105 = scmp.eq.s32.totalorder %s17, 0
      %p106 = por %p104, %p105
      %p107 = scmp.ne.s32.totalorder %s93, %s94
      %p108 = scmp.eq.s32.totalorder %s18, 1
      %p109 = por %p107, %p108
      %p111 = scmp.ne.s32.totalorder %s94, %s110
      %p112 = scmp.eq.s32.totalorder %s18, 0
      %p113 = por %p111, %p112
      %p114 = scmp.le.s32.totalorder 1, %s12
      %p115 = scmp.lt.s32.totalorder %s12, 3
      %p116 = pnand %p114, %p115
      %p117 = pneg %p116
      // Predicated region
      $region9: #{decoder_forward.19} parent=5 // pred_check
        _
      $region10: #{decoder_forward.19} parent=5 // pred_check_branch
        %119 = sbr.rel (%p116) target = $region12
      $region11: #{decoder_forward.19} parent=5 // pred_region
        %s120 = ssub.s32 %s12, 1
        // Predicated region
        $region13: #{decoder_forward.19} parent=11 // pred_check
          %p121 = pneg %p59
        $region14: #{decoder_forward.19} parent=11 // pred_check_branch
          %123 = sbr.rel (%p121) target = $region16
        $region15: #{decoder_forward.19} parent=11 // pred_region
          _
        $region16: #{decoder_forward.19} parent=11 // pred_fallthru
          _
        // Predicated region
        $region17: #{decoder_forward.19} parent=11 // pred_check
          %p124 = pneg %p80
        $region18: #{decoder_forward.19} parent=11 // pred_check_branch
          %126 = sbr.rel (%p124) target = $region20
        $region19: #{decoder_forward.19} parent=11 // pred_region
          _
        $region20: #{decoder_forward.19} parent=11 // pred_fallthru
          _
      $region12: #{decoder_forward.19} parent=5 // pred_fallthru
        _
      %p127 = scmp.lt.s32.totalorder %s12, 2
      // Predicated region
      $region21: #{decoder_forward.19} parent=5 // pred_check
        %p128 = pneg %p127
      $region22: #{decoder_forward.19} parent=5 // pred_check_branch
        %130 = sbr.rel (%p128) target = $region24
      $region23: #{decoder_forward.19} parent=5 // pred_region
        // Predicated region
        $region25: #{decoder_forward.19} parent=23 // pred_check
          %p131 = pneg %p32
        $region26: #{decoder_forward.19} parent=23 // pred_check_branch
          %133 = sbr.rel (%p131) target = $region28
        $region27: #{decoder_forward.19} parent=23 // pred_region
          %p134 = scmp.lt.s32.totalorder %s12, 1
          %s135 = scalar_select %p134, %s12, 1
          %s136 = smul.addr %s135, 3
          %s137 = smul.addr %s136, 4
          %s138 = scalar_lea.vmem %s0, %s137
        $region28: #{decoder_forward.19} parent=23 // pred_fallthru
          _
      $region24: #{decoder_forward.19} parent=5 // pred_fallthru
        _
      %p139 = scmp.le.s32.totalorder 1, %s12
      %p140 = scmp.lt.s32.totalorder %s12, 3
      %p141 = pnand %p139, %p140
      %p142 = pneg %p141
      // Predicated region
      $region29: #{decoder_forward.19} parent=5 // pred_check
        _
      $region30: #{decoder_forward.19} parent=5 // pred_check_branch
        %144 = sbr.rel (%p141) target = $region32
      $region31: #{decoder_forward.19} parent=5 // pred_region
        %s145 = ssub.s32 %s12, 1
        %p146 = scmp.lt.s32.totalorder %s17, 1
        %s147 = scalar_select %p146, %s17, 1
        %s148 = smul.addr %s147, 3
        %s149 = smul.addr %s148, 4
        %s150 = scalar_lea.vmem %s0, %s149
        %p151 = pneg %p38
        %p152 = pneg %p35
        %p153 = pneg %p59
        %p154 = pneg %p56
        %p155 = pneg %p80
        %p156 = pneg %p77
        %p157 = pneg %p106
        %p158 = pneg %p103
        %s159 = sand.u32 %s93, 1
        %s160 = scalar_lea.sflag [#allocation3], %s159
        %s161 = sand.u32 %s93, 1
        %s162 = smul.addr %s161, 48
        %s163 = scalar_lea.vmem [#allocation2], %s162
        %p164 = scmp.lt.s32.totalorder %s17, 1
        %s165 = scalar_select %p164, %s17, 1
        %s166 = smul.addr %s165, 3
        %s167 = smul.addr %s166, 4
        %s168 = scalar_lea.vmem %s0, %s167
        %v170 = vld [vmem:[%s1] sm:$0x3]
        %v171 = vld [vmem:[%s168] sm:$0xff]
        %v172 = vld [vmem:[%s168 + $0x8] sm:$0xf]
        %s173 = scalar_lea.vmem %s1, 2
        %v174 = vld [vmem:[%s173] sm:$0x3]
        %v177 = vunpack.c.l.b16 %v171
        %v178 = vunpack.c.h.b16 %v171
        %v179 = vunpack.c.l.b16 %v172
        %v180 = vpack.c.b16 %v177, %v177
        %v181 = vpack.c.b16 %v178, %v178
        %v182 = vpack.c.b16 %v179, %v179
        %183 = vrot.lane.b32.xlu0 %v180, 127
        %v184 = vpop.permute.xlu0 %183
        %185 = vrot.lane.b32.xlu0 %v181, 127
        %v186 = vpop.permute.xlu0 %185
        %187 = vrot.lane.b32.xlu0 %v182, 127
        %v188 = vpop.permute.xlu0 %187
        %vm189 = vcmask 1039360
        %v190 = vsel %vm189, %v184, %v186
        %v191 = vsel %vm189, %v186, %v188
        %vm192 = vcmask 64512
        %v194 = vsel %vm192, %v174, 0
        %vm196 = vcmask 1043456
        %v198 = vsel %vm196, %v190, 0
        %v201 = vsel %vm196, %v191, 0
        %v204 = vsel %vm196, %v188, 0
        %206 = vmatpush.bf16.msra.mxu0 0
        %207 = vmatpush.bf16.msra.mxu0 0
        %208 = vmatpush.bf16.msra.mxu0 0
        %209 = vmatpush.bf16.msra.mxu0 0
        %210 = vmatpush.bf16.msra.mxu0 0
        %211 = vmatpush.bf16.msra.mxu0 0
        %212 = vmatpush.bf16.msra.mxu0 0
        %213 = vmatpush.bf16.msra.mxu0 %v198
        %214 = vmatmul.bf16.gmra.mxu0 %v194
        %v215 = vpop.f32.mrf.mxu0
        %v216 = vadd.f32 0.0, %v215
        %v217 = vpop.f32.mrf.mxu0
        %218 = vdwg.mxu0
        %219 = vmatpush.bf16.msra.mxu0 0
        %220 = vmatpush.bf16.msra.mxu0 0
        %221 = vmatpush.bf16.msra.mxu0 0
        %222 = vmatpush.bf16.msra.mxu0 0
        %223 = vmatpush.bf16.msra.mxu0 0
        %224 = vmatpush.bf16.msra.mxu0 0
        %225 = vmatpush.bf16.msra.mxu0 0
        %226 = vmatpush.bf16.msra.mxu0 %v201
        %227 = vmatmul.bf16.gmra.mxu0 %v194
        %v228 = vpop.f32.mrf.mxu0
        %v229 = vadd.f32 0.0, %v228
        %v230 = vpop.f32.mrf.mxu0
        %231 = vdwg.mxu0
        %232 = vmatpush.bf16.msra.mxu0 0
        %233 = vmatpush.bf16.msra.mxu0 0
        %234 = vmatpush.bf16.msra.mxu0 0
        %235 = vmatpush.bf16.msra.mxu0 0
        %236 = vmatpush.bf16.msra.mxu0 0
        %237 = vmatpush.bf16.msra.mxu0 0
        %238 = vmatpush.bf16.msra.mxu0 0
        %239 = vmatpush.bf16.msra.mxu0 %v204
        %240 = vmatmul.bf16.gmra.mxu0 %v194
        %v241 = vpop.f32.mrf.mxu0
        %v242 = vadd.f32 0.0, %v241
        %v243 = vpop.f32.mrf.mxu0
        %244 = vdwg.mxu0
        %v246 = vsel %vm192, %v170, 0
        %v249 = vsel %vm196, %v180, 0
        %v252 = vsel %vm196, %v181, 0
        %v255 = vsel %vm196, %v182, 0
        %257 = vmatpush.bf16.msra.mxu0 0
        %258 = vmatpush.bf16.msra.mxu0 0
        %259 = vmatpush.bf16.msra.mxu0 0
        %260 = vmatpush.bf16.msra.mxu0 0
        %261 = vmatpush.bf16.msra.mxu0 0
        %262 = vmatpush.bf16.msra.mxu0 0
        %263 = vmatpush.bf16.msra.mxu0 0
        %264 = vmatpush.bf16.msra.mxu0 %v249
        %265 = vmatmul.bf16.gmra.mxu0 %v246
        %v266 = vpop.f32.mrf.mxu0
        %v267 = vadd.f32 %v216, %v266
        %v268 = vpop.f32.mrf.mxu0
        %269 = vdwg.mxu0
        %270 = vmatpush.bf16.msra.mxu0 0
        %271 = vmatpush.bf16.msra.mxu0 0
        %272 = vmatpush.bf16.msra.mxu0 0
        %273 = vmatpush.bf16.msra.mxu0 0
        %274 = vmatpush.bf16.msra.mxu0 0
        %275 = vmatpush.bf16.msra.mxu0 0
        %276 = vmatpush.bf16.msra.mxu0 0
        %277 = vmatpush.bf16.msra.mxu0 %v252
        %278 = vmatmul.bf16.gmra.mxu0 %v246
        %v279 = vpop.f32.mrf.mxu0
        %v280 = vadd.f32 %v229, %v279
        %v281 = vpop.f32.mrf.mxu0
        %282 = vdwg.mxu0
        %283 = vmatpush.bf16.msra.mxu0 0
        %284 = vmatpush.bf16.msra.mxu0 0
        %285 = vmatpush.bf16.msra.mxu0 0
        %286 = vmatpush.bf16.msra.mxu0 0
        %287 = vmatpush.bf16.msra.mxu0 0
        %288 = vmatpush.bf16.msra.mxu0 0
        %289 = vmatpush.bf16.msra.mxu0 0
        %290 = vmatpush.bf16.msra.mxu0 %v255
        %291 = vmatmul.bf16.gmra.mxu0 %v246
        %v292 = vpop.f32.mrf.mxu0
        %v293 = vadd.f32 %v242, %v292
        %v294 = vpop.f32.mrf.mxu0
        %295 = vdwg.mxu0
        %s296 = scalar_lea.vmem %s1, 4
        %v297 = vld [vmem:[%s296] sm:$0x3]
        %298 = vrot.lane.b32.xlu0 %v180, 126
        %v299 = vpop.permute.xlu0 %298
        %300 = vrot.lane.b32.xlu0 %v181, 126
        %v301 = vpop.permute.xlu0 %300
        %302 = vrot.lane.b32.xlu0 %v182, 126
        %v303 = vpop.permute.xlu0 %302
        %vm304 = vcmask 1031168
        %v305 = vsel %vm304, %v299, %v301
        %v306 = vsel %vm304, %v301, %v303
        %v308 = vsel %vm192, %v297, 0
        %v311 = vsel %vm196, %v305, 0
        %v314 = vsel %vm196, %v306, 0
        %v317 = vsel %vm196, %v303, 0
        %319 = vmatpush.bf16.msra.mxu0 0
        %320 = vmatpush.bf16.msra.mxu0 0
        %321 = vmatpush.bf16.msra.mxu0 0
        %322 = vmatpush.bf16.msra.mxu0 0
        %323 = vmatpush.bf16.msra.mxu0 0
        %324 = vmatpush.bf16.msra.mxu0 0
        %325 = vmatpush.bf16.msra.mxu0 0
        %326 = vmatpush.bf16.msra.mxu0 %v311
        %327 = vmatmul.bf16.gmra.mxu0 %v308
        %v328 = vpop.f32.mrf.mxu0
        %v329 = vadd.f32 0.0, %v328
        %v330 = vpop.f32.mrf.mxu0
        %331 = vdwg.mxu0
        %332 = vmatpush.bf16.msra.mxu0 0
        %333 = vmatpush.bf16.msra.mxu0 0
        %334 = vmatpush.bf16.msra.mxu0 0
        %335 = vmatpush.bf16.msra.mxu0 0
        %336 = vmatpush.bf16.msra.mxu0 0
        %337 = vmatpush.bf16.msra.mxu0 0
        %338 = vmatpush.bf16.msra.mxu0 0
        %339 = vmatpush.bf16.msra.mxu0 %v314
        %340 = vmatmul.bf16.gmra.mxu0 %v308
        %v341 = vpop.f32.mrf.mxu0
        %v342 = vadd.f32 0.0, %v341
        %v343 = vpop.f32.mrf.mxu0
        %344 = vdwg.mxu0
        %345 = vmatpush.bf16.msra.mxu0 0
        %346 = vmatpush.bf16.msra.mxu0 0
        %347 = vmatpush.bf16.msra.mxu0 0
        %348 = vmatpush.bf16.msra.mxu0 0
        %349 = vmatpush.bf16.msra.mxu0 0
        %350 = vmatpush.bf16.msra.mxu0 0
        %351 = vmatpush.bf16.msra.mxu0 0
        %352 = vmatpush.bf16.msra.mxu0 %v317
        %353 = vmatmul.bf16.gmra.mxu0 %v308
        %v354 = vpop.f32.mrf.mxu0
        %v355 = vadd.f32 0.0, %v354
        %v356 = vpop.f32.mrf.mxu0
        %357 = vdwg.mxu0
        %v358 = vadd.f32 %v267, %v329
        %v359 = vadd.f32 %v280, %v342
        %v360 = vadd.f32 %v293, %v355
        %s361 = scalar_lea.vmem %s1, 6
        %v362 = vld [vmem:[%s361] sm:$0x3]
        %363 = vrot.lane.b32.xlu0 %v180, 110
        %v364 = vpop.permute.xlu0 %363
        %365 = vrot.lane.b32.xlu0 %v181, 110
        %v366 = vpop.permute.xlu0 %365
        %367 = vrot.lane.b32.xlu0 %v182, 110
        %v368 = vpop.permute.xlu0 %367
        %vm369 = vcmask 900096
        %v370 = vsel %vm369, %v364, %v366
        %v371 = vsel %vm369, %v366, %v368
        %v373 = vsel %vm192, %v362, 0
        %v376 = vsel %vm196, %v370, 0
        %v379 = vsel %vm196, %v371, 0
        %v382 = vsel %vm196, %v368, 0
        %384 = vmatpush.bf16.msra.mxu0 0
        %385 = vmatpush.bf16.msra.mxu0 0
        %386 = vmatpush.bf16.msra.mxu0 0
        %387 = vmatpush.bf16.msra.mxu0 0
        %388 = vmatpush.bf16.msra.mxu0 0
        %389 = vmatpush.bf16.msra.mxu0 0
        %390 = vmatpush.bf16.msra.mxu0 0
        %391 = vmatpush.bf16.msra.mxu0 %v376
        %392 = vmatmul.bf16.gmra.mxu0 %v373
        %v393 = vpop.f32.mrf.mxu0
        %v394 = vadd.f32 0.0, %v393
        %v395 = vpop.f32.mrf.mxu0
        %396 = vdwg.mxu0
        %397 = vmatpush.bf16.msra.mxu0 0
        %398 = vmatpush.bf16.msra.mxu0 0
        %399 = vmatpush.bf16.msra.mxu0 0
        %400 = vmatpush.bf16.msra.mxu0 0
        %401 = vmatpush.bf16.msra.mxu0 0
        %402 = vmatpush.bf16.msra.mxu0 0
        %403 = vmatpush.bf16.msra.mxu0 0
        %404 = vmatpush.bf16.msra.mxu0 %v379
        %405 = vmatmul.bf16.gmra.mxu0 %v373
        %v406 = vpop.f32.mrf.mxu0
        %v407 = vadd.f32 0.0, %v406
        %v408 = vpop.f32.mrf.mxu0
        %409 = vdwg.mxu0
        %410 = vmatpush.bf16.msra.mxu0 0
        %411 = vmatpush.bf16.msra.mxu0 0
        %412 = vmatpush.bf16.msra.mxu0 0
        %413 = vmatpush.bf16.msra.mxu0 0
        %414 = vmatpush.bf16.msra.mxu0 0
        %415 = vmatpush.bf16.msra.mxu0 0
        %416 = vmatpush.bf16.msra.mxu0 0
        %417 = vmatpush.bf16.msra.mxu0 %v382
        %418 = vmatmul.bf16.gmra.mxu0 %v373
        %v419 = vpop.f32.mrf.mxu0
        %v420 = vadd.f32 0.0, %v419
        %v421 = vpop.f32.mrf.mxu0
        %422 = vdwg.mxu0
        %v423 = vadd.f32 %v358, %v394
        %v424 = vadd.f32 %v359, %v407
        %v425 = vadd.f32 %v360, %v420
        %s426 = scalar_lea.vmem %s1, 8
        %v427 = vld [vmem:[%s426] sm:$0x3]
        %428 = vrot.lane.b32.xlu0 %v180, 109
        %v429 = vpop.permute.xlu0 %428
        %430 = vrot.lane.b32.xlu0 %v181, 109
        %v431 = vpop.permute.xlu0 %430
        %432 = vrot.lane.b32.xlu0 %v182, 109
        %v433 = vpop.permute.xlu0 %432
        %vm434 = vcmask 891904
        %v435 = vsel %vm434, %v429, %v431
        %v436 = vsel %vm434, %v431, %v433
        %v438 = vsel %vm192, %v427, 0
        %v441 = vsel %vm196, %v435, 0
        %v444 = vsel %vm196, %v436, 0
        %v447 = vsel %vm196, %v433, 0
        %449 = vmatpush.bf16.msra.mxu0 0
        %450 = vmatpush.bf16.msra.mxu0 0
        %451 = vmatpush.bf16.msra.mxu0 0
        %452 = vmatpush.bf16.msra.mxu0 0
        %453 = vmatpush.bf16.msra.mxu0 0
        %454 = vmatpush.bf16.msra.mxu0 0
        %455 = vmatpush.bf16.msra.mxu0 0
        %456 = vmatpush.bf16.msra.mxu0 %v441
        %457 = vmatmul.bf16.gmra.mxu0 %v438
        %v458 = vpop.f32.mrf.mxu0
        %v459 = vadd.f32 0.0, %v458
        %v460 = vpop.f32.mrf.mxu0
        %461 = vdwg.mxu0
        %462 = vmatpush.bf16.msra.mxu0 0
        %463 = vmatpush.bf16.msra.mxu0 0
        %464 = vmatpush.bf16.msra.mxu0 0
        %465 = vmatpush.bf16.msra.mxu0 0
        %466 = vmatpush.bf16.msra.mxu0 0
        %467 = vmatpush.bf16.msra.mxu0 0
        %468 = vmatpush.bf16.msra.mxu0 0
        %469 = vmatpush.bf16.msra.mxu0 %v444
        %470 = vmatmul.bf16.gmra.mxu0 %v438
        %v471 = vpop.f32.mrf.mxu0
        %v472 = vadd.f32 0.0, %v471
        %v473 = vpop.f32.mrf.mxu0
        %474 = vdwg.mxu0
        %475 = vmatpush.bf16.msra.mxu0 0
        %476 = vmatpush.bf16.msra.mxu0 0
        %477 = vmatpush.bf16.msra.mxu0 0
        %478 = vmatpush.bf16.msra.mxu0 0
        %479 = vmatpush.bf16.msra.mxu0 0
        %480 = vmatpush.bf16.msra.mxu0 0
        %481 = vmatpush.bf16.msra.mxu0 0
        %482 = vmatpush.bf16.msra.mxu0 %v447
        %483 = vmatmul.bf16.gmra.mxu0 %v438
        %v484 = vpop.f32.mrf.mxu0
        %v485 = vadd.f32 0.0, %v484
        %v486 = vpop.f32.mrf.mxu0
        %487 = vdwg.mxu0
        %v488 = vadd.f32 %v423, %v459
        %v489 = vadd.f32 %v424, %v472
        %v490 = vadd.f32 %v425, %v485
        %s491 = scalar_lea.vmem %s1, 10
        %v492 = vld [vmem:[%s491] sm:$0x3]
        %493 = vrot.lane.b32.xlu0 %v180, 108
        %v494 = vpop.permute.xlu0 %493
        %495 = vrot.lane.b32.xlu0 %v181, 108
        %v496 = vpop.permute.xlu0 %495
        %497 = vrot.lane.b32.xlu0 %v182, 108
        %v498 = vpop.permute.xlu0 %497
        %vm499 = vcmask 883712
        %v500 = vsel %vm499, %v494, %v496
        %v501 = vsel %vm499, %v496, %v498
        %v503 = vsel %vm192, %v492, 0
        %v506 = vsel %vm196, %v500, 0
        %v509 = vsel %vm196, %v501, 0
        %v512 = vsel %vm196, %v498, 0
        %514 = vmatpush.bf16.msra.mxu0 0
        %515 = vmatpush.bf16.msra.mxu0 0
        %516 = vmatpush.bf16.msra.mxu0 0
        %517 = vmatpush.bf16.msra.mxu0 0
        %518 = vmatpush.bf16.msra.mxu0 0
        %519 = vmatpush.bf16.msra.mxu0 0
        %520 = vmatpush.bf16.msra.mxu0 0
        %521 = vmatpush.bf16.msra.mxu0 %v506
        %522 = vmatmul.bf16.gmra.mxu0 %v503
        %v523 = vpop.f32.mrf.mxu0
        %v524 = vadd.f32 0.0, %v523
        %v525 = vpop.f32.mrf.mxu0
        %526 = vdwg.mxu0
        %527 = vmatpush.bf16.msra.mxu0 0
        %528 = vmatpush.bf16.msra.mxu0 0
        %529 = vmatpush.bf16.msra.mxu0 0
        %530 = vmatpush.bf16.msra.mxu0 0
        %531 = vmatpush.bf16.msra.mxu0 0
        %532 = vmatpush.bf16.msra.mxu0 0
        %533 = vmatpush.bf16.msra.mxu0 0
        %534 = vmatpush.bf16.msra.mxu0 %v509
        %535 = vmatmul.bf16.gmra.mxu0 %v503
        %v536 = vpop.f32.mrf.mxu0
        %v537 = vadd.f32 0.0, %v536
        %v538 = vpop.f32.mrf.mxu0
        %539 = vdwg.mxu0
        %540 = vmatpush.bf16.msra.mxu0 0
        %541 = vmatpush.bf16.msra.mxu0 0
        %542 = vmatpush.bf16.msra.mxu0 0
        %543 = vmatpush.bf16.msra.mxu0 0
        %544 = vmatpush.bf16.msra.mxu0 0
        %545 = vmatpush.bf16.msra.mxu0 0
        %546 = vmatpush.bf16.msra.mxu0 0
        %547 = vmatpush.bf16.msra.mxu0 %v512
        %548 = vmatmul.bf16.gmra.mxu0 %v503
        %v549 = vpop.f32.mrf.mxu0
        %v550 = vadd.f32 0.0, %v549
        %v551 = vpop.f32.mrf.mxu0
        %552 = vdwg.mxu0
        %v553 = vadd.f32 %v488, %v524
        %v554 = vadd.f32 %v489, %v537
        %v555 = vadd.f32 %v490, %v550
        %s556 = scalar_lea.vmem %s1, 12
        %v557 = vld [vmem:[%s556] sm:$0x3]
        %558 = vrot.lane.b32.xlu0 %v180, 92
        %v559 = vpop.permute.xlu0 %558
        %560 = vrot.lane.b32.xlu0 %v181, 92
        %v561 = vpop.permute.xlu0 %560
        %562 = vrot.lane.b32.xlu0 %v182, 92
        %v563 = vpop.permute.xlu0 %562
        %vm564 = vcmask 752640
        %v565 = vsel %vm564, %v559, %v561
        %v566 = vsel %vm564, %v561, %v563
        %v568 = vsel %vm192, %v557, 0
        %v571 = vsel %vm196, %v565, 0
        %v574 = vsel %vm196, %v566, 0
        %v577 = vsel %vm196, %v563, 0
        %579 = vmatpush.bf16.msra.mxu0 0
        %580 = vmatpush.bf16.msra.mxu0 0
        %581 = vmatpush.bf16.msra.mxu0 0
        %582 = vmatpush.bf16.msra.mxu0 0
        %583 = vmatpush.bf16.msra.mxu0 0
        %584 = vmatpush.bf16.msra.mxu0 0
        %585 = vmatpush.bf16.msra.mxu0 0
        %586 = vmatpush.bf16.msra.mxu0 %v571
        %587 = vmatmul.bf16.gmra.mxu0 %v568
        %v588 = vpop.f32.mrf.mxu0
        %v589 = vadd.f32 0.0, %v588
        %v590 = vpop.f32.mrf.mxu0
        %591 = vdwg.mxu0
        %592 = vmatpush.bf16.msra.mxu0 0
        %593 = vmatpush.bf16.msra.mxu0 0
        %594 = vmatpush.bf16.msra.mxu0 0
        %595 = vmatpush.bf16.msra.mxu0 0
        %596 = vmatpush.bf16.msra.mxu0 0
        %597 = vmatpush.bf16.msra.mxu0 0
        %598 = vmatpush.bf16.msra.mxu0 0
        %599 = vmatpush.bf16.msra.mxu0 %v574
        %600 = vmatmul.bf16.gmra.mxu0 %v568
        %v601 = vpop.f32.mrf.mxu0
        %v602 = vadd.f32 0.0, %v601
        %v603 = vpop.f32.mrf.mxu0
        %604 = vdwg.mxu0
        %605 = vmatpush.bf16.msra.mxu0 0
        %606 = vmatpush.bf16.msra.mxu0 0
        %607 = vmatpush.bf16.msra.mxu0 0
        %608 = vmatpush.bf16.msra.mxu0 0
        %609 = vmatpush.bf16.msra.mxu0 0
        %610 = vmatpush.bf16.msra.mxu0 0
        %611 = vmatpush.bf16.msra.mxu0 0
        %612 = vmatpush.bf16.msra.mxu0 %v577
        %613 = vmatmul.bf16.gmra.mxu0 %v568
        %v614 = vpop.f32.mrf.mxu0
        %v615 = vadd.f32 0.0, %v614
        %v616 = vpop.f32.mrf.mxu0
        %617 = vdwg.mxu0
        %v618 = vadd.f32 %v553, %v589
        %v619 = vadd.f32 %v554, %v602
        %v620 = vadd.f32 %v555, %v615
        %s621 = scalar_lea.vmem %s1, 14
        %v622 = vld [vmem:[%s621] sm:$0x3]
        %623 = vrot.lane.b32.xlu0 %v180, 91
        %v624 = vpop.permute.xlu0 %623
        %625 = vrot.lane.b32.xlu0 %v181, 91
        %v626 = vpop.permute.xlu0 %625
        %627 = vrot.lane.b32.xlu0 %v182, 91
        %v628 = vpop.permute.xlu0 %627
        %vm629 = vcmask 744448
        %v630 = vsel %vm629, %v624, %v626
        %v631 = vsel %vm629, %v626, %v628
        %v633 = vsel %vm192, %v622, 0
        %v636 = vsel %vm196, %v630, 0
        %v639 = vsel %vm196, %v631, 0
        %v642 = vsel %vm196, %v628, 0
        %644 = vmatpush.bf16.msra.mxu0 0
        %645 = vmatpush.bf16.msra.mxu0 0
        %646 = vmatpush.bf16.msra.mxu0 0
        %647 = vmatpush.bf16.msra.mxu0 0
        %648 = vmatpush.bf16.msra.mxu0 0
        %649 = vmatpush.bf16.msra.mxu0 0
        %650 = vmatpush.bf16.msra.mxu0 0
        %651 = vmatpush.bf16.msra.mxu0 %v636
        %652 = vmatmul.bf16.gmra.mxu0 %v633
        %v653 = vpop.f32.mrf.mxu0
        %v654 = vadd.f32 0.0, %v653
        %v655 = vpop.f32.mrf.mxu0
        %656 = vdwg.mxu0
        %657 = vmatpush.bf16.msra.mxu0 0
        %658 = vmatpush.bf16.msra.mxu0 0
        %659 = vmatpush.bf16.msra.mxu0 0
        %660 = vmatpush.bf16.msra.mxu0 0
        %661 = vmatpush.bf16.msra.mxu0 0
        %662 = vmatpush.bf16.msra.mxu0 0
        %663 = vmatpush.bf16.msra.mxu0 0
        %664 = vmatpush.bf16.msra.mxu0 %v639
        %665 = vmatmul.bf16.gmra.mxu0 %v633
        %v666 = vpop.f32.mrf.mxu0
        %v667 = vadd.f32 0.0, %v666
        %v668 = vpop.f32.mrf.mxu0
        %669 = vdwg.mxu0
        %670 = vmatpush.bf16.msra.mxu0 0
        %671 = vmatpush.bf16.msra.mxu0 0
        %672 = vmatpush.bf16.msra.mxu0 0
        %673 = vmatpush.bf16.msra.mxu0 0
        %674 = vmatpush.bf16.msra.mxu0 0
        %675 = vmatpush.bf16.msra.mxu0 0
        %676 = vmatpush.bf16.msra.mxu0 0
        %677 = vmatpush.bf16.msra.mxu0 %v642
        %678 = vmatmul.bf16.gmra.mxu0 %v633
        %v679 = vpop.f32.mrf.mxu0
        %v680 = vadd.f32 0.0, %v679
        %v681 = vpop.f32.mrf.mxu0
        %682 = vdwg.mxu0
        %v683 = vadd.f32 %v618, %v654
        %v684 = vadd.f32 %v619, %v667
        %v685 = vadd.f32 %v620, %v680
        %s686 = scalar_lea.vmem %s1, 16
        %v687 = vld [vmem:[%s686] sm:$0x3]
        %688 = vrot.lane.b32.xlu0 %v180, 90
        %v689 = vpop.permute.xlu0 %688
        %690 = vrot.lane.b32.xlu0 %v181, 90
        %v691 = vpop.permute.xlu0 %690
        %692 = vrot.lane.b32.xlu0 %v182, 90
        %v693 = vpop.permute.xlu0 %692
        %vm694 = vcmask 736256
        %v695 = vsel %vm694, %v689, %v691
        %v696 = vsel %vm694, %v691, %v693
        %v698 = vsel %vm192, %v687, 0
        %v701 = vsel %vm196, %v695, 0
        %v704 = vsel %vm196, %v696, 0
        %v707 = vsel %vm196, %v693, 0
        %709 = vmatpush.bf16.msra.mxu0 0
        %710 = vmatpush.bf16.msra.mxu0 0
        %711 = vmatpush.bf16.msra.mxu0 0
        %712 = vmatpush.bf16.msra.mxu0 0
        %713 = vmatpush.bf16.msra.mxu0 0
        %714 = vmatpush.bf16.msra.mxu0 0
        %715 = vmatpush.bf16.msra.mxu0 0
        %716 = vmatpush.bf16.msra.mxu0 %v701
        %717 = vmatmul.bf16.gmra.mxu0 %v698
        %v718 = vpop.f32.mrf.mxu0
        %v719 = vadd.f32 0.0, %v718
        %v720 = vpop.f32.mrf.mxu0
        %721 = vdwg.mxu0
        %722 = vmatpush.bf16.msra.mxu0 0
        %723 = vmatpush.bf16.msra.mxu0 0
        %724 = vmatpush.bf16.msra.mxu0 0
        %725 = vmatpush.bf16.msra.mxu0 0
        %726 = vmatpush.bf16.msra.mxu0 0
        %727 = vmatpush.bf16.msra.mxu0 0
        %728 = vmatpush.bf16.msra.mxu0 0
        %729 = vmatpush.bf16.msra.mxu0 %v704
        %730 = vmatmul.bf16.gmra.mxu0 %v698
        %v731 = vpop.f32.mrf.mxu0
        %v732 = vadd.f32 0.0, %v731
        %v733 = vpop.f32.mrf.mxu0
        %734 = vdwg.mxu0
        %735 = vmatpush.bf16.msra.mxu0 0
        %736 = vmatpush.bf16.msra.mxu0 0
        %737 = vmatpush.bf16.msra.mxu0 0
        %738 = vmatpush.bf16.msra.mxu0 0
        %739 = vmatpush.bf16.msra.mxu0 0
        %740 = vmatpush.bf16.msra.mxu0 0
        %741 = vmatpush.bf16.msra.mxu0 0
        %742 = vmatpush.bf16.msra.mxu0 %v707
        %743 = vmatmul.bf16.gmra.mxu0 %v698
        %v744 = vpop.f32.mrf.mxu0
        %v745 = vadd.f32 0.0, %v744
        %v746 = vpop.f32.mrf.mxu0
        %747 = vdwg.mxu0
        %v748 = vadd.f32 %v683, %v719
        %v749 = vadd.f32 %v684, %v732
        %v750 = vadd.f32 %v685, %v745
        %v751 = vld [vmem:[%s2] sm:$0x7]
        %753 = vset.pattern.permute.xlu0 0
        %754 = vperm.xlu0 %753, %v751
        %v755 = vpop.permute.xlu0 %754
        %v757 = vadd.f32 %v748, %v755
        %v758 = vadd.f32 %v749, %v755
        %v759 = vadd.f32 %v750, %v755
        %v761 = vrot.slane %v757, 1
        %v762 = vrot.slane %v757, 2
        %vm765 = vcmask 122880
        %766 = vst.msk [vmem:[%s163] sm:$0x1] %vm765, %v757
        %767 = vst.msk [vmem:[%s163 + $0x10] sm:$0x1] %vm765, %v761
        %768 = vst.msk [vmem:[%s163 + $0x20] sm:$0x1] %vm765, %v762
        %v769 = vperm.slane %v757, 0
        %v770 = vperm.slane %v761, 0
        %v771 = vperm.slane %v762, 0
        %772 = vrot.lane.b32.xlu0 %v769, 110
        %v773 = vpop.permute.xlu0 %772
        %774 = vrot.lane.b32.xlu0 %v770, 110
        %v775 = vpop.permute.xlu0 %774
        %776 = vrot.lane.b32.xlu0 %v771, 110
        %v777 = vpop.permute.xlu0 %776
        %781 = vst.msk [vmem:[%s163 + $0x1] sm:$0x1] %vm765, %v773
        %782 = vst.msk [vmem:[%s163 + $0x11] sm:$0x1] %vm765, %v775
        %783 = vst.msk [vmem:[%s163 + $0x21] sm:$0x1] %vm765, %v777
        %784 = vrot.lane.b32.xlu0 %v769, 92
        %v785 = vpop.permute.xlu0 %784
        %786 = vrot.lane.b32.xlu0 %v770, 92
        %v787 = vpop.permute.xlu0 %786
        %788 = vrot.lane.b32.xlu0 %v771, 92
        %v789 = vpop.permute.xlu0 %788
        %793 = vst.msk [vmem:[%s163 + $0x2] sm:$0x1] %vm765, %v785
        %794 = vst.msk [vmem:[%s163 + $0x12] sm:$0x1] %vm765, %v787
        %795 = vst.msk [vmem:[%s163 + $0x22] sm:$0x1] %vm765, %v789
        %796 = vrot.lane.b32.xlu0 %v769, 74
        %v797 = vpop.permute.xlu0 %796
        %798 = vrot.lane.b32.xlu0 %v770, 74
        %v799 = vpop.permute.xlu0 %798
        %800 = vrot.lane.b32.xlu0 %v771, 74
        %v801 = vpop.permute.xlu0 %800
        %805 = vst.msk [vmem:[%s163 + $0x3] sm:$0x1] %vm765, %v797
        %806 = vst.msk [vmem:[%s163 + $0x13] sm:$0x1] %vm765, %v799
        %807 = vst.msk [vmem:[%s163 + $0x23] sm:$0x1] %vm765, %v801
        %808 = vrot.lane.b32.xlu0 %v769, 56
        %v809 = vpop.permute.xlu0 %808
        %810 = vrot.lane.b32.xlu0 %v770, 56
        %v811 = vpop.permute.xlu0 %810
        %812 = vrot.lane.b32.xlu0 %v771, 56
        %v813 = vpop.permute.xlu0 %812
        %817 = vst.msk [vmem:[%s163 + $0x4] sm:$0x1] %vm765, %v809
        %818 = vst.msk [vmem:[%s163 + $0x14] sm:$0x1] %vm765, %v811
        %819 = vst.msk [vmem:[%s163 + $0x24] sm:$0x1] %vm765, %v813
        %820 = vrot.lane.b32.xlu0 %v769, 38
        %v821 = vpop.permute.xlu0 %820
        %822 = vrot.lane.b32.xlu0 %v770, 38
        %v823 = vpop.permute.xlu0 %822
        %824 = vrot.lane.b32.xlu0 %v771, 38
        %v825 = vpop.permute.xlu0 %824
        %829 = vst.msk [vmem:[%s163 + $0x5] sm:$0x1] %vm765, %v821
        %830 = vst.msk [vmem:[%s163 + $0x15] sm:$0x1] %vm765, %v823
        %831 = vst.msk [vmem:[%s163 + $0x25] sm:$0x1] %vm765, %v825
        %832 = vrot.lane.b32.xlu0 %v769, 20
        %v833 = vpop.permute.xlu0 %832
        %834 = vrot.lane.b32.xlu0 %v770, 20
        %v835 = vpop.permute.xlu0 %834
        %836 = vrot.lane.b32.xlu0 %v771, 20
        %v837 = vpop.permute.xlu0 %836
        %841 = vst.msk [vmem:[%s163 + $0x6] sm:$0x1] %vm765, %v833
        %842 = vst.msk [vmem:[%s163 + $0x16] sm:$0x1] %vm765, %v835
        %843 = vst.msk [vmem:[%s163 + $0x26] sm:$0x1] %vm765, %v837
        %v845 = vrot.slane %v758, 7
        %vm846 = vcmask 1040384
        %v847 = vsel %vm846, %v757, %v845
        %vm848 = vcmask 1041409
        %v849 = vsel %vm848, %v757, %v845
        %v850 = vrot.slane %v849, 1
        %vm851 = vcmask 1042434
        %v852 = vsel %vm851, %v757, %v845
        %v853 = vrot.slane %v852, 2
        %v854 = vperm.slane %v847, 0
        %v855 = vperm.slane %v847, 1
        %v856 = vperm.slane %v850, 0
        %v857 = vperm.slane %v850, 1
        %v858 = vperm.slane %v853, 0
        %v859 = vperm.slane %v853, 1
        %860 = vrot.lane.b32.xlu0 %v854, 2
        %v861 = vpop.permute.xlu0 %860
        %862 = vrot.lane.b32.xlu0 %v855, 2
        %v863 = vpop.permute.xlu0 %862
        %864 = vrot.lane.b32.xlu0 %v856, 2
        %v865 = vpop.permute.xlu0 %864
        %866 = vrot.lane.b32.xlu0 %v857, 2
        %v867 = vpop.permute.xlu0 %866
        %868 = vrot.lane.b32.xlu0 %v858, 2
        %v869 = vpop.permute.xlu0 %868
        %870 = vrot.lane.b32.xlu0 %v859, 2
        %v871 = vpop.permute.xlu0 %870
        %vm872 = vcmask 15360
        %v873 = vsel %vm872, %v861, %v863
        %v874 = vsel %vm872, %v865, %v867
        %v875 = vsel %vm872, %v869, %v871
        %879 = vst.msk [vmem:[%s163 + $0x7] sm:$0x1] %vm765, %v873
        %880 = vst.msk [vmem:[%s163 + $0x17] sm:$0x1] %vm765, %v874
        %881 = vst.msk [vmem:[%s163 + $0x27] sm:$0x1] %vm765, %v875
        %v882 = vrot.slane %v758, 1
        %v883 = vrot.slane %v758, 2
        %v884 = vperm.slane %v758, 0
        %v885 = vperm.slane %v882, 0
        %v886 = vperm.slane %v883, 0
        %887 = vrot.lane.b32.xlu0 %v884, 112
        %v888 = vpop.permute.xlu0 %887
        %889 = vrot.lane.b32.xlu0 %v885, 112
        %v890 = vpop.permute.xlu0 %889
        %891 = vrot.lane.b32.xlu0 %v886, 112
        %v892 = vpop.permute.xlu0 %891
        %896 = vst.msk [vmem:[%s163 + $0x8] sm:$0x1] %vm765, %v888
        %897 = vst.msk [vmem:[%s163 + $0x18] sm:$0x1] %vm765, %v890
        %898 = vst.msk [vmem:[%s163 + $0x28] sm:$0x1] %vm765, %v892
        %899 = vrot.lane.b32.xlu0 %v884, 94
        %v900 = vpop.permute.xlu0 %899
        %901 = vrot.lane.b32.xlu0 %v885, 94
        %v902 = vpop.permute.xlu0 %901
        %903 = vrot.lane.b32.xlu0 %v886, 94
        %v904 = vpop.permute.xlu0 %903
        %908 = vst.msk [vmem:[%s163 + $0x9] sm:$0x1] %vm765, %v900
        %909 = vst.msk [vmem:[%s163 + $0x19] sm:$0x1] %vm765, %v902
        %910 = vst.msk [vmem:[%s163 + $0x29] sm:$0x1] %vm765, %v904
        %911 = vrot.lane.b32.xlu0 %v884, 76
        %v912 = vpop.permute.xlu0 %911
        %913 = vrot.lane.b32.xlu0 %v885, 76
        %v914 = vpop.permute.xlu0 %913
        %915 = vrot.lane.b32.xlu0 %v886, 76
        %v916 = vpop.permute.xlu0 %915
        %920 = vst.msk [vmem:[%s163 + $0xa] sm:$0x1] %vm765, %v912
        %921 = vst.msk [vmem:[%s163 + $0x1a] sm:$0x1] %vm765, %v914
        %922 = vst.msk [vmem:[%s163 + $0x2a] sm:$0x1] %vm765, %v916
        %923 = vrot.lane.b32.xlu0 %v884, 58
        %v924 = vpop.permute.xlu0 %923
        %925 = vrot.lane.b32.xlu0 %v885, 58
        %v926 = vpop.permute.xlu0 %925
        %927 = vrot.lane.b32.xlu0 %v886, 58
        %v928 = vpop.permute.xlu0 %927
        %932 = vst.msk [vmem:[%s163 + $0xb] sm:$0x1] %vm765, %v924
        %933 = vst.msk [vmem:[%s163 + $0x1b] sm:$0x1] %vm765, %v926
        %934 = vst.msk [vmem:[%s163 + $0x2b] sm:$0x1] %vm765, %v928
        %935 = vrot.lane.b32.xlu0 %v884, 40
        %v936 = vpop.permute.xlu0 %935
        %937 = vrot.lane.b32.xlu0 %v885, 40
        %v938 = vpop.permute.xlu0 %937
        %939 = vrot.lane.b32.xlu0 %v886, 40
        %v940 = vpop.permute.xlu0 %939
        %944 = vst.msk [vmem:[%s163 + $0xc] sm:$0x1] %vm765, %v936
        %945 = vst.msk [vmem:[%s163 + $0x1c] sm:$0x1] %vm765, %v938
        %946 = vst.msk [vmem:[%s163 + $0x2c] sm:$0x1] %vm765, %v940
        %947 = vrot.lane.b32.xlu0 %v884, 22
        %v948 = vpop.permute.xlu0 %947
        %949 = vrot.lane.b32.xlu0 %v885, 22
        %v950 = vpop.permute.xlu0 %949
        %951 = vrot.lane.b32.xlu0 %v886, 22
        %v952 = vpop.permute.xlu0 %951
        %956 = vst.msk [vmem:[%s163 + $0xd] sm:$0x1] %vm765, %v948
        %957 = vst.msk [vmem:[%s163 + $0x1d] sm:$0x1] %vm765, %v950
        %958 = vst.msk [vmem:[%s163 + $0x2d] sm:$0x1] %vm765, %v952
        %v960 = vrot.slane %v759, 7
        %v961 = vsel %vm846, %v758, %v960
        %v962 = vsel %vm848, %v758, %v960
        %v963 = vrot.slane %v962, 1
        %v964 = vsel %vm851, %v758, %v960
        %v965 = vrot.slane %v964, 2
        %v966 = vperm.slane %v961, 0
        %v967 = vperm.slane %v961, 1
        %v968 = vperm.slane %v963, 0
        %v969 = vperm.slane %v963, 1
        %v970 = vperm.slane %v965, 0
        %v971 = vperm.slane %v965, 1
        %972 = vrot.lane.b32.xlu0 %v966, 4
        %v973 = vpop.permute.xlu0 %972
        %974 = vrot.lane.b32.xlu0 %v967, 4
        %v975 = vpop.permute.xlu0 %974
        %976 = vrot.lane.b32.xlu0 %v968, 4
        %v977 = vpop.permute.xlu0 %976
        %978 = vrot.lane.b32.xlu0 %v969, 4
        %v979 = vpop.permute.xlu0 %978
        %980 = vrot.lane.b32.xlu0 %v970, 4
        %v981 = vpop.permute.xlu0 %980
        %982 = vrot.lane.b32.xlu0 %v971, 4
        %v983 = vpop.permute.xlu0 %982
        %vm984 = vcmask 31744
        %v985 = vsel %vm984, %v973, %v975
        %v986 = vsel %vm984, %v977, %v979
        %v987 = vsel %vm984, %v981, %v983
        %991 = vst.msk [vmem:[%s163 + $0xe] sm:$0x1] %vm765, %v985
        %992 = vst.msk [vmem:[%s163 + $0x1e] sm:$0x1] %vm765, %v986
        %993 = vst.msk [vmem:[%s163 + $0x2e] sm:$0x1] %vm765, %v987
        %v994 = vrot.slane %v759, 1
        %v995 = vrot.slane %v759, 2
        %v996 = vperm.slane %v759, 0
        %v997 = vperm.slane %v994, 0
        %v998 = vperm.slane %v995, 0
        %999 = vrot.lane.b32.xlu0 %v996, 114
        %v1000 = vpop.permute.xlu0 %999
        %1001 = vrot.lane.b32.xlu0 %v997, 114
        %v1002 = vpop.permute.xlu0 %1001
        %1003 = vrot.lane.b32.xlu0 %v998, 114
        %v1004 = vpop.permute.xlu0 %1003
        %1008 = vst.msk [vmem:[%s163 + $0xf] sm:$0x1] %vm765, %v1000
        %1009 = vst.msk [vmem:[%s163 + $0x1f] sm:$0x1] %vm765, %v1002
        %1010 = vst.msk [vmem:[%s163 + $0x2f] sm:$0x1] %vm765, %v1004
        %s1011 = sand.u32 %s93, 1
        %s1012 = scalar_lea.sflag [#allocation3], %s1011
        %s1013 = sand.u32 %s93, 1
        %s1014 = smul.addr %s1013, 48
        %s1015 = scalar_lea.vmem [#allocation2], %s1014
        // Predicated region
        $region33: #{decoder_forward.19} parent=31 // pred_check
          %p1016 = pneg %p103
        $region34: #{decoder_forward.19} parent=31 // pred_check_branch
          %1018 = sbr.rel (%p1016) target = $region36
        $region35: #{decoder_forward.19} parent=31 // pred_region
          %1020 = vsyncadd %s1012, 0
          %s1021 = smul.addr %s17, 6
          %s1022 = smul.addr %s1021, 8
          %s1023 = scalar_lea.hbm %s3, %s1022
          %s1024 = sshll.u32 %s1015, 4
          %s1025 = int_to_ptr.vmem [resolvable:$true] %s1024
          %s1026 = sshll.u32 %s1023, 4
          %s1027 = int_to_ptr.hbm [resolvable:$true] %s1026
          %1032 = dma.vmem_to_hbm [thread:$0]  %s1025, 768, %s1027, %s1012, 128, 128, 8
        $region36: #{decoder_forward.19} parent=31 // pred_fallthru
          _
      $region32: #{decoder_forward.19} parent=5 // pred_fallthru
        _
      %p1033 = scmp.le.s32.totalorder 2, %s12
      // Predicated region
      $region37: #{decoder_forward.19} parent=5 // pred_check
        %p1034 = pneg %p1033
      $region38: #{decoder_forward.19} parent=5 // pred_check_branch
        %1036 = sbr.rel (%p1034) target = $region40
      $region39: #{decoder_forward.19} parent=5 // pred_region
        %s1037 = ssub.s32 %s12, 2
        // Predicated region
        $region41: #{decoder_forward.19} parent=39 // pred_check
          %p1038 = pneg %p109
        $region42: #{decoder_forward.19} parent=39 // pred_check_branch
          %1040 = sbr.rel (%p1038) target = $region44
        $region43: #{decoder_forward.19} parent=39 // pred_region
          %s1041 = sand.u32 %s94, 1
          %s1042 = scalar_lea.sflag [#allocation3], %s1041
          %s1043 = sand.u32 %s94, 1
          %s1044 = smul.addr %s1043, 48
          %s1045 = scalar_lea.vmem [#allocation2], %s1044
          %1047 = dma.done %s1042, 768
        $region44: #{decoder_forward.19} parent=39 // pred_fallthru
          _
      $region40: #{decoder_forward.19} parent=5 // pred_fallthru
        _
    $region6: #{decoder_forward.19} parent=1 // loop_footer
      %s16 = sadd.s32 1, %s12
    $region7: #{decoder_forward.19} parent=1 // loop_footer_branch
      %11 = sbr.rel target = $region3
    $region8: #{decoder_forward.19} parent=1 // loop_exit
      _
    %1048 = vsyncpa [#allocation3], 1
    %s1049 = scalar_lea.sflag [#allocation3], 1
    %1050 = vsyncpa %s1049, 1

// kernel: decoder_forward.17
$region0: #{decoder_forward.17}
  #allocation0 [shape = 'u32[]', space=smem, size = 0x4, offset = 0x4, fixed_abs, tag = 'smem constant byte address 0x4 - core index']
  #allocation1 [shape = 'u32[72,128]{1,0:T(1,128)}', space=vmem, size = 0x9000, scoped, tag = 'internal scratch']
  %s0 = inlined_call_operand.vmem [shape: bf16[2,8,324], index: 0, kind: input, shape index: {}]
  %s1 = inlined_call_operand.vmem [shape: bf16[9,8,8], index: 1, kind: input, shape index: {}]
  %s2 = inlined_call_operand.vmem [shape: f32[8,1], index: 2, kind: input, shape index: {}]
  %s3 = inlined_call_operand.vmem [shape: bf16[2,8,16,16], index: 3, kind: output, shape index: {}]
  %s4 = sld [smem:[#allocation0]]
  $region45: #{decoder_forward.17} parent=0
    _
  %s6 = ssub.s32 1, %s4
  %s7 = scalar_select 0, %s6, %s4
  loop: start=0, step=1, limit=4
  $region2: #{decoder_forward.17} parent=0 // loop_pre_header
    _
  $region3: #{decoder_forward.17} parent=0 // loop_header
    %s9 = sphi 0, %s13
    %p10 = scmp.ge.s32.totalorder %s9, 4
    %s19 = sphi 0, %s21
    %s22 = sphi 0, %s19
    %s23 = sphi 0, %s22
    %s39 = sphi 0, %s23
    %s43 = sphi 0, %s43
    %s45 = sphi 0, %s43
    %s46 = sphi 0, %s45
    %s60 = sphi 0, %s46
    %s64 = sphi 0, %s64
    %s66 = sphi 0, %s64
    %s67 = sphi 0, %s66
    %s81 = sphi 0, %s67
    %s87 = sphi 0, %s89
    %s90 = sphi 0, %s87
    %s91 = sphi 0, %s90
    %s107 = sphi 0, %s91
  $region4: #{decoder_forward.17} parent=0 // loop_header_branch
    %12 = sbr.rel (%p10) target = $region8
  $region5: #{decoder_forward.17} parent=0 // loop_body
    %s14 = ssub.s32 %s9, 1
    %s15 = ssub.s32 %s9, 2
    %s16 = sadd.s32 %s9, 1
    %s17 = ssub.s32 %s9, %s16
    %p18 = scmp.eq.s32.totalorder %s17, 0
    %s20 = sadd.s32 %s19, 1
    %s21 = scalar_select %p18, %s19, %s20
    %p24 = pneg %p18
    %p25 = scmp.eq.s32.totalorder %s9, 1
    %p26 = por %p24, %p25
    %p27 = scmp.ne.s32.totalorder %s19, %s22
    %p28 = scmp.eq.s32.totalorder %s9, 0
    %p29 = por %p27, %p28
    %p30 = scmp.ne.s32.totalorder %s19, %s22
    %p31 = scmp.eq.s32.totalorder %s14, 1
    %p32 = por %p30, %p31
    %p33 = scmp.ne.s32.totalorder %s22, %s23
    %p34 = scmp.eq.s32.totalorder %s14, 0
    %p35 = por %p33, %p34
    %p36 = scmp.ne.s32.totalorder %s22, %s23
    %p37 = scmp.eq.s32.totalorder %s15, 1
    %p38 = por %p36, %p37
    %p40 = scmp.ne.s32.totalorder %s23, %s39
    %p41 = scmp.eq.s32.totalorder %s15, 0
    %p42 = por %p40, %p41
    %s44 = sadd.s32 %s43, 1
    %p47 = scmp.eq.s32.totalorder %s9, 1
    %p48 = scmp.ne.s32.totalorder %s43, %s45
    %p49 = scmp.eq.s32.totalorder %s9, 0
    %p50 = por %p48, %p49
    %p51 = scmp.ne.s32.totalorder %s43, %s45
    %p52 = scmp.eq.s32.totalorder %s14, 1
    %p53 = por %p51, %p52
    %p54 = scmp.ne.s32.totalorder %s45, %s46
    %p55 = scmp.eq.s32.totalorder %s14, 0
    %p56 = por %p54, %p55
    %p57 = scmp.ne.s32.totalorder %s45, %s46
    %p58 = scmp.eq.s32.totalorder %s15, 1
    %p59 = por %p57, %p58
    %p61 = scmp.ne.s32.totalorder %s46, %s60
    %p62 = scmp.eq.s32.totalorder %s15, 0
    %p63 = por %p61, %p62
    %s65 = sadd.s32 %s64, 1
    %p68 = scmp.eq.s32.totalorder %s9, 1
    %p69 = scmp.ne.s32.totalorder %s64, %s66
    %p70 = scmp.eq.s32.totalorder %s9, 0
    %p71 = por %p69, %p70
    %p72 = scmp.ne.s32.totalorder %s64, %s66
    %p73 = scmp.eq.s32.totalorder %s14, 1
    %p74 = por %p72, %p73
    %p75 = scmp.ne.s32.totalorder %s66, %s67
    %p76 = scmp.eq.s32.totalorder %s14, 0
    %p77 = por %p75, %p76
    %p78 = scmp.ne.s32.totalorder %s66, %s67
    %p79 = scmp.eq.s32.totalorder %s15, 1
    %p80 = por %p78, %p79
    %p82 = scmp.ne.s32.totalorder %s67, %s81
    %p83 = scmp.eq.s32.totalorder %s15, 0
    %p84 = por %p82, %p83
    %s85 = ssub.s32 %s9, %s16
    %p86 = scmp.eq.s32.totalorder %s85, 0
    %s88 = sadd.s32 %s87, 1
    %s89 = scalar_select %p86, %s87, %s88
    %p92 = pneg %p86
    %p93 = scmp.eq.s32.totalorder %s9, 1
    %p94 = por %p92, %p93
    %p95 = scmp.ne.s32.totalorder %s87, %s90
    %p96 = scmp.eq.s32.totalorder %s9, 0
    %p97 = por %p95, %p96
    %p98 = scmp.ne.s32.totalorder %s87, %s90
    %p99 = scmp.eq.s32.totalorder %s14, 1
    %p100 = por %p98, %p99
    %p101 = scmp.ne.s32.totalorder %s90, %s91
    %p102 = scmp.eq.s32.totalorder %s14, 0
    %p103 = por %p101, %p102
    %p104 = scmp.ne.s32.totalorder %s90, %s91
    %p105 = scmp.eq.s32.totalorder %s15, 1
    %p106 = por %p104, %p105
    %p108 = scmp.ne.s32.totalorder %s91, %s107
    %p109 = scmp.eq.s32.totalorder %s15, 0
    %p110 = por %p108, %p109
    %p111 = scmp.le.s32.totalorder 1, %s9
    %p112 = scmp.lt.s32.totalorder %s9, 3
    %p113 = pnand %p111, %p112
    %p114 = pneg %p113
    // Predicated region
    $region9: #{decoder_forward.17} parent=5 // pred_check
      _
    $region10: #{decoder_forward.17} parent=5 // pred_check_branch
      %116 = sbr.rel (%p113) target = $region12
    $region11: #{decoder_forward.17} parent=5 // pred_region
      %s117 = ssub.s32 %s9, 1
      // Predicated region
      $region13: #{decoder_forward.17} parent=11 // pred_check
        %p118 = pneg %p56
      $region14: #{decoder_forward.17} parent=11 // pred_check_branch
        %120 = sbr.rel (%p118) target = $region16
      $region15: #{decoder_forward.17} parent=11 // pred_region
        _
      $region16: #{decoder_forward.17} parent=11 // pred_fallthru
        _
      // Predicated region
      $region17: #{decoder_forward.17} parent=11 // pred_check
        %p121 = pneg %p77
      $region18: #{decoder_forward.17} parent=11 // pred_check_branch
        %123 = sbr.rel (%p121) target = $region20
      $region19: #{decoder_forward.17} parent=11 // pred_region
        _
      $region20: #{decoder_forward.17} parent=11 // pred_fallthru
        _
    $region12: #{decoder_forward.17} parent=5 // pred_fallthru
      _
    %p124 = scmp.lt.s32.totalorder %s9, 2
    // Predicated region
    $region21: #{decoder_forward.17} parent=5 // pred_check
      %p125 = pneg %p124
    $region22: #{decoder_forward.17} parent=5 // pred_check_branch
      %127 = sbr.rel (%p125) target = $region24
    $region23: #{decoder_forward.17} parent=5 // pred_region
      // Predicated region
      $region25: #{decoder_forward.17} parent=23 // pred_check
        %p128 = pneg %p29
      $region26: #{decoder_forward.17} parent=23 // pred_check_branch
        %130 = sbr.rel (%p128) target = $region28
      $region27: #{decoder_forward.17} parent=23 // pred_region
        %p131 = scmp.lt.s32.totalorder %s9, 1
        %s132 = scalar_select %p131, %s9, 1
        %s133 = smul.addr %s132, 3
        %s134 = smul.addr %s133, 4
        %s135 = scalar_lea.vmem %s0, %s134
      $region28: #{decoder_forward.17} parent=23 // pred_fallthru
        _
    $region24: #{decoder_forward.17} parent=5 // pred_fallthru
      _
    %p136 = scmp.le.s32.totalorder 1, %s9
    %p137 = scmp.lt.s32.totalorder %s9, 3
    %p138 = pnand %p136, %p137
    %p139 = pneg %p138
    // Predicated region
    $region29: #{decoder_forward.17} parent=5 // pred_check
      _
    $region30: #{decoder_forward.17} parent=5 // pred_check_branch
      %141 = sbr.rel (%p138) target = $region32
    $region31: #{decoder_forward.17} parent=5 // pred_region
      %s142 = ssub.s32 %s9, 1
      %p143 = scmp.lt.s32.totalorder %s14, 1
      %s144 = scalar_select %p143, %s14, 1
      %s145 = smul.addr %s144, 3
      %s146 = smul.addr %s145, 4
      %s147 = scalar_lea.vmem %s0, %s146
      %p148 = pneg %p35
      %p149 = pneg %p32
      %p150 = pneg %p56
      %p151 = pneg %p53
      %p152 = pneg %p77
      %p153 = pneg %p74
      %p154 = pneg %p103
      %p155 = pneg %p100
      %p156 = scmp.lt.s32.totalorder %s14, 1
      %s157 = scalar_select %p156, %s14, 1
      %s158 = smul.addr %s157, 16
      %s159 = smul.addr %s158, 4
      %s160 = scalar_lea.vmem %s3, %s159
      %p161 = scmp.lt.s32.totalorder %s14, 1
      %s162 = scalar_select %p161, %s14, 1
      %s163 = smul.addr %s162, 3
      %s164 = smul.addr %s163, 4
      %s165 = scalar_lea.vmem %s0, %s164
      %p166 = scmp.lt.s32.totalorder %s14, 1
      %s167 = scalar_select %p166, %s14, 1
      %s168 = smul.addr %s167, 16
      %s169 = smul.addr %s168, 4
      %s170 = scalar_lea.vmem %s3, %s169
      %v172 = vld [vmem:[%s1] sm:$0xf]
      %v173 = vld [vmem:[%s165] sm:$0xff]
      %v174 = vld [vmem:[%s165 + $0x8] sm:$0xf]
      %s175 = scalar_lea.vmem %s1, 4
      %v176 = vld [vmem:[%s175] sm:$0xf]
      %v179 = vunpack.c.l.b16 %v173
      %v180 = vunpack.c.h.b16 %v173
      %v181 = vunpack.c.l.b16 %v174
      %v182 = vpack.c.b16 %v179, %v179
      %v183 = vpack.c.b16 %v180, %v180
      %v184 = vpack.c.b16 %v181, %v181
      %185 = vrot.lane.b32.xlu0 %v182, 127
      %v186 = vpop.permute.xlu0 %185
      %187 = vrot.lane.b32.xlu0 %v183, 127
      %v188 = vpop.permute.xlu0 %187
      %189 = vrot.lane.b32.xlu0 %v184, 127
      %v190 = vpop.permute.xlu0 %189
      %vm191 = vcmask 1039360
      %v192 = vsel %vm191, %v186, %v188
      %v193 = vsel %vm191, %v188, %v190
      %vm194 = vcmask 64512
      %v196 = vsel %vm194, %v176, 0
      %vm198 = vcmask 1043456
      %v200 = vsel %vm198, %v192, 0
      %v203 = vsel %vm198, %v193, 0
      %v206 = vsel %vm198, %v190, 0
      %208 = vmatpush.bf16.msra.mxu0 0
      %209 = vmatpush.bf16.msra.mxu0 0
      %210 = vmatpush.bf16.msra.mxu0 0
      %211 = vmatpush.bf16.msra.mxu0 0
      %212 = vmatpush.bf16.msra.mxu0 0
      %213 = vmatpush.bf16.msra.mxu0 0
      %214 = vmatpush.bf16.msra.mxu0 0
      %215 = vmatpush.bf16.msra.mxu0 %v200
      %216 = vmatmul.bf16.gmra.mxu0 %v196
      %v217 = vpop.f32.mrf.mxu0
      %v218 = vadd.f32 0.0, %v217
      %v219 = vpop.f32.mrf.mxu0
      %220 = vdwg.mxu0
      %221 = vmatpush.bf16.msra.mxu0 0
      %222 = vmatpush.bf16.msra.mxu0 0
      %223 = vmatpush.bf16.msra.mxu0 0
      %224 = vmatpush.bf16.msra.mxu0 0
      %225 = vmatpush.bf16.msra.mxu0 0
      %226 = vmatpush.bf16.msra.mxu0 0
      %227 = vmatpush.bf16.msra.mxu0 0
      %228 = vmatpush.bf16.msra.mxu0 %v203
      %229 = vmatmul.bf16.gmra.mxu0 %v196
      %v230 = vpop.f32.mrf.mxu0
      %v231 = vadd.f32 0.0, %v230
      %v232 = vpop.f32.mrf.mxu0
      %233 = vdwg.mxu0
      %234 = vmatpush.bf16.msra.mxu0 0
      %235 = vmatpush.bf16.msra.mxu0 0
      %236 = vmatpush.bf16.msra.mxu0 0
      %237 = vmatpush.bf16.msra.mxu0 0
      %238 = vmatpush.bf16.msra.mxu0 0
      %239 = vmatpush.bf16.msra.mxu0 0
      %240 = vmatpush.bf16.msra.mxu0 0
      %241 = vmatpush.bf16.msra.mxu0 %v206
      %242 = vmatmul.bf16.gmra.mxu0 %v196
      %v243 = vpop.f32.mrf.mxu0
      %v244 = vadd.f32 0.0, %v243
      %v245 = vpop.f32.mrf.mxu0
      %246 = vdwg.mxu0
      %v248 = vsel %vm194, %v172, 0
      %v251 = vsel %vm198, %v182, 0
      %v254 = vsel %vm198, %v183, 0
      %v257 = vsel %vm198, %v184, 0
      %259 = vmatpush.bf16.msra.mxu0 0
      %260 = vmatpush.bf16.msra.mxu0 0
      %261 = vmatpush.bf16.msra.mxu0 0
      %262 = vmatpush.bf16.msra.mxu0 0
      %263 = vmatpush.bf16.msra.mxu0 0
      %264 = vmatpush.bf16.msra.mxu0 0
      %265 = vmatpush.bf16.msra.mxu0 0
      %266 = vmatpush.bf16.msra.mxu0 %v251
      %267 = vmatmul.bf16.gmra.mxu0 %v248
      %v268 = vpop.f32.mrf.mxu0
      %v269 = vadd.f32 %v218, %v268
      %v270 = vpop.f32.mrf.mxu0
      %271 = vdwg.mxu0
      %272 = vmatpush.bf16.msra.mxu0 0
      %273 = vmatpush.bf16.msra.mxu0 0
      %274 = vmatpush.bf16.msra.mxu0 0
      %275 = vmatpush.bf16.msra.mxu0 0
      %276 = vmatpush.bf16.msra.mxu0 0
      %277 = vmatpush.bf16.msra.mxu0 0
      %278 = vmatpush.bf16.msra.mxu0 0
      %279 = vmatpush.bf16.msra.mxu0 %v254
      %280 = vmatmul.bf16.gmra.mxu0 %v248
      %v281 = vpop.f32.mrf.mxu0
      %v282 = vadd.f32 %v231, %v281
      %v283 = vpop.f32.mrf.mxu0
      %284 = vdwg.mxu0
      %285 = vmatpush.bf16.msra.mxu0 0
      %286 = vmatpush.bf16.msra.mxu0 0
      %287 = vmatpush.bf16.msra.mxu0 0
      %288 = vmatpush.bf16.msra.mxu0 0
      %289 = vmatpush.bf16.msra.mxu0 0
      %290 = vmatpush.bf16.msra.mxu0 0
      %291 = vmatpush.bf16.msra.mxu0 0
      %292 = vmatpush.bf16.msra.mxu0 %v257
      %293 = vmatmul.bf16.gmra.mxu0 %v248
      %v294 = vpop.f32.mrf.mxu0
      %v295 = vadd.f32 %v244, %v294
      %v296 = vpop.f32.mrf.mxu0
      %297 = vdwg.mxu0
      %s298 = scalar_lea.vmem %s1, 8
      %v299 = vld [vmem:[%s298] sm:$0xf]
      %300 = vrot.lane.b32.xlu0 %v182, 126
      %v301 = vpop.permute.xlu0 %300
      %302 = vrot.lane.b32.xlu0 %v183, 126
      %v303 = vpop.permute.xlu0 %302
      %304 = vrot.lane.b32.xlu0 %v184, 126
      %v305 = vpop.permute.xlu0 %304
      %vm306 = vcmask 1031168
      %v307 = vsel %vm306, %v301, %v303
      %v308 = vsel %vm306, %v303, %v305
      %v310 = vsel %vm194, %v299, 0
      %v313 = vsel %vm198, %v307, 0
      %v316 = vsel %vm198, %v308, 0
      %v319 = vsel %vm198, %v305, 0
      %321 = vmatpush.bf16.msra.mxu0 0
      %322 = vmatpush.bf16.msra.mxu0 0
      %323 = vmatpush.bf16.msra.mxu0 0
      %324 = vmatpush.bf16.msra.mxu0 0
      %325 = vmatpush.bf16.msra.mxu0 0
      %326 = vmatpush.bf16.msra.mxu0 0
      %327 = vmatpush.bf16.msra.mxu0 0
      %328 = vmatpush.bf16.msra.mxu0 %v313
      %329 = vmatmul.bf16.gmra.mxu0 %v310
      %v330 = vpop.f32.mrf.mxu0
      %v331 = vadd.f32 0.0, %v330
      %v332 = vpop.f32.mrf.mxu0
      %333 = vdwg.mxu0
      %334 = vmatpush.bf16.msra.mxu0 0
      %335 = vmatpush.bf16.msra.mxu0 0
      %336 = vmatpush.bf16.msra.mxu0 0
      %337 = vmatpush.bf16.msra.mxu0 0
      %338 = vmatpush.bf16.msra.mxu0 0
      %339 = vmatpush.bf16.msra.mxu0 0
      %340 = vmatpush.bf16.msra.mxu0 0
      %341 = vmatpush.bf16.msra.mxu0 %v316
      %342 = vmatmul.bf16.gmra.mxu0 %v310
      %v343 = vpop.f32.mrf.mxu0
      %v344 = vadd.f32 0.0, %v343
      %v345 = vpop.f32.mrf.mxu0
      %346 = vdwg.mxu0
      %347 = vmatpush.bf16.msra.mxu0 0
      %348 = vmatpush.bf16.msra.mxu0 0
      %349 = vmatpush.bf16.msra.mxu0 0
      %350 = vmatpush.bf16.msra.mxu0 0
      %351 = vmatpush.bf16.msra.mxu0 0
      %352 = vmatpush.bf16.msra.mxu0 0
      %353 = vmatpush.bf16.msra.mxu0 0
      %354 = vmatpush.bf16.msra.mxu0 %v319
      %355 = vmatmul.bf16.gmra.mxu0 %v310
      %v356 = vpop.f32.mrf.mxu0
      %v357 = vadd.f32 0.0, %v356
      %v358 = vpop.f32.mrf.mxu0
      %359 = vdwg.mxu0
      %v360 = vadd.f32 %v269, %v331
      %v361 = vadd.f32 %v282, %v344
      %v362 = vadd.f32 %v295, %v357
      %s363 = scalar_lea.vmem %s1, 12
      %v364 = vld [vmem:[%s363] sm:$0xf]
      %365 = vrot.lane.b32.xlu0 %v182, 110
      %v366 = vpop.permute.xlu0 %365
      %367 = vrot.lane.b32.xlu0 %v183, 110
      %v368 = vpop.permute.xlu0 %367
      %369 = vrot.lane.b32.xlu0 %v184, 110
      %v370 = vpop.permute.xlu0 %369
      %vm371 = vcmask 900096
      %v372 = vsel %vm371, %v366, %v368
      %v373 = vsel %vm371, %v368, %v370
      %v375 = vsel %vm194, %v364, 0
      %v378 = vsel %vm198, %v372, 0
      %v381 = vsel %vm198, %v373, 0
      %v384 = vsel %vm198, %v370, 0
      %386 = vmatpush.bf16.msra.mxu0 0
      %387 = vmatpush.bf16.msra.mxu0 0
      %388 = vmatpush.bf16.msra.mxu0 0
      %389 = vmatpush.bf16.msra.mxu0 0
      %390 = vmatpush.bf16.msra.mxu0 0
      %391 = vmatpush.bf16.msra.mxu0 0
      %392 = vmatpush.bf16.msra.mxu0 0
      %393 = vmatpush.bf16.msra.mxu0 %v378
      %394 = vmatmul.bf16.gmra.mxu0 %v375
      %v395 = vpop.f32.mrf.mxu0
      %v396 = vadd.f32 0.0, %v395
      %v397 = vpop.f32.mrf.mxu0
      %398 = vdwg.mxu0
      %399 = vmatpush.bf16.msra.mxu0 0
      %400 = vmatpush.bf16.msra.mxu0 0
      %401 = vmatpush.bf16.msra.mxu0 0
      %402 = vmatpush.bf16.msra.mxu0 0
      %403 = vmatpush.bf16.msra.mxu0 0
      %404 = vmatpush.bf16.msra.mxu0 0
      %405 = vmatpush.bf16.msra.mxu0 0
      %406 = vmatpush.bf16.msra.mxu0 %v381
      %407 = vmatmul.bf16.gmra.mxu0 %v375
      %v408 = vpop.f32.mrf.mxu0
      %v409 = vadd.f32 0.0, %v408
      %v410 = vpop.f32.mrf.mxu0
      %411 = vdwg.mxu0
      %412 = vmatpush.bf16.msra.mxu0 0
      %413 = vmatpush.bf16.msra.mxu0 0
      %414 = vmatpush.bf16.msra.mxu0 0
      %415 = vmatpush.bf16.msra.mxu0 0
      %416 = vmatpush.bf16.msra.mxu0 0
      %417 = vmatpush.bf16.msra.mxu0 0
      %418 = vmatpush.bf16.msra.mxu0 0
      %419 = vmatpush.bf16.msra.mxu0 %v384
      %420 = vmatmul.bf16.gmra.mxu0 %v375
      %v421 = vpop.f32.mrf.mxu0
      %v422 = vadd.f32 0.0, %v421
      %v423 = vpop.f32.mrf.mxu0
      %424 = vdwg.mxu0
      %v425 = vadd.f32 %v360, %v396
      %v426 = vadd.f32 %v361, %v409
      %v427 = vadd.f32 %v362, %v422
      %s428 = scalar_lea.vmem %s1, 16
      %v429 = vld [vmem:[%s428] sm:$0xf]
      %430 = vrot.lane.b32.xlu0 %v182, 109
      %v431 = vpop.permute.xlu0 %430
      %432 = vrot.lane.b32.xlu0 %v183, 109
      %v433 = vpop.permute.xlu0 %432
      %434 = vrot.lane.b32.xlu0 %v184, 109
      %v435 = vpop.permute.xlu0 %434
      %vm436 = vcmask 891904
      %v437 = vsel %vm436, %v431, %v433
      %v438 = vsel %vm436, %v433, %v435
      %v440 = vsel %vm194, %v429, 0
      %v443 = vsel %vm198, %v437, 0
      %v446 = vsel %vm198, %v438, 0
      %v449 = vsel %vm198, %v435, 0
      %451 = vmatpush.bf16.msra.mxu0 0
      %452 = vmatpush.bf16.msra.mxu0 0
      %453 = vmatpush.bf16.msra.mxu0 0
      %454 = vmatpush.bf16.msra.mxu0 0
      %455 = vmatpush.bf16.msra.mxu0 0
      %456 = vmatpush.bf16.msra.mxu0 0
      %457 = vmatpush.bf16.msra.mxu0 0
      %458 = vmatpush.bf16.msra.mxu0 %v443
      %459 = vmatmul.bf16.gmra.mxu0 %v440
      %v460 = vpop.f32.mrf.mxu0
      %v461 = vadd.f32 0.0, %v460
      %v462 = vpop.f32.mrf.mxu0
      %463 = vdwg.mxu0
      %464 = vmatpush.bf16.msra.mxu0 0
      %465 = vmatpush.bf16.msra.mxu0 0
      %466 = vmatpush.bf16.msra.mxu0 0
      %467 = vmatpush.bf16.msra.mxu0 0
      %468 = vmatpush.bf16.msra.mxu0 0
      %469 = vmatpush.bf16.msra.mxu0 0
      %470 = vmatpush.bf16.msra.mxu0 0
      %471 = vmatpush.bf16.msra.mxu0 %v446
      %472 = vmatmul.bf16.gmra.mxu0 %v440
      %v473 = vpop.f32.mrf.mxu0
      %v474 = vadd.f32 0.0, %v473
      %v475 = vpop.f32.mrf.mxu0
      %476 = vdwg.mxu0
      %477 = vmatpush.bf16.msra.mxu0 0
      %478 = vmatpush.bf16.msra.mxu0 0
      %479 = vmatpush.bf16.msra.mxu0 0
      %480 = vmatpush.bf16.msra.mxu0 0
      %481 = vmatpush.bf16.msra.mxu0 0
      %482 = vmatpush.bf16.msra.mxu0 0
      %483 = vmatpush.bf16.msra.mxu0 0
      %484 = vmatpush.bf16.msra.mxu0 %v449
      %485 = vmatmul.bf16.gmra.mxu0 %v440
      %v486 = vpop.f32.mrf.mxu0
      %v487 = vadd.f32 0.0, %v486
      %v488 = vpop.f32.mrf.mxu0
      %489 = vdwg.mxu0
      %v490 = vadd.f32 %v425, %v461
      %v491 = vadd.f32 %v426, %v474
      %v492 = vadd.f32 %v427, %v487
      %s493 = scalar_lea.vmem %s1, 20
      %v494 = vld [vmem:[%s493] sm:$0xf]
      %495 = vrot.lane.b32.xlu0 %v182, 108
      %v496 = vpop.permute.xlu0 %495
      %497 = vrot.lane.b32.xlu0 %v183, 108
      %v498 = vpop.permute.xlu0 %497
      %499 = vrot.lane.b32.xlu0 %v184, 108
      %v500 = vpop.permute.xlu0 %499
      %vm501 = vcmask 883712
      %v502 = vsel %vm501, %v496, %v498
      %v503 = vsel %vm501, %v498, %v500
      %v505 = vsel %vm194, %v494, 0
      %v508 = vsel %vm198, %v502, 0
      %v511 = vsel %vm198, %v503, 0
      %v514 = vsel %vm198, %v500, 0
      %516 = vmatpush.bf16.msra.mxu0 0
      %517 = vmatpush.bf16.msra.mxu0 0
      %518 = vmatpush.bf16.msra.mxu0 0
      %519 = vmatpush.bf16.msra.mxu0 0
      %520 = vmatpush.bf16.msra.mxu0 0
      %521 = vmatpush.bf16.msra.mxu0 0
      %522 = vmatpush.bf16.msra.mxu0 0
      %523 = vmatpush.bf16.msra.mxu0 %v508
      %524 = vmatmul.bf16.gmra.mxu0 %v505
      %v525 = vpop.f32.mrf.mxu0
      %v526 = vadd.f32 0.0, %v525
      %v527 = vpop.f32.mrf.mxu0
      %528 = vdwg.mxu0
      %529 = vmatpush.bf16.msra.mxu0 0
      %530 = vmatpush.bf16.msra.mxu0 0
      %531 = vmatpush.bf16.msra.mxu0 0
      %532 = vmatpush.bf16.msra.mxu0 0
      %533 = vmatpush.bf16.msra.mxu0 0
      %534 = vmatpush.bf16.msra.mxu0 0
      %535 = vmatpush.bf16.msra.mxu0 0
      %536 = vmatpush.bf16.msra.mxu0 %v511
      %537 = vmatmul.bf16.gmra.mxu0 %v505
      %v538 = vpop.f32.mrf.mxu0
      %v539 = vadd.f32 0.0, %v538
      %v540 = vpop.f32.mrf.mxu0
      %541 = vdwg.mxu0
      %542 = vmatpush.bf16.msra.mxu0 0
      %543 = vmatpush.bf16.msra.mxu0 0
      %544 = vmatpush.bf16.msra.mxu0 0
      %545 = vmatpush.bf16.msra.mxu0 0
      %546 = vmatpush.bf16.msra.mxu0 0
      %547 = vmatpush.bf16.msra.mxu0 0
      %548 = vmatpush.bf16.msra.mxu0 0
      %549 = vmatpush.bf16.msra.mxu0 %v514
      %550 = vmatmul.bf16.gmra.mxu0 %v505
      %v551 = vpop.f32.mrf.mxu0
      %v552 = vadd.f32 0.0, %v551
      %v553 = vpop.f32.mrf.mxu0
      %554 = vdwg.mxu0
      %v555 = vadd.f32 %v490, %v526
      %v556 = vadd.f32 %v491, %v539
      %v557 = vadd.f32 %v492, %v552
      %s558 = scalar_lea.vmem %s1, 24
      %v559 = vld [vmem:[%s558] sm:$0xf]
      %560 = vrot.lane.b32.xlu0 %v182, 92
      %v561 = vpop.permute.xlu0 %560
      %562 = vrot.lane.b32.xlu0 %v183, 92
      %v563 = vpop.permute.xlu0 %562
      %564 = vrot.lane.b32.xlu0 %v184, 92
      %v565 = vpop.permute.xlu0 %564
      %vm566 = vcmask 752640
      %v567 = vsel %vm566, %v561, %v563
      %v568 = vsel %vm566, %v563, %v565
      %v570 = vsel %vm194, %v559, 0
      %v573 = vsel %vm198, %v567, 0
      %v576 = vsel %vm198, %v568, 0
      %v579 = vsel %vm198, %v565, 0
      %581 = vmatpush.bf16.msra.mxu0 0
      %582 = vmatpush.bf16.msra.mxu0 0
      %583 = vmatpush.bf16.msra.mxu0 0
      %584 = vmatpush.bf16.msra.mxu0 0
      %585 = vmatpush.bf16.msra.mxu0 0
      %586 = vmatpush.bf16.msra.mxu0 0
      %587 = vmatpush.bf16.msra.mxu0 0
      %588 = vmatpush.bf16.msra.mxu0 %v573
      %589 = vmatmul.bf16.gmra.mxu0 %v570
      %v590 = vpop.f32.mrf.mxu0
      %v591 = vadd.f32 0.0, %v590
      %v592 = vpop.f32.mrf.mxu0
      %593 = vdwg.mxu0
      %594 = vmatpush.bf16.msra.mxu0 0
      %595 = vmatpush.bf16.msra.mxu0 0
      %596 = vmatpush.bf16.msra.mxu0 0
      %597 = vmatpush.bf16.msra.mxu0 0
      %598 = vmatpush.bf16.msra.mxu0 0
      %599 = vmatpush.bf16.msra.mxu0 0
      %600 = vmatpush.bf16.msra.mxu0 0
      %601 = vmatpush.bf16.msra.mxu0 %v576
      %602 = vmatmul.bf16.gmra.mxu0 %v570
      %v603 = vpop.f32.mrf.mxu0
      %v604 = vadd.f32 0.0, %v603
      %v605 = vpop.f32.mrf.mxu0
      %606 = vdwg.mxu0
      %607 = vmatpush.bf16.msra.mxu0 0
      %608 = vmatpush.bf16.msra.mxu0 0
      %609 = vmatpush.bf16.msra.mxu0 0
      %610 = vmatpush.bf16.msra.mxu0 0
      %611 = vmatpush.bf16.msra.mxu0 0
      %612 = vmatpush.bf16.msra.mxu0 0
      %613 = vmatpush.bf16.msra.mxu0 0
      %614 = vmatpush.bf16.msra.mxu0 %v579
      %615 = vmatmul.bf16.gmra.mxu0 %v570
      %v616 = vpop.f32.mrf.mxu0
      %v617 = vadd.f32 0.0, %v616
      %v618 = vpop.f32.mrf.mxu0
      %619 = vdwg.mxu0
      %v620 = vadd.f32 %v555, %v591
      %v621 = vadd.f32 %v556, %v604
      %v622 = vadd.f32 %v557, %v617
      %s623 = scalar_lea.vmem %s1, 28
      %v624 = vld [vmem:[%s623] sm:$0xf]
      %625 = vrot.lane.b32.xlu0 %v182, 91
      %v626 = vpop.permute.xlu0 %625
      %627 = vrot.lane.b32.xlu0 %v183, 91
      %v628 = vpop.permute.xlu0 %627
      %629 = vrot.lane.b32.xlu0 %v184, 91
      %v630 = vpop.permute.xlu0 %629
      %vm631 = vcmask 744448
      %v632 = vsel %vm631, %v626, %v628
      %v633 = vsel %vm631, %v628, %v630
      %v635 = vsel %vm194, %v624, 0
      %v638 = vsel %vm198, %v632, 0
      %v641 = vsel %vm198, %v633, 0
      %v644 = vsel %vm198, %v630, 0
      %646 = vmatpush.bf16.msra.mxu0 0
      %647 = vmatpush.bf16.msra.mxu0 0
      %648 = vmatpush.bf16.msra.mxu0 0
      %649 = vmatpush.bf16.msra.mxu0 0
      %650 = vmatpush.bf16.msra.mxu0 0
      %651 = vmatpush.bf16.msra.mxu0 0
      %652 = vmatpush.bf16.msra.mxu0 0
      %653 = vmatpush.bf16.msra.mxu0 %v638
      %654 = vmatmul.bf16.gmra.mxu0 %v635
      %v655 = vpop.f32.mrf.mxu0
      %v656 = vadd.f32 0.0, %v655
      %v657 = vpop.f32.mrf.mxu0
      %658 = vdwg.mxu0
      %659 = vmatpush.bf16.msra.mxu0 0
      %660 = vmatpush.bf16.msra.mxu0 0
      %661 = vmatpush.bf16.msra.mxu0 0
      %662 = vmatpush.bf16.msra.mxu0 0
      %663 = vmatpush.bf16.msra.mxu0 0
      %664 = vmatpush.bf16.msra.mxu0 0
      %665 = vmatpush.bf16.msra.mxu0 0
      %666 = vmatpush.bf16.msra.mxu0 %v641
      %667 = vmatmul.bf16.gmra.mxu0 %v635
      %v668 = vpop.f32.mrf.mxu0
      %v669 = vadd.f32 0.0, %v668
      %v670 = vpop.f32.mrf.mxu0
      %671 = vdwg.mxu0
      %672 = vmatpush.bf16.msra.mxu0 0
      %673 = vmatpush.bf16.msra.mxu0 0
      %674 = vmatpush.bf16.msra.mxu0 0
      %675 = vmatpush.bf16.msra.mxu0 0
      %676 = vmatpush.bf16.msra.mxu0 0
      %677 = vmatpush.bf16.msra.mxu0 0
      %678 = vmatpush.bf16.msra.mxu0 0
      %679 = vmatpush.bf16.msra.mxu0 %v644
      %680 = vmatmul.bf16.gmra.mxu0 %v635
      %v681 = vpop.f32.mrf.mxu0
      %v682 = vadd.f32 0.0, %v681
      %v683 = vpop.f32.mrf.mxu0
      %684 = vdwg.mxu0
      %v685 = vadd.f32 %v620, %v656
      %v686 = vadd.f32 %v621, %v669
      %v687 = vadd.f32 %v622, %v682
      %s688 = scalar_lea.vmem %s1, 32
      %v689 = vld [vmem:[%s688] sm:$0xf]
      %690 = vrot.lane.b32.xlu0 %v182, 90
      %v691 = vpop.permute.xlu0 %690
      %692 = vrot.lane.b32.xlu0 %v183, 90
      %v693 = vpop.permute.xlu0 %692
      %694 = vrot.lane.b32.xlu0 %v184, 90
      %v695 = vpop.permute.xlu0 %694
      %vm696 = vcmask 736256
      %v697 = vsel %vm696, %v691, %v693
      %v698 = vsel %vm696, %v693, %v695
      %v700 = vsel %vm194, %v689, 0
      %v703 = vsel %vm198, %v697, 0
      %v706 = vsel %vm198, %v698, 0
      %v709 = vsel %vm198, %v695, 0
      %711 = vmatpush.bf16.msra.mxu0 0
      %712 = vmatpush.bf16.msra.mxu0 0
      %713 = vmatpush.bf16.msra.mxu0 0
      %714 = vmatpush.bf16.msra.mxu0 0
      %715 = vmatpush.bf16.msra.mxu0 0
      %716 = vmatpush.bf16.msra.mxu0 0
      %717 = vmatpush.bf16.msra.mxu0 0
      %718 = vmatpush.bf16.msra.mxu0 %v703
      %719 = vmatmul.bf16.gmra.mxu0 %v700
      %v720 = vpop.f32.mrf.mxu0
      %v721 = vadd.f32 0.0, %v720
      %v722 = vpop.f32.mrf.mxu0
      %723 = vdwg.mxu0
      %724 = vmatpush.bf16.msra.mxu0 0
      %725 = vmatpush.bf16.msra.mxu0 0
      %726 = vmatpush.bf16.msra.mxu0 0
      %727 = vmatpush.bf16.msra.mxu0 0
      %728 = vmatpush.bf16.msra.mxu0 0
      %729 = vmatpush.bf16.msra.mxu0 0
      %730 = vmatpush.bf16.msra.mxu0 0
      %731 = vmatpush.bf16.msra.mxu0 %v706
      %732 = vmatmul.bf16.gmra.mxu0 %v700
      %v733 = vpop.f32.mrf.mxu0
      %v734 = vadd.f32 0.0, %v733
      %v735 = vpop.f32.mrf.mxu0
      %736 = vdwg.mxu0
      %737 = vmatpush.bf16.msra.mxu0 0
      %738 = vmatpush.bf16.msra.mxu0 0
      %739 = vmatpush.bf16.msra.mxu0 0
      %740 = vmatpush.bf16.msra.mxu0 0
      %741 = vmatpush.bf16.msra.mxu0 0
      %742 = vmatpush.bf16.msra.mxu0 0
      %743 = vmatpush.bf16.msra.mxu0 0
      %744 = vmatpush.bf16.msra.mxu0 %v709
      %745 = vmatmul.bf16.gmra.mxu0 %v700
      %v746 = vpop.f32.mrf.mxu0
      %v747 = vadd.f32 0.0, %v746
      %v748 = vpop.f32.mrf.mxu0
      %749 = vdwg.mxu0
      %v750 = vadd.f32 %v685, %v721
      %v751 = vadd.f32 %v686, %v734
      %v752 = vadd.f32 %v687, %v747
      %v753 = vpack.c.bf16 %v751, %v750
      %v754 = vpack.c.bf16 %v752, %v752
      %v756 = vrot.slane %v753, 3
      %vm757 = vcmask 1040384
      %v760 = vsel %vm757, %v753, %v756
      %vm762 = vcmask 1041409
      %v763 = vsel %vm762, %v753, %v756
      %v765 = vrot.slane %v763, 1
      %vm766 = vcmask 1042434
      %v767 = vsel %vm766, %v753, %v756
      %v769 = vrot.slane %v767, 2
      %vm770 = vcmask 1043459
      %v771 = vsel %vm770, %v753, %v756
      %v773 = vrot.slane %v771, 3
      %v774 = vunpack.i.l.s16 %v760
      %v775 = vunpack.i.h.s16 %v760
      %v776 = vunpack.i.l.s16 %v765
      %v777 = vunpack.i.h.s16 %v765
      %v778 = vunpack.i.l.s16 %v769
      %v779 = vunpack.i.h.s16 %v769
      %v780 = vunpack.i.l.s16 %v773
      %v781 = vunpack.i.h.s16 %v773
      %v782 = vpack.i.b16 %v774, %v774
      %v783 = vpack.i.b16 %v775, %v775
      %v784 = vpack.i.b16 %v776, %v776
      %v785 = vpack.i.b16 %v777, %v777
      %v786 = vpack.i.b16 %v778, %v778
      %v787 = vpack.i.b16 %v779, %v779
      %v788 = vpack.i.b16 %v780, %v780
      %v789 = vpack.i.b16 %v781, %v781
      %v791 = vunpack.c.l.s4 286326784
      %v792 = vunpack.c.0.s8 %v791
      %v793 = vperm.slane %v782, %v792
      %v795 = vunpack.c.l.s4 286326784
      %v796 = vunpack.c.0.s8 %v795
      %v797 = vperm.slane %v783, %v796
      %v799 = vunpack.c.l.s4 286326784
      %v800 = vunpack.c.0.s8 %v799
      %v801 = vperm.slane %v784, %v800
      %v803 = vunpack.c.l.s4 286326784
      %v804 = vunpack.c.0.s8 %v803
      %v805 = vperm.slane %v785, %v804
      %v807 = vunpack.c.l.s4 286326784
      %v808 = vunpack.c.0.s8 %v807
      %v809 = vperm.slane %v786, %v808
      %v811 = vunpack.c.l.s4 286326784
      %v812 = vunpack.c.0.s8 %v811
      %v813 = vperm.slane %v787, %v812
      %v815 = vunpack.c.l.s4 286326784
      %v816 = vunpack.c.0.s8 %v815
      %v817 = vperm.slane %v788, %v816
      %v819 = vunpack.c.l.s4 286326784
      %v820 = vunpack.c.0.s8 %v819
      %v821 = vperm.slane %v789, %v820
      %vm830 = vcmask 122880
      %vm831 = vsmask.f32 256
      %vm832 = vmand %vm830, %vm831
      %v833 = vld [vmem:[%s170] sm:$0x1]
      %v834 = vsel %vm832, %v793, %v833
      %835 = vst [vmem:[%s170] sm:$0x1] %v834
      %v836 = vld [vmem:[%s170 + $0x8] sm:$0x1]
      %v837 = vsel %vm832, %v797, %v836
      %838 = vst [vmem:[%s170 + $0x8] sm:$0x1] %v837
      %v839 = vld [vmem:[%s170 + $0x10] sm:$0x1]
      %v840 = vsel %vm832, %v801, %v839
      %841 = vst [vmem:[%s170 + $0x10] sm:$0x1] %v840
      %v842 = vld [vmem:[%s170 + $0x18] sm:$0x1]
      %v843 = vsel %vm832, %v805, %v842
      %844 = vst [vmem:[%s170 + $0x18] sm:$0x1] %v843
      %v845 = vld [vmem:[%s170 + $0x20] sm:$0x1]
      %v846 = vsel %vm832, %v809, %v845
      %847 = vst [vmem:[%s170 + $0x20] sm:$0x1] %v846
      %v848 = vld [vmem:[%s170 + $0x28] sm:$0x1]
      %v849 = vsel %vm832, %v813, %v848
      %850 = vst [vmem:[%s170 + $0x28] sm:$0x1] %v849
      %v851 = vld [vmem:[%s170 + $0x30] sm:$0x1]
      %v852 = vsel %vm832, %v817, %v851
      %853 = vst [vmem:[%s170 + $0x30] sm:$0x1] %v852
      %v854 = vld [vmem:[%s170 + $0x38] sm:$0x1]
      %v855 = vsel %vm832, %v821, %v854
      %856 = vst [vmem:[%s170 + $0x38] sm:$0x1] %v855
      %857 = vrot.lane.b32.xlu0 %v793, 110
      %v858 = vpop.permute.xlu0 %857
      %859 = vrot.lane.b32.xlu0 %v797, 110
      %v860 = vpop.permute.xlu0 %859
      %861 = vrot.lane.b32.xlu0 %v801, 110
      %v862 = vpop.permute.xlu0 %861
      %863 = vrot.lane.b32.xlu0 %v805, 110
      %v864 = vpop.permute.xlu0 %863
      %865 = vrot.lane.b32.xlu0 %v809, 110
      %v866 = vpop.permute.xlu0 %865
      %867 = vrot.lane.b32.xlu0 %v813, 110
      %v868 = vpop.permute.xlu0 %867
      %869 = vrot.lane.b32.xlu0 %v817, 110
      %v870 = vpop.permute.xlu0 %869
      %871 = vrot.lane.b32.xlu0 %v821, 110
      %v872 = vpop.permute.xlu0 %871
      %vm881 = vsmask.f32 7938
      %vm882 = vmand %vm830, %vm881
      %v883 = vld [vmem:[%s170] sm:$0x1]
      %v884 = vsel %vm882, %v858, %v883
      %885 = vst [vmem:[%s170] sm:$0x1] %v884
      %v886 = vld [vmem:[%s170 + $0x8] sm:$0x1]
      %v887 = vsel %vm882, %v860, %v886
      %888 = vst [vmem:[%s170 + $0x8] sm:$0x1] %v887
      %v889 = vld [vmem:[%s170 + $0x10] sm:$0x1]
      %v890 = vsel %vm882, %v862, %v889
      %891 = vst [vmem:[%s170 + $0x10] sm:$0x1] %v890
      %v892 = vld [vmem:[%s170 + $0x18] sm:$0x1]
      %v893 = vsel %vm882, %v864, %v892
      %894 = vst [vmem:[%s170 + $0x18] sm:$0x1] %v893
      %v895 = vld [vmem:[%s170 + $0x20] sm:$0x1]
      %v896 = vsel %vm882, %v866, %v895
      %897 = vst [vmem:[%s170 + $0x20] sm:$0x1] %v896
      %v898 = vld [vmem:[%s170 + $0x28] sm:$0x1]
      %v899 = vsel %vm882, %v868, %v898
      %900 = vst [vmem:[%s170 + $0x28] sm:$0x1] %v899
      %v901 = vld [vmem:[%s170 + $0x30] sm:$0x1]
      %v902 = vsel %vm882, %v870, %v901
      %903 = vst [vmem:[%s170 + $0x30] sm:$0x1] %v902
      %v904 = vld [vmem:[%s170 + $0x38] sm:$0x1]
      %v905 = vsel %vm882, %v872, %v904
      %906 = vst [vmem:[%s170 + $0x38] sm:$0x1] %v905
      %907 = vrot.lane.b32.xlu0 %v793, 92
      %v908 = vpop.permute.xlu0 %907
      %909 = vrot.lane.b32.xlu0 %v797, 92
      %v910 = vpop.permute.xlu0 %909
      %911 = vrot.lane.b32.xlu0 %v801, 92
      %v912 = vpop.permute.xlu0 %911
      %913 = vrot.lane.b32.xlu0 %v805, 92
      %v914 = vpop.permute.xlu0 %913
      %915 = vrot.lane.b32.xlu0 %v809, 92
      %v916 = vpop.permute.xlu0 %915
      %917 = vrot.lane.b32.xlu0 %v813, 92
      %v918 = vpop.permute.xlu0 %917
      %919 = vrot.lane.b32.xlu0 %v817, 92
      %v920 = vpop.permute.xlu0 %919
      %921 = vrot.lane.b32.xlu0 %v821, 92
      %v922 = vpop.permute.xlu0 %921
      %vm931 = vcmask 123905
      %vm932 = vsmask.f32 1280
      %vm933 = vmand %vm931, %vm932
      %v934 = vld [vmem:[%s170] sm:$0x2]
      %v935 = vsel %vm933, %v908, %v934
      %936 = vst [vmem:[%s170] sm:$0x2] %v935
      %v937 = vld [vmem:[%s170 + $0x8] sm:$0x2]
      %v938 = vsel %vm933, %v910, %v937
      %939 = vst [vmem:[%s170 + $0x8] sm:$0x2] %v938
      %v940 = vld [vmem:[%s170 + $0x10] sm:$0x2]
      %v941 = vsel %vm933, %v912, %v940
      %942 = vst [vmem:[%s170 + $0x10] sm:$0x2] %v941
      %v943 = vld [vmem:[%s170 + $0x18] sm:$0x2]
      %v944 = vsel %vm933, %v914, %v943
      %945 = vst [vmem:[%s170 + $0x18] sm:$0x2] %v944
      %v946 = vld [vmem:[%s170 + $0x20] sm:$0x2]
      %v947 = vsel %vm933, %v916, %v946
      %948 = vst [vmem:[%s170 + $0x20] sm:$0x2] %v947
      %v949 = vld [vmem:[%s170 + $0x28] sm:$0x2]
      %v950 = vsel %vm933, %v918, %v949
      %951 = vst [vmem:[%s170 + $0x28] sm:$0x2] %v950
      %v952 = vld [vmem:[%s170 + $0x30] sm:$0x2]
      %v953 = vsel %vm933, %v920, %v952
      %954 = vst [vmem:[%s170 + $0x30] sm:$0x2] %v953
      %v955 = vld [vmem:[%s170 + $0x38] sm:$0x2]
      %v956 = vsel %vm933, %v922, %v955
      %957 = vst [vmem:[%s170 + $0x38] sm:$0x2] %v956
      %958 = vrot.lane.b32.xlu0 %v793, 74
      %v959 = vpop.permute.xlu0 %958
      %960 = vrot.lane.b32.xlu0 %v797, 74
      %v961 = vpop.permute.xlu0 %960
      %962 = vrot.lane.b32.xlu0 %v801, 74
      %v963 = vpop.permute.xlu0 %962
      %964 = vrot.lane.b32.xlu0 %v805, 74
      %v965 = vpop.permute.xlu0 %964
      %966 = vrot.lane.b32.xlu0 %v809, 74
      %v967 = vpop.permute.xlu0 %966
      %968 = vrot.lane.b32.xlu0 %v813, 74
      %v969 = vpop.permute.xlu0 %968
      %970 = vrot.lane.b32.xlu0 %v817, 74
      %v971 = vpop.permute.xlu0 %970
      %972 = vrot.lane.b32.xlu0 %v821, 74
      %v973 = vpop.permute.xlu0 %972
      %vm982 = vsmask.f32 7942
      %vm983 = vmand %vm931, %vm982
      %v984 = vld [vmem:[%s170] sm:$0x2]
      %v985 = vsel %vm983, %v959, %v984
      %986 = vst [vmem:[%s170] sm:$0x2] %v985
      %v987 = vld [vmem:[%s170 + $0x8] sm:$0x2]
      %v988 = vsel %vm983, %v961, %v987
      %989 = vst [vmem:[%s170 + $0x8] sm:$0x2] %v988
      %v990 = vld [vmem:[%s170 + $0x10] sm:$0x2]
      %v991 = vsel %vm983, %v963, %v990
      %992 = vst [vmem:[%s170 + $0x10] sm:$0x2] %v991
      %v993 = vld [vmem:[%s170 + $0x18] sm:$0x2]
      %v994 = vsel %vm983, %v965, %v993
      %995 = vst [vmem:[%s170 + $0x18] sm:$0x2] %v994
      %v996 = vld [vmem:[%s170 + $0x20] sm:$0x2]
      %v997 = vsel %vm983, %v967, %v996
      %998 = vst [vmem:[%s170 + $0x20] sm:$0x2] %v997
      %v999 = vld [vmem:[%s170 + $0x28] sm:$0x2]
      %v1000 = vsel %vm983, %v969, %v999
      %1001 = vst [vmem:[%s170 + $0x28] sm:$0x2] %v1000
      %v1002 = vld [vmem:[%s170 + $0x30] sm:$0x2]
      %v1003 = vsel %vm983, %v971, %v1002
      %1004 = vst [vmem:[%s170 + $0x30] sm:$0x2] %v1003
      %v1005 = vld [vmem:[%s170 + $0x38] sm:$0x2]
      %v1006 = vsel %vm983, %v973, %v1005
      %1007 = vst [vmem:[%s170 + $0x38] sm:$0x2] %v1006
      %1008 = vrot.lane.b32.xlu0 %v793, 56
      %v1009 = vpop.permute.xlu0 %1008
      %1010 = vrot.lane.b32.xlu0 %v797, 56
      %v1011 = vpop.permute.xlu0 %1010
      %1012 = vrot.lane.b32.xlu0 %v801, 56
      %v1013 = vpop.permute.xlu0 %1012
      %1014 = vrot.lane.b32.xlu0 %v805, 56
      %v1015 = vpop.permute.xlu0 %1014
      %1016 = vrot.lane.b32.xlu0 %v809, 56
      %v1017 = vpop.permute.xlu0 %1016
      %1018 = vrot.lane.b32.xlu0 %v813, 56
      %v1019 = vpop.permute.xlu0 %1018
      %1020 = vrot.lane.b32.xlu0 %v817, 56
      %v1021 = vpop.permute.xlu0 %1020
      %1022 = vrot.lane.b32.xlu0 %v821, 56
      %v1023 = vpop.permute.xlu0 %1022
      %vm1032 = vcmask 124930
      %vm1033 = vsmask.f32 2304
      %vm1034 = vmand %vm1032, %vm1033
      %v1035 = vld [vmem:[%s170] sm:$0x4]
      %v1036 = vsel %vm1034, %v1009, %v1035
      %1037 = vst [vmem:[%s170] sm:$0x4] %v1036
      %v1038 = vld [vmem:[%s170 + $0x8] sm:$0x4]
      %v1039 = vsel %vm1034, %v1011, %v1038
      %1040 = vst [vmem:[%s170 + $0x8] sm:$0x4] %v1039
      %v1041 = vld [vmem:[%s170 + $0x10] sm:$0x4]
      %v1042 = vsel %vm1034, %v1013, %v1041
      %1043 = vst [vmem:[%s170 + $0x10] sm:$0x4] %v1042
      %v1044 = vld [vmem:[%s170 + $0x18] sm:$0x4]
      %v1045 = vsel %vm1034, %v1015, %v1044
      %1046 = vst [vmem:[%s170 + $0x18] sm:$0x4] %v1045
      %v1047 = vld [vmem:[%s170 + $0x20] sm:$0x4]
      %v1048 = vsel %vm1034, %v1017, %v1047
      %1049 = vst [vmem:[%s170 + $0x20] sm:$0x4] %v1048
      %v1050 = vld [vmem:[%s170 + $0x28] sm:$0x4]
      %v1051 = vsel %vm1034, %v1019, %v1050
      %1052 = vst [vmem:[%s170 + $0x28] sm:$0x4] %v1051
      %v1053 = vld [vmem:[%s170 + $0x30] sm:$0x4]
      %v1054 = vsel %vm1034, %v1021, %v1053
      %1055 = vst [vmem:[%s170 + $0x30] sm:$0x4] %v1054
      %v1056 = vld [vmem:[%s170 + $0x38] sm:$0x4]
      %v1057 = vsel %vm1034, %v1023, %v1056
      %1058 = vst [vmem:[%s170 + $0x38] sm:$0x4] %v1057
      %1059 = vrot.lane.b32.xlu0 %v793, 38
      %v1060 = vpop.permute.xlu0 %1059
      %1061 = vrot.lane.b32.xlu0 %v797, 38
      %v1062 = vpop.permute.xlu0 %1061
      %1063 = vrot.lane.b32.xlu0 %v801, 38
      %v1064 = vpop.permute.xlu0 %1063
      %1065 = vrot.lane.b32.xlu0 %v805, 38
      %v1066 = vpop.permute.xlu0 %1065
      %1067 = vrot.lane.b32.xlu0 %v809, 38
      %v1068 = vpop.permute.xlu0 %1067
      %1069 = vrot.lane.b32.xlu0 %v813, 38
      %v1070 = vpop.permute.xlu0 %1069
      %1071 = vrot.lane.b32.xlu0 %v817, 38
      %v1072 = vpop.permute.xlu0 %1071
      %1073 = vrot.lane.b32.xlu0 %v821, 38
      %v1074 = vpop.permute.xlu0 %1073
      %vm1083 = vsmask.f32 7946
      %vm1084 = vmand %vm1032, %vm1083
      %v1085 = vld [vmem:[%s170] sm:$0x4]
      %v1086 = vsel %vm1084, %v1060, %v1085
      %1087 = vst [vmem:[%s170] sm:$0x4] %v1086
      %v1088 = vld [vmem:[%s170 + $0x8] sm:$0x4]
      %v1089 = vsel %vm1084, %v1062, %v1088
      %1090 = vst [vmem:[%s170 + $0x8] sm:$0x4] %v1089
      %v1091 = vld [vmem:[%s170 + $0x10] sm:$0x4]
      %v1092 = vsel %vm1084, %v1064, %v1091
      %1093 = vst [vmem:[%s170 + $0x10] sm:$0x4] %v1092
      %v1094 = vld [vmem:[%s170 + $0x18] sm:$0x4]
      %v1095 = vsel %vm1084, %v1066, %v1094
      %1096 = vst [vmem:[%s170 + $0x18] sm:$0x4] %v1095
      %v1097 = vld [vmem:[%s170 + $0x20] sm:$0x4]
      %v1098 = vsel %vm1084, %v1068, %v1097
      %1099 = vst [vmem:[%s170 + $0x20] sm:$0x4] %v1098
      %v1100 = vld [vmem:[%s170 + $0x28] sm:$0x4]
      %v1101 = vsel %vm1084, %v1070, %v1100
      %1102 = vst [vmem:[%s170 + $0x28] sm:$0x4] %v1101
      %v1103 = vld [vmem:[%s170 + $0x30] sm:$0x4]
      %v1104 = vsel %vm1084, %v1072, %v1103
      %1105 = vst [vmem:[%s170 + $0x30] sm:$0x4] %v1104
      %v1106 = vld [vmem:[%s170 + $0x38] sm:$0x4]
      %v1107 = vsel %vm1084, %v1074, %v1106
      %1108 = vst [vmem:[%s170 + $0x38] sm:$0x4] %v1107
      %1109 = vrot.lane.b32.xlu0 %v793, 20
      %v1110 = vpop.permute.xlu0 %1109
      %1111 = vrot.lane.b32.xlu0 %v797, 20
      %v1112 = vpop.permute.xlu0 %1111
      %1113 = vrot.lane.b32.xlu0 %v801, 20
      %v1114 = vpop.permute.xlu0 %1113
      %1115 = vrot.lane.b32.xlu0 %v805, 20
      %v1116 = vpop.permute.xlu0 %1115
      %1117 = vrot.lane.b32.xlu0 %v809, 20
      %v1118 = vpop.permute.xlu0 %1117
      %1119 = vrot.lane.b32.xlu0 %v813, 20
      %v1120 = vpop.permute.xlu0 %1119
      %1121 = vrot.lane.b32.xlu0 %v817, 20
      %v1122 = vpop.permute.xlu0 %1121
      %1123 = vrot.lane.b32.xlu0 %v821, 20
      %v1124 = vpop.permute.xlu0 %1123
      %vm1133 = vcmask 125955
      %vm1134 = vsmask.f32 3328
      %vm1135 = vmand %vm1133, %vm1134
      %v1136 = vld [vmem:[%s170] sm:$0x8]
      %v1137 = vsel %vm1135, %v1110, %v1136
      %1138 = vst [vmem:[%s170] sm:$0x8] %v1137
      %v1139 = vld [vmem:[%s170 + $0x8] sm:$0x8]
      %v1140 = vsel %vm1135, %v1112, %v1139
      %1141 = vst [vmem:[%s170 + $0x8] sm:$0x8] %v1140
      %v1142 = vld [vmem:[%s170 + $0x10] sm:$0x8]
      %v1143 = vsel %vm1135, %v1114, %v1142
      %1144 = vst [vmem:[%s170 + $0x10] sm:$0x8] %v1143
      %v1145 = vld [vmem:[%s170 + $0x18] sm:$0x8]
      %v1146 = vsel %vm1135, %v1116, %v1145
      %1147 = vst [vmem:[%s170 + $0x18] sm:$0x8] %v1146
      %v1148 = vld [vmem:[%s170 + $0x20] sm:$0x8]
      %v1149 = vsel %vm1135, %v1118, %v1148
      %1150 = vst [vmem:[%s170 + $0x20] sm:$0x8] %v1149
      %v1151 = vld [vmem:[%s170 + $0x28] sm:$0x8]
      %v1152 = vsel %vm1135, %v1120, %v1151
      %1153 = vst [vmem:[%s170 + $0x28] sm:$0x8] %v1152
      %v1154 = vld [vmem:[%s170 + $0x30] sm:$0x8]
      %v1155 = vsel %vm1135, %v1122, %v1154
      %1156 = vst [vmem:[%s170 + $0x30] sm:$0x8] %v1155
      %v1157 = vld [vmem:[%s170 + $0x38] sm:$0x8]
      %v1158 = vsel %vm1135, %v1124, %v1157
      %1159 = vst [vmem:[%s170 + $0x38] sm:$0x8] %v1158
      %1160 = vrot.lane.b32.xlu0 %v793, 2
      %v1161 = vpop.permute.xlu0 %1160
      %1162 = vrot.lane.b32.xlu0 %v797, 2
      %v1163 = vpop.permute.xlu0 %1162
      %1164 = vrot.lane.b32.xlu0 %v801, 2
      %v1165 = vpop.permute.xlu0 %1164
      %1166 = vrot.lane.b32.xlu0 %v805, 2
      %v1167 = vpop.permute.xlu0 %1166
      %1168 = vrot.lane.b32.xlu0 %v809, 2
      %v1169 = vpop.permute.xlu0 %1168
      %1170 = vrot.lane.b32.xlu0 %v813, 2
      %v1171 = vpop.permute.xlu0 %1170
      %1172 = vrot.lane.b32.xlu0 %v817, 2
      %v1173 = vpop.permute.xlu0 %1172
      %1174 = vrot.lane.b32.xlu0 %v821, 2
      %v1175 = vpop.permute.xlu0 %1174
      %v1176 = vrot.slane %v1161, 4
      %v1177 = vrot.slane %v1163, 4
      %v1178 = vrot.slane %v1165, 4
      %v1179 = vrot.slane %v1167, 4
      %v1180 = vrot.slane %v1169, 4
      %v1181 = vrot.slane %v1171, 4
      %v1182 = vrot.slane %v1173, 4
      %v1183 = vrot.slane %v1175, 4
      %vm1184 = vcmask 15360
      %v1185 = vsel %vm1184, %v1161, %v1176
      %v1186 = vsel %vm1184, %v1163, %v1177
      %v1187 = vsel %vm1184, %v1165, %v1178
      %v1188 = vsel %vm1184, %v1167, %v1179
      %v1189 = vsel %vm1184, %v1169, %v1180
      %v1190 = vsel %vm1184, %v1171, %v1181
      %v1191 = vsel %vm1184, %v1173, %v1182
      %v1192 = vsel %vm1184, %v1175, %v1183
      %vm1201 = vsmask.f32 7950
      %vm1202 = vmand %vm1133, %vm1201
      %v1203 = vld [vmem:[%s170] sm:$0x8]
      %v1204 = vsel %vm1202, %v1185, %v1203
      %1205 = vst [vmem:[%s170] sm:$0x8] %v1204
      %v1206 = vld [vmem:[%s170 + $0x8] sm:$0x8]
      %v1207 = vsel %vm1202, %v1186, %v1206
      %1208 = vst [vmem:[%s170 + $0x8] sm:$0x8] %v1207
      %v1209 = vld [vmem:[%s170 + $0x10] sm:$0x8]
      %v1210 = vsel %vm1202, %v1187, %v1209
      %1211 = vst [vmem:[%s170 + $0x10] sm:$0x8] %v1210
      %v1212 = vld [vmem:[%s170 + $0x18] sm:$0x8]
      %v1213 = vsel %vm1202, %v1188, %v1212
      %1214 = vst [vmem:[%s170 + $0x18] sm:$0x8] %v1213
      %v1215 = vld [vmem:[%s170 + $0x20] sm:$0x8]
      %v1216 = vsel %vm1202, %v1189, %v1215
      %1217 = vst [vmem:[%s170 + $0x20] sm:$0x8] %v1216
      %v1218 = vld [vmem:[%s170 + $0x28] sm:$0x8]
      %v1219 = vsel %vm1202, %v1190, %v1218
      %1220 = vst [vmem:[%s170 + $0x28] sm:$0x8] %v1219
      %v1221 = vld [vmem:[%s170 + $0x30] sm:$0x8]
      %v1222 = vsel %vm1202, %v1191, %v1221
      %1223 = vst [vmem:[%s170 + $0x30] sm:$0x8] %v1222
      %v1224 = vld [vmem:[%s170 + $0x38] sm:$0x8]
      %v1225 = vsel %vm1202, %v1192, %v1224
      %1226 = vst [vmem:[%s170 + $0x38] sm:$0x8] %v1225
      %v1227 = vpack.i.b16 %v775, %v774
      %v1228 = vpack.i.b16 %v777, %v776
      %v1229 = vpack.i.b16 %v779, %v778
      %v1230 = vpack.i.b16 %v781, %v780
      %1231 = vrot.lane.b32.xlu0 %v1227, 112
      %v1232 = vpop.permute.xlu0 %1231
      %1233 = vrot.lane.b32.xlu0 %v1228, 112
      %v1234 = vpop.permute.xlu0 %1233
      %1235 = vrot.lane.b32.xlu0 %v1229, 112
      %v1236 = vpop.permute.xlu0 %1235
      %1237 = vrot.lane.b32.xlu0 %v1230, 112
      %v1238 = vpop.permute.xlu0 %1237
      %v1239 = vrot.slane %v1232, 1
      %v1240 = vrot.slane %v1234, 1
      %v1241 = vrot.slane %v1236, 1
      %v1242 = vrot.slane %v1238, 1
      %v1243 = vunpack.i.l.s16 %v1239
      %v1244 = vunpack.i.h.s16 %v1239
      %v1245 = vunpack.i.l.s16 %v1240
      %v1246 = vunpack.i.h.s16 %v1240
      %v1247 = vunpack.i.l.s16 %v1241
      %v1248 = vunpack.i.h.s16 %v1241
      %v1249 = vunpack.i.l.s16 %v1242
      %v1250 = vunpack.i.h.s16 %v1242
      %v1251 = vpack.i.b16 %v1243, %v1243
      %v1252 = vpack.i.b16 %v1244, %v1244
      %v1253 = vpack.i.b16 %v1245, %v1245
      %v1254 = vpack.i.b16 %v1246, %v1246
      %v1255 = vpack.i.b16 %v1247, %v1247
      %v1256 = vpack.i.b16 %v1248, %v1248
      %v1257 = vpack.i.b16 %v1249, %v1249
      %v1258 = vpack.i.b16 %v1250, %v1250
      %v1260 = vunpack.c.l.s4 286326784
      %v1261 = vunpack.c.0.s8 %v1260
      %v1262 = vperm.slane %v1251, %v1261
      %v1264 = vunpack.c.l.s4 286326784
      %v1265 = vunpack.c.0.s8 %v1264
      %v1266 = vperm.slane %v1252, %v1265
      %v1268 = vunpack.c.l.s4 286326784
      %v1269 = vunpack.c.0.s8 %v1268
      %v1270 = vperm.slane %v1253, %v1269
      %v1272 = vunpack.c.l.s4 286326784
      %v1273 = vunpack.c.0.s8 %v1272
      %v1274 = vperm.slane %v1254, %v1273
      %v1276 = vunpack.c.l.s4 286326784
      %v1277 = vunpack.c.0.s8 %v1276
      %v1278 = vperm.slane %v1255, %v1277
      %v1280 = vunpack.c.l.s4 286326784
      %v1281 = vunpack.c.0.s8 %v1280
      %v1282 = vperm.slane %v1256, %v1281
      %v1284 = vunpack.c.l.s4 286326784
      %v1285 = vunpack.c.0.s8 %v1284
      %v1286 = vperm.slane %v1257, %v1285
      %v1288 = vunpack.c.l.s4 286326784
      %v1289 = vunpack.c.0.s8 %v1288
      %v1290 = vperm.slane %v1258, %v1289
      %v1299 = vld [vmem:[%s170 + $0x4] sm:$0x1]
      %v1300 = vsel %vm832, %v1262, %v1299
      %1301 = vst [vmem:[%s170 + $0x4] sm:$0x1] %v1300
      %v1302 = vld [vmem:[%s170 + $0xc] sm:$0x1]
      %v1303 = vsel %vm832, %v1266, %v1302
      %1304 = vst [vmem:[%s170 + $0xc] sm:$0x1] %v1303
      %v1305 = vld [vmem:[%s170 + $0x14] sm:$0x1]
      %v1306 = vsel %vm832, %v1270, %v1305
      %1307 = vst [vmem:[%s170 + $0x14] sm:$0x1] %v1306
      %v1308 = vld [vmem:[%s170 + $0x1c] sm:$0x1]
      %v1309 = vsel %vm832, %v1274, %v1308
      %1310 = vst [vmem:[%s170 + $0x1c] sm:$0x1] %v1309
      %v1311 = vld [vmem:[%s170 + $0x24] sm:$0x1]
      %v1312 = vsel %vm832, %v1278, %v1311
      %1313 = vst [vmem:[%s170 + $0x24] sm:$0x1] %v1312
      %v1314 = vld [vmem:[%s170 + $0x2c] sm:$0x1]
      %v1315 = vsel %vm832, %v1282, %v1314
      %1316 = vst [vmem:[%s170 + $0x2c] sm:$0x1] %v1315
      %v1317 = vld [vmem:[%s170 + $0x34] sm:$0x1]
      %v1318 = vsel %vm832, %v1286, %v1317
      %1319 = vst [vmem:[%s170 + $0x34] sm:$0x1] %v1318
      %v1320 = vld [vmem:[%s170 + $0x3c] sm:$0x1]
      %v1321 = vsel %vm832, %v1290, %v1320
      %1322 = vst [vmem:[%s170 + $0x3c] sm:$0x1] %v1321
      %1323 = vrot.lane.b32.xlu0 %v1227, 94
      %v1324 = vpop.permute.xlu0 %1323
      %1325 = vrot.lane.b32.xlu0 %v1228, 94
      %v1326 = vpop.permute.xlu0 %1325
      %1327 = vrot.lane.b32.xlu0 %v1229, 94
      %v1328 = vpop.permute.xlu0 %1327
      %1329 = vrot.lane.b32.xlu0 %v1230, 94
      %v1330 = vpop.permute.xlu0 %1329
      %v1331 = vrot.slane %v1324, 1
      %v1332 = vrot.slane %v1326, 1
      %v1333 = vrot.slane %v1328, 1
      %v1334 = vrot.slane %v1330, 1
      %v1335 = vunpack.i.l.s16 %v1331
      %v1336 = vunpack.i.h.s16 %v1331
      %v1337 = vunpack.i.l.s16 %v1332
      %v1338 = vunpack.i.h.s16 %v1332
      %v1339 = vunpack.i.l.s16 %v1333
      %v1340 = vunpack.i.h.s16 %v1333
      %v1341 = vunpack.i.l.s16 %v1334
      %v1342 = vunpack.i.h.s16 %v1334
      %v1343 = vpack.i.b16 %v1335, %v1335
      %v1344 = vpack.i.b16 %v1336, %v1336
      %v1345 = vpack.i.b16 %v1337, %v1337
      %v1346 = vpack.i.b16 %v1338, %v1338
      %v1347 = vpack.i.b16 %v1339, %v1339
      %v1348 = vpack.i.b16 %v1340, %v1340
      %v1349 = vpack.i.b16 %v1341, %v1341
      %v1350 = vpack.i.b16 %v1342, %v1342
      %v1352 = vunpack.c.l.s4 286326784
      %v1353 = vunpack.c.0.s8 %v1352
      %v1354 = vperm.slane %v1343, %v1353
      %v1356 = vunpack.c.l.s4 286326784
      %v1357 = vunpack.c.0.s8 %v1356
      %v1358 = vperm.slane %v1344, %v1357
      %v1360 = vunpack.c.l.s4 286326784
      %v1361 = vunpack.c.0.s8 %v1360
      %v1362 = vperm.slane %v1345, %v1361
      %v1364 = vunpack.c.l.s4 286326784
      %v1365 = vunpack.c.0.s8 %v1364
      %v1366 = vperm.slane %v1346, %v1365
      %v1368 = vunpack.c.l.s4 286326784
      %v1369 = vunpack.c.0.s8 %v1368
      %v1370 = vperm.slane %v1347, %v1369
      %v1372 = vunpack.c.l.s4 286326784
      %v1373 = vunpack.c.0.s8 %v1372
      %v1374 = vperm.slane %v1348, %v1373
      %v1376 = vunpack.c.l.s4 286326784
      %v1377 = vunpack.c.0.s8 %v1376
      %v1378 = vperm.slane %v1349, %v1377
      %v1380 = vunpack.c.l.s4 286326784
      %v1381 = vunpack.c.0.s8 %v1380
      %v1382 = vperm.slane %v1350, %v1381
      %v1391 = vld [vmem:[%s170 + $0x4] sm:$0x1]
      %v1392 = vsel %vm882, %v1354, %v1391
      %1393 = vst [vmem:[%s170 + $0x4] sm:$0x1] %v1392
      %v1394 = vld [vmem:[%s170 + $0xc] sm:$0x1]
      %v1395 = vsel %vm882, %v1358, %v1394
      %1396 = vst [vmem:[%s170 + $0xc] sm:$0x1] %v1395
      %v1397 = vld [vmem:[%s170 + $0x14] sm:$0x1]
      %v1398 = vsel %vm882, %v1362, %v1397
      %1399 = vst [vmem:[%s170 + $0x14] sm:$0x1] %v1398
      %v1400 = vld [vmem:[%s170 + $0x1c] sm:$0x1]
      %v1401 = vsel %vm882, %v1366, %v1400
      %1402 = vst [vmem:[%s170 + $0x1c] sm:$0x1] %v1401
      %v1403 = vld [vmem:[%s170 + $0x24] sm:$0x1]
      %v1404 = vsel %vm882, %v1370, %v1403
      %1405 = vst [vmem:[%s170 + $0x24] sm:$0x1] %v1404
      %v1406 = vld [vmem:[%s170 + $0x2c] sm:$0x1]
      %v1407 = vsel %vm882, %v1374, %v1406
      %1408 = vst [vmem:[%s170 + $0x2c] sm:$0x1] %v1407
      %v1409 = vld [vmem:[%s170 + $0x34] sm:$0x1]
      %v1410 = vsel %vm882, %v1378, %v1409
      %1411 = vst [vmem:[%s170 + $0x34] sm:$0x1] %v1410
      %v1412 = vld [vmem:[%s170 + $0x3c] sm:$0x1]
      %v1413 = vsel %vm882, %v1382, %v1412
      %1414 = vst [vmem:[%s170 + $0x3c] sm:$0x1] %v1413
      %1415 = vrot.lane.b32.xlu0 %v1227, 76
      %v1416 = vpop.permute.xlu0 %1415
      %1417 = vrot.lane.b32.xlu0 %v1228, 76
      %v1418 = vpop.permute.xlu0 %1417
      %1419 = vrot.lane.b32.xlu0 %v1229, 76
      %v1420 = vpop.permute.xlu0 %1419
      %1421 = vrot.lane.b32.xlu0 %v1230, 76
      %v1422 = vpop.permute.xlu0 %1421
      %v1423 = vrot.slane %v1416, 1
      %v1424 = vrot.slane %v1418, 1
      %v1425 = vrot.slane %v1420, 1
      %v1426 = vrot.slane %v1422, 1
      %v1427 = vunpack.i.l.s16 %v1423
      %v1428 = vunpack.i.h.s16 %v1423
      %v1429 = vunpack.i.l.s16 %v1424
      %v1430 = vunpack.i.h.s16 %v1424
      %v1431 = vunpack.i.l.s16 %v1425
      %v1432 = vunpack.i.h.s16 %v1425
      %v1433 = vunpack.i.l.s16 %v1426
      %v1434 = vunpack.i.h.s16 %v1426
      %v1435 = vpack.i.b16 %v1427, %v1427
      %v1436 = vpack.i.b16 %v1428, %v1428
      %v1437 = vpack.i.b16 %v1429, %v1429
      %v1438 = vpack.i.b16 %v1430, %v1430
      %v1439 = vpack.i.b16 %v1431, %v1431
      %v1440 = vpack.i.b16 %v1432, %v1432
      %v1441 = vpack.i.b16 %v1433, %v1433
      %v1442 = vpack.i.b16 %v1434, %v1434
      %v1444 = vunpack.c.l.s4 286326784
      %v1445 = vunpack.c.0.s8 %v1444
      %v1446 = vperm.slane %v1435, %v1445
      %v1448 = vunpack.c.l.s4 286326784
      %v1449 = vunpack.c.0.s8 %v1448
      %v1450 = vperm.slane %v1436, %v1449
      %v1452 = vunpack.c.l.s4 286326784
      %v1453 = vunpack.c.0.s8 %v1452
      %v1454 = vperm.slane %v1437, %v1453
      %v1456 = vunpack.c.l.s4 286326784
      %v1457 = vunpack.c.0.s8 %v1456
      %v1458 = vperm.slane %v1438, %v1457
      %v1460 = vunpack.c.l.s4 286326784
      %v1461 = vunpack.c.0.s8 %v1460
      %v1462 = vperm.slane %v1439, %v1461
      %v1464 = vunpack.c.l.s4 286326784
      %v1465 = vunpack.c.0.s8 %v1464
      %v1466 = vperm.slane %v1440, %v1465
      %v1468 = vunpack.c.l.s4 286326784
      %v1469 = vunpack.c.0.s8 %v1468
      %v1470 = vperm.slane %v1441, %v1469
      %v1472 = vunpack.c.l.s4 286326784
      %v1473 = vunpack.c.0.s8 %v1472
      %v1474 = vperm.slane %v1442, %v1473
      %v1483 = vld [vmem:[%s170 + $0x4] sm:$0x2]
      %v1484 = vsel %vm933, %v1446, %v1483
      %1485 = vst [vmem:[%s170 + $0x4] sm:$0x2] %v1484
      %v1486 = vld [vmem:[%s170 + $0xc] sm:$0x2]
      %v1487 = vsel %vm933, %v1450, %v1486
      %1488 = vst [vmem:[%s170 + $0xc] sm:$0x2] %v1487
      %v1489 = vld [vmem:[%s170 + $0x14] sm:$0x2]
      %v1490 = vsel %vm933, %v1454, %v1489
      %1491 = vst [vmem:[%s170 + $0x14] sm:$0x2] %v1490
      %v1492 = vld [vmem:[%s170 + $0x1c] sm:$0x2]
      %v1493 = vsel %vm933, %v1458, %v1492
      %1494 = vst [vmem:[%s170 + $0x1c] sm:$0x2] %v1493
      %v1495 = vld [vmem:[%s170 + $0x24] sm:$0x2]
      %v1496 = vsel %vm933, %v1462, %v1495
      %1497 = vst [vmem:[%s170 + $0x24] sm:$0x2] %v1496
      %v1498 = vld [vmem:[%s170 + $0x2c] sm:$0x2]
      %v1499 = vsel %vm933, %v1466, %v1498
      %1500 = vst [vmem:[%s170 + $0x2c] sm:$0x2] %v1499
      %v1501 = vld [vmem:[%s170 + $0x34] sm:$0x2]
      %v1502 = vsel %vm933, %v1470, %v1501
      %1503 = vst [vmem:[%s170 + $0x34] sm:$0x2] %v1502
      %v1504 = vld [vmem:[%s170 + $0x3c] sm:$0x2]
      %v1505 = vsel %vm933, %v1474, %v1504
      %1506 = vst [vmem:[%s170 + $0x3c] sm:$0x2] %v1505
      %1507 = vrot.lane.b32.xlu0 %v1227, 58
      %v1508 = vpop.permute.xlu0 %1507
      %1509 = vrot.lane.b32.xlu0 %v1228, 58
      %v1510 = vpop.permute.xlu0 %1509
      %1511 = vrot.lane.b32.xlu0 %v1229, 58
      %v1512 = vpop.permute.xlu0 %1511
      %1513 = vrot.lane.b32.xlu0 %v1230, 58
      %v1514 = vpop.permute.xlu0 %1513
      %v1515 = vrot.slane %v1508, 1
      %v1516 = vrot.slane %v1510, 1
      %v1517 = vrot.slane %v1512, 1
      %v1518 = vrot.slane %v1514, 1
      %v1519 = vunpack.i.l.s16 %v1515
      %v1520 = vunpack.i.h.s16 %v1515
      %v1521 = vunpack.i.l.s16 %v1516
      %v1522 = vunpack.i.h.s16 %v1516
      %v1523 = vunpack.i.l.s16 %v1517
      %v1524 = vunpack.i.h.s16 %v1517
      %v1525 = vunpack.i.l.s16 %v1518
      %v1526 = vunpack.i.h.s16 %v1518
      %v1527 = vpack.i.b16 %v1519, %v1519
      %v1528 = vpack.i.b16 %v1520, %v1520
      %v1529 = vpack.i.b16 %v1521, %v1521
      %v1530 = vpack.i.b16 %v1522, %v1522
      %v1531 = vpack.i.b16 %v1523, %v1523
      %v1532 = vpack.i.b16 %v1524, %v1524
      %v1533 = vpack.i.b16 %v1525, %v1525
      %v1534 = vpack.i.b16 %v1526, %v1526
      %v1536 = vunpack.c.l.s4 286326784
      %v1537 = vunpack.c.0.s8 %v1536
      %v1538 = vperm.slane %v1527, %v1537
      %v1540 = vunpack.c.l.s4 286326784
      %v1541 = vunpack.c.0.s8 %v1540
      %v1542 = vperm.slane %v1528, %v1541
      %v1544 = vunpack.c.l.s4 286326784
      %v1545 = vunpack.c.0.s8 %v1544
      %v1546 = vperm.slane %v1529, %v1545
      %v1548 = vunpack.c.l.s4 286326784
      %v1549 = vunpack.c.0.s8 %v1548
      %v1550 = vperm.slane %v1530, %v1549
      %v1552 = vunpack.c.l.s4 286326784
      %v1553 = vunpack.c.0.s8 %v1552
      %v1554 = vperm.slane %v1531, %v1553
      %v1556 = vunpack.c.l.s4 286326784
      %v1557 = vunpack.c.0.s8 %v1556
      %v1558 = vperm.slane %v1532, %v1557
      %v1560 = vunpack.c.l.s4 286326784
      %v1561 = vunpack.c.0.s8 %v1560
      %v1562 = vperm.slane %v1533, %v1561
      %v1564 = vunpack.c.l.s4 286326784
      %v1565 = vunpack.c.0.s8 %v1564
      %v1566 = vperm.slane %v1534, %v1565
      %v1575 = vld [vmem:[%s170 + $0x4] sm:$0x2]
      %v1576 = vsel %vm983, %v1538, %v1575
      %1577 = vst [vmem:[%s170 + $0x4] sm:$0x2] %v1576
      %v1578 = vld [vmem:[%s170 + $0xc] sm:$0x2]
      %v1579 = vsel %vm983, %v1542, %v1578
      %1580 = vst [vmem:[%s170 + $0xc] sm:$0x2] %v1579
      %v1581 = vld [vmem:[%s170 + $0x14] sm:$0x2]
      %v1582 = vsel %vm983, %v1546, %v1581
      %1583 = vst [vmem:[%s170 + $0x14] sm:$0x2] %v1582
      %v1584 = vld [vmem:[%s170 + $0x1c] sm:$0x2]
      %v1585 = vsel %vm983, %v1550, %v1584
      %1586 = vst [vmem:[%s170 + $0x1c] sm:$0x2] %v1585
      %v1587 = vld [vmem:[%s170 + $0x24] sm:$0x2]
      %v1588 = vsel %vm983, %v1554, %v1587
      %1589 = vst [vmem:[%s170 + $0x24] sm:$0x2] %v1588
      %v1590 = vld [vmem:[%s170 + $0x2c] sm:$0x2]
      %v1591 = vsel %vm983, %v1558, %v1590
      %1592 = vst [vmem:[%s170 + $0x2c] sm:$0x2] %v1591
      %v1593 = vld [vmem:[%s170 + $0x34] sm:$0x2]
      %v1594 = vsel %vm983, %v1562, %v1593
      %1595 = vst [vmem:[%s170 + $0x34] sm:$0x2] %v1594
      %v1596 = vld [vmem:[%s170 + $0x3c] sm:$0x2]
      %v1597 = vsel %vm983, %v1566, %v1596
      %1598 = vst [vmem:[%s170 + $0x3c] sm:$0x2] %v1597
      %1599 = vrot.lane.b32.xlu0 %v1227, 40
      %v1600 = vpop.permute.xlu0 %1599
      %1601 = vrot.lane.b32.xlu0 %v1228, 40
      %v1602 = vpop.permute.xlu0 %1601
      %1603 = vrot.lane.b32.xlu0 %v1229, 40
      %v1604 = vpop.permute.xlu0 %1603
      %1605 = vrot.lane.b32.xlu0 %v1230, 40
      %v1606 = vpop.permute.xlu0 %1605
      %v1607 = vrot.slane %v1600, 1
      %v1608 = vrot.slane %v1602, 1
      %v1609 = vrot.slane %v1604, 1
      %v1610 = vrot.slane %v1606, 1
      %v1611 = vunpack.i.l.s16 %v1607
      %v1612 = vunpack.i.h.s16 %v1607
      %v1613 = vunpack.i.l.s16 %v1608
      %v1614 = vunpack.i.h.s16 %v1608
      %v1615 = vunpack.i.l.s16 %v1609
      %v1616 = vunpack.i.h.s16 %v1609
      %v1617 = vunpack.i.l.s16 %v1610
      %v1618 = vunpack.i.h.s16 %v1610
      %v1619 = vpack.i.b16 %v1611, %v1611
      %v1620 = vpack.i.b16 %v1612, %v1612
      %v1621 = vpack.i.b16 %v1613, %v1613
      %v1622 = vpack.i.b16 %v1614, %v1614
      %v1623 = vpack.i.b16 %v1615, %v1615
      %v1624 = vpack.i.b16 %v1616, %v1616
      %v1625 = vpack.i.b16 %v1617, %v1617
      %v1626 = vpack.i.b16 %v1618, %v1618
      %v1628 = vunpack.c.l.s4 286326784
      %v1629 = vunpack.c.0.s8 %v1628
      %v1630 = vperm.slane %v1619, %v1629
      %v1632 = vunpack.c.l.s4 286326784
      %v1633 = vunpack.c.0.s8 %v1632
      %v1634 = vperm.slane %v1620, %v1633
      %v1636 = vunpack.c.l.s4 286326784
      %v1637 = vunpack.c.0.s8 %v1636
      %v1638 = vperm.slane %v1621, %v1637
      %v1640 = vunpack.c.l.s4 286326784
      %v1641 = vunpack.c.0.s8 %v1640
      %v1642 = vperm.slane %v1622, %v1641
      %v1644 = vunpack.c.l.s4 286326784
      %v1645 = vunpack.c.0.s8 %v1644
      %v1646 = vperm.slane %v1623, %v1645
      %v1648 = vunpack.c.l.s4 286326784
      %v1649 = vunpack.c.0.s8 %v1648
      %v1650 = vperm.slane %v1624, %v1649
      %v1652 = vunpack.c.l.s4 286326784
      %v1653 = vunpack.c.0.s8 %v1652
      %v1654 = vperm.slane %v1625, %v1653
      %v1656 = vunpack.c.l.s4 286326784
      %v1657 = vunpack.c.0.s8 %v1656
      %v1658 = vperm.slane %v1626, %v1657
      %v1667 = vld [vmem:[%s170 + $0x4] sm:$0x4]
      %v1668 = vsel %vm1034, %v1630, %v1667
      %1669 = vst [vmem:[%s170 + $0x4] sm:$0x4] %v1668
      %v1670 = vld [vmem:[%s170 + $0xc] sm:$0x4]
      %v1671 = vsel %vm1034, %v1634, %v1670
      %1672 = vst [vmem:[%s170 + $0xc] sm:$0x4] %v1671
      %v1673 = vld [vmem:[%s170 + $0x14] sm:$0x4]
      %v1674 = vsel %vm1034, %v1638, %v1673
      %1675 = vst [vmem:[%s170 + $0x14] sm:$0x4] %v1674
      %v1676 = vld [vmem:[%s170 + $0x1c] sm:$0x4]
      %v1677 = vsel %vm1034, %v1642, %v1676
      %1678 = vst [vmem:[%s170 + $0x1c] sm:$0x4] %v1677
      %v1679 = vld [vmem:[%s170 + $0x24] sm:$0x4]
      %v1680 = vsel %vm1034, %v1646, %v1679
      %1681 = vst [vmem:[%s170 + $0x24] sm:$0x4] %v1680
      %v1682 = vld [vmem:[%s170 + $0x2c] sm:$0x4]
      %v1683 = vsel %vm1034, %v1650, %v1682
      %1684 = vst [vmem:[%s170 + $0x2c] sm:$0x4] %v1683
      %v1685 = vld [vmem:[%s170 + $0x34] sm:$0x4]
      %v1686 = vsel %vm1034, %v1654, %v1685
      %1687 = vst [vmem:[%s170 + $0x34] sm:$0x4] %v1686
      %v1688 = vld [vmem:[%s170 + $0x3c] sm:$0x4]
      %v1689 = vsel %vm1034, %v1658, %v1688
      %1690 = vst [vmem:[%s170 + $0x3c] sm:$0x4] %v1689
      %1691 = vrot.lane.b32.xlu0 %v1227, 22
      %v1692 = vpop.permute.xlu0 %1691
      %1693 = vrot.lane.b32.xlu0 %v1228, 22
      %v1694 = vpop.permute.xlu0 %1693
      %1695 = vrot.lane.b32.xlu0 %v1229, 22
      %v1696 = vpop.permute.xlu0 %1695
      %1697 = vrot.lane.b32.xlu0 %v1230, 22
      %v1698 = vpop.permute.xlu0 %1697
      %v1699 = vrot.slane %v1692, 1
      %v1700 = vrot.slane %v1694, 1
      %v1701 = vrot.slane %v1696, 1
      %v1702 = vrot.slane %v1698, 1
      %v1703 = vunpack.i.l.s16 %v1699
      %v1704 = vunpack.i.h.s16 %v1699
      %v1705 = vunpack.i.l.s16 %v1700
      %v1706 = vunpack.i.h.s16 %v1700
      %v1707 = vunpack.i.l.s16 %v1701
      %v1708 = vunpack.i.h.s16 %v1701
      %v1709 = vunpack.i.l.s16 %v1702
      %v1710 = vunpack.i.h.s16 %v1702
      %v1711 = vpack.i.b16 %v1703, %v1703
      %v1712 = vpack.i.b16 %v1704, %v1704
      %v1713 = vpack.i.b16 %v1705, %v1705
      %v1714 = vpack.i.b16 %v1706, %v1706
      %v1715 = vpack.i.b16 %v1707, %v1707
      %v1716 = vpack.i.b16 %v1708, %v1708
      %v1717 = vpack.i.b16 %v1709, %v1709
      %v1718 = vpack.i.b16 %v1710, %v1710
      %v1720 = vunpack.c.l.s4 286326784
      %v1721 = vunpack.c.0.s8 %v1720
      %v1722 = vperm.slane %v1711, %v1721
      %v1724 = vunpack.c.l.s4 286326784
      %v1725 = vunpack.c.0.s8 %v1724
      %v1726 = vperm.slane %v1712, %v1725
      %v1728 = vunpack.c.l.s4 286326784
      %v1729 = vunpack.c.0.s8 %v1728
      %v1730 = vperm.slane %v1713, %v1729
      %v1732 = vunpack.c.l.s4 286326784
      %v1733 = vunpack.c.0.s8 %v1732
      %v1734 = vperm.slane %v1714, %v1733
      %v1736 = vunpack.c.l.s4 286326784
      %v1737 = vunpack.c.0.s8 %v1736
      %v1738 = vperm.slane %v1715, %v1737
      %v1740 = vunpack.c.l.s4 286326784
      %v1741 = vunpack.c.0.s8 %v1740
      %v1742 = vperm.slane %v1716, %v1741
      %v1744 = vunpack.c.l.s4 286326784
      %v1745 = vunpack.c.0.s8 %v1744
      %v1746 = vperm.slane %v1717, %v1745
      %v1748 = vunpack.c.l.s4 286326784
      %v1749 = vunpack.c.0.s8 %v1748
      %v1750 = vperm.slane %v1718, %v1749
      %v1759 = vld [vmem:[%s170 + $0x4] sm:$0x4]
      %v1760 = vsel %vm1084, %v1722, %v1759
      %1761 = vst [vmem:[%s170 + $0x4] sm:$0x4] %v1760
      %v1762 = vld [vmem:[%s170 + $0xc] sm:$0x4]
      %v1763 = vsel %vm1084, %v1726, %v1762
      %1764 = vst [vmem:[%s170 + $0xc] sm:$0x4] %v1763
      %v1765 = vld [vmem:[%s170 + $0x14] sm:$0x4]
      %v1766 = vsel %vm1084, %v1730, %v1765
      %1767 = vst [vmem:[%s170 + $0x14] sm:$0x4] %v1766
      %v1768 = vld [vmem:[%s170 + $0x1c] sm:$0x4]
      %v1769 = vsel %vm1084, %v1734, %v1768
      %1770 = vst [vmem:[%s170 + $0x1c] sm:$0x4] %v1769
      %v1771 = vld [vmem:[%s170 + $0x24] sm:$0x4]
      %v1772 = vsel %vm1084, %v1738, %v1771
      %1773 = vst [vmem:[%s170 + $0x24] sm:$0x4] %v1772
      %v1774 = vld [vmem:[%s170 + $0x2c] sm:$0x4]
      %v1775 = vsel %vm1084, %v1742, %v1774
      %1776 = vst [vmem:[%s170 + $0x2c] sm:$0x4] %v1775
      %v1777 = vld [vmem:[%s170 + $0x34] sm:$0x4]
      %v1778 = vsel %vm1084, %v1746, %v1777
      %1779 = vst [vmem:[%s170 + $0x34] sm:$0x4] %v1778
      %v1780 = vld [vmem:[%s170 + $0x3c] sm:$0x4]
      %v1781 = vsel %vm1084, %v1750, %v1780
      %1782 = vst [vmem:[%s170 + $0x3c] sm:$0x4] %v1781
      %v1784 = vrot.slane %v754, 6
      %v1785 = vrot.slane %v754, 1
      %v1788 = vsel %vm766, %v1784, %v1785
      %vm1789 = vcmask 1041408
      %v1790 = vsel %vm1789, %v760, %v1788
      %v1792 = vsel %vm770, %v1784, %v1785
      %vm1793 = vcmask 1042433
      %v1794 = vsel %vm1793, %v763, %v1792
      %v1796 = vrot.slane %v1794, 1
      %vm1797 = vcmask 1044484
      %v1798 = vsel %vm1797, %v1784, %v1785
      %vm1799 = vcmask 1043458
      %v1800 = vsel %vm1799, %v767, %v1798
      %v1802 = vrot.slane %v1800, 2
      %vm1803 = vcmask 1045509
      %v1804 = vsel %vm1803, %v1784, %v1785
      %vm1805 = vcmask 1044483
      %v1806 = vsel %vm1805, %v771, %v1804
      %v1808 = vrot.slane %v1806, 3
      %v1809 = vunpack.i.l.s16 %v1790
      %v1810 = vunpack.i.h.s16 %v1790
      %v1811 = vunpack.i.l.s16 %v1796
      %v1812 = vunpack.i.h.s16 %v1796
      %v1813 = vunpack.i.l.s16 %v1802
      %v1814 = vunpack.i.h.s16 %v1802
      %v1815 = vunpack.i.l.s16 %v1808
      %v1816 = vunpack.i.h.s16 %v1808
      %v1817 = vpack.i.b16 %v1810, %v1809
      %v1818 = vpack.i.b16 %v1812, %v1811
      %v1819 = vpack.i.b16 %v1814, %v1813
      %v1820 = vpack.i.b16 %v1816, %v1815
      %1821 = vrot.lane.b32.xlu0 %v1817, 4
      %v1822 = vpop.permute.xlu0 %1821
      %1823 = vrot.lane.b32.xlu0 %v1818, 4
      %v1824 = vpop.permute.xlu0 %1823
      %1825 = vrot.lane.b32.xlu0 %v1819, 4
      %v1826 = vpop.permute.xlu0 %1825
      %1827 = vrot.lane.b32.xlu0 %v1820, 4
      %v1828 = vpop.permute.xlu0 %1827
      %v1829 = vrot.slane %v1822, 1
      %v1830 = vrot.slane %v1824, 1
      %v1831 = vrot.slane %v1826, 1
      %v1832 = vrot.slane %v1828, 1
      %v1833 = vrot.slane %v1822, 2
      %v1834 = vrot.slane %v1824, 2
      %v1835 = vrot.slane %v1826, 2
      %v1836 = vrot.slane %v1828, 2
      %vm1837 = vcmask 31744
      %v1838 = vsel %vm1837, %v1829, %v1833
      %v1839 = vsel %vm1837, %v1830, %v1834
      %v1840 = vsel %vm1837, %v1831, %v1835
      %v1841 = vsel %vm1837, %v1832, %v1836
      %v1842 = vunpack.i.l.s16 %v1838
      %v1843 = vunpack.i.h.s16 %v1838
      %v1844 = vunpack.i.l.s16 %v1839
      %v1845 = vunpack.i.h.s16 %v1839
      %v1846 = vunpack.i.l.s16 %v1840
      %v1847 = vunpack.i.h.s16 %v1840
      %v1848 = vunpack.i.l.s16 %v1841
      %v1849 = vunpack.i.h.s16 %v1841
      %v1850 = vpack.i.b16 %v1842, %v1842
      %v1851 = vpack.i.b16 %v1843, %v1843
      %v1852 = vpack.i.b16 %v1844, %v1844
      %v1853 = vpack.i.b16 %v1845, %v1845
      %v1854 = vpack.i.b16 %v1846, %v1846
      %v1855 = vpack.i.b16 %v1847, %v1847
      %v1856 = vpack.i.b16 %v1848, %v1848
      %v1857 = vpack.i.b16 %v1849, %v1849
      %v1859 = vunpack.c.l.s4 286326784
      %v1860 = vunpack.c.0.s8 %v1859
      %v1861 = vperm.slane %v1850, %v1860
      %v1863 = vunpack.c.l.s4 286326784
      %v1864 = vunpack.c.0.s8 %v1863
      %v1865 = vperm.slane %v1851, %v1864
      %v1867 = vunpack.c.l.s4 286326784
      %v1868 = vunpack.c.0.s8 %v1867
      %v1869 = vperm.slane %v1852, %v1868
      %v1871 = vunpack.c.l.s4 286326784
      %v1872 = vunpack.c.0.s8 %v1871
      %v1873 = vperm.slane %v1853, %v1872
      %v1875 = vunpack.c.l.s4 286326784
      %v1876 = vunpack.c.0.s8 %v1875
      %v1877 = vperm.slane %v1854, %v1876
      %v1879 = vunpack.c.l.s4 286326784
      %v1880 = vunpack.c.0.s8 %v1879
      %v1881 = vperm.slane %v1855, %v1880
      %v1883 = vunpack.c.l.s4 286326784
      %v1884 = vunpack.c.0.s8 %v1883
      %v1885 = vperm.slane %v1856, %v1884
      %v1887 = vunpack.c.l.s4 286326784
      %v1888 = vunpack.c.0.s8 %v1887
      %v1889 = vperm.slane %v1857, %v1888
      %v1898 = vld [vmem:[%s170 + $0x4] sm:$0x8]
      %v1899 = vsel %vm1135, %v1861, %v1898
      %1900 = vst [vmem:[%s170 + $0x4] sm:$0x8] %v1899
      %v1901 = vld [vmem:[%s170 + $0xc] sm:$0x8]
      %v1902 = vsel %vm1135, %v1865, %v1901
      %1903 = vst [vmem:[%s170 + $0xc] sm:$0x8] %v1902
      %v1904 = vld [vmem:[%s170 + $0x14] sm:$0x8]
      %v1905 = vsel %vm1135, %v1869, %v1904
      %1906 = vst [vmem:[%s170 + $0x14] sm:$0x8] %v1905
      %v1907 = vld [vmem:[%s170 + $0x1c] sm:$0x8]
      %v1908 = vsel %vm1135, %v1873, %v1907
      %1909 = vst [vmem:[%s170 + $0x1c] sm:$0x8] %v1908
      %v1910 = vld [vmem:[%s170 + $0x24] sm:$0x8]
      %v1911 = vsel %vm1135, %v1877, %v1910
      %1912 = vst [vmem:[%s170 + $0x24] sm:$0x8] %v1911
      %v1913 = vld [vmem:[%s170 + $0x2c] sm:$0x8]
      %v1914 = vsel %vm1135, %v1881, %v1913
      %1915 = vst [vmem:[%s170 + $0x2c] sm:$0x8] %v1914
      %v1916 = vld [vmem:[%s170 + $0x34] sm:$0x8]
      %v1917 = vsel %vm1135, %v1885, %v1916
      %1918 = vst [vmem:[%s170 + $0x34] sm:$0x8] %v1917
      %v1919 = vld [vmem:[%s170 + $0x3c] sm:$0x8]
      %v1920 = vsel %vm1135, %v1889, %v1919
      %1921 = vst [vmem:[%s170 + $0x3c] sm:$0x8] %v1920
      %v1922 = vrot.slane %v754, 3
      %v1925 = vsel %vm757, %v754, %v1922
      %v1927 = vsel %vm762, %v754, %v1922
      %v1929 = vrot.slane %v1927, 1
      %v1930 = vsel %vm766, %v754, %v1922
      %v1932 = vrot.slane %v1930, 2
      %v1933 = vsel %vm770, %v754, %v1922
      %v1935 = vrot.slane %v1933, 3
      %v1936 = vunpack.i.l.s16 %v1925
      %v1937 = vunpack.i.h.s16 %v1925
      %v1938 = vunpack.i.l.s16 %v1929
      %v1939 = vunpack.i.h.s16 %v1929
      %v1940 = vunpack.i.l.s16 %v1932
      %v1941 = vunpack.i.h.s16 %v1932
      %v1942 = vunpack.i.l.s16 %v1935
      %v1943 = vunpack.i.h.s16 %v1935
      %v1944 = vpack.i.b16 %v1936, %v1936
      %v1945 = vpack.i.b16 %v1937, %v1937
      %v1946 = vpack.i.b16 %v1938, %v1938
      %v1947 = vpack.i.b16 %v1939, %v1939
      %v1948 = vpack.i.b16 %v1940, %v1940
      %v1949 = vpack.i.b16 %v1941, %v1941
      %v1950 = vpack.i.b16 %v1942, %v1942
      %v1951 = vpack.i.b16 %v1943, %v1943
      %v1953 = vunpack.c.l.s4 286326784
      %v1954 = vunpack.c.0.s8 %v1953
      %v1955 = vperm.slane %v1944, %v1954
      %v1957 = vunpack.c.l.s4 286326784
      %v1958 = vunpack.c.0.s8 %v1957
      %v1959 = vperm.slane %v1945, %v1958
      %v1961 = vunpack.c.l.s4 286326784
      %v1962 = vunpack.c.0.s8 %v1961
      %v1963 = vperm.slane %v1946, %v1962
      %v1965 = vunpack.c.l.s4 286326784
      %v1966 = vunpack.c.0.s8 %v1965
      %v1967 = vperm.slane %v1947, %v1966
      %v1969 = vunpack.c.l.s4 286326784
      %v1970 = vunpack.c.0.s8 %v1969
      %v1971 = vperm.slane %v1948, %v1970
      %v1973 = vunpack.c.l.s4 286326784
      %v1974 = vunpack.c.0.s8 %v1973
      %v1975 = vperm.slane %v1949, %v1974
      %v1977 = vunpack.c.l.s4 286326784
      %v1978 = vunpack.c.0.s8 %v1977
      %v1979 = vperm.slane %v1950, %v1978
      %v1981 = vunpack.c.l.s4 286326784
      %v1982 = vunpack.c.0.s8 %v1981
      %v1983 = vperm.slane %v1951, %v1982
      %1984 = vrot.lane.b32.xlu0 %v1955, 114
      %v1985 = vpop.permute.xlu0 %1984
      %1986 = vrot.lane.b32.xlu0 %v1959, 114
      %v1987 = vpop.permute.xlu0 %1986
      %1988 = vrot.lane.b32.xlu0 %v1963, 114
      %v1989 = vpop.permute.xlu0 %1988
      %1990 = vrot.lane.b32.xlu0 %v1967, 114
      %v1991 = vpop.permute.xlu0 %1990
      %1992 = vrot.lane.b32.xlu0 %v1971, 114
      %v1993 = vpop.permute.xlu0 %1992
      %1994 = vrot.lane.b32.xlu0 %v1975, 114
      %v1995 = vpop.permute.xlu0 %1994
      %1996 = vrot.lane.b32.xlu0 %v1979, 114
      %v1997 = vpop.permute.xlu0 %1996
      %1998 = vrot.lane.b32.xlu0 %v1983, 114
      %v1999 = vpop.permute.xlu0 %1998
      %v2008 = vld [vmem:[%s170 + $0x4] sm:$0x8]
      %v2009 = vsel %vm1202, %v1985, %v2008
      %2010 = vst [vmem:[%s170 + $0x4] sm:$0x8] %v2009
      %v2011 = vld [vmem:[%s170 + $0xc] sm:$0x8]
      %v2012 = vsel %vm1202, %v1987, %v2011
      %2013 = vst [vmem:[%s170 + $0xc] sm:$0x8] %v2012
      %v2014 = vld [vmem:[%s170 + $0x14] sm:$0x8]
      %v2015 = vsel %vm1202, %v1989, %v2014
      %2016 = vst [vmem:[%s170 + $0x14] sm:$0x8] %v2015
      %v2017 = vld [vmem:[%s170 + $0x1c] sm:$0x8]
      %v2018 = vsel %vm1202, %v1991, %v2017
      %2019 = vst [vmem:[%s170 + $0x1c] sm:$0x8] %v2018
      %v2020 = vld [vmem:[%s170 + $0x24] sm:$0x8]
      %v2021 = vsel %vm1202, %v1993, %v2020
      %2022 = vst [vmem:[%s170 + $0x24] sm:$0x8] %v2021
      %v2023 = vld [vmem:[%s170 + $0x2c] sm:$0x8]
      %v2024 = vsel %vm1202, %v1995, %v2023
      %2025 = vst [vmem:[%s170 + $0x2c] sm:$0x8] %v2024
      %v2026 = vld [vmem:[%s170 + $0x34] sm:$0x8]
      %v2027 = vsel %vm1202, %v1997, %v2026
      %2028 = vst [vmem:[%s170 + $0x34] sm:$0x8] %v2027
      %v2029 = vld [vmem:[%s170 + $0x3c] sm:$0x8]
      %v2030 = vsel %vm1202, %v1999, %v2029
      %2031 = vst [vmem:[%s170 + $0x3c] sm:$0x8] %v2030
      %p2032 = scmp.lt.s32.totalorder %s14, 1
      %s2033 = scalar_select %p2032, %s14, 1
      %s2034 = smul.addr %s2033, 16
      %s2035 = smul.addr %s2034, 4
      %s2036 = scalar_lea.vmem %s3, %s2035
      // Predicated region
      $region33: #{decoder_forward.17} parent=31 // pred_check
        %p2037 = pneg %p100
      $region34: #{decoder_forward.17} parent=31 // pred_check_branch
        %2039 = sbr.rel (%p2037) target = $region36
      $region35: #{decoder_forward.17} parent=31 // pred_region
        _
      $region36: #{decoder_forward.17} parent=31 // pred_fallthru
        _
    $region32: #{decoder_forward.17} parent=5 // pred_fallthru
      _
    %p2040 = scmp.le.s32.totalorder 2, %s9
    // Predicated region
    $region37: #{decoder_forward.17} parent=5 // pred_check
      %p2041 = pneg %p2040
    $region38: #{decoder_forward.17} parent=5 // pred_check_branch
      %2043 = sbr.rel (%p2041) target = $region40
    $region39: #{decoder_forward.17} parent=5 // pred_region
      %s2044 = ssub.s32 %s9, 2
      // Predicated region
      $region41: #{decoder_forward.17} parent=39 // pred_check
        %p2045 = pneg %p106
      $region42: #{decoder_forward.17} parent=39 // pred_check_branch
        %2047 = sbr.rel (%p2045) target = $region44
      $region43: #{decoder_forward.17} parent=39 // pred_region
        %p2048 = scmp.lt.s32.totalorder %s15, 1
        %s2049 = scalar_select %p2048, %s15, 1
        %s2050 = smul.addr %s2049, 16
        %s2051 = smul.addr %s2050, 4
        %s2052 = scalar_lea.vmem %s3, %s2051
      $region44: #{decoder_forward.17} parent=39 // pred_fallthru
        _
    $region40: #{decoder_forward.17} parent=5 // pred_fallthru
      _
  $region6: #{decoder_forward.17} parent=0 // loop_footer
    %s13 = sadd.s32 1, %s9
  $region7: #{decoder_forward.17} parent=0 // loop_footer_branch
    %8 = sbr.rel target = $region3
  $region8: #{decoder_forward.17} parent=0 // loop_exit
    _

</llo_original>
